<compile_context>
chip_gen: v6e
topology: v6e:2x2x1
jax: 0.10.0
libtpu: 0.0.40
codegen_flags: <defaults>
</compile_context>

<pallas_src>
import jax
import jax.numpy as jnp
from jax.experimental import pallas as pl
from jax.experimental.pallas import tpu as pltpu

KSIZE = 5
CONV_CH = 128
HIDDEN = 512


def duel_conv1d_kernel(xcol_ref, w1_ref, b1_ref, w2_ref, b2_ref,
                       wfc1_ref, bfc1_ref, whead_ref, bhead_ref, out_ref):
    f32 = jnp.float32
    bf16 = jnp.bfloat16
    t1, tb, _ = xcol_ref.shape            # conv1 output length, batch tile, K*C
    t2 = t1 - (KSIZE - 1)                 # conv2 output length
    out_dim = out_ref.shape[1]

    b1 = b1_ref[...]                      # (1, 128) f32
    b2 = b2_ref[...]                      # (1, 128) f32

    # ---- conv1: one fused (tb, K*C) @ (K*C, 128) dot per output time step ----
    h1 = [
        jnp.maximum(
            jnp.dot(xcol_ref[t], w1_ref[...], preferred_element_type=f32) + b1,
            0.0).astype(bf16)
        for t in range(t1)
    ]
    # 128-aligned lane concat: (tb, t1*128)
    h1_cat = jnp.concatenate(h1, axis=-1) if t1 > 1 else h1[0]

    # ---- conv2: one fused (tb, 5*128) @ (5*128, 128) dot per output step ----
    h2 = [
        jnp.maximum(
            jnp.dot(h1_cat[:, t * CONV_CH:(t + KSIZE) * CONV_CH], w2_ref[...],
                    preferred_element_type=f32) + b2,
            0.0).astype(bf16)
        for t in range(t2)
    ]
    # flattened conv_out, (time, channel)-major: (tb, t2*128)
    h2_cat = jnp.concatenate(h2, axis=-1) if t2 > 1 else h2[0]

    # ---- fused (value|adv) first FC layer: ONE wide-K dot, MXU-internal acc ----
    y = jnp.maximum(
        jnp.dot(h2_cat, wfc1_ref[...], preferred_element_type=f32) + bfc1_ref[...],
        0.0).astype(bf16)                                          # (tb, 1024)

    # ---- both dueling heads via one block-diagonal dot: col 0 = value ----
    fc2 = jnp.dot(y, whead_ref[...], preferred_element_type=f32) + bhead_ref[...]
    value = fc2[:, :1]                                             # (tb, 1)
    adv = fc2[:, 1:]                                               # (tb, out_dim)

    # ---- dueling combine: value + (adv - mean(adv)) ----
    adv_mean = jnp.sum(adv, axis=-1, keepdims=True) * (1.0 / out_dim)
    out_ref[...] = (value + (adv - adv_mean)).astype(out_ref.dtype)


def _pick_batch_tile(B, batch_tile=None):
    if batch_tile is not None:
        assert B % batch_tile == 0
        assert batch_tile == B or batch_tile % 16 == 0, \
            "batch_tile must be 16-aligned (bf16 sublane tile) or the full batch"
        return batch_tile
    # Single-TC chips (v5e/v6e): the grid is a serial loop, so take the whole
    # batch in one tile (best MXU M fill), capped at 256.
    # TODO(synk): on v7x, passing batch_tile=B//2 (16-aligned) uses both
    # TensorCores via the "parallel" grid axis.
    if B <= 256:
        return B
    for tb in (256, 128, 64, 32, 16):
        if B % tb == 0:
            return tb
    return B


def duel_conv1d_forward(x, params, *, batch_tile=None, out_dtype=jnp.float32):
    (w1, b1, w2, b2, wv1, bv1, wv2, bv2, wa1, ba1, wa2, ba2) = params
    B, C, L = x.shape
    t1 = L - (KSIZE - 1)
    t2 = L - 2 * (KSIZE - 1)
    assert t2 >= 1, "input length too short for two valid k=5 convolutions"
    assert wv1.shape[0] == CONV_CH * t2
    output_dim = wa2.shape[1]
    tb = _pick_batch_tile(B, batch_tile)

    bf16 = jnp.bfloat16

    # -- single preprocessing op: im2col + time-major layout + bf16 cast --
    # x_col[t, b, k*C + c] = x[b, c, t + k]
    slabs = [x[:, :, k:k + t1] for k in range(KSIZE)]              # each (B, C, t1)
    x_col = jnp.transpose(jnp.concatenate(slabs, axis=1), (2, 0, 1)).astype(bf16)

    # -- weight prep (all MXU operands bf16, biases f32) --
    w1col = w1.reshape(KSIZE * C, CONV_CH).astype(bf16)            # (K*C, 128)
    w2col = w2.reshape(KSIZE * CONV_CH, CONV_CH).astype(bf16)      # (K*128, 128)
    wfc1 = jnp.concatenate([wv1, wa1], axis=1).astype(bf16)        # (t2*128, 1024)
    bfc1 = jnp.concatenate([bv1, ba1], axis=1)                     # (1, 1024) f32
    whead = jnp.zeros((2 * HIDDEN, 1 + output_dim), jnp.float32)   # block-diagonal head
    whead = whead.at[:HIDDEN, 0:1].set(wv2)
    whead = whead.at[HIDDEN:, 1:].set(wa2)
    whead = whead.astype(bf16)
    bhead = jnp.concatenate([bv2, ba2], axis=1)                    # (1, 1+out_dim) f32

    weights = (w1col, b1, w2col, b2, wfc1, bfc1, whead, bhead)

    def full(a):
        nd = a.ndim
        return pl.BlockSpec(a.shape, lambda i, nd=nd: (0,) * nd)

    # Explicit scoped-VMEM budget: double-buffered blocks + weights + headroom.
    weight_bytes = sum(a.size * a.dtype.itemsize for a in weights)
    xcol_block_bytes = t1 * tb * (KSIZE * C) * 2
    out_block_bytes = tb * output_dim * jnp.dtype(out_dtype).itemsize
    need = 2 * (weight_bytes + xcol_block_bytes + out_block_bytes) + (8 << 20)
    vmem_limit = int(max(need, 32 << 20))

    out = pl.pallas_call(
        duel_conv1d_kernel,
        out_shape=jax.ShapeDtypeStruct((B, output_dim), out_dtype),
        grid=(B // tb,),
        in_specs=[
            pl.BlockSpec((t1, tb, KSIZE * C), lambda i: (0, i, 0)),  # im2col'd x
            full(w1col), full(b1),
            full(w2col), full(b2),
            full(wfc1), full(bfc1),
            full(whead), full(bhead),
        ],
        out_specs=pl.BlockSpec((tb, output_dim), lambda i: (i, 0)),
        compiler_params=pltpu.CompilerParams(
            dimension_semantics=("parallel",),
            vmem_limit_bytes=vmem_limit),
    )(x_col, *weights)
    return out


def init_params(key, input_shape, output_dim):
    """PyTorch-default-style U(-1/sqrt(fan_in), 1/sqrt(fan_in)) init, f32."""
    C, L = input_shape
    conv_out_dim = CONV_CH * (L - 2 * (KSIZE - 1))

    def uniform(k, shape, fan_in):
        bound = 1.0 / (fan_in ** 0.5)
        return jax.random.uniform(k, shape, jnp.float32, -bound, bound)

    keys = jax.random.split(key, 12)
    w1 = uniform(keys[0], (KSIZE, C, CONV_CH), C * KSIZE)          # (k, in, out)
    b1 = uniform(keys[1], (1, CONV_CH), C * KSIZE)
    w2 = uniform(keys[2], (KSIZE, CONV_CH, CONV_CH), CONV_CH * KSIZE)
    b2 = uniform(keys[3], (1, CONV_CH), CONV_CH * KSIZE)
    wv1 = uniform(keys[4], (conv_out_dim, HIDDEN), conv_out_dim)
    bv1 = uniform(keys[5], (1, HIDDEN), conv_out_dim)
    wv2 = uniform(keys[6], (HIDDEN, 1), HIDDEN)
    bv2 = uniform(keys[7], (1, 1), HIDDEN)
    wa1 = uniform(keys[8], (conv_out_dim, HIDDEN), conv_out_dim)
    ba1 = uniform(keys[9], (1, HIDDEN), conv_out_dim)
    wa2 = uniform(keys[10], (HIDDEN, output_dim), HIDDEN)
    ba2 = uniform(keys[11], (1, output_dim), HIDDEN)
    return (w1, b1, w2, b2, wv1, bv1, wv2, bv2, wa1, ba1, wa2, ba2)


def duel_conv1d_reference(x, params):
    """Pure-JAX f32 reference with the same forward semantics as the torch module."""
    (w1, b1, w2, b2, wv1, bv1, wv2, bv2, wa1, ba1, wa2, ba2) = params
    B, C, L = x.shape
    t1 = L - (KSIZE - 1)
    t2 = L - 2 * (KSIZE - 1)
    xt = jnp.transpose(x, (0, 2, 1)).astype(jnp.float32)           # (B, L, C)

    h1 = jnp.zeros((B, t1, CONV_CH), jnp.float32)
    for k in range(KSIZE):
        h1 = h1 + jnp.einsum("blc,co->blo", xt[:, k:k + t1, :], w1[k])
    h1 = jnp.maximum(h1 + b1, 0.0)

    h2 = jnp.zeros((B, t2, CONV_CH), jnp.float32)
    for k in range(KSIZE):
        h2 = h2 + jnp.einsum("blc,co->blo", h1[:, k:k + t2, :], w2[k])
    h2 = jnp.maximum(h2 + b2, 0.0)

    conv_out = h2.reshape(B, t2 * CONV_CH)                         # (time, channel)-major
    hv = jnp.maximum(conv_out @ wv1 + bv1, 0.0)
    value = hv @ wv2 + bv2
    ha = jnp.maximum(conv_out @ wa1 + ba1, 0.0)
    adv = ha @ wa2 + ba2
    return value + (adv - adv.mean(axis=1, keepdims=True))


if __name__ == "__main__":
    B = 32
    input_shape = (4, 16)       # (channels, length) -> conv_out_dim = 128 * 8 = 1024
    output_dim = 8

    key = jax.random.PRNGKey(0)
    kx, kp = jax.random.split(key)
    x = jax.random.normal(kx, (B,) + input_shape, jnp.float32)
    params = init_params(kp, input_shape, output_dim)

    # Round test data to bf16-representable values so the f32 reference isolates
    # only the kernel's internal bf16 rounding of intermediates.
    x = x.astype(jnp.bfloat16).astype(jnp.float32)
    params = tuple(p.astype(jnp.bfloat16).astype(jnp.float32) for p in params)

    out = jax.block_until_ready(duel_conv1d_forward(x, params))    # tb=32 -> 1 grid step
    ref = duel_conv1d_reference(x, params)

    assert out.shape == (B, output_dim)
    max_err = float(jnp.max(jnp.abs(out - ref)))
    assert jnp.allclose(out, ref, atol=2e-2, rtol=2e-2), \
        f"mismatch vs reference (max |diff| = {max_err})"
    print("KERNEL_OK")
</pallas_src>

<mosaic_0001>
module attributes {stable_mosaic.version = 11 : i64} {
  func.func @duel_conv1d_kernel(%arg0: i32, %arg1: memref<12x32x20xbf16, #tpu.memory_space<vmem>>, %arg2: memref<20x128xbf16, #tpu.memory_space<vmem>>, %arg3: memref<1x128xf32, #tpu.memory_space<vmem>>, %arg4: memref<640x128xbf16, #tpu.memory_space<vmem>>, %arg5: memref<1x128xf32, #tpu.memory_space<vmem>>, %arg6: memref<1024x1024xbf16, #tpu.memory_space<vmem>>, %arg7: memref<1x1024xf32, #tpu.memory_space<vmem>>, %arg8: memref<1024x9xbf16, #tpu.memory_space<vmem>>, %arg9: memref<1x9xf32, #tpu.memory_space<vmem>>, %arg10: memref<32x8xf32, #tpu.memory_space<vmem>>) attributes {dimension_semantics = [#tpu.dimension_semantics<parallel>], iteration_bounds = array<i64: 1>, scalar_prefetch = 0 : i64, scratch_operands = 0 : i64, tpu.core_type = #tpu.core_type<tc>, window_params = [{transform_indices = @transform_0, window_bounds = array<i64: 12, 32, 20>}, {pipeline_mode = #tpu.pipeline_mode<synchronous>, transform_indices = @transform_1, window_bounds = array<i64: 20, 128>}, {pipeline_mode = #tpu.pipeline_mode<synchronous>, transform_indices = @transform_2, window_bounds = array<i64: 1, 128>}, {pipeline_mode = #tpu.pipeline_mode<synchronous>, transform_indices = @transform_3, window_bounds = array<i64: 640, 128>}, {pipeline_mode = #tpu.pipeline_mode<synchronous>, transform_indices = @transform_4, window_bounds = array<i64: 1, 128>}, {pipeline_mode = #tpu.pipeline_mode<synchronous>, transform_indices = @transform_5, window_bounds = array<i64: 1024, 1024>}, {pipeline_mode = #tpu.pipeline_mode<synchronous>, transform_indices = @transform_6, window_bounds = array<i64: 1, 1024>}, {pipeline_mode = #tpu.pipeline_mode<synchronous>, transform_indices = @transform_7, window_bounds = array<i64: 1024, 9>}, {pipeline_mode = #tpu.pipeline_mode<synchronous>, transform_indices = @transform_8, window_bounds = array<i64: 1, 9>}, {transform_indices = @transform_9, window_bounds = array<i64: 32, 8>}]} {
    %c0 = arith.constant 0 : index
    %c0_0 = arith.constant 0 : index
    %0 = vector.load %arg3[%c0, %c0_0] : memref<1x128xf32, #tpu.memory_space<vmem>>, vector<1x128xf32>
    %c0_1 = arith.constant 0 : index
    %c0_2 = arith.constant 0 : index
    %1 = vector.load %arg5[%c0_1, %c0_2] : memref<1x128xf32, #tpu.memory_space<vmem>>, vector<1x128xf32>
    %c0_3 = arith.constant 0 : index
    %c0_4 = arith.constant 0 : index
    %c0_5 = arith.constant 0 : index
    %2 = vector.load %arg1[%c0_3, %c0_4, %c0_5] : memref<12x32x20xbf16, #tpu.memory_space<vmem>>, vector<1x32x20xbf16>
    %3 = vector.shape_cast %2 : vector<1x32x20xbf16> to vector<32x20xbf16>
    %c0_6 = arith.constant 0 : index
    %c0_7 = arith.constant 0 : index
    %4 = vector.load %arg2[%c0_6, %c0_7] : memref<20x128xbf16, #tpu.memory_space<vmem>>, vector<20x128xbf16>
    %cst = arith.constant dense<0.000000e+00> : vector<32x128xf32>
    %5 = tpu.matmul %3, %4, %cst {dimension_numbers = #tpu.dot_dimension_numbers<[1], [0], [0], [1], [0, 0, 1, 1], [], []>} : vector<32x20xbf16>, vector<20x128xbf16>, vector<32x128xf32> -> vector<32x128xf32>
    %6 = vector.broadcast %0 : vector<1x128xf32> to vector<32x128xf32>
    %7 = arith.addf %5, %6 : vector<32x128xf32>
    %cst_8 = arith.constant 0.000000e+00 : f32
    %8 = vector.broadcast %cst_8 : f32 to vector<32x128xf32>
    %9 = arith.maximumf %7, %8 : vector<32x128xf32>
    %10 = arith.truncf %9 : vector<32x128xf32> to vector<32x128xbf16>
    %c1 = arith.constant 1 : index
    %c0_9 = arith.constant 0 : index
    %c0_10 = arith.constant 0 : index
    %11 = vector.load %arg1[%c1, %c0_9, %c0_10] : memref<12x32x20xbf16, #tpu.memory_space<vmem>>, vector<1x32x20xbf16>
    %12 = vector.shape_cast %11 : vector<1x32x20xbf16> to vector<32x20xbf16>
    %c0_11 = arith.constant 0 : index
    %c0_12 = arith.constant 0 : index
    %13 = vector.load %arg2[%c0_11, %c0_12] : memref<20x128xbf16, #tpu.memory_space<vmem>>, vector<20x128xbf16>
    %cst_13 = arith.constant dense<0.000000e+00> : vector<32x128xf32>
    %14 = tpu.matmul %12, %13, %cst_13 {dimension_numbers = #tpu.dot_dimension_numbers<[1], [0], [0], [1], [0, 0, 1, 1], [], []>} : vector<32x20xbf16>, vector<20x128xbf16>, vector<32x128xf32> -> vector<32x128xf32>
    %15 = vector.broadcast %0 : vector<1x128xf32> to vector<32x128xf32>
    %16 = arith.addf %14, %15 : vector<32x128xf32>
    %cst_14 = arith.constant 0.000000e+00 : f32
    %17 = vector.broadcast %cst_14 : f32 to vector<32x128xf32>
    %18 = arith.maximumf %16, %17 : vector<32x128xf32>
    %19 = arith.truncf %18 : vector<32x128xf32> to vector<32x128xbf16>
    %c2 = arith.constant 2 : index
    %c0_15 = arith.constant 0 : index
    %c0_16 = arith.constant 0 : index
    %20 = vector.load %arg1[%c2, %c0_15, %c0_16] : memref<12x32x20xbf16, #tpu.memory_space<vmem>>, vector<1x32x20xbf16>
    %21 = vector.shape_cast %20 : vector<1x32x20xbf16> to vector<32x20xbf16>
    %c0_17 = arith.constant 0 : index
    %c0_18 = arith.constant 0 : index
    %22 = vector.load %arg2[%c0_17, %c0_18] : memref<20x128xbf16, #tpu.memory_space<vmem>>, vector<20x128xbf16>
    %cst_19 = arith.constant dense<0.000000e+00> : vector<32x128xf32>
    %23 = tpu.matmul %21, %22, %cst_19 {dimension_numbers = #tpu.dot_dimension_numbers<[1], [0], [0], [1], [0, 0, 1, 1], [], []>} : vector<32x20xbf16>, vector<20x128xbf16>, vector<32x128xf32> -> vector<32x128xf32>
    %24 = vector.broadcast %0 : vector<1x128xf32> to vector<32x128xf32>
    %25 = arith.addf %23, %24 : vector<32x128xf32>
    %cst_20 = arith.constant 0.000000e+00 : f32
    %26 = vector.broadcast %cst_20 : f32 to vector<32x128xf32>
    %27 = arith.maximumf %25, %26 : vector<32x128xf32>
    %28 = arith.truncf %27 : vector<32x128xf32> to vector<32x128xbf16>
    %c3 = arith.constant 3 : index
    %c0_21 = arith.constant 0 : index
    %c0_22 = arith.constant 0 : index
    %29 = vector.load %arg1[%c3, %c0_21, %c0_22] : memref<12x32x20xbf16, #tpu.memory_space<vmem>>, vector<1x32x20xbf16>
    %30 = vector.shape_cast %29 : vector<1x32x20xbf16> to vector<32x20xbf16>
    %c0_23 = arith.constant 0 : index
    %c0_24 = arith.constant 0 : index
    %31 = vector.load %arg2[%c0_23, %c0_24] : memref<20x128xbf16, #tpu.memory_space<vmem>>, vector<20x128xbf16>
    %cst_25 = arith.constant dense<0.000000e+00> : vector<32x128xf32>
    %32 = tpu.matmul %30, %31, %cst_25 {dimension_numbers = #tpu.dot_dimension_numbers<[1], [0], [0], [1], [0, 0, 1, 1], [], []>} : vector<32x20xbf16>, vector<20x128xbf16>, vector<32x128xf32> -> vector<32x128xf32>
    %33 = vector.broadcast %0 : vector<1x128xf32> to vector<32x128xf32>
    %34 = arith.addf %32, %33 : vector<32x128xf32>
    %cst_26 = arith.constant 0.000000e+00 : f32
    %35 = vector.broadcast %cst_26 : f32 to vector<32x128xf32>
    %36 = arith.maximumf %34, %35 : vector<32x128xf32>
    %37 = arith.truncf %36 : vector<32x128xf32> to vector<32x128xbf16>
    %c4 = arith.constant 4 : index
    %c0_27 = arith.constant 0 : index
    %c0_28 = arith.constant 0 : index
    %38 = vector.load %arg1[%c4, %c0_27, %c0_28] : memref<12x32x20xbf16, #tpu.memory_space<vmem>>, vector<1x32x20xbf16>
    %39 = vector.shape_cast %38 : vector<1x32x20xbf16> to vector<32x20xbf16>
    %c0_29 = arith.constant 0 : index
    %c0_30 = arith.constant 0 : index
    %40 = vector.load %arg2[%c0_29, %c0_30] : memref<20x128xbf16, #tpu.memory_space<vmem>>, vector<20x128xbf16>
    %cst_31 = arith.constant dense<0.000000e+00> : vector<32x128xf32>
    %41 = tpu.matmul %39, %40, %cst_31 {dimension_numbers = #tpu.dot_dimension_numbers<[1], [0], [0], [1], [0, 0, 1, 1], [], []>} : vector<32x20xbf16>, vector<20x128xbf16>, vector<32x128xf32> -> vector<32x128xf32>
    %42 = vector.broadcast %0 : vector<1x128xf32> to vector<32x128xf32>
    %43 = arith.addf %41, %42 : vector<32x128xf32>
    %cst_32 = arith.constant 0.000000e+00 : f32
    %44 = vector.broadcast %cst_32 : f32 to vector<32x128xf32>
    %45 = arith.maximumf %43, %44 : vector<32x128xf32>
    %46 = arith.truncf %45 : vector<32x128xf32> to vector<32x128xbf16>
    %c5 = arith.constant 5 : index
    %c0_33 = arith.constant 0 : index
    %c0_34 = arith.constant 0 : index
    %47 = vector.load %arg1[%c5, %c0_33, %c0_34] : memref<12x32x20xbf16, #tpu.memory_space<vmem>>, vector<1x32x20xbf16>
    %48 = vector.shape_cast %47 : vector<1x32x20xbf16> to vector<32x20xbf16>
    %c0_35 = arith.constant 0 : index
    %c0_36 = arith.constant 0 : index
    %49 = vector.load %arg2[%c0_35, %c0_36] : memref<20x128xbf16, #tpu.memory_space<vmem>>, vector<20x128xbf16>
    %cst_37 = arith.constant dense<0.000000e+00> : vector<32x128xf32>
    %50 = tpu.matmul %48, %49, %cst_37 {dimension_numbers = #tpu.dot_dimension_numbers<[1], [0], [0], [1], [0, 0, 1, 1], [], []>} : vector<32x20xbf16>, vector<20x128xbf16>, vector<32x128xf32> -> vector<32x128xf32>
    %51 = vector.broadcast %0 : vector<1x128xf32> to vector<32x128xf32>
    %52 = arith.addf %50, %51 : vector<32x128xf32>
    %cst_38 = arith.constant 0.000000e+00 : f32
    %53 = vector.broadcast %cst_38 : f32 to vector<32x128xf32>
    %54 = arith.maximumf %52, %53 : vector<32x128xf32>
    %55 = arith.truncf %54 : vector<32x128xf32> to vector<32x128xbf16>
    %c6 = arith.constant 6 : index
    %c0_39 = arith.constant 0 : index
    %c0_40 = arith.constant 0 : index
    %56 = vector.load %arg1[%c6, %c0_39, %c0_40] : memref<12x32x20xbf16, #tpu.memory_space<vmem>>, vector<1x32x20xbf16>
    %57 = vector.shape_cast %56 : vector<1x32x20xbf16> to vector<32x20xbf16>
    %c0_41 = arith.constant 0 : index
    %c0_42 = arith.constant 0 : index
    %58 = vector.load %arg2[%c0_41, %c0_42] : memref<20x128xbf16, #tpu.memory_space<vmem>>, vector<20x128xbf16>
    %cst_43 = arith.constant dense<0.000000e+00> : vector<32x128xf32>
    %59 = tpu.matmul %57, %58, %cst_43 {dimension_numbers = #tpu.dot_dimension_numbers<[1], [0], [0], [1], [0, 0, 1, 1], [], []>} : vector<32x20xbf16>, vector<20x128xbf16>, vector<32x128xf32> -> vector<32x128xf32>
    %60 = vector.broadcast %0 : vector<1x128xf32> to vector<32x128xf32>
    %61 = arith.addf %59, %60 : vector<32x128xf32>
    %cst_44 = arith.constant 0.000000e+00 : f32
    %62 = vector.broadcast %cst_44 : f32 to vector<32x128xf32>
    %63 = arith.maximumf %61, %62 : vector<32x128xf32>
    %64 = arith.truncf %63 : vector<32x128xf32> to vector<32x128xbf16>
    %c7 = arith.constant 7 : index
    %c0_45 = arith.constant 0 : index
    %c0_46 = arith.constant 0 : index
    %65 = vector.load %arg1[%c7, %c0_45, %c0_46] : memref<12x32x20xbf16, #tpu.memory_space<vmem>>, vector<1x32x20xbf16>
    %66 = vector.shape_cast %65 : vector<1x32x20xbf16> to vector<32x20xbf16>
    %c0_47 = arith.constant 0 : index
    %c0_48 = arith.constant 0 : index
    %67 = vector.load %arg2[%c0_47, %c0_48] : memref<20x128xbf16, #tpu.memory_space<vmem>>, vector<20x128xbf16>
    %cst_49 = arith.constant dense<0.000000e+00> : vector<32x128xf32>
    %68 = tpu.matmul %66, %67, %cst_49 {dimension_numbers = #tpu.dot_dimension_numbers<[1], [0], [0], [1], [0, 0, 1, 1], [], []>} : vector<32x20xbf16>, vector<20x128xbf16>, vector<32x128xf32> -> vector<32x128xf32>
    %69 = vector.broadcast %0 : vector<1x128xf32> to vector<32x128xf32>
    %70 = arith.addf %68, %69 : vector<32x128xf32>
    %cst_50 = arith.constant 0.000000e+00 : f32
    %71 = vector.broadcast %cst_50 : f32 to vector<32x128xf32>
    %72 = arith.maximumf %70, %71 : vector<32x128xf32>
    %73 = arith.truncf %72 : vector<32x128xf32> to vector<32x128xbf16>
    %c8 = arith.constant 8 : index
    %c0_51 = arith.constant 0 : index
    %c0_52 = arith.constant 0 : index
    %74 = vector.load %arg1[%c8, %c0_51, %c0_52] : memref<12x32x20xbf16, #tpu.memory_space<vmem>>, vector<1x32x20xbf16>
    %75 = vector.shape_cast %74 : vector<1x32x20xbf16> to vector<32x20xbf16>
    %c0_53 = arith.constant 0 : index
    %c0_54 = arith.constant 0 : index
    %76 = vector.load %arg2[%c0_53, %c0_54] : memref<20x128xbf16, #tpu.memory_space<vmem>>, vector<20x128xbf16>
    %cst_55 = arith.constant dense<0.000000e+00> : vector<32x128xf32>
    %77 = tpu.matmul %75, %76, %cst_55 {dimension_numbers = #tpu.dot_dimension_numbers<[1], [0], [0], [1], [0, 0, 1, 1], [], []>} : vector<32x20xbf16>, vector<20x128xbf16>, vector<32x128xf32> -> vector<32x128xf32>
    %78 = vector.broadcast %0 : vector<1x128xf32> to vector<32x128xf32>
    %79 = arith.addf %77, %78 : vector<32x128xf32>
    %cst_56 = arith.constant 0.000000e+00 : f32
    %80 = vector.broadcast %cst_56 : f32 to vector<32x128xf32>
    %81 = arith.maximumf %79, %80 : vector<32x128xf32>
    %82 = arith.truncf %81 : vector<32x128xf32> to vector<32x128xbf16>
    %c9 = arith.constant 9 : index
    %c0_57 = arith.constant 0 : index
    %c0_58 = arith.constant 0 : index
    %83 = vector.load %arg1[%c9, %c0_57, %c0_58] : memref<12x32x20xbf16, #tpu.memory_space<vmem>>, vector<1x32x20xbf16>
    %84 = vector.shape_cast %83 : vector<1x32x20xbf16> to vector<32x20xbf16>
    %c0_59 = arith.constant 0 : index
    %c0_60 = arith.constant 0 : index
    %85 = vector.load %arg2[%c0_59, %c0_60] : memref<20x128xbf16, #tpu.memory_space<vmem>>, vector<20x128xbf16>
    %cst_61 = arith.constant dense<0.000000e+00> : vector<32x128xf32>
    %86 = tpu.matmul %84, %85, %cst_61 {dimension_numbers = #tpu.dot_dimension_numbers<[1], [0], [0], [1], [0, 0, 1, 1], [], []>} : vector<32x20xbf16>, vector<20x128xbf16>, vector<32x128xf32> -> vector<32x128xf32>
    %87 = vector.broadcast %0 : vector<1x128xf32> to vector<32x128xf32>
    %88 = arith.addf %86, %87 : vector<32x128xf32>
    %cst_62 = arith.constant 0.000000e+00 : f32
    %89 = vector.broadcast %cst_62 : f32 to vector<32x128xf32>
    %90 = arith.maximumf %88, %89 : vector<32x128xf32>
    %91 = arith.truncf %90 : vector<32x128xf32> to vector<32x128xbf16>
    %c10 = arith.constant 10 : index
    %c0_63 = arith.constant 0 : index
    %c0_64 = arith.constant 0 : index
    %92 = vector.load %arg1[%c10, %c0_63, %c0_64] : memref<12x32x20xbf16, #tpu.memory_space<vmem>>, vector<1x32x20xbf16>
    %93 = vector.shape_cast %92 : vector<1x32x20xbf16> to vector<32x20xbf16>
    %c0_65 = arith.constant 0 : index
    %c0_66 = arith.constant 0 : index
    %94 = vector.load %arg2[%c0_65, %c0_66] : memref<20x128xbf16, #tpu.memory_space<vmem>>, vector<20x128xbf16>
    %cst_67 = arith.constant dense<0.000000e+00> : vector<32x128xf32>
    %95 = tpu.matmul %93, %94, %cst_67 {dimension_numbers = #tpu.dot_dimension_numbers<[1], [0], [0], [1], [0, 0, 1, 1], [], []>} : vector<32x20xbf16>, vector<20x128xbf16>, vector<32x128xf32> -> vector<32x128xf32>
    %96 = vector.broadcast %0 : vector<1x128xf32> to vector<32x128xf32>
    %97 = arith.addf %95, %96 : vector<32x128xf32>
    %cst_68 = arith.constant 0.000000e+00 : f32
    %98 = vector.broadcast %cst_68 : f32 to vector<32x128xf32>
    %99 = arith.maximumf %97, %98 : vector<32x128xf32>
    %100 = arith.truncf %99 : vector<32x128xf32> to vector<32x128xbf16>
    %c11 = arith.constant 11 : index
    %c0_69 = arith.constant 0 : index
    %c0_70 = arith.constant 0 : index
    %101 = vector.load %arg1[%c11, %c0_69, %c0_70] : memref<12x32x20xbf16, #tpu.memory_space<vmem>>, vector<1x32x20xbf16>
    %102 = vector.shape_cast %101 : vector<1x32x20xbf16> to vector<32x20xbf16>
    %c0_71 = arith.constant 0 : index
    %c0_72 = arith.constant 0 : index
    %103 = vector.load %arg2[%c0_71, %c0_72] : memref<20x128xbf16, #tpu.memory_space<vmem>>, vector<20x128xbf16>
    %cst_73 = arith.constant dense<0.000000e+00> : vector<32x128xf32>
    %104 = tpu.matmul %102, %103, %cst_73 {dimension_numbers = #tpu.dot_dimension_numbers<[1], [0], [0], [1], [0, 0, 1, 1], [], []>} : vector<32x20xbf16>, vector<20x128xbf16>, vector<32x128xf32> -> vector<32x128xf32>
    %105 = vector.broadcast %0 : vector<1x128xf32> to vector<32x128xf32>
    %106 = arith.addf %104, %105 : vector<32x128xf32>
    %cst_74 = arith.constant 0.000000e+00 : f32
    %107 = vector.broadcast %cst_74 : f32 to vector<32x128xf32>
    %108 = arith.maximumf %106, %107 : vector<32x128xf32>
    %109 = arith.truncf %108 : vector<32x128xf32> to vector<32x128xbf16>
    %110 = tpu.concatenate %10, %19, %28, %37, %46, %55, %64, %73, %82, %91, %100, %109 in 1 : vector<32x128xbf16>, vector<32x128xbf16>, vector<32x128xbf16>, vector<32x128xbf16>, vector<32x128xbf16>, vector<32x128xbf16>, vector<32x128xbf16>, vector<32x128xbf16>, vector<32x128xbf16>, vector<32x128xbf16>, vector<32x128xbf16>, vector<32x128xbf16> -> vector<32x1536xbf16>
    %111 = vector.extract_strided_slice %110 {offsets = [0, 0], sizes = [32, 640], strides = [1, 1]} : vector<32x1536xbf16> to vector<32x640xbf16>
    %c0_75 = arith.constant 0 : index
    %c0_76 = arith.constant 0 : index
    %112 = vector.load %arg4[%c0_75, %c0_76] : memref<640x128xbf16, #tpu.memory_space<vmem>>, vector<640x128xbf16>
    %cst_77 = arith.constant dense<0.000000e+00> : vector<32x128xf32>
    %113 = tpu.matmul %111, %112, %cst_77 {dimension_numbers = #tpu.dot_dimension_numbers<[1], [0], [0], [1], [0, 0, 1, 1], [], []>} : vector<32x640xbf16>, vector<640x128xbf16>, vector<32x128xf32> -> vector<32x128xf32>
    %114 = vector.broadcast %1 : vector<1x128xf32> to vector<32x128xf32>
    %115 = arith.addf %113, %114 : vector<32x128xf32>
    %cst_78 = arith.constant 0.000000e+00 : f32
    %116 = vector.broadcast %cst_78 : f32 to vector<32x128xf32>
    %117 = arith.maximumf %115, %116 : vector<32x128xf32>
    %118 = arith.truncf %117 : vector<32x128xf32> to vector<32x128xbf16>
    %119 = vector.extract_strided_slice %110 {offsets = [0, 128], sizes = [32, 640], strides = [1, 1]} : vector<32x1536xbf16> to vector<32x640xbf16>
    %c0_79 = arith.constant 0 : index
    %c0_80 = arith.constant 0 : index
    %120 = vector.load %arg4[%c0_79, %c0_80] : memref<640x128xbf16, #tpu.memory_space<vmem>>, vector<640x128xbf16>
    %cst_81 = arith.constant dense<0.000000e+00> : vector<32x128xf32>
    %121 = tpu.matmul %119, %120, %cst_81 {dimension_numbers = #tpu.dot_dimension_numbers<[1], [0], [0], [1], [0, 0, 1, 1], [], []>} : vector<32x640xbf16>, vector<640x128xbf16>, vector<32x128xf32> -> vector<32x128xf32>
    %122 = vector.broadcast %1 : vector<1x128xf32> to vector<32x128xf32>
    %123 = arith.addf %121, %122 : vector<32x128xf32>
    %cst_82 = arith.constant 0.000000e+00 : f32
    %124 = vector.broadcast %cst_82 : f32 to vector<32x128xf32>
    %125 = arith.maximumf %123, %124 : vector<32x128xf32>
    %126 = arith.truncf %125 : vector<32x128xf32> to vector<32x128xbf16>
    %127 = vector.extract_strided_slice %110 {offsets = [0, 256], sizes = [32, 640], strides = [1, 1]} : vector<32x1536xbf16> to vector<32x640xbf16>
    %c0_83 = arith.constant 0 : index
    %c0_84 = arith.constant 0 : index
    %128 = vector.load %arg4[%c0_83, %c0_84] : memref<640x128xbf16, #tpu.memory_space<vmem>>, vector<640x128xbf16>
    %cst_85 = arith.constant dense<0.000000e+00> : vector<32x128xf32>
    %129 = tpu.matmul %127, %128, %cst_85 {dimension_numbers = #tpu.dot_dimension_numbers<[1], [0], [0], [1], [0, 0, 1, 1], [], []>} : vector<32x640xbf16>, vector<640x128xbf16>, vector<32x128xf32> -> vector<32x128xf32>
    %130 = vector.broadcast %1 : vector<1x128xf32> to vector<32x128xf32>
    %131 = arith.addf %129, %130 : vector<32x128xf32>
    %cst_86 = arith.constant 0.000000e+00 : f32
    %132 = vector.broadcast %cst_86 : f32 to vector<32x128xf32>
    %133 = arith.maximumf %131, %132 : vector<32x128xf32>
    %134 = arith.truncf %133 : vector<32x128xf32> to vector<32x128xbf16>
    %135 = vector.extract_strided_slice %110 {offsets = [0, 384], sizes = [32, 640], strides = [1, 1]} : vector<32x1536xbf16> to vector<32x640xbf16>
    %c0_87 = arith.constant 0 : index
    %c0_88 = arith.constant 0 : index
    %136 = vector.load %arg4[%c0_87, %c0_88] : memref<640x128xbf16, #tpu.memory_space<vmem>>, vector<640x128xbf16>
    %cst_89 = arith.constant dense<0.000000e+00> : vector<32x128xf32>
    %137 = tpu.matmul %135, %136, %cst_89 {dimension_numbers = #tpu.dot_dimension_numbers<[1], [0], [0], [1], [0, 0, 1, 1], [], []>} : vector<32x640xbf16>, vector<640x128xbf16>, vector<32x128xf32> -> vector<32x128xf32>
    %138 = vector.broadcast %1 : vector<1x128xf32> to vector<32x128xf32>
    %139 = arith.addf %137, %138 : vector<32x128xf32>
    %cst_90 = arith.constant 0.000000e+00 : f32
    %140 = vector.broadcast %cst_90 : f32 to vector<32x128xf32>
    %141 = arith.maximumf %139, %140 : vector<32x128xf32>
    %142 = arith.truncf %141 : vector<32x128xf32> to vector<32x128xbf16>
    %143 = vector.extract_strided_slice %110 {offsets = [0, 512], sizes = [32, 640], strides = [1, 1]} : vector<32x1536xbf16> to vector<32x640xbf16>
    %c0_91 = arith.constant 0 : index
    %c0_92 = arith.constant 0 : index
    %144 = vector.load %arg4[%c0_91, %c0_92] : memref<640x128xbf16, #tpu.memory_space<vmem>>, vector<640x128xbf16>
    %cst_93 = arith.constant dense<0.000000e+00> : vector<32x128xf32>
    %145 = tpu.matmul %143, %144, %cst_93 {dimension_numbers = #tpu.dot_dimension_numbers<[1], [0], [0], [1], [0, 0, 1, 1], [], []>} : vector<32x640xbf16>, vector<640x128xbf16>, vector<32x128xf32> -> vector<32x128xf32>
    %146 = vector.broadcast %1 : vector<1x128xf32> to vector<32x128xf32>
    %147 = arith.addf %145, %146 : vector<32x128xf32>
    %cst_94 = arith.constant 0.000000e+00 : f32
    %148 = vector.broadcast %cst_94 : f32 to vector<32x128xf32>
    %149 = arith.maximumf %147, %148 : vector<32x128xf32>
    %150 = arith.truncf %149 : vector<32x128xf32> to vector<32x128xbf16>
    %151 = vector.extract_strided_slice %110 {offsets = [0, 640], sizes = [32, 640], strides = [1, 1]} : vector<32x1536xbf16> to vector<32x640xbf16>
    %c0_95 = arith.constant 0 : index
    %c0_96 = arith.constant 0 : index
    %152 = vector.load %arg4[%c0_95, %c0_96] : memref<640x128xbf16, #tpu.memory_space<vmem>>, vector<640x128xbf16>
    %cst_97 = arith.constant dense<0.000000e+00> : vector<32x128xf32>
    %153 = tpu.matmul %151, %152, %cst_97 {dimension_numbers = #tpu.dot_dimension_numbers<[1], [0], [0], [1], [0, 0, 1, 1], [], []>} : vector<32x640xbf16>, vector<640x128xbf16>, vector<32x128xf32> -> vector<32x128xf32>
    %154 = vector.broadcast %1 : vector<1x128xf32> to vector<32x128xf32>
    %155 = arith.addf %153, %154 : vector<32x128xf32>
    %cst_98 = arith.constant 0.000000e+00 : f32
    %156 = vector.broadcast %cst_98 : f32 to vector<32x128xf32>
    %157 = arith.maximumf %155, %156 : vector<32x128xf32>
    %158 = arith.truncf %157 : vector<32x128xf32> to vector<32x128xbf16>
    %159 = vector.extract_strided_slice %110 {offsets = [0, 768], sizes = [32, 640], strides = [1, 1]} : vector<32x1536xbf16> to vector<32x640xbf16>
    %c0_99 = arith.constant 0 : index
    %c0_100 = arith.constant 0 : index
    %160 = vector.load %arg4[%c0_99, %c0_100] : memref<640x128xbf16, #tpu.memory_space<vmem>>, vector<640x128xbf16>
    %cst_101 = arith.constant dense<0.000000e+00> : vector<32x128xf32>
    %161 = tpu.matmul %159, %160, %cst_101 {dimension_numbers = #tpu.dot_dimension_numbers<[1], [0], [0], [1], [0, 0, 1, 1], [], []>} : vector<32x640xbf16>, vector<640x128xbf16>, vector<32x128xf32> -> vector<32x128xf32>
    %162 = vector.broadcast %1 : vector<1x128xf32> to vector<32x128xf32>
    %163 = arith.addf %161, %162 : vector<32x128xf32>
    %cst_102 = arith.constant 0.000000e+00 : f32
    %164 = vector.broadcast %cst_102 : f32 to vector<32x128xf32>
    %165 = arith.maximumf %163, %164 : vector<32x128xf32>
    %166 = arith.truncf %165 : vector<32x128xf32> to vector<32x128xbf16>
    %167 = vector.extract_strided_slice %110 {offsets = [0, 896], sizes = [32, 640], strides = [1, 1]} : vector<32x1536xbf16> to vector<32x640xbf16>
    %c0_103 = arith.constant 0 : index
    %c0_104 = arith.constant 0 : index
    %168 = vector.load %arg4[%c0_103, %c0_104] : memref<640x128xbf16, #tpu.memory_space<vmem>>, vector<640x128xbf16>
    %cst_105 = arith.constant dense<0.000000e+00> : vector<32x128xf32>
    %169 = tpu.matmul %167, %168, %cst_105 {dimension_numbers = #tpu.dot_dimension_numbers<[1], [0], [0], [1], [0, 0, 1, 1], [], []>} : vector<32x640xbf16>, vector<640x128xbf16>, vector<32x128xf32> -> vector<32x128xf32>
    %170 = vector.broadcast %1 : vector<1x128xf32> to vector<32x128xf32>
    %171 = arith.addf %169, %170 : vector<32x128xf32>
    %cst_106 = arith.constant 0.000000e+00 : f32
    %172 = vector.broadcast %cst_106 : f32 to vector<32x128xf32>
    %173 = arith.maximumf %171, %172 : vector<32x128xf32>
    %174 = arith.truncf %173 : vector<32x128xf32> to vector<32x128xbf16>
    %175 = tpu.concatenate %118, %126, %134, %142, %150, %158, %166, %174 in 1 : vector<32x128xbf16>, vector<32x128xbf16>, vector<32x128xbf16>, vector<32x128xbf16>, vector<32x128xbf16>, vector<32x128xbf16>, vector<32x128xbf16>, vector<32x128xbf16> -> vector<32x1024xbf16>
    %c0_107 = arith.constant 0 : index
    %c0_108 = arith.constant 0 : index
    %176 = vector.load %arg6[%c0_107, %c0_108] : memref<1024x1024xbf16, #tpu.memory_space<vmem>>, vector<1024x1024xbf16>
    %cst_109 = arith.constant dense<0.000000e+00> : vector<32x1024xf32>
    %177 = tpu.matmul %175, %176, %cst_109 {dimension_numbers = #tpu.dot_dimension_numbers<[1], [0], [0], [1], [0, 0, 1, 1], [], []>} : vector<32x1024xbf16>, vector<1024x1024xbf16>, vector<32x1024xf32> -> vector<32x1024xf32>
    %c0_110 = arith.constant 0 : index
    %c0_111 = arith.constant 0 : index
    %178 = vector.load %arg7[%c0_110, %c0_111] : memref<1x1024xf32, #tpu.memory_space<vmem>>, vector<1x1024xf32>
    %179 = vector.broadcast %178 : vector<1x1024xf32> to vector<32x1024xf32>
    %180 = arith.addf %177, %179 : vector<32x1024xf32>
    %cst_112 = arith.constant 0.000000e+00 : f32
    %181 = vector.broadcast %cst_112 : f32 to vector<32x1024xf32>
    %182 = arith.maximumf %180, %181 : vector<32x1024xf32>
    %183 = arith.truncf %182 : vector<32x1024xf32> to vector<32x1024xbf16>
    %c0_113 = arith.constant 0 : index
    %c0_114 = arith.constant 0 : index
    %184 = vector.load %arg8[%c0_113, %c0_114] : memref<1024x9xbf16, #tpu.memory_space<vmem>>, vector<1024x9xbf16>
    %cst_115 = arith.constant dense<0.000000e+00> : vector<32x9xf32>
    %185 = tpu.matmul %183, %184, %cst_115 {dimension_numbers = #tpu.dot_dimension_numbers<[1], [0], [0], [1], [0, 0, 1, 1], [], []>} : vector<32x1024xbf16>, vector<1024x9xbf16>, vector<32x9xf32> -> vector<32x9xf32>
    %c0_116 = arith.constant 0 : index
    %c0_117 = arith.constant 0 : index
    %186 = vector.load %arg9[%c0_116, %c0_117] : memref<1x9xf32, #tpu.memory_space<vmem>>, vector<1x9xf32>
    %187 = vector.broadcast %186 : vector<1x9xf32> to vector<32x9xf32>
    %188 = arith.addf %185, %187 : vector<32x9xf32>
    %189 = vector.extract_strided_slice %188 {offsets = [0, 0], sizes = [32, 1], strides = [1, 1]} : vector<32x9xf32> to vector<32x1xf32>
    %190 = vector.extract_strided_slice %188 {offsets = [0, 1], sizes = [32, 8], strides = [1, 1]} : vector<32x9xf32> to vector<32x8xf32>
    %cst_118 = arith.constant dense<0.000000e+00> : vector<32xf32>
    %191 = vector.multi_reduction <add>, %190, %cst_118 [1] : vector<32x8xf32> to vector<32xf32>
    %192 = vector.shape_cast %191 : vector<32xf32> to vector<32x1xf32>
    %cst_119 = arith.constant 1.250000e-01 : f32
    %193 = vector.broadcast %cst_119 : f32 to vector<32x1xf32>
    %194 = arith.mulf %192, %193 : vector<32x1xf32>
    %195 = vector.broadcast %194 : vector<32x1xf32> to vector<32x8xf32>
    %196 = arith.subf %190, %195 : vector<32x8xf32>
    %197 = vector.broadcast %189 : vector<32x1xf32> to vector<32x8xf32>
    %198 = arith.addf %197, %196 : vector<32x8xf32>
    %c0_120 = arith.constant 0 : index
    %c0_121 = arith.constant 0 : index
    %199 = vector.load %arg10[%c0_120, %c0_121] : memref<32x8xf32, #tpu.memory_space<vmem>>, vector<32x8xf32>
    tpu.vector_store %arg10[%c0_120, %c0_121], %198 {strides = array<i32>} : memref<32x8xf32, #tpu.memory_space<vmem>>, vector<32x8xf32>,
    return
  }
  func.func @transform_0(%arg0: i32) -> (i32, i32, i32) {
    %c0_i32 = arith.constant 0 : i32
    %c0_i32_0 = arith.constant 0 : i32
    %c0_i32_1 = arith.constant 0 : i32
    return %c0_i32, %arg0, %c0_i32_0 : i32, i32, i32
  }
  func.func @transform_1(%arg0: i32) -> (i32, i32) {
    %c0_i32 = arith.constant 0 : i32
    %c0_i32_0 = arith.constant 0 : i32
    %c0_i32_1 = arith.constant 0 : i32
    return %c0_i32, %c0_i32_0 : i32, i32
  }
  func.func @transform_2(%arg0: i32) -> (i32, i32) {
    %c0_i32 = arith.constant 0 : i32
    %c0_i32_0 = arith.constant 0 : i32
    %c0_i32_1 = arith.constant 0 : i32
    return %c0_i32, %c0_i32_0 : i32, i32
  }
  func.func @transform_3(%arg0: i32) -> (i32, i32) {
    %c0_i32 = arith.constant 0 : i32
    %c0_i32_0 = arith.constant 0 : i32
    %c0_i32_1 = arith.constant 0 : i32
    return %c0_i32, %c0_i32_0 : i32, i32
  }
  func.func @transform_4(%arg0: i32) -> (i32, i32) {
    %c0_i32 = arith.constant 0 : i32
    %c0_i32_0 = arith.constant 0 : i32
    %c0_i32_1 = arith.constant 0 : i32
    return %c0_i32, %c0_i32_0 : i32, i32
  }
  func.func @transform_5(%arg0: i32) -> (i32, i32) {
    %c0_i32 = arith.constant 0 : i32
    %c0_i32_0 = arith.constant 0 : i32
    %c0_i32_1 = arith.constant 0 : i32
    return %c0_i32, %c0_i32_0 : i32, i32
  }
  func.func @transform_6(%arg0: i32) -> (i32, i32) {
    %c0_i32 = arith.constant 0 : i32
    %c0_i32_0 = arith.constant 0 : i32
    %c0_i32_1 = arith.constant 0 : i32
    return %c0_i32, %c0_i32_0 : i32, i32
  }
  func.func @transform_7(%arg0: i32) -> (i32, i32) {
    %c0_i32 = arith.constant 0 : i32
    %c0_i32_0 = arith.constant 0 : i32
    %c0_i32_1 = arith.constant 0 : i32
    return %c0_i32, %c0_i32_0 : i32, i32
  }
  func.func @transform_8(%arg0: i32) -> (i32, i32) {
    %c0_i32 = arith.constant 0 : i32
    %c0_i32_0 = arith.constant 0 : i32
    %c0_i32_1 = arith.constant 0 : i32
    return %c0_i32, %c0_i32_0 : i32, i32
  }
  func.func @transform_9(%arg0: i32) -> (i32, i32) {
    %c0_i32 = arith.constant 0 : i32
    %c0_i32_0 = arith.constant 0 : i32
    return %arg0, %c0_i32 : i32, i32
  }
}

</mosaic_0001>

<llo_original>
// kernel: tpu_custom_call.1
$region0: #{tpu_custom_call.1}
  #allocation0 [shape = 'u32[]', space=smem, size = 0x4, offset = 0x4, fixed_abs, tag = 'smem constant byte address 0x4 - core index']
  #allocation1 [shape = 'u32[144,128]{1,0:T(1,128)}', space=vmem, size = 0x12000, scoped, tag = 'internal scratch']
  %s0 = inlined_call_operand.vmem [shape: bf16[12,32,20], index: 0, kind: input, shape index: {}]
  %s1 = inlined_call_operand.hbm [shape: bf16[20,128], index: 1, kind: input, shape index: {}]
  %s2 = inlined_call_operand.hbm [shape: f32[1,128], index: 2, kind: input, shape index: {}]
  %s3 = inlined_call_operand.hbm [shape: bf16[640,128], index: 3, kind: input, shape index: {}]
  %s4 = inlined_call_operand.hbm [shape: f32[1,128], index: 4, kind: input, shape index: {}]
  %s5 = inlined_call_operand.hbm [shape: bf16[1024,1024], index: 5, kind: input, shape index: {}]
  %s6 = inlined_call_operand.hbm [shape: f32[1,1024], index: 6, kind: input, shape index: {}]
  %s7 = inlined_call_operand.vmem [shape: bf16[1024,9], index: 7, kind: input, shape index: {}]
  %s8 = inlined_call_operand.hbm [shape: f32[1,9], index: 8, kind: input, shape index: {}]
  %s9 = inlined_call_operand.vmem [shape: f32[32,8], index: 9, kind: output, shape index: {}]
  %s10 = sld [smem:[#allocation0]]
  $region74: #{tpu_custom_call.1} parent=0
    _
  %s12 = ssub.s32 1, %s10
  %s13 = scalar_select 0, %s12, %s10
  $region1: #{tpu_custom_call.1} parent=0
    #allocation2 [shape = 'u8[6144]{0}', space=vmem, size = 0x1800, scoped, tag = 'input window, operand 1, single buffered']
    #allocation3 [shape = 's32[1]{0}', space=sflag, size = 0x4, scoped, tag = 'scoped memory for tpu_custom_call.1']
    #allocation4 [shape = 'u8[512]{0}', space=vmem, size = 0x400, scoped, tag = 'input window, operand 2, single buffered']
    #allocation5 [shape = 's32[1]{0}', space=sflag, size = 0x4, scoped, tag = 'scoped memory for tpu_custom_call.1']
    #allocation6 [shape = 'u8[163840]{0}', space=vmem, size = 0x28000, scoped, tag = 'input window, operand 3, single buffered']
    #allocation7 [shape = 'u8[512]{0}', space=vmem, size = 0x400, scoped, tag = 'input window, operand 4, single buffered']
    #allocation8 [shape = 's32[1]{0}', space=sflag, size = 0x4, scoped, tag = 'scoped memory for tpu_custom_call.1']
    #allocation9 [shape = 'u8[2097152]{0}', space=vmem, size = 0x200000, scoped, tag = 'input window, operand 5, single buffered']
    #allocation10 [shape = 'u8[4096]{0}', space=vmem, size = 0x1000, scoped, tag = 'input window, operand 6, single buffered']
    #allocation11 [shape = 's32[1]{0}', space=sflag, size = 0x4, scoped, tag = 'scoped memory for tpu_custom_call.1']
    #allocation12 [shape = 'u8[512]{0}', space=vmem, size = 0x400, scoped, tag = 'input window, operand 8, single buffered']
    %14 = vsyncpa [#allocation3], 0
    %15 = vsyncpa [#allocation5], 0
    %16 = vsyncpa [#allocation8], 0
    %17 = vsyncpa [#allocation11], 0
    // Predicated region
    $region2: #{tpu_custom_call.1} parent=1 // pred_check
      _
    $region3: #{tpu_custom_call.1} parent=1 // pred_check_branch
      %19 = sbr.rel (0) target = $region5
    $region4: #{tpu_custom_call.1} parent=1 // pred_region
      _
    $region5: #{tpu_custom_call.1} parent=1 // pred_fallthru
      _
    // Predicated region
    $region6: #{tpu_custom_call.1} parent=1 // pred_check
      _
    $region7: #{tpu_custom_call.1} parent=1 // pred_check_branch
      %21 = sbr.rel (0) target = $region9
    $region8: #{tpu_custom_call.1} parent=1 // pred_region
      %s23 = ssub.s32 192, 192
      %24 = vsyncadd [#allocation3], %s23
      %s25 = sshll.u32 [#allocation2], 4
      %s26 = int_to_ptr.vmem [resolvable:$true] %s25
      %31 = dma.hbm_to_vmem [thread:$0]  %s1, 192, %s26, [#allocation3], 64, 64, 4
    $region9: #{tpu_custom_call.1} parent=1 // pred_fallthru
      _
    // Predicated region
    $region10: #{tpu_custom_call.1} parent=1 // pred_check
      _
    $region11: #{tpu_custom_call.1} parent=1 // pred_check_branch
      %33 = sbr.rel (0) target = $region13
    $region12: #{tpu_custom_call.1} parent=1 // pred_region
      %s35 = ssub.s32 16, 16
      %36 = vsyncadd [#allocation5], %s35
      %s38 = sshll.u32 [#allocation4], 4
      %s39 = int_to_ptr.vmem [resolvable:$true] %s38
      %41 = dma.hbm_to_vmem [thread:$0]  %s2, 16, %s39, [#allocation5]
    $region13: #{tpu_custom_call.1} parent=1 // pred_fallthru
      _
    // Predicated region
    $region14: #{tpu_custom_call.1} parent=1 // pred_check
      _
    $region15: #{tpu_custom_call.1} parent=1 // pred_check_branch
      %43 = sbr.rel (0) target = $region17
    $region16: #{tpu_custom_call.1} parent=1 // pred_region
      %s45 = ssub.s32 5120, 5120
      %46 = vsyncadd [#allocation5], %s45
      %s47 = sshll.u32 [#allocation6], 4
      %s48 = int_to_ptr.vmem [resolvable:$true] %s47
      %53 = dma.hbm_to_vmem [thread:$0]  %s3, 5120, %s48, [#allocation5], 64, 64, 4
    $region17: #{tpu_custom_call.1} parent=1 // pred_fallthru
      _
    // Predicated region
    $region18: #{tpu_custom_call.1} parent=1 // pred_check
      _
    $region19: #{tpu_custom_call.1} parent=1 // pred_check_branch
      %55 = sbr.rel (0) target = $region21
    $region20: #{tpu_custom_call.1} parent=1 // pred_region
      %s57 = ssub.s32 16, 16
      %58 = vsyncadd [#allocation8], %s57
      %s60 = sshll.u32 [#allocation7], 4
      %s61 = int_to_ptr.vmem [resolvable:$true] %s60
      %63 = dma.hbm_to_vmem [thread:$0]  %s4, 16, %s61, [#allocation8]
    $region21: #{tpu_custom_call.1} parent=1 // pred_fallthru
      _
    // Predicated region
    $region22: #{tpu_custom_call.1} parent=1 // pred_check
      _
    $region23: #{tpu_custom_call.1} parent=1 // pred_check_branch
      %65 = sbr.rel (0) target = $region25
    $region24: #{tpu_custom_call.1} parent=1 // pred_region
      %s67 = ssub.s32 65536, 65536
      %68 = vsyncadd [#allocation8], %s67
      %s69 = sshll.u32 [#allocation9], 4
      %s70 = int_to_ptr.vmem [resolvable:$true] %s69
      %75 = dma.hbm_to_vmem [thread:$0]  %s5, 65536, %s70, [#allocation8], 512, 512, 32
    $region25: #{tpu_custom_call.1} parent=1 // pred_fallthru
      _
    // Predicated region
    $region26: #{tpu_custom_call.1} parent=1 // pred_check
      _
    $region27: #{tpu_custom_call.1} parent=1 // pred_check_branch
      %77 = sbr.rel (0) target = $region29
    $region28: #{tpu_custom_call.1} parent=1 // pred_region
      %s79 = ssub.s32 128, 128
      %80 = vsyncadd [#allocation11], %s79
      %s82 = sshll.u32 [#allocation10], 4
      %s83 = int_to_ptr.vmem [resolvable:$true] %s82
      %85 = dma.hbm_to_vmem [thread:$0]  %s6, 128, %s83, [#allocation11]
    $region29: #{tpu_custom_call.1} parent=1 // pred_fallthru
      _
    // Predicated region
    $region30: #{tpu_custom_call.1} parent=1 // pred_check
      _
    $region31: #{tpu_custom_call.1} parent=1 // pred_check_branch
      %87 = sbr.rel (0) target = $region33
    $region32: #{tpu_custom_call.1} parent=1 // pred_region
      _
    $region33: #{tpu_custom_call.1} parent=1 // pred_fallthru
      _
    // Predicated region
    $region34: #{tpu_custom_call.1} parent=1 // pred_check
      _
    $region35: #{tpu_custom_call.1} parent=1 // pred_check_branch
      %89 = sbr.rel (0) target = $region37
    $region36: #{tpu_custom_call.1} parent=1 // pred_region
      %s91 = ssub.s32 16, 16
      %92 = vsyncadd [#allocation11], %s91
      %s94 = sshll.u32 [#allocation12], 4
      %s95 = int_to_ptr.vmem [resolvable:$true] %s94
      %97 = dma.hbm_to_vmem [thread:$0]  %s8, 16, %s95, [#allocation11]
    $region37: #{tpu_custom_call.1} parent=1 // pred_fallthru
      _
    // Predicated region
    $region38: #{tpu_custom_call.1} parent=1 // pred_check
      _
    $region39: #{tpu_custom_call.1} parent=1 // pred_check_branch
      %99 = sbr.rel (0) target = $region41
    $region40: #{tpu_custom_call.1} parent=1 // pred_region
      %100 = dma.done [#allocation3], 192
    $region41: #{tpu_custom_call.1} parent=1 // pred_fallthru
      _
    // Predicated region
    $region42: #{tpu_custom_call.1} parent=1 // pred_check
      _
    $region43: #{tpu_custom_call.1} parent=1 // pred_check_branch
      %102 = sbr.rel (0) target = $region45
    $region44: #{tpu_custom_call.1} parent=1 // pred_region
      %103 = dma.done [#allocation5], 16
    $region45: #{tpu_custom_call.1} parent=1 // pred_fallthru
      _
    // Predicated region
    $region46: #{tpu_custom_call.1} parent=1 // pred_check
      _
    $region47: #{tpu_custom_call.1} parent=1 // pred_check_branch
      %105 = sbr.rel (0) target = $region49
    $region48: #{tpu_custom_call.1} parent=1 // pred_region
      %106 = dma.done [#allocation5], 5120
    $region49: #{tpu_custom_call.1} parent=1 // pred_fallthru
      _
    // Predicated region
    $region50: #{tpu_custom_call.1} parent=1 // pred_check
      _
    $region51: #{tpu_custom_call.1} parent=1 // pred_check_branch
      %108 = sbr.rel (0) target = $region53
    $region52: #{tpu_custom_call.1} parent=1 // pred_region
      %109 = dma.done [#allocation8], 16
    $region53: #{tpu_custom_call.1} parent=1 // pred_fallthru
      _
    // Predicated region
    $region54: #{tpu_custom_call.1} parent=1 // pred_check
      _
    $region55: #{tpu_custom_call.1} parent=1 // pred_check_branch
      %111 = sbr.rel (0) target = $region57
    $region56: #{tpu_custom_call.1} parent=1 // pred_region
      %112 = dma.done [#allocation8], 65536
    $region57: #{tpu_custom_call.1} parent=1 // pred_fallthru
      _
    // Predicated region
    $region58: #{tpu_custom_call.1} parent=1 // pred_check
      _
    $region59: #{tpu_custom_call.1} parent=1 // pred_check_branch
      %114 = sbr.rel (0) target = $region61
    $region60: #{tpu_custom_call.1} parent=1 // pred_region
      %115 = dma.done [#allocation11], 128
    $region61: #{tpu_custom_call.1} parent=1 // pred_fallthru
      _
    // Predicated region
    $region62: #{tpu_custom_call.1} parent=1 // pred_check
      _
    $region63: #{tpu_custom_call.1} parent=1 // pred_check_branch
      %117 = sbr.rel (0) target = $region65
    $region64: #{tpu_custom_call.1} parent=1 // pred_region
      %118 = dma.done [#allocation11], 16
    $region65: #{tpu_custom_call.1} parent=1 // pred_fallthru
      _
    %v120 = vld [vmem:[#allocation4] sm:$0x1]
    %v121 = vld [vmem:[#allocation7] sm:$0x1]
    %v122 = vld [vmem:[%s0] sm:$0xf]
    %v123 = vld [vmem:[%s0 + $0x4] sm:$0xf]
    %v124 = vld [vmem:[%s0 + $0x8] sm:$0xf]
    %v125 = vld [vmem:[%s0 + $0xc] sm:$0xf]
    %v126 = vld [vmem:[#allocation2] sm:$0xf]
    %v127 = vld [vmem:[#allocation2 + $0x4] sm:$0xf]
    %v128 = vld [vmem:[#allocation2 + $0x8] sm:$0x3]
    %v130 = vlaneseq
    %v131 = vshrl.u32 %v130, 7
    %v132 = vsub.s32 0, %v131
    %v133 = vrot.slane %v120, %v132
    %v139 = vunpack.c.l.b16 %v122
    %v140 = vunpack.c.l.b16 %v123
    %v141 = vunpack.c.l.b16 %v124
    %v142 = vunpack.c.l.b16 %v125
    %v143 = vpack.c.b16 %v140, %v139
    %v144 = vpack.c.b16 %v142, %v141
    %v148 = vunpack.c.l.b16 %v126
    %v149 = vunpack.c.l.b16 %v127
    %v150 = vunpack.c.l.b16 %v128
    %v151 = vpack.c.b16 %v149, %v148
    %v152 = vpack.c.b16 %v150, %v150
    %vm154 = vcmask 162816
    %v156 = vsel %vm154, %v143, 0
    %v159 = vsel %vm154, %v144, 0
    %vm161 = vcmask 1041408
    %v163 = vsel %vm161, %v152, 0
    %165 = vmatprep.subr.bf16.mxu0 0
    %166 = vmatpush1.bf16.msra.mxu0 0
    %167 = vmatprep.subr.bf16.mxu0 0
    %168 = vmatpush1.bf16.msra.mxu0 0
    %169 = vmatprep.subr.bf16.mxu0 0
    %170 = vmatpush1.bf16.msra.mxu0 0
    %171 = vmatprep.subr.bf16.mxu0 0
    %172 = vmatpush1.bf16.msra.mxu0 0
    %173 = vmatprep.subr.bf16.mxu0 0
    %174 = vmatpush1.bf16.msra.mxu0 0
    %175 = vmatprep.subr.bf16.mxu0 0
    %176 = vmatpush1.bf16.msra.mxu0 0
    %177 = vmatprep.subr.bf16.mxu0 0
    %178 = vmatpush1.bf16.msra.mxu0 %v163
    %179 = vmatprep.subr.bf16.mxu0 0
    %180 = vmatpush1.bf16.msra.mxu0 %v151
    %181 = vmatprep.subr.bf16.mxu0 0
    %182 = vmatpush2.bf16.msra.mxu0 0
    %183 = vmatprep.subr.bf16.mxu0 0
    %184 = vmatpush2.bf16.msra.mxu0 0
    %185 = vmatprep.subr.bf16.mxu0 0
    %186 = vmatpush2.bf16.msra.mxu0 0
    %187 = vmatprep.subr.bf16.mxu0 0
    %188 = vmatpush2.bf16.msra.mxu0 0
    %189 = vmatprep.subr.bf16.mxu0 0
    %190 = vmatpush2.bf16.msra.mxu0 0
    %191 = vmatprep.subr.bf16.mxu0 0
    %192 = vmatpush2.bf16.msra.mxu0 0
    %193 = vmatprep.subr.bf16.mxu0 0
    %194 = vmatpush2.bf16.msra.mxu0 0
    %195 = vmatprep.subr.bf16.mxu0 0
    %196 = vmatpush2.bf16.msra.mxu0 0
    %197 = vmatprep.mubr.bf16.mxu0 0
    %198 = vmatmul.mubr.bf16.gmra.mxu0 %v156
    %v199 = vpop.f32.mrf.mxu0
    %v200 = vadd.f32 %v133, %v199
    %v201 = vpop.f32.mrf.mxu0
    %v202 = vpop.f32.mrf.mxu0
    %v203 = vadd.f32 %v133, %v202
    %v204 = vpop.f32.mrf.mxu0
    %205 = vmatprep.mubr.bf16.mxu0 0
    %206 = vmatmul.mubr.bf16.gmra.mxu0 %v159
    %v207 = vpop.f32.mrf.mxu0
    %v208 = vadd.f32 %v133, %v207
    %v209 = vpop.f32.mrf.mxu0
    %v210 = vpop.f32.mrf.mxu0
    %v211 = vadd.f32 %v133, %v210
    %v212 = vpop.f32.mrf.mxu0
    %213 = vdwg.mxu0
    %v214 = vmax.f32 %v200, 0.0
    %v215 = vmax.f32 %v203, 0.0
    %v216 = vmax.f32 %v208, 0.0
    %v217 = vmax.f32 %v211, 0.0
    %v218 = vpack.c.bf16 %v215, %v214
    %v219 = vpack.c.bf16 %v217, %v216
    %s220 = scalar_lea.vmem %s0, 16
    %v221 = vld [vmem:[%s220] sm:$0xf]
    %v222 = vld [vmem:[%s220 + $0x4] sm:$0xf]
    %v223 = vld [vmem:[%s220 + $0x8] sm:$0xf]
    %v224 = vld [vmem:[%s220 + $0xc] sm:$0xf]
    %v229 = vunpack.c.l.b16 %v221
    %v230 = vunpack.c.l.b16 %v222
    %v231 = vunpack.c.l.b16 %v223
    %v232 = vunpack.c.l.b16 %v224
    %v233 = vpack.c.b16 %v230, %v229
    %v234 = vpack.c.b16 %v232, %v231
    %v236 = vsel %vm154, %v233, 0
    %v239 = vsel %vm154, %v234, 0
    %241 = vmatprep.subr.bf16.mxu0 0
    %242 = vmatpush1.bf16.msra.mxu0 0
    %243 = vmatprep.subr.bf16.mxu0 0
    %244 = vmatpush1.bf16.msra.mxu0 0
    %245 = vmatprep.subr.bf16.mxu0 0
    %246 = vmatpush1.bf16.msra.mxu0 0
    %247 = vmatprep.subr.bf16.mxu0 0
    %248 = vmatpush1.bf16.msra.mxu0 0
    %249 = vmatprep.subr.bf16.mxu0 0
    %250 = vmatpush1.bf16.msra.mxu0 0
    %251 = vmatprep.subr.bf16.mxu0 0
    %252 = vmatpush1.bf16.msra.mxu0 0
    %253 = vmatprep.subr.bf16.mxu0 0
    %254 = vmatpush1.bf16.msra.mxu0 %v163
    %255 = vmatprep.subr.bf16.mxu0 0
    %256 = vmatpush1.bf16.msra.mxu0 %v151
    %257 = vmatprep.subr.bf16.mxu0 0
    %258 = vmatpush2.bf16.msra.mxu0 0
    %259 = vmatprep.subr.bf16.mxu0 0
    %260 = vmatpush2.bf16.msra.mxu0 0
    %261 = vmatprep.subr.bf16.mxu0 0
    %262 = vmatpush2.bf16.msra.mxu0 0
    %263 = vmatprep.subr.bf16.mxu0 0
    %264 = vmatpush2.bf16.msra.mxu0 0
    %265 = vmatprep.subr.bf16.mxu0 0
    %266 = vmatpush2.bf16.msra.mxu0 0
    %267 = vmatprep.subr.bf16.mxu0 0
    %268 = vmatpush2.bf16.msra.mxu0 0
    %269 = vmatprep.subr.bf16.mxu0 0
    %270 = vmatpush2.bf16.msra.mxu0 0
    %271 = vmatprep.subr.bf16.mxu0 0
    %272 = vmatpush2.bf16.msra.mxu0 0
    %273 = vmatprep.mubr.bf16.mxu0 0
    %274 = vmatmul.mubr.bf16.gmra.mxu0 %v236
    %v275 = vpop.f32.mrf.mxu0
    %v276 = vadd.f32 %v133, %v275
    %v277 = vpop.f32.mrf.mxu0
    %v278 = vpop.f32.mrf.mxu0
    %v279 = vadd.f32 %v133, %v278
    %v280 = vpop.f32.mrf.mxu0
    %281 = vmatprep.mubr.bf16.mxu0 0
    %282 = vmatmul.mubr.bf16.gmra.mxu0 %v239
    %v283 = vpop.f32.mrf.mxu0
    %v284 = vadd.f32 %v133, %v283
    %v285 = vpop.f32.mrf.mxu0
    %v286 = vpop.f32.mrf.mxu0
    %v287 = vadd.f32 %v133, %v286
    %v288 = vpop.f32.mrf.mxu0
    %289 = vdwg.mxu0
    %v290 = vmax.f32 %v276, 0.0
    %v291 = vmax.f32 %v279, 0.0
    %v292 = vmax.f32 %v284, 0.0
    %v293 = vmax.f32 %v287, 0.0
    %v294 = vpack.c.bf16 %v291, %v290
    %v295 = vpack.c.bf16 %v293, %v292
    %s296 = scalar_lea.vmem %s0, 32
    %v297 = vld [vmem:[%s296] sm:$0xf]
    %v298 = vld [vmem:[%s296 + $0x4] sm:$0xf]
    %v299 = vld [vmem:[%s296 + $0x8] sm:$0xf]
    %v300 = vld [vmem:[%s296 + $0xc] sm:$0xf]
    %v305 = vunpack.c.l.b16 %v297
    %v306 = vunpack.c.l.b16 %v298
    %v307 = vunpack.c.l.b16 %v299
    %v308 = vunpack.c.l.b16 %v300
    %v309 = vpack.c.b16 %v306, %v305
    %v310 = vpack.c.b16 %v308, %v307
    %v312 = vsel %vm154, %v309, 0
    %v315 = vsel %vm154, %v310, 0
    %317 = vmatprep.subr.bf16.mxu0 0
    %318 = vmatpush1.bf16.msra.mxu0 0
    %319 = vmatprep.subr.bf16.mxu0 0
    %320 = vmatpush1.bf16.msra.mxu0 0
    %321 = vmatprep.subr.bf16.mxu0 0
    %322 = vmatpush1.bf16.msra.mxu0 0
    %323 = vmatprep.subr.bf16.mxu0 0
    %324 = vmatpush1.bf16.msra.mxu0 0
    %325 = vmatprep.subr.bf16.mxu0 0
    %326 = vmatpush1.bf16.msra.mxu0 0
    %327 = vmatprep.subr.bf16.mxu0 0
    %328 = vmatpush1.bf16.msra.mxu0 0
    %329 = vmatprep.subr.bf16.mxu0 0
    %330 = vmatpush1.bf16.msra.mxu0 %v163
    %331 = vmatprep.subr.bf16.mxu0 0
    %332 = vmatpush1.bf16.msra.mxu0 %v151
    %333 = vmatprep.subr.bf16.mxu0 0
    %334 = vmatpush2.bf16.msra.mxu0 0
    %335 = vmatprep.subr.bf16.mxu0 0
    %336 = vmatpush2.bf16.msra.mxu0 0
    %337 = vmatprep.subr.bf16.mxu0 0
    %338 = vmatpush2.bf16.msra.mxu0 0
    %339 = vmatprep.subr.bf16.mxu0 0
    %340 = vmatpush2.bf16.msra.mxu0 0
    %341 = vmatprep.subr.bf16.mxu0 0
    %342 = vmatpush2.bf16.msra.mxu0 0
    %343 = vmatprep.subr.bf16.mxu0 0
    %344 = vmatpush2.bf16.msra.mxu0 0
    %345 = vmatprep.subr.bf16.mxu0 0
    %346 = vmatpush2.bf16.msra.mxu0 0
    %347 = vmatprep.subr.bf16.mxu0 0
    %348 = vmatpush2.bf16.msra.mxu0 0
    %349 = vmatprep.mubr.bf16.mxu0 0
    %350 = vmatmul.mubr.bf16.gmra.mxu0 %v312
    %v351 = vpop.f32.mrf.mxu0
    %v352 = vadd.f32 %v133, %v351
    %v353 = vpop.f32.mrf.mxu0
    %v354 = vpop.f32.mrf.mxu0
    %v355 = vadd.f32 %v133, %v354
    %v356 = vpop.f32.mrf.mxu0
    %357 = vmatprep.mubr.bf16.mxu0 0
    %358 = vmatmul.mubr.bf16.gmra.mxu0 %v315
    %v359 = vpop.f32.mrf.mxu0
    %v360 = vadd.f32 %v133, %v359
    %v361 = vpop.f32.mrf.mxu0
    %v362 = vpop.f32.mrf.mxu0
    %v363 = vadd.f32 %v133, %v362
    %v364 = vpop.f32.mrf.mxu0
    %365 = vdwg.mxu0
    %v366 = vmax.f32 %v352, 0.0
    %v367 = vmax.f32 %v355, 0.0
    %v368 = vmax.f32 %v360, 0.0
    %v369 = vmax.f32 %v363, 0.0
    %v370 = vpack.c.bf16 %v367, %v366
    %v371 = vpack.c.bf16 %v369, %v368
    %s372 = scalar_lea.vmem %s0, 48
    %v373 = vld [vmem:[%s372] sm:$0xf]
    %v374 = vld [vmem:[%s372 + $0x4] sm:$0xf]
    %v375 = vld [vmem:[%s372 + $0x8] sm:$0xf]
    %v376 = vld [vmem:[%s372 + $0xc] sm:$0xf]
    %v381 = vunpack.c.l.b16 %v373
    %v382 = vunpack.c.l.b16 %v374
    %v383 = vunpack.c.l.b16 %v375
    %v384 = vunpack.c.l.b16 %v376
    %v385 = vpack.c.b16 %v382, %v381
    %v386 = vpack.c.b16 %v384, %v383
    %v388 = vsel %vm154, %v385, 0
    %v391 = vsel %vm154, %v386, 0
    %393 = vmatprep.subr.bf16.mxu0 0
    %394 = vmatpush1.bf16.msra.mxu0 0
    %395 = vmatprep.subr.bf16.mxu0 0
    %396 = vmatpush1.bf16.msra.mxu0 0
    %397 = vmatprep.subr.bf16.mxu0 0
    %398 = vmatpush1.bf16.msra.mxu0 0
    %399 = vmatprep.subr.bf16.mxu0 0
    %400 = vmatpush1.bf16.msra.mxu0 0
    %401 = vmatprep.subr.bf16.mxu0 0
    %402 = vmatpush1.bf16.msra.mxu0 0
    %403 = vmatprep.subr.bf16.mxu0 0
    %404 = vmatpush1.bf16.msra.mxu0 0
    %405 = vmatprep.subr.bf16.mxu0 0
    %406 = vmatpush1.bf16.msra.mxu0 %v163
    %407 = vmatprep.subr.bf16.mxu0 0
    %408 = vmatpush1.bf16.msra.mxu0 %v151
    %409 = vmatprep.subr.bf16.mxu0 0
    %410 = vmatpush2.bf16.msra.mxu0 0
    %411 = vmatprep.subr.bf16.mxu0 0
    %412 = vmatpush2.bf16.msra.mxu0 0
    %413 = vmatprep.subr.bf16.mxu0 0
    %414 = vmatpush2.bf16.msra.mxu0 0
    %415 = vmatprep.subr.bf16.mxu0 0
    %416 = vmatpush2.bf16.msra.mxu0 0
    %417 = vmatprep.subr.bf16.mxu0 0
    %418 = vmatpush2.bf16.msra.mxu0 0
    %419 = vmatprep.subr.bf16.mxu0 0
    %420 = vmatpush2.bf16.msra.mxu0 0
    %421 = vmatprep.subr.bf16.mxu0 0
    %422 = vmatpush2.bf16.msra.mxu0 0
    %423 = vmatprep.subr.bf16.mxu0 0
    %424 = vmatpush2.bf16.msra.mxu0 0
    %425 = vmatprep.mubr.bf16.mxu0 0
    %426 = vmatmul.mubr.bf16.gmra.mxu0 %v388
    %v427 = vpop.f32.mrf.mxu0
    %v428 = vadd.f32 %v133, %v427
    %v429 = vpop.f32.mrf.mxu0
    %v430 = vpop.f32.mrf.mxu0
    %v431 = vadd.f32 %v133, %v430
    %v432 = vpop.f32.mrf.mxu0
    %433 = vmatprep.mubr.bf16.mxu0 0
    %434 = vmatmul.mubr.bf16.gmra.mxu0 %v391
    %v435 = vpop.f32.mrf.mxu0
    %v436 = vadd.f32 %v133, %v435
    %v437 = vpop.f32.mrf.mxu0
    %v438 = vpop.f32.mrf.mxu0
    %v439 = vadd.f32 %v133, %v438
    %v440 = vpop.f32.mrf.mxu0
    %441 = vdwg.mxu0
    %v442 = vmax.f32 %v428, 0.0
    %v443 = vmax.f32 %v431, 0.0
    %v444 = vmax.f32 %v436, 0.0
    %v445 = vmax.f32 %v439, 0.0
    %v446 = vpack.c.bf16 %v443, %v442
    %v447 = vpack.c.bf16 %v445, %v444
    %s448 = scalar_lea.vmem %s0, 64
    %v449 = vld [vmem:[%s448] sm:$0xf]
    %v450 = vld [vmem:[%s448 + $0x4] sm:$0xf]
    %v451 = vld [vmem:[%s448 + $0x8] sm:$0xf]
    %v452 = vld [vmem:[%s448 + $0xc] sm:$0xf]
    %v457 = vunpack.c.l.b16 %v449
    %v458 = vunpack.c.l.b16 %v450
    %v459 = vunpack.c.l.b16 %v451
    %v460 = vunpack.c.l.b16 %v452
    %v461 = vpack.c.b16 %v458, %v457
    %v462 = vpack.c.b16 %v460, %v459
    %v464 = vsel %vm154, %v461, 0
    %v467 = vsel %vm154, %v462, 0
    %469 = vmatprep.subr.bf16.mxu0 0
    %470 = vmatpush1.bf16.msra.mxu0 0
    %471 = vmatprep.subr.bf16.mxu0 0
    %472 = vmatpush1.bf16.msra.mxu0 0
    %473 = vmatprep.subr.bf16.mxu0 0
    %474 = vmatpush1.bf16.msra.mxu0 0
    %475 = vmatprep.subr.bf16.mxu0 0
    %476 = vmatpush1.bf16.msra.mxu0 0
    %477 = vmatprep.subr.bf16.mxu0 0
    %478 = vmatpush1.bf16.msra.mxu0 0
    %479 = vmatprep.subr.bf16.mxu0 0
    %480 = vmatpush1.bf16.msra.mxu0 0
    %481 = vmatprep.subr.bf16.mxu0 0
    %482 = vmatpush1.bf16.msra.mxu0 %v163
    %483 = vmatprep.subr.bf16.mxu0 0
    %484 = vmatpush1.bf16.msra.mxu0 %v151
    %485 = vmatprep.subr.bf16.mxu0 0
    %486 = vmatpush2.bf16.msra.mxu0 0
    %487 = vmatprep.subr.bf16.mxu0 0
    %488 = vmatpush2.bf16.msra.mxu0 0
    %489 = vmatprep.subr.bf16.mxu0 0
    %490 = vmatpush2.bf16.msra.mxu0 0
    %491 = vmatprep.subr.bf16.mxu0 0
    %492 = vmatpush2.bf16.msra.mxu0 0
    %493 = vmatprep.subr.bf16.mxu0 0
    %494 = vmatpush2.bf16.msra.mxu0 0
    %495 = vmatprep.subr.bf16.mxu0 0
    %496 = vmatpush2.bf16.msra.mxu0 0
    %497 = vmatprep.subr.bf16.mxu0 0
    %498 = vmatpush2.bf16.msra.mxu0 0
    %499 = vmatprep.subr.bf16.mxu0 0
    %500 = vmatpush2.bf16.msra.mxu0 0
    %501 = vmatprep.mubr.bf16.mxu0 0
    %502 = vmatmul.mubr.bf16.gmra.mxu0 %v464
    %v503 = vpop.f32.mrf.mxu0
    %v504 = vadd.f32 %v133, %v503
    %v505 = vpop.f32.mrf.mxu0
    %v506 = vpop.f32.mrf.mxu0
    %v507 = vadd.f32 %v133, %v506
    %v508 = vpop.f32.mrf.mxu0
    %509 = vmatprep.mubr.bf16.mxu0 0
    %510 = vmatmul.mubr.bf16.gmra.mxu0 %v467
    %v511 = vpop.f32.mrf.mxu0
    %v512 = vadd.f32 %v133, %v511
    %v513 = vpop.f32.mrf.mxu0
    %v514 = vpop.f32.mrf.mxu0
    %v515 = vadd.f32 %v133, %v514
    %v516 = vpop.f32.mrf.mxu0
    %517 = vdwg.mxu0
    %v518 = vmax.f32 %v504, 0.0
    %v519 = vmax.f32 %v507, 0.0
    %v520 = vmax.f32 %v512, 0.0
    %v521 = vmax.f32 %v515, 0.0
    %v522 = vpack.c.bf16 %v519, %v518
    %v523 = vpack.c.bf16 %v521, %v520
    %s524 = scalar_lea.vmem %s0, 80
    %v525 = vld [vmem:[%s524] sm:$0xf]
    %v526 = vld [vmem:[%s524 + $0x4] sm:$0xf]
    %v527 = vld [vmem:[%s524 + $0x8] sm:$0xf]
    %v528 = vld [vmem:[%s524 + $0xc] sm:$0xf]
    %v533 = vunpack.c.l.b16 %v525
    %v534 = vunpack.c.l.b16 %v526
    %v535 = vunpack.c.l.b16 %v527
    %v536 = vunpack.c.l.b16 %v528
    %v537 = vpack.c.b16 %v534, %v533
    %v538 = vpack.c.b16 %v536, %v535
    %v540 = vsel %vm154, %v537, 0
    %v543 = vsel %vm154, %v538, 0
    %545 = vmatprep.subr.bf16.mxu0 0
    %546 = vmatpush1.bf16.msra.mxu0 0
    %547 = vmatprep.subr.bf16.mxu0 0
    %548 = vmatpush1.bf16.msra.mxu0 0
    %549 = vmatprep.subr.bf16.mxu0 0
    %550 = vmatpush1.bf16.msra.mxu0 0
    %551 = vmatprep.subr.bf16.mxu0 0
    %552 = vmatpush1.bf16.msra.mxu0 0
    %553 = vmatprep.subr.bf16.mxu0 0
    %554 = vmatpush1.bf16.msra.mxu0 0
    %555 = vmatprep.subr.bf16.mxu0 0
    %556 = vmatpush1.bf16.msra.mxu0 0
    %557 = vmatprep.subr.bf16.mxu0 0
    %558 = vmatpush1.bf16.msra.mxu0 %v163
    %559 = vmatprep.subr.bf16.mxu0 0
    %560 = vmatpush1.bf16.msra.mxu0 %v151
    %561 = vmatprep.subr.bf16.mxu0 0
    %562 = vmatpush2.bf16.msra.mxu0 0
    %563 = vmatprep.subr.bf16.mxu0 0
    %564 = vmatpush2.bf16.msra.mxu0 0
    %565 = vmatprep.subr.bf16.mxu0 0
    %566 = vmatpush2.bf16.msra.mxu0 0
    %567 = vmatprep.subr.bf16.mxu0 0
    %568 = vmatpush2.bf16.msra.mxu0 0
    %569 = vmatprep.subr.bf16.mxu0 0
    %570 = vmatpush2.bf16.msra.mxu0 0
    %571 = vmatprep.subr.bf16.mxu0 0
    %572 = vmatpush2.bf16.msra.mxu0 0
    %573 = vmatprep.subr.bf16.mxu0 0
    %574 = vmatpush2.bf16.msra.mxu0 0
    %575 = vmatprep.subr.bf16.mxu0 0
    %576 = vmatpush2.bf16.msra.mxu0 0
    %577 = vmatprep.mubr.bf16.mxu0 0
    %578 = vmatmul.mubr.bf16.gmra.mxu0 %v540
    %v579 = vpop.f32.mrf.mxu0
    %v580 = vadd.f32 %v133, %v579
    %v581 = vpop.f32.mrf.mxu0
    %v582 = vpop.f32.mrf.mxu0
    %v583 = vadd.f32 %v133, %v582
    %v584 = vpop.f32.mrf.mxu0
    %585 = vmatprep.mubr.bf16.mxu0 0
    %586 = vmatmul.mubr.bf16.gmra.mxu0 %v543
    %v587 = vpop.f32.mrf.mxu0
    %v588 = vadd.f32 %v133, %v587
    %v589 = vpop.f32.mrf.mxu0
    %v590 = vpop.f32.mrf.mxu0
    %v591 = vadd.f32 %v133, %v590
    %v592 = vpop.f32.mrf.mxu0
    %593 = vdwg.mxu0
    %v594 = vmax.f32 %v580, 0.0
    %v595 = vmax.f32 %v583, 0.0
    %v596 = vmax.f32 %v588, 0.0
    %v597 = vmax.f32 %v591, 0.0
    %v598 = vpack.c.bf16 %v595, %v594
    %v599 = vpack.c.bf16 %v597, %v596
    %s600 = scalar_lea.vmem %s0, 96
    %v601 = vld [vmem:[%s600] sm:$0xf]
    %v602 = vld [vmem:[%s600 + $0x4] sm:$0xf]
    %v603 = vld [vmem:[%s600 + $0x8] sm:$0xf]
    %v604 = vld [vmem:[%s600 + $0xc] sm:$0xf]
    %v609 = vunpack.c.l.b16 %v601
    %v610 = vunpack.c.l.b16 %v602
    %v611 = vunpack.c.l.b16 %v603
    %v612 = vunpack.c.l.b16 %v604
    %v613 = vpack.c.b16 %v610, %v609
    %v614 = vpack.c.b16 %v612, %v611
    %v616 = vsel %vm154, %v613, 0
    %v619 = vsel %vm154, %v614, 0
    %621 = vmatprep.subr.bf16.mxu0 0
    %622 = vmatpush1.bf16.msra.mxu0 0
    %623 = vmatprep.subr.bf16.mxu0 0
    %624 = vmatpush1.bf16.msra.mxu0 0
    %625 = vmatprep.subr.bf16.mxu0 0
    %626 = vmatpush1.bf16.msra.mxu0 0
    %627 = vmatprep.subr.bf16.mxu0 0
    %628 = vmatpush1.bf16.msra.mxu0 0
    %629 = vmatprep.subr.bf16.mxu0 0
    %630 = vmatpush1.bf16.msra.mxu0 0
    %631 = vmatprep.subr.bf16.mxu0 0
    %632 = vmatpush1.bf16.msra.mxu0 0
    %633 = vmatprep.subr.bf16.mxu0 0
    %634 = vmatpush1.bf16.msra.mxu0 %v163
    %635 = vmatprep.subr.bf16.mxu0 0
    %636 = vmatpush1.bf16.msra.mxu0 %v151
    %637 = vmatprep.subr.bf16.mxu0 0
    %638 = vmatpush2.bf16.msra.mxu0 0
    %639 = vmatprep.subr.bf16.mxu0 0
    %640 = vmatpush2.bf16.msra.mxu0 0
    %641 = vmatprep.subr.bf16.mxu0 0
    %642 = vmatpush2.bf16.msra.mxu0 0
    %643 = vmatprep.subr.bf16.mxu0 0
    %644 = vmatpush2.bf16.msra.mxu0 0
    %645 = vmatprep.subr.bf16.mxu0 0
    %646 = vmatpush2.bf16.msra.mxu0 0
    %647 = vmatprep.subr.bf16.mxu0 0
    %648 = vmatpush2.bf16.msra.mxu0 0
    %649 = vmatprep.subr.bf16.mxu0 0
    %650 = vmatpush2.bf16.msra.mxu0 0
    %651 = vmatprep.subr.bf16.mxu0 0
    %652 = vmatpush2.bf16.msra.mxu0 0
    %653 = vmatprep.mubr.bf16.mxu0 0
    %654 = vmatmul.mubr.bf16.gmra.mxu0 %v616
    %v655 = vpop.f32.mrf.mxu0
    %v656 = vadd.f32 %v133, %v655
    %v657 = vpop.f32.mrf.mxu0
    %v658 = vpop.f32.mrf.mxu0
    %v659 = vadd.f32 %v133, %v658
    %v660 = vpop.f32.mrf.mxu0
    %661 = vmatprep.mubr.bf16.mxu0 0
    %662 = vmatmul.mubr.bf16.gmra.mxu0 %v619
    %v663 = vpop.f32.mrf.mxu0
    %v664 = vadd.f32 %v133, %v663
    %v665 = vpop.f32.mrf.mxu0
    %v666 = vpop.f32.mrf.mxu0
    %v667 = vadd.f32 %v133, %v666
    %v668 = vpop.f32.mrf.mxu0
    %669 = vdwg.mxu0
    %v670 = vmax.f32 %v656, 0.0
    %v671 = vmax.f32 %v659, 0.0
    %v672 = vmax.f32 %v664, 0.0
    %v673 = vmax.f32 %v667, 0.0
    %v674 = vpack.c.bf16 %v671, %v670
    %v675 = vpack.c.bf16 %v673, %v672
    %s676 = scalar_lea.vmem %s0, 112
    %v677 = vld [vmem:[%s676] sm:$0xf]
    %v678 = vld [vmem:[%s676 + $0x4] sm:$0xf]
    %v679 = vld [vmem:[%s676 + $0x8] sm:$0xf]
    %v680 = vld [vmem:[%s676 + $0xc] sm:$0xf]
    %v685 = vunpack.c.l.b16 %v677
    %v686 = vunpack.c.l.b16 %v678
    %v687 = vunpack.c.l.b16 %v679
    %v688 = vunpack.c.l.b16 %v680
    %v689 = vpack.c.b16 %v686, %v685
    %v690 = vpack.c.b16 %v688, %v687
    %v692 = vsel %vm154, %v689, 0
    %v695 = vsel %vm154, %v690, 0
    %697 = vmatprep.subr.bf16.mxu0 0
    %698 = vmatpush1.bf16.msra.mxu0 0
    %699 = vmatprep.subr.bf16.mxu0 0
    %700 = vmatpush1.bf16.msra.mxu0 0
    %701 = vmatprep.subr.bf16.mxu0 0
    %702 = vmatpush1.bf16.msra.mxu0 0
    %703 = vmatprep.subr.bf16.mxu0 0
    %704 = vmatpush1.bf16.msra.mxu0 0
    %705 = vmatprep.subr.bf16.mxu0 0
    %706 = vmatpush1.bf16.msra.mxu0 0
    %707 = vmatprep.subr.bf16.mxu0 0
    %708 = vmatpush1.bf16.msra.mxu0 0
    %709 = vmatprep.subr.bf16.mxu0 0
    %710 = vmatpush1.bf16.msra.mxu0 %v163
    %711 = vmatprep.subr.bf16.mxu0 0
    %712 = vmatpush1.bf16.msra.mxu0 %v151
    %713 = vmatprep.subr.bf16.mxu0 0
    %714 = vmatpush2.bf16.msra.mxu0 0
    %715 = vmatprep.subr.bf16.mxu0 0
    %716 = vmatpush2.bf16.msra.mxu0 0
    %717 = vmatprep.subr.bf16.mxu0 0
    %718 = vmatpush2.bf16.msra.mxu0 0
    %719 = vmatprep.subr.bf16.mxu0 0
    %720 = vmatpush2.bf16.msra.mxu0 0
    %721 = vmatprep.subr.bf16.mxu0 0
    %722 = vmatpush2.bf16.msra.mxu0 0
    %723 = vmatprep.subr.bf16.mxu0 0
    %724 = vmatpush2.bf16.msra.mxu0 0
    %725 = vmatprep.subr.bf16.mxu0 0
    %726 = vmatpush2.bf16.msra.mxu0 0
    %727 = vmatprep.subr.bf16.mxu0 0
    %728 = vmatpush2.bf16.msra.mxu0 0
    %729 = vmatprep.mubr.bf16.mxu0 0
    %730 = vmatmul.mubr.bf16.gmra.mxu0 %v692
    %v731 = vpop.f32.mrf.mxu0
    %v732 = vadd.f32 %v133, %v731
    %v733 = vpop.f32.mrf.mxu0
    %v734 = vpop.f32.mrf.mxu0
    %v735 = vadd.f32 %v133, %v734
    %v736 = vpop.f32.mrf.mxu0
    %737 = vmatprep.mubr.bf16.mxu0 0
    %738 = vmatmul.mubr.bf16.gmra.mxu0 %v695
    %v739 = vpop.f32.mrf.mxu0
    %v740 = vadd.f32 %v133, %v739
    %v741 = vpop.f32.mrf.mxu0
    %v742 = vpop.f32.mrf.mxu0
    %v743 = vadd.f32 %v133, %v742
    %v744 = vpop.f32.mrf.mxu0
    %745 = vdwg.mxu0
    %v746 = vmax.f32 %v732, 0.0
    %v747 = vmax.f32 %v735, 0.0
    %v748 = vmax.f32 %v740, 0.0
    %v749 = vmax.f32 %v743, 0.0
    %v750 = vpack.c.bf16 %v747, %v746
    %v751 = vpack.c.bf16 %v749, %v748
    %s752 = scalar_lea.vmem %s0, 128
    %v753 = vld [vmem:[%s752] sm:$0xf]
    %v754 = vld [vmem:[%s752 + $0x4] sm:$0xf]
    %v755 = vld [vmem:[%s752 + $0x8] sm:$0xf]
    %v756 = vld [vmem:[%s752 + $0xc] sm:$0xf]
    %v761 = vunpack.c.l.b16 %v753
    %v762 = vunpack.c.l.b16 %v754
    %v763 = vunpack.c.l.b16 %v755
    %v764 = vunpack.c.l.b16 %v756
    %v765 = vpack.c.b16 %v762, %v761
    %v766 = vpack.c.b16 %v764, %v763
    %v768 = vsel %vm154, %v765, 0
    %v771 = vsel %vm154, %v766, 0
    %773 = vmatprep.subr.bf16.mxu0 0
    %774 = vmatpush1.bf16.msra.mxu0 0
    %775 = vmatprep.subr.bf16.mxu0 0
    %776 = vmatpush1.bf16.msra.mxu0 0
    %777 = vmatprep.subr.bf16.mxu0 0
    %778 = vmatpush1.bf16.msra.mxu0 0
    %779 = vmatprep.subr.bf16.mxu0 0
    %780 = vmatpush1.bf16.msra.mxu0 0
    %781 = vmatprep.subr.bf16.mxu0 0
    %782 = vmatpush1.bf16.msra.mxu0 0
    %783 = vmatprep.subr.bf16.mxu0 0
    %784 = vmatpush1.bf16.msra.mxu0 0
    %785 = vmatprep.subr.bf16.mxu0 0
    %786 = vmatpush1.bf16.msra.mxu0 %v163
    %787 = vmatprep.subr.bf16.mxu0 0
    %788 = vmatpush1.bf16.msra.mxu0 %v151
    %789 = vmatprep.subr.bf16.mxu0 0
    %790 = vmatpush2.bf16.msra.mxu0 0
    %791 = vmatprep.subr.bf16.mxu0 0
    %792 = vmatpush2.bf16.msra.mxu0 0
    %793 = vmatprep.subr.bf16.mxu0 0
    %794 = vmatpush2.bf16.msra.mxu0 0
    %795 = vmatprep.subr.bf16.mxu0 0
    %796 = vmatpush2.bf16.msra.mxu0 0
    %797 = vmatprep.subr.bf16.mxu0 0
    %798 = vmatpush2.bf16.msra.mxu0 0
    %799 = vmatprep.subr.bf16.mxu0 0
    %800 = vmatpush2.bf16.msra.mxu0 0
    %801 = vmatprep.subr.bf16.mxu0 0
    %802 = vmatpush2.bf16.msra.mxu0 0
    %803 = vmatprep.subr.bf16.mxu0 0
    %804 = vmatpush2.bf16.msra.mxu0 0
    %805 = vmatprep.mubr.bf16.mxu0 0
    %806 = vmatmul.mubr.bf16.gmra.mxu0 %v768
    %v807 = vpop.f32.mrf.mxu0
    %v808 = vadd.f32 %v133, %v807
    %v809 = vpop.f32.mrf.mxu0
    %v810 = vpop.f32.mrf.mxu0
    %v811 = vadd.f32 %v133, %v810
    %v812 = vpop.f32.mrf.mxu0
    %813 = vmatprep.mubr.bf16.mxu0 0
    %814 = vmatmul.mubr.bf16.gmra.mxu0 %v771
    %v815 = vpop.f32.mrf.mxu0
    %v816 = vadd.f32 %v133, %v815
    %v817 = vpop.f32.mrf.mxu0
    %v818 = vpop.f32.mrf.mxu0
    %v819 = vadd.f32 %v133, %v818
    %v820 = vpop.f32.mrf.mxu0
    %821 = vdwg.mxu0
    %v822 = vmax.f32 %v808, 0.0
    %v823 = vmax.f32 %v811, 0.0
    %v824 = vmax.f32 %v816, 0.0
    %v825 = vmax.f32 %v819, 0.0
    %v826 = vpack.c.bf16 %v823, %v822
    %v827 = vpack.c.bf16 %v825, %v824
    %s828 = scalar_lea.vmem %s0, 144
    %v829 = vld [vmem:[%s828] sm:$0xf]
    %v830 = vld [vmem:[%s828 + $0x4] sm:$0xf]
    %v831 = vld [vmem:[%s828 + $0x8] sm:$0xf]
    %v832 = vld [vmem:[%s828 + $0xc] sm:$0xf]
    %v837 = vunpack.c.l.b16 %v829
    %v838 = vunpack.c.l.b16 %v830
    %v839 = vunpack.c.l.b16 %v831
    %v840 = vunpack.c.l.b16 %v832
    %v841 = vpack.c.b16 %v838, %v837
    %v842 = vpack.c.b16 %v840, %v839
    %v844 = vsel %vm154, %v841, 0
    %v847 = vsel %vm154, %v842, 0
    %849 = vmatprep.subr.bf16.mxu0 0
    %850 = vmatpush1.bf16.msra.mxu0 0
    %851 = vmatprep.subr.bf16.mxu0 0
    %852 = vmatpush1.bf16.msra.mxu0 0
    %853 = vmatprep.subr.bf16.mxu0 0
    %854 = vmatpush1.bf16.msra.mxu0 0
    %855 = vmatprep.subr.bf16.mxu0 0
    %856 = vmatpush1.bf16.msra.mxu0 0
    %857 = vmatprep.subr.bf16.mxu0 0
    %858 = vmatpush1.bf16.msra.mxu0 0
    %859 = vmatprep.subr.bf16.mxu0 0
    %860 = vmatpush1.bf16.msra.mxu0 0
    %861 = vmatprep.subr.bf16.mxu0 0
    %862 = vmatpush1.bf16.msra.mxu0 %v163
    %863 = vmatprep.subr.bf16.mxu0 0
    %864 = vmatpush1.bf16.msra.mxu0 %v151
    %865 = vmatprep.subr.bf16.mxu0 0
    %866 = vmatpush2.bf16.msra.mxu0 0
    %867 = vmatprep.subr.bf16.mxu0 0
    %868 = vmatpush2.bf16.msra.mxu0 0
    %869 = vmatprep.subr.bf16.mxu0 0
    %870 = vmatpush2.bf16.msra.mxu0 0
    %871 = vmatprep.subr.bf16.mxu0 0
    %872 = vmatpush2.bf16.msra.mxu0 0
    %873 = vmatprep.subr.bf16.mxu0 0
    %874 = vmatpush2.bf16.msra.mxu0 0
    %875 = vmatprep.subr.bf16.mxu0 0
    %876 = vmatpush2.bf16.msra.mxu0 0
    %877 = vmatprep.subr.bf16.mxu0 0
    %878 = vmatpush2.bf16.msra.mxu0 0
    %879 = vmatprep.subr.bf16.mxu0 0
    %880 = vmatpush2.bf16.msra.mxu0 0
    %881 = vmatprep.mubr.bf16.mxu0 0
    %882 = vmatmul.mubr.bf16.gmra.mxu0 %v844
    %v883 = vpop.f32.mrf.mxu0
    %v884 = vadd.f32 %v133, %v883
    %v885 = vpop.f32.mrf.mxu0
    %v886 = vpop.f32.mrf.mxu0
    %v887 = vadd.f32 %v133, %v886
    %v888 = vpop.f32.mrf.mxu0
    %889 = vmatprep.mubr.bf16.mxu0 0
    %890 = vmatmul.mubr.bf16.gmra.mxu0 %v847
    %v891 = vpop.f32.mrf.mxu0
    %v892 = vadd.f32 %v133, %v891
    %v893 = vpop.f32.mrf.mxu0
    %v894 = vpop.f32.mrf.mxu0
    %v895 = vadd.f32 %v133, %v894
    %v896 = vpop.f32.mrf.mxu0
    %897 = vdwg.mxu0
    %v898 = vmax.f32 %v884, 0.0
    %v899 = vmax.f32 %v887, 0.0
    %v900 = vmax.f32 %v892, 0.0
    %v901 = vmax.f32 %v895, 0.0
    %v902 = vpack.c.bf16 %v899, %v898
    %v903 = vpack.c.bf16 %v901, %v900
    %s904 = scalar_lea.vmem %s0, 160
    %v905 = vld [vmem:[%s904] sm:$0xf]
    %v906 = vld [vmem:[%s904 + $0x4] sm:$0xf]
    %v907 = vld [vmem:[%s904 + $0x8] sm:$0xf]
    %v908 = vld [vmem:[%s904 + $0xc] sm:$0xf]
    %v913 = vunpack.c.l.b16 %v905
    %v914 = vunpack.c.l.b16 %v906
    %v915 = vunpack.c.l.b16 %v907
    %v916 = vunpack.c.l.b16 %v908
    %v917 = vpack.c.b16 %v914, %v913
    %v918 = vpack.c.b16 %v916, %v915
    %v920 = vsel %vm154, %v917, 0
    %v923 = vsel %vm154, %v918, 0
    %925 = vmatprep.subr.bf16.mxu0 0
    %926 = vmatpush1.bf16.msra.mxu0 0
    %927 = vmatprep.subr.bf16.mxu0 0
    %928 = vmatpush1.bf16.msra.mxu0 0
    %929 = vmatprep.subr.bf16.mxu0 0
    %930 = vmatpush1.bf16.msra.mxu0 0
    %931 = vmatprep.subr.bf16.mxu0 0
    %932 = vmatpush1.bf16.msra.mxu0 0
    %933 = vmatprep.subr.bf16.mxu0 0
    %934 = vmatpush1.bf16.msra.mxu0 0
    %935 = vmatprep.subr.bf16.mxu0 0
    %936 = vmatpush1.bf16.msra.mxu0 0
    %937 = vmatprep.subr.bf16.mxu0 0
    %938 = vmatpush1.bf16.msra.mxu0 %v163
    %939 = vmatprep.subr.bf16.mxu0 0
    %940 = vmatpush1.bf16.msra.mxu0 %v151
    %941 = vmatprep.subr.bf16.mxu0 0
    %942 = vmatpush2.bf16.msra.mxu0 0
    %943 = vmatprep.subr.bf16.mxu0 0
    %944 = vmatpush2.bf16.msra.mxu0 0
    %945 = vmatprep.subr.bf16.mxu0 0
    %946 = vmatpush2.bf16.msra.mxu0 0
    %947 = vmatprep.subr.bf16.mxu0 0
    %948 = vmatpush2.bf16.msra.mxu0 0
    %949 = vmatprep.subr.bf16.mxu0 0
    %950 = vmatpush2.bf16.msra.mxu0 0
    %951 = vmatprep.subr.bf16.mxu0 0
    %952 = vmatpush2.bf16.msra.mxu0 0
    %953 = vmatprep.subr.bf16.mxu0 0
    %954 = vmatpush2.bf16.msra.mxu0 0
    %955 = vmatprep.subr.bf16.mxu0 0
    %956 = vmatpush2.bf16.msra.mxu0 0
    %957 = vmatprep.mubr.bf16.mxu0 0
    %958 = vmatmul.mubr.bf16.gmra.mxu0 %v920
    %v959 = vpop.f32.mrf.mxu0
    %v960 = vadd.f32 %v133, %v959
    %v961 = vpop.f32.mrf.mxu0
    %v962 = vpop.f32.mrf.mxu0
    %v963 = vadd.f32 %v133, %v962
    %v964 = vpop.f32.mrf.mxu0
    %965 = vmatprep.mubr.bf16.mxu0 0
    %966 = vmatmul.mubr.bf16.gmra.mxu0 %v923
    %v967 = vpop.f32.mrf.mxu0
    %v968 = vadd.f32 %v133, %v967
    %v969 = vpop.f32.mrf.mxu0
    %v970 = vpop.f32.mrf.mxu0
    %v971 = vadd.f32 %v133, %v970
    %v972 = vpop.f32.mrf.mxu0
    %973 = vdwg.mxu0
    %v974 = vmax.f32 %v960, 0.0
    %v975 = vmax.f32 %v963, 0.0
    %v976 = vmax.f32 %v968, 0.0
    %v977 = vmax.f32 %v971, 0.0
    %v978 = vpack.c.bf16 %v975, %v974
    %v979 = vpack.c.bf16 %v977, %v976
    %s980 = scalar_lea.vmem %s0, 176
    %v981 = vld [vmem:[%s980] sm:$0xf]
    %v982 = vld [vmem:[%s980 + $0x4] sm:$0xf]
    %v983 = vld [vmem:[%s980 + $0x8] sm:$0xf]
    %v984 = vld [vmem:[%s980 + $0xc] sm:$0xf]
    %v989 = vunpack.c.l.b16 %v981
    %v990 = vunpack.c.l.b16 %v982
    %v991 = vunpack.c.l.b16 %v983
    %v992 = vunpack.c.l.b16 %v984
    %v993 = vpack.c.b16 %v990, %v989
    %v994 = vpack.c.b16 %v992, %v991
    %v996 = vsel %vm154, %v993, 0
    %v999 = vsel %vm154, %v994, 0
    %1001 = vmatprep.subr.bf16.mxu0 0
    %1002 = vmatpush1.bf16.msra.mxu0 0
    %1003 = vmatprep.subr.bf16.mxu0 0
    %1004 = vmatpush1.bf16.msra.mxu0 0
    %1005 = vmatprep.subr.bf16.mxu0 0
    %1006 = vmatpush1.bf16.msra.mxu0 0
    %1007 = vmatprep.subr.bf16.mxu0 0
    %1008 = vmatpush1.bf16.msra.mxu0 0
    %1009 = vmatprep.subr.bf16.mxu0 0
    %1010 = vmatpush1.bf16.msra.mxu0 0
    %1011 = vmatprep.subr.bf16.mxu0 0
    %1012 = vmatpush1.bf16.msra.mxu0 0
    %1013 = vmatprep.subr.bf16.mxu0 0
    %1014 = vmatpush1.bf16.msra.mxu0 %v163
    %1015 = vmatprep.subr.bf16.mxu0 0
    %1016 = vmatpush1.bf16.msra.mxu0 %v151
    %1017 = vmatprep.subr.bf16.mxu0 0
    %1018 = vmatpush2.bf16.msra.mxu0 0
    %1019 = vmatprep.subr.bf16.mxu0 0
    %1020 = vmatpush2.bf16.msra.mxu0 0
    %1021 = vmatprep.subr.bf16.mxu0 0
    %1022 = vmatpush2.bf16.msra.mxu0 0
    %1023 = vmatprep.subr.bf16.mxu0 0
    %1024 = vmatpush2.bf16.msra.mxu0 0
    %1025 = vmatprep.subr.bf16.mxu0 0
    %1026 = vmatpush2.bf16.msra.mxu0 0
    %1027 = vmatprep.subr.bf16.mxu0 0
    %1028 = vmatpush2.bf16.msra.mxu0 0
    %1029 = vmatprep.subr.bf16.mxu0 0
    %1030 = vmatpush2.bf16.msra.mxu0 0
    %1031 = vmatprep.subr.bf16.mxu0 0
    %1032 = vmatpush2.bf16.msra.mxu0 0
    %1033 = vmatprep.mubr.bf16.mxu0 0
    %1034 = vmatmul.mubr.bf16.gmra.mxu0 %v996
    %v1035 = vpop.f32.mrf.mxu0
    %v1036 = vadd.f32 %v133, %v1035
    %v1037 = vpop.f32.mrf.mxu0
    %v1038 = vpop.f32.mrf.mxu0
    %v1039 = vadd.f32 %v133, %v1038
    %v1040 = vpop.f32.mrf.mxu0
    %1041 = vmatprep.mubr.bf16.mxu0 0
    %1042 = vmatmul.mubr.bf16.gmra.mxu0 %v999
    %v1043 = vpop.f32.mrf.mxu0
    %v1044 = vadd.f32 %v133, %v1043
    %v1045 = vpop.f32.mrf.mxu0
    %v1046 = vpop.f32.mrf.mxu0
    %v1047 = vadd.f32 %v133, %v1046
    %v1048 = vpop.f32.mrf.mxu0
    %1049 = vdwg.mxu0
    %v1050 = vmax.f32 %v1036, 0.0
    %v1051 = vmax.f32 %v1039, 0.0
    %v1052 = vmax.f32 %v1044, 0.0
    %v1053 = vmax.f32 %v1047, 0.0
    %v1054 = vpack.c.bf16 %v1051, %v1050
    %v1055 = vpack.c.bf16 %v1053, %v1052
    %v1056 = vld [vmem:[#allocation6] sm:$0xf]
    %v1057 = vld [vmem:[#allocation6 + $0x4] sm:$0xf]
    %v1058 = vld [vmem:[#allocation6 + $0x8] sm:$0xf]
    %v1059 = vld [vmem:[#allocation6 + $0xc] sm:$0xf]
    %v1060 = vld [vmem:[#allocation6 + $0x10] sm:$0xf]
    %v1061 = vld [vmem:[#allocation6 + $0x14] sm:$0xf]
    %v1062 = vld [vmem:[#allocation6 + $0x18] sm:$0xf]
    %v1063 = vld [vmem:[#allocation6 + $0x1c] sm:$0xf]
    %v1064 = vld [vmem:[#allocation6 + $0x20] sm:$0xf]
    %v1065 = vld [vmem:[#allocation6 + $0x24] sm:$0xf]
    %v1066 = vld [vmem:[#allocation6 + $0x28] sm:$0xf]
    %v1067 = vld [vmem:[#allocation6 + $0x2c] sm:$0xf]
    %v1068 = vld [vmem:[#allocation6 + $0x30] sm:$0xf]
    %v1069 = vld [vmem:[#allocation6 + $0x34] sm:$0xf]
    %v1070 = vld [vmem:[#allocation6 + $0x38] sm:$0xf]
    %v1071 = vld [vmem:[#allocation6 + $0x3c] sm:$0xf]
    %v1072 = vld [vmem:[#allocation6 + $0x40] sm:$0xf]
    %v1073 = vld [vmem:[#allocation6 + $0x44] sm:$0xf]
    %v1074 = vld [vmem:[#allocation6 + $0x48] sm:$0xf]
    %v1075 = vld [vmem:[#allocation6 + $0x4c] sm:$0xf]
    %v1076 = vld [vmem:[#allocation6 + $0x50] sm:$0xf]
    %v1077 = vld [vmem:[#allocation6 + $0x54] sm:$0xf]
    %v1078 = vld [vmem:[#allocation6 + $0x58] sm:$0xf]
    %v1079 = vld [vmem:[#allocation6 + $0x5c] sm:$0xf]
    %v1080 = vld [vmem:[#allocation6 + $0x60] sm:$0xf]
    %v1081 = vld [vmem:[#allocation6 + $0x64] sm:$0xf]
    %v1082 = vld [vmem:[#allocation6 + $0x68] sm:$0xf]
    %v1083 = vld [vmem:[#allocation6 + $0x6c] sm:$0xf]
    %v1084 = vld [vmem:[#allocation6 + $0x70] sm:$0xf]
    %v1085 = vld [vmem:[#allocation6 + $0x74] sm:$0xf]
    %v1086 = vld [vmem:[#allocation6 + $0x78] sm:$0xf]
    %v1087 = vld [vmem:[#allocation6 + $0x7c] sm:$0xf]
    %v1088 = vld [vmem:[#allocation6 + $0x80] sm:$0xf]
    %v1089 = vld [vmem:[#allocation6 + $0x84] sm:$0xf]
    %v1090 = vld [vmem:[#allocation6 + $0x88] sm:$0xf]
    %v1091 = vld [vmem:[#allocation6 + $0x8c] sm:$0xf]
    %v1092 = vld [vmem:[#allocation6 + $0x90] sm:$0xf]
    %v1093 = vld [vmem:[#allocation6 + $0x94] sm:$0xf]
    %v1094 = vld [vmem:[#allocation6 + $0x98] sm:$0xf]
    %v1095 = vld [vmem:[#allocation6 + $0x9c] sm:$0xf]
    %v1096 = vld [vmem:[#allocation6 + $0xa0] sm:$0xf]
    %v1097 = vld [vmem:[#allocation6 + $0xa4] sm:$0xf]
    %v1098 = vld [vmem:[#allocation6 + $0xa8] sm:$0xf]
    %v1099 = vld [vmem:[#allocation6 + $0xac] sm:$0xf]
    %v1100 = vld [vmem:[#allocation6 + $0xb0] sm:$0xf]
    %v1101 = vld [vmem:[#allocation6 + $0xb4] sm:$0xf]
    %v1102 = vld [vmem:[#allocation6 + $0xb8] sm:$0xf]
    %v1103 = vld [vmem:[#allocation6 + $0xbc] sm:$0xf]
    %v1104 = vld [vmem:[#allocation6 + $0xc0] sm:$0xf]
    %v1105 = vld [vmem:[#allocation6 + $0xc4] sm:$0xf]
    %v1106 = vld [vmem:[#allocation6 + $0xc8] sm:$0xf]
    %v1107 = vld [vmem:[#allocation6 + $0xcc] sm:$0xf]
    %v1108 = vld [vmem:[#allocation6 + $0xd0] sm:$0xf]
    %v1109 = vld [vmem:[#allocation6 + $0xd4] sm:$0xf]
    %v1110 = vld [vmem:[#allocation6 + $0xd8] sm:$0xf]
    %v1111 = vld [vmem:[#allocation6 + $0xdc] sm:$0xf]
    %v1112 = vld [vmem:[#allocation6 + $0xe0] sm:$0xf]
    %v1113 = vld [vmem:[#allocation6 + $0xe4] sm:$0xf]
    %v1114 = vld [vmem:[#allocation6 + $0xe8] sm:$0xf]
    %v1115 = vld [vmem:[#allocation6 + $0xec] sm:$0xf]
    %v1116 = vld [vmem:[#allocation6 + $0xf0] sm:$0xf]
    %v1117 = vld [vmem:[#allocation6 + $0xf4] sm:$0xf]
    %v1118 = vld [vmem:[#allocation6 + $0xf8] sm:$0xf]
    %v1119 = vld [vmem:[#allocation6 + $0xfc] sm:$0xf]
    %v1120 = vld [vmem:[#allocation6 + $0x100] sm:$0xf]
    %v1121 = vld [vmem:[#allocation6 + $0x104] sm:$0xf]
    %v1122 = vld [vmem:[#allocation6 + $0x108] sm:$0xf]
    %v1123 = vld [vmem:[#allocation6 + $0x10c] sm:$0xf]
    %v1124 = vld [vmem:[#allocation6 + $0x110] sm:$0xf]
    %v1125 = vld [vmem:[#allocation6 + $0x114] sm:$0xf]
    %v1126 = vld [vmem:[#allocation6 + $0x118] sm:$0xf]
    %v1127 = vld [vmem:[#allocation6 + $0x11c] sm:$0xf]
    %v1128 = vld [vmem:[#allocation6 + $0x120] sm:$0xf]
    %v1129 = vld [vmem:[#allocation6 + $0x124] sm:$0xf]
    %v1130 = vld [vmem:[#allocation6 + $0x128] sm:$0xf]
    %v1131 = vld [vmem:[#allocation6 + $0x12c] sm:$0xf]
    %v1132 = vld [vmem:[#allocation6 + $0x130] sm:$0xf]
    %v1133 = vld [vmem:[#allocation6 + $0x134] sm:$0xf]
    %v1134 = vld [vmem:[#allocation6 + $0x138] sm:$0xf]
    %v1135 = vld [vmem:[#allocation6 + $0x13c] sm:$0xf]
    %v1137 = vlaneseq
    %v1138 = vshrl.u32 %v1137, 7
    %v1139 = vsub.s32 0, %v1138
    %v1140 = vrot.slane %v121, %v1139
    %v1222 = vunpack.c.l.b16 %v1056
    %v1223 = vunpack.c.l.b16 %v1057
    %v1224 = vunpack.c.l.b16 %v1058
    %v1225 = vunpack.c.l.b16 %v1059
    %v1226 = vunpack.c.l.b16 %v1060
    %v1227 = vunpack.c.l.b16 %v1061
    %v1228 = vunpack.c.l.b16 %v1062
    %v1229 = vunpack.c.l.b16 %v1063
    %v1230 = vunpack.c.l.b16 %v1064
    %v1231 = vunpack.c.l.b16 %v1065
    %v1232 = vunpack.c.l.b16 %v1066
    %v1233 = vunpack.c.l.b16 %v1067
    %v1234 = vunpack.c.l.b16 %v1068
    %v1235 = vunpack.c.l.b16 %v1069
    %v1236 = vunpack.c.l.b16 %v1070
    %v1237 = vunpack.c.l.b16 %v1071
    %v1238 = vunpack.c.l.b16 %v1072
    %v1239 = vunpack.c.l.b16 %v1073
    %v1240 = vunpack.c.l.b16 %v1074
    %v1241 = vunpack.c.l.b16 %v1075
    %v1242 = vunpack.c.l.b16 %v1076
    %v1243 = vunpack.c.l.b16 %v1077
    %v1244 = vunpack.c.l.b16 %v1078
    %v1245 = vunpack.c.l.b16 %v1079
    %v1246 = vunpack.c.l.b16 %v1080
    %v1247 = vunpack.c.l.b16 %v1081
    %v1248 = vunpack.c.l.b16 %v1082
    %v1249 = vunpack.c.l.b16 %v1083
    %v1250 = vunpack.c.l.b16 %v1084
    %v1251 = vunpack.c.l.b16 %v1085
    %v1252 = vunpack.c.l.b16 %v1086
    %v1253 = vunpack.c.l.b16 %v1087
    %v1254 = vunpack.c.l.b16 %v1088
    %v1255 = vunpack.c.l.b16 %v1089
    %v1256 = vunpack.c.l.b16 %v1090
    %v1257 = vunpack.c.l.b16 %v1091
    %v1258 = vunpack.c.l.b16 %v1092
    %v1259 = vunpack.c.l.b16 %v1093
    %v1260 = vunpack.c.l.b16 %v1094
    %v1261 = vunpack.c.l.b16 %v1095
    %v1262 = vunpack.c.l.b16 %v1096
    %v1263 = vunpack.c.l.b16 %v1097
    %v1264 = vunpack.c.l.b16 %v1098
    %v1265 = vunpack.c.l.b16 %v1099
    %v1266 = vunpack.c.l.b16 %v1100
    %v1267 = vunpack.c.l.b16 %v1101
    %v1268 = vunpack.c.l.b16 %v1102
    %v1269 = vunpack.c.l.b16 %v1103
    %v1270 = vunpack.c.l.b16 %v1104
    %v1271 = vunpack.c.l.b16 %v1105
    %v1272 = vunpack.c.l.b16 %v1106
    %v1273 = vunpack.c.l.b16 %v1107
    %v1274 = vunpack.c.l.b16 %v1108
    %v1275 = vunpack.c.l.b16 %v1109
    %v1276 = vunpack.c.l.b16 %v1110
    %v1277 = vunpack.c.l.b16 %v1111
    %v1278 = vunpack.c.l.b16 %v1112
    %v1279 = vunpack.c.l.b16 %v1113
    %v1280 = vunpack.c.l.b16 %v1114
    %v1281 = vunpack.c.l.b16 %v1115
    %v1282 = vunpack.c.l.b16 %v1116
    %v1283 = vunpack.c.l.b16 %v1117
    %v1284 = vunpack.c.l.b16 %v1118
    %v1285 = vunpack.c.l.b16 %v1119
    %v1286 = vunpack.c.l.b16 %v1120
    %v1287 = vunpack.c.l.b16 %v1121
    %v1288 = vunpack.c.l.b16 %v1122
    %v1289 = vunpack.c.l.b16 %v1123
    %v1290 = vunpack.c.l.b16 %v1124
    %v1291 = vunpack.c.l.b16 %v1125
    %v1292 = vunpack.c.l.b16 %v1126
    %v1293 = vunpack.c.l.b16 %v1127
    %v1294 = vunpack.c.l.b16 %v1128
    %v1295 = vunpack.c.l.b16 %v1129
    %v1296 = vunpack.c.l.b16 %v1130
    %v1297 = vunpack.c.l.b16 %v1131
    %v1298 = vunpack.c.l.b16 %v1132
    %v1299 = vunpack.c.l.b16 %v1133
    %v1300 = vunpack.c.l.b16 %v1134
    %v1301 = vunpack.c.l.b16 %v1135
    %v1302 = vpack.c.b16 %v1223, %v1222
    %v1303 = vpack.c.b16 %v1225, %v1224
    %v1304 = vpack.c.b16 %v1227, %v1226
    %v1305 = vpack.c.b16 %v1229, %v1228
    %v1306 = vpack.c.b16 %v1231, %v1230
    %v1307 = vpack.c.b16 %v1233, %v1232
    %v1308 = vpack.c.b16 %v1235, %v1234
    %v1309 = vpack.c.b16 %v1237, %v1236
    %v1310 = vpack.c.b16 %v1239, %v1238
    %v1311 = vpack.c.b16 %v1241, %v1240
    %v1312 = vpack.c.b16 %v1243, %v1242
    %v1313 = vpack.c.b16 %v1245, %v1244
    %v1314 = vpack.c.b16 %v1247, %v1246
    %v1315 = vpack.c.b16 %v1249, %v1248
    %v1316 = vpack.c.b16 %v1251, %v1250
    %v1317 = vpack.c.b16 %v1253, %v1252
    %v1318 = vpack.c.b16 %v1255, %v1254
    %v1319 = vpack.c.b16 %v1257, %v1256
    %v1320 = vpack.c.b16 %v1259, %v1258
    %v1321 = vpack.c.b16 %v1261, %v1260
    %v1322 = vpack.c.b16 %v1263, %v1262
    %v1323 = vpack.c.b16 %v1265, %v1264
    %v1324 = vpack.c.b16 %v1267, %v1266
    %v1325 = vpack.c.b16 %v1269, %v1268
    %v1326 = vpack.c.b16 %v1271, %v1270
    %v1327 = vpack.c.b16 %v1273, %v1272
    %v1328 = vpack.c.b16 %v1275, %v1274
    %v1329 = vpack.c.b16 %v1277, %v1276
    %v1330 = vpack.c.b16 %v1279, %v1278
    %v1331 = vpack.c.b16 %v1281, %v1280
    %v1332 = vpack.c.b16 %v1283, %v1282
    %v1333 = vpack.c.b16 %v1285, %v1284
    %v1334 = vpack.c.b16 %v1287, %v1286
    %v1335 = vpack.c.b16 %v1289, %v1288
    %v1336 = vpack.c.b16 %v1291, %v1290
    %v1337 = vpack.c.b16 %v1293, %v1292
    %v1338 = vpack.c.b16 %v1295, %v1294
    %v1339 = vpack.c.b16 %v1297, %v1296
    %v1340 = vpack.c.b16 %v1299, %v1298
    %v1341 = vpack.c.b16 %v1301, %v1300
    %1382 = vmatprep.subr.bf16.mxu0 0
    %1383 = vmatpush1.bf16.msra.mxu0 %v1309
    %1384 = vmatprep.subr.bf16.mxu0 0
    %1385 = vmatpush1.bf16.msra.mxu0 %v1308
    %1386 = vmatprep.subr.bf16.mxu0 0
    %1387 = vmatpush1.bf16.msra.mxu0 %v1307
    %1388 = vmatprep.subr.bf16.mxu0 0
    %1389 = vmatpush1.bf16.msra.mxu0 %v1306
    %1390 = vmatprep.subr.bf16.mxu0 0
    %1391 = vmatpush1.bf16.msra.mxu0 %v1305
    %1392 = vmatprep.subr.bf16.mxu0 0
    %1393 = vmatpush1.bf16.msra.mxu0 %v1304
    %1394 = vmatprep.subr.bf16.mxu0 0
    %1395 = vmatpush1.bf16.msra.mxu0 %v1303
    %1396 = vmatprep.subr.bf16.mxu0 0
    %1397 = vmatpush1.bf16.msra.mxu0 %v1302
    %1398 = vmatprep.subr.bf16.mxu0 0
    %1399 = vmatpush2.bf16.msra.mxu0 %v1317
    %1400 = vmatprep.subr.bf16.mxu0 0
    %1401 = vmatpush2.bf16.msra.mxu0 %v1316
    %1402 = vmatprep.subr.bf16.mxu0 0
    %1403 = vmatpush2.bf16.msra.mxu0 %v1315
    %1404 = vmatprep.subr.bf16.mxu0 0
    %1405 = vmatpush2.bf16.msra.mxu0 %v1314
    %1406 = vmatprep.subr.bf16.mxu0 0
    %1407 = vmatpush2.bf16.msra.mxu0 %v1313
    %1408 = vmatprep.subr.bf16.mxu0 0
    %1409 = vmatpush2.bf16.msra.mxu0 %v1312
    %1410 = vmatprep.subr.bf16.mxu0 0
    %1411 = vmatpush2.bf16.msra.mxu0 %v1311
    %1412 = vmatprep.subr.bf16.mxu0 0
    %1413 = vmatpush2.bf16.msra.mxu0 %v1310
    %1414 = vmatprep.mubr.bf16.mxu0 %v294
    %1415 = vmatmul.mubr.bf16.gmra.mxu0 %v218
    %v1416 = vpop.f32.mrf.mxu0
    %v1417 = vadd.f32 %v1140, %v1416
    %v1418 = vpop.f32.mrf.mxu0
    %v1419 = vpop.f32.mrf.mxu0
    %v1420 = vadd.f32 %v1140, %v1419
    %v1421 = vpop.f32.mrf.mxu0
    %1422 = vmatprep.mubr.bf16.mxu0 %v295
    %1423 = vmatmul.mubr.bf16.gmra.mxu0 %v219
    %v1424 = vpop.f32.mrf.mxu0
    %v1425 = vadd.f32 %v1140, %v1424
    %v1426 = vpop.f32.mrf.mxu0
    %v1427 = vpop.f32.mrf.mxu0
    %v1428 = vadd.f32 %v1140, %v1427
    %v1429 = vpop.f32.mrf.mxu0
    %1430 = vdwg.mxu0
    %1431 = vmatprep.subr.bf16.mxu0 0
    %1432 = vmatpush1.bf16.msra.mxu0 %v1325
    %1433 = vmatprep.subr.bf16.mxu0 0
    %1434 = vmatpush1.bf16.msra.mxu0 %v1324
    %1435 = vmatprep.subr.bf16.mxu0 0
    %1436 = vmatpush1.bf16.msra.mxu0 %v1323
    %1437 = vmatprep.subr.bf16.mxu0 0
    %1438 = vmatpush1.bf16.msra.mxu0 %v1322
    %1439 = vmatprep.subr.bf16.mxu0 0
    %1440 = vmatpush1.bf16.msra.mxu0 %v1321
    %1441 = vmatprep.subr.bf16.mxu0 0
    %1442 = vmatpush1.bf16.msra.mxu0 %v1320
    %1443 = vmatprep.subr.bf16.mxu0 0
    %1444 = vmatpush1.bf16.msra.mxu0 %v1319
    %1445 = vmatprep.subr.bf16.mxu0 0
    %1446 = vmatpush1.bf16.msra.mxu0 %v1318
    %1447 = vmatprep.subr.bf16.mxu0 0
    %1448 = vmatpush2.bf16.msra.mxu0 %v1333
    %1449 = vmatprep.subr.bf16.mxu0 0
    %1450 = vmatpush2.bf16.msra.mxu0 %v1332
    %1451 = vmatprep.subr.bf16.mxu0 0
    %1452 = vmatpush2.bf16.msra.mxu0 %v1331
    %1453 = vmatprep.subr.bf16.mxu0 0
    %1454 = vmatpush2.bf16.msra.mxu0 %v1330
    %1455 = vmatprep.subr.bf16.mxu0 0
    %1456 = vmatpush2.bf16.msra.mxu0 %v1329
    %1457 = vmatprep.subr.bf16.mxu0 0
    %1458 = vmatpush2.bf16.msra.mxu0 %v1328
    %1459 = vmatprep.subr.bf16.mxu0 0
    %1460 = vmatpush2.bf16.msra.mxu0 %v1327
    %1461 = vmatprep.subr.bf16.mxu0 0
    %1462 = vmatpush2.bf16.msra.mxu0 %v1326
    %1463 = vmatprep.mubr.bf16.mxu0 %v446
    %1464 = vmatmul.mubr.bf16.gmra.mxu0 %v370
    %v1465 = vpop.f32.mrf.mxu0
    %v1466 = vadd.f32 %v1417, %v1465
    %v1467 = vpop.f32.mrf.mxu0
    %v1468 = vpop.f32.mrf.mxu0
    %v1469 = vadd.f32 %v1420, %v1468
    %v1470 = vpop.f32.mrf.mxu0
    %1471 = vmatprep.mubr.bf16.mxu0 %v447
    %1472 = vmatmul.mubr.bf16.gmra.mxu0 %v371
    %v1473 = vpop.f32.mrf.mxu0
    %v1474 = vadd.f32 %v1425, %v1473
    %v1475 = vpop.f32.mrf.mxu0
    %v1476 = vpop.f32.mrf.mxu0
    %v1477 = vadd.f32 %v1428, %v1476
    %v1478 = vpop.f32.mrf.mxu0
    %1479 = vdwg.mxu0
    %1480 = vmatprep.subr.bf16.mxu0 0
    %1481 = vmatpush1.bf16.msra.mxu0 %v1341
    %1482 = vmatprep.subr.bf16.mxu0 0
    %1483 = vmatpush1.bf16.msra.mxu0 %v1340
    %1484 = vmatprep.subr.bf16.mxu0 0
    %1485 = vmatpush1.bf16.msra.mxu0 %v1339
    %1486 = vmatprep.subr.bf16.mxu0 0
    %1487 = vmatpush1.bf16.msra.mxu0 %v1338
    %1488 = vmatprep.subr.bf16.mxu0 0
    %1489 = vmatpush1.bf16.msra.mxu0 %v1337
    %1490 = vmatprep.subr.bf16.mxu0 0
    %1491 = vmatpush1.bf16.msra.mxu0 %v1336
    %1492 = vmatprep.subr.bf16.mxu0 0
    %1493 = vmatpush1.bf16.msra.mxu0 %v1335
    %1494 = vmatprep.subr.bf16.mxu0 0
    %1495 = vmatpush1.bf16.msra.mxu0 %v1334
    %1496 = vmatprep.subr.bf16.mxu0 0
    %1497 = vmatpush2.bf16.msra.mxu0 0
    %1498 = vmatprep.subr.bf16.mxu0 0
    %1499 = vmatpush2.bf16.msra.mxu0 0
    %1500 = vmatprep.subr.bf16.mxu0 0
    %1501 = vmatpush2.bf16.msra.mxu0 0
    %1502 = vmatprep.subr.bf16.mxu0 0
    %1503 = vmatpush2.bf16.msra.mxu0 0
    %1504 = vmatprep.subr.bf16.mxu0 0
    %1505 = vmatpush2.bf16.msra.mxu0 0
    %1506 = vmatprep.subr.bf16.mxu0 0
    %1507 = vmatpush2.bf16.msra.mxu0 0
    %1508 = vmatprep.subr.bf16.mxu0 0
    %1509 = vmatpush2.bf16.msra.mxu0 0
    %1510 = vmatprep.subr.bf16.mxu0 0
    %1511 = vmatpush2.bf16.msra.mxu0 0
    %1512 = vmatprep.mubr.bf16.mxu0 0
    %1513 = vmatmul.mubr.bf16.gmra.mxu0 %v522
    %v1514 = vpop.f32.mrf.mxu0
    %v1515 = vadd.f32 %v1466, %v1514
    %v1516 = vpop.f32.mrf.mxu0
    %v1517 = vpop.f32.mrf.mxu0
    %v1518 = vadd.f32 %v1469, %v1517
    %v1519 = vpop.f32.mrf.mxu0
    %1520 = vmatprep.mubr.bf16.mxu0 0
    %1521 = vmatmul.mubr.bf16.gmra.mxu0 %v523
    %v1522 = vpop.f32.mrf.mxu0
    %v1523 = vadd.f32 %v1474, %v1522
    %v1524 = vpop.f32.mrf.mxu0
    %v1525 = vpop.f32.mrf.mxu0
    %v1526 = vadd.f32 %v1477, %v1525
    %v1527 = vpop.f32.mrf.mxu0
    %1528 = vdwg.mxu0
    %v1529 = vmax.f32 %v1515, 0.0
    %v1530 = vmax.f32 %v1518, 0.0
    %v1531 = vmax.f32 %v1523, 0.0
    %v1532 = vmax.f32 %v1526, 0.0
    %v1533 = vpack.c.bf16 %v1530, %v1529
    %v1534 = vpack.c.bf16 %v1532, %v1531
    %1535 = vmatprep.subr.bf16.mxu0 0
    %1536 = vmatpush1.bf16.msra.mxu0 %v1309
    %1537 = vmatprep.subr.bf16.mxu0 0
    %1538 = vmatpush1.bf16.msra.mxu0 %v1308
    %1539 = vmatprep.subr.bf16.mxu0 0
    %1540 = vmatpush1.bf16.msra.mxu0 %v1307
    %1541 = vmatprep.subr.bf16.mxu0 0
    %1542 = vmatpush1.bf16.msra.mxu0 %v1306
    %1543 = vmatprep.subr.bf16.mxu0 0
    %1544 = vmatpush1.bf16.msra.mxu0 %v1305
    %1545 = vmatprep.subr.bf16.mxu0 0
    %1546 = vmatpush1.bf16.msra.mxu0 %v1304
    %1547 = vmatprep.subr.bf16.mxu0 0
    %1548 = vmatpush1.bf16.msra.mxu0 %v1303
    %1549 = vmatprep.subr.bf16.mxu0 0
    %1550 = vmatpush1.bf16.msra.mxu0 %v1302
    %1551 = vmatprep.subr.bf16.mxu0 0
    %1552 = vmatpush2.bf16.msra.mxu0 %v1317
    %1553 = vmatprep.subr.bf16.mxu0 0
    %1554 = vmatpush2.bf16.msra.mxu0 %v1316
    %1555 = vmatprep.subr.bf16.mxu0 0
    %1556 = vmatpush2.bf16.msra.mxu0 %v1315
    %1557 = vmatprep.subr.bf16.mxu0 0
    %1558 = vmatpush2.bf16.msra.mxu0 %v1314
    %1559 = vmatprep.subr.bf16.mxu0 0
    %1560 = vmatpush2.bf16.msra.mxu0 %v1313
    %1561 = vmatprep.subr.bf16.mxu0 0
    %1562 = vmatpush2.bf16.msra.mxu0 %v1312
    %1563 = vmatprep.subr.bf16.mxu0 0
    %1564 = vmatpush2.bf16.msra.mxu0 %v1311
    %1565 = vmatprep.subr.bf16.mxu0 0
    %1566 = vmatpush2.bf16.msra.mxu0 %v1310
    %1567 = vmatprep.mubr.bf16.mxu0 %v370
    %1568 = vmatmul.mubr.bf16.gmra.mxu0 %v294
    %v1569 = vpop.f32.mrf.mxu0
    %v1570 = vadd.f32 %v1140, %v1569
    %v1571 = vpop.f32.mrf.mxu0
    %v1572 = vpop.f32.mrf.mxu0
    %v1573 = vadd.f32 %v1140, %v1572
    %v1574 = vpop.f32.mrf.mxu0
    %1575 = vmatprep.mubr.bf16.mxu0 %v371
    %1576 = vmatmul.mubr.bf16.gmra.mxu0 %v295
    %v1577 = vpop.f32.mrf.mxu0
    %v1578 = vadd.f32 %v1140, %v1577
    %v1579 = vpop.f32.mrf.mxu0
    %v1580 = vpop.f32.mrf.mxu0
    %v1581 = vadd.f32 %v1140, %v1580
    %v1582 = vpop.f32.mrf.mxu0
    %1583 = vdwg.mxu0
    %1584 = vmatprep.subr.bf16.mxu0 0
    %1585 = vmatpush1.bf16.msra.mxu0 %v1325
    %1586 = vmatprep.subr.bf16.mxu0 0
    %1587 = vmatpush1.bf16.msra.mxu0 %v1324
    %1588 = vmatprep.subr.bf16.mxu0 0
    %1589 = vmatpush1.bf16.msra.mxu0 %v1323
    %1590 = vmatprep.subr.bf16.mxu0 0
    %1591 = vmatpush1.bf16.msra.mxu0 %v1322
    %1592 = vmatprep.subr.bf16.mxu0 0
    %1593 = vmatpush1.bf16.msra.mxu0 %v1321
    %1594 = vmatprep.subr.bf16.mxu0 0
    %1595 = vmatpush1.bf16.msra.mxu0 %v1320
    %1596 = vmatprep.subr.bf16.mxu0 0
    %1597 = vmatpush1.bf16.msra.mxu0 %v1319
    %1598 = vmatprep.subr.bf16.mxu0 0
    %1599 = vmatpush1.bf16.msra.mxu0 %v1318
    %1600 = vmatprep.subr.bf16.mxu0 0
    %1601 = vmatpush2.bf16.msra.mxu0 %v1333
    %1602 = vmatprep.subr.bf16.mxu0 0
    %1603 = vmatpush2.bf16.msra.mxu0 %v1332
    %1604 = vmatprep.subr.bf16.mxu0 0
    %1605 = vmatpush2.bf16.msra.mxu0 %v1331
    %1606 = vmatprep.subr.bf16.mxu0 0
    %1607 = vmatpush2.bf16.msra.mxu0 %v1330
    %1608 = vmatprep.subr.bf16.mxu0 0
    %1609 = vmatpush2.bf16.msra.mxu0 %v1329
    %1610 = vmatprep.subr.bf16.mxu0 0
    %1611 = vmatpush2.bf16.msra.mxu0 %v1328
    %1612 = vmatprep.subr.bf16.mxu0 0
    %1613 = vmatpush2.bf16.msra.mxu0 %v1327
    %1614 = vmatprep.subr.bf16.mxu0 0
    %1615 = vmatpush2.bf16.msra.mxu0 %v1326
    %1616 = vmatprep.mubr.bf16.mxu0 %v522
    %1617 = vmatmul.mubr.bf16.gmra.mxu0 %v446
    %v1618 = vpop.f32.mrf.mxu0
    %v1619 = vadd.f32 %v1570, %v1618
    %v1620 = vpop.f32.mrf.mxu0
    %v1621 = vpop.f32.mrf.mxu0
    %v1622 = vadd.f32 %v1573, %v1621
    %v1623 = vpop.f32.mrf.mxu0
    %1624 = vmatprep.mubr.bf16.mxu0 %v523
    %1625 = vmatmul.mubr.bf16.gmra.mxu0 %v447
    %v1626 = vpop.f32.mrf.mxu0
    %v1627 = vadd.f32 %v1578, %v1626
    %v1628 = vpop.f32.mrf.mxu0
    %v1629 = vpop.f32.mrf.mxu0
    %v1630 = vadd.f32 %v1581, %v1629
    %v1631 = vpop.f32.mrf.mxu0
    %1632 = vdwg.mxu0
    %1633 = vmatprep.subr.bf16.mxu0 0
    %1634 = vmatpush1.bf16.msra.mxu0 %v1341
    %1635 = vmatprep.subr.bf16.mxu0 0
    %1636 = vmatpush1.bf16.msra.mxu0 %v1340
    %1637 = vmatprep.subr.bf16.mxu0 0
    %1638 = vmatpush1.bf16.msra.mxu0 %v1339
    %1639 = vmatprep.subr.bf16.mxu0 0
    %1640 = vmatpush1.bf16.msra.mxu0 %v1338
    %1641 = vmatprep.subr.bf16.mxu0 0
    %1642 = vmatpush1.bf16.msra.mxu0 %v1337
    %1643 = vmatprep.subr.bf16.mxu0 0
    %1644 = vmatpush1.bf16.msra.mxu0 %v1336
    %1645 = vmatprep.subr.bf16.mxu0 0
    %1646 = vmatpush1.bf16.msra.mxu0 %v1335
    %1647 = vmatprep.subr.bf16.mxu0 0
    %1648 = vmatpush1.bf16.msra.mxu0 %v1334
    %1649 = vmatprep.subr.bf16.mxu0 0
    %1650 = vmatpush2.bf16.msra.mxu0 0
    %1651 = vmatprep.subr.bf16.mxu0 0
    %1652 = vmatpush2.bf16.msra.mxu0 0
    %1653 = vmatprep.subr.bf16.mxu0 0
    %1654 = vmatpush2.bf16.msra.mxu0 0
    %1655 = vmatprep.subr.bf16.mxu0 0
    %1656 = vmatpush2.bf16.msra.mxu0 0
    %1657 = vmatprep.subr.bf16.mxu0 0
    %1658 = vmatpush2.bf16.msra.mxu0 0
    %1659 = vmatprep.subr.bf16.mxu0 0
    %1660 = vmatpush2.bf16.msra.mxu0 0
    %1661 = vmatprep.subr.bf16.mxu0 0
    %1662 = vmatpush2.bf16.msra.mxu0 0
    %1663 = vmatprep.subr.bf16.mxu0 0
    %1664 = vmatpush2.bf16.msra.mxu0 0
    %1665 = vmatprep.mubr.bf16.mxu0 0
    %1666 = vmatmul.mubr.bf16.gmra.mxu0 %v598
    %v1667 = vpop.f32.mrf.mxu0
    %v1668 = vadd.f32 %v1619, %v1667
    %v1669 = vpop.f32.mrf.mxu0
    %v1670 = vpop.f32.mrf.mxu0
    %v1671 = vadd.f32 %v1622, %v1670
    %v1672 = vpop.f32.mrf.mxu0
    %1673 = vmatprep.mubr.bf16.mxu0 0
    %1674 = vmatmul.mubr.bf16.gmra.mxu0 %v599
    %v1675 = vpop.f32.mrf.mxu0
    %v1676 = vadd.f32 %v1627, %v1675
    %v1677 = vpop.f32.mrf.mxu0
    %v1678 = vpop.f32.mrf.mxu0
    %v1679 = vadd.f32 %v1630, %v1678
    %v1680 = vpop.f32.mrf.mxu0
    %1681 = vdwg.mxu0
    %v1682 = vmax.f32 %v1668, 0.0
    %v1683 = vmax.f32 %v1671, 0.0
    %v1684 = vmax.f32 %v1676, 0.0
    %v1685 = vmax.f32 %v1679, 0.0
    %v1686 = vpack.c.bf16 %v1683, %v1682
    %v1687 = vpack.c.bf16 %v1685, %v1684
    %1688 = vmatprep.subr.bf16.mxu0 0
    %1689 = vmatpush1.bf16.msra.mxu0 %v1309
    %1690 = vmatprep.subr.bf16.mxu0 0
    %1691 = vmatpush1.bf16.msra.mxu0 %v1308
    %1692 = vmatprep.subr.bf16.mxu0 0
    %1693 = vmatpush1.bf16.msra.mxu0 %v1307
    %1694 = vmatprep.subr.bf16.mxu0 0
    %1695 = vmatpush1.bf16.msra.mxu0 %v1306
    %1696 = vmatprep.subr.bf16.mxu0 0
    %1697 = vmatpush1.bf16.msra.mxu0 %v1305
    %1698 = vmatprep.subr.bf16.mxu0 0
    %1699 = vmatpush1.bf16.msra.mxu0 %v1304
    %1700 = vmatprep.subr.bf16.mxu0 0
    %1701 = vmatpush1.bf16.msra.mxu0 %v1303
    %1702 = vmatprep.subr.bf16.mxu0 0
    %1703 = vmatpush1.bf16.msra.mxu0 %v1302
    %1704 = vmatprep.subr.bf16.mxu0 0
    %1705 = vmatpush2.bf16.msra.mxu0 %v1317
    %1706 = vmatprep.subr.bf16.mxu0 0
    %1707 = vmatpush2.bf16.msra.mxu0 %v1316
    %1708 = vmatprep.subr.bf16.mxu0 0
    %1709 = vmatpush2.bf16.msra.mxu0 %v1315
    %1710 = vmatprep.subr.bf16.mxu0 0
    %1711 = vmatpush2.bf16.msra.mxu0 %v1314
    %1712 = vmatprep.subr.bf16.mxu0 0
    %1713 = vmatpush2.bf16.msra.mxu0 %v1313
    %1714 = vmatprep.subr.bf16.mxu0 0
    %1715 = vmatpush2.bf16.msra.mxu0 %v1312
    %1716 = vmatprep.subr.bf16.mxu0 0
    %1717 = vmatpush2.bf16.msra.mxu0 %v1311
    %1718 = vmatprep.subr.bf16.mxu0 0
    %1719 = vmatpush2.bf16.msra.mxu0 %v1310
    %1720 = vmatprep.mubr.bf16.mxu0 %v446
    %1721 = vmatmul.mubr.bf16.gmra.mxu0 %v370
    %v1722 = vpop.f32.mrf.mxu0
    %v1723 = vadd.f32 %v1140, %v1722
    %v1724 = vpop.f32.mrf.mxu0
    %v1725 = vpop.f32.mrf.mxu0
    %v1726 = vadd.f32 %v1140, %v1725
    %v1727 = vpop.f32.mrf.mxu0
    %1728 = vmatprep.mubr.bf16.mxu0 %v447
    %1729 = vmatmul.mubr.bf16.gmra.mxu0 %v371
    %v1730 = vpop.f32.mrf.mxu0
    %v1731 = vadd.f32 %v1140, %v1730
    %v1732 = vpop.f32.mrf.mxu0
    %v1733 = vpop.f32.mrf.mxu0
    %v1734 = vadd.f32 %v1140, %v1733
    %v1735 = vpop.f32.mrf.mxu0
    %1736 = vdwg.mxu0
    %1737 = vmatprep.subr.bf16.mxu0 0
    %1738 = vmatpush1.bf16.msra.mxu0 %v1325
    %1739 = vmatprep.subr.bf16.mxu0 0
    %1740 = vmatpush1.bf16.msra.mxu0 %v1324
    %1741 = vmatprep.subr.bf16.mxu0 0
    %1742 = vmatpush1.bf16.msra.mxu0 %v1323
    %1743 = vmatprep.subr.bf16.mxu0 0
    %1744 = vmatpush1.bf16.msra.mxu0 %v1322
    %1745 = vmatprep.subr.bf16.mxu0 0
    %1746 = vmatpush1.bf16.msra.mxu0 %v1321
    %1747 = vmatprep.subr.bf16.mxu0 0
    %1748 = vmatpush1.bf16.msra.mxu0 %v1320
    %1749 = vmatprep.subr.bf16.mxu0 0
    %1750 = vmatpush1.bf16.msra.mxu0 %v1319
    %1751 = vmatprep.subr.bf16.mxu0 0
    %1752 = vmatpush1.bf16.msra.mxu0 %v1318
    %1753 = vmatprep.subr.bf16.mxu0 0
    %1754 = vmatpush2.bf16.msra.mxu0 %v1333
    %1755 = vmatprep.subr.bf16.mxu0 0
    %1756 = vmatpush2.bf16.msra.mxu0 %v1332
    %1757 = vmatprep.subr.bf16.mxu0 0
    %1758 = vmatpush2.bf16.msra.mxu0 %v1331
    %1759 = vmatprep.subr.bf16.mxu0 0
    %1760 = vmatpush2.bf16.msra.mxu0 %v1330
    %1761 = vmatprep.subr.bf16.mxu0 0
    %1762 = vmatpush2.bf16.msra.mxu0 %v1329
    %1763 = vmatprep.subr.bf16.mxu0 0
    %1764 = vmatpush2.bf16.msra.mxu0 %v1328
    %1765 = vmatprep.subr.bf16.mxu0 0
    %1766 = vmatpush2.bf16.msra.mxu0 %v1327
    %1767 = vmatprep.subr.bf16.mxu0 0
    %1768 = vmatpush2.bf16.msra.mxu0 %v1326
    %1769 = vmatprep.mubr.bf16.mxu0 %v598
    %1770 = vmatmul.mubr.bf16.gmra.mxu0 %v522
    %v1771 = vpop.f32.mrf.mxu0
    %v1772 = vadd.f32 %v1723, %v1771
    %v1773 = vpop.f32.mrf.mxu0
    %v1774 = vpop.f32.mrf.mxu0
    %v1775 = vadd.f32 %v1726, %v1774
    %v1776 = vpop.f32.mrf.mxu0
    %1777 = vmatprep.mubr.bf16.mxu0 %v599
    %1778 = vmatmul.mubr.bf16.gmra.mxu0 %v523
    %v1779 = vpop.f32.mrf.mxu0
    %v1780 = vadd.f32 %v1731, %v1779
    %v1781 = vpop.f32.mrf.mxu0
    %v1782 = vpop.f32.mrf.mxu0
    %v1783 = vadd.f32 %v1734, %v1782
    %v1784 = vpop.f32.mrf.mxu0
    %1785 = vdwg.mxu0
    %1786 = vmatprep.subr.bf16.mxu0 0
    %1787 = vmatpush1.bf16.msra.mxu0 %v1341
    %1788 = vmatprep.subr.bf16.mxu0 0
    %1789 = vmatpush1.bf16.msra.mxu0 %v1340
    %1790 = vmatprep.subr.bf16.mxu0 0
    %1791 = vmatpush1.bf16.msra.mxu0 %v1339
    %1792 = vmatprep.subr.bf16.mxu0 0
    %1793 = vmatpush1.bf16.msra.mxu0 %v1338
    %1794 = vmatprep.subr.bf16.mxu0 0
    %1795 = vmatpush1.bf16.msra.mxu0 %v1337
    %1796 = vmatprep.subr.bf16.mxu0 0
    %1797 = vmatpush1.bf16.msra.mxu0 %v1336
    %1798 = vmatprep.subr.bf16.mxu0 0
    %1799 = vmatpush1.bf16.msra.mxu0 %v1335
    %1800 = vmatprep.subr.bf16.mxu0 0
    %1801 = vmatpush1.bf16.msra.mxu0 %v1334
    %1802 = vmatprep.subr.bf16.mxu0 0
    %1803 = vmatpush2.bf16.msra.mxu0 0
    %1804 = vmatprep.subr.bf16.mxu0 0
    %1805 = vmatpush2.bf16.msra.mxu0 0
    %1806 = vmatprep.subr.bf16.mxu0 0
    %1807 = vmatpush2.bf16.msra.mxu0 0
    %1808 = vmatprep.subr.bf16.mxu0 0
    %1809 = vmatpush2.bf16.msra.mxu0 0
    %1810 = vmatprep.subr.bf16.mxu0 0
    %1811 = vmatpush2.bf16.msra.mxu0 0
    %1812 = vmatprep.subr.bf16.mxu0 0
    %1813 = vmatpush2.bf16.msra.mxu0 0
    %1814 = vmatprep.subr.bf16.mxu0 0
    %1815 = vmatpush2.bf16.msra.mxu0 0
    %1816 = vmatprep.subr.bf16.mxu0 0
    %1817 = vmatpush2.bf16.msra.mxu0 0
    %1818 = vmatprep.mubr.bf16.mxu0 0
    %1819 = vmatmul.mubr.bf16.gmra.mxu0 %v674
    %v1820 = vpop.f32.mrf.mxu0
    %v1821 = vadd.f32 %v1772, %v1820
    %v1822 = vpop.f32.mrf.mxu0
    %v1823 = vpop.f32.mrf.mxu0
    %v1824 = vadd.f32 %v1775, %v1823
    %v1825 = vpop.f32.mrf.mxu0
    %1826 = vmatprep.mubr.bf16.mxu0 0
    %1827 = vmatmul.mubr.bf16.gmra.mxu0 %v675
    %v1828 = vpop.f32.mrf.mxu0
    %v1829 = vadd.f32 %v1780, %v1828
    %v1830 = vpop.f32.mrf.mxu0
    %v1831 = vpop.f32.mrf.mxu0
    %v1832 = vadd.f32 %v1783, %v1831
    %v1833 = vpop.f32.mrf.mxu0
    %1834 = vdwg.mxu0
    %v1835 = vmax.f32 %v1821, 0.0
    %v1836 = vmax.f32 %v1824, 0.0
    %v1837 = vmax.f32 %v1829, 0.0
    %v1838 = vmax.f32 %v1832, 0.0
    %v1839 = vpack.c.bf16 %v1836, %v1835
    %v1840 = vpack.c.bf16 %v1838, %v1837
    %1841 = vmatprep.subr.bf16.mxu0 0
    %1842 = vmatpush1.bf16.msra.mxu0 %v1309
    %1843 = vmatprep.subr.bf16.mxu0 0
    %1844 = vmatpush1.bf16.msra.mxu0 %v1308
    %1845 = vmatprep.subr.bf16.mxu0 0
    %1846 = vmatpush1.bf16.msra.mxu0 %v1307
    %1847 = vmatprep.subr.bf16.mxu0 0
    %1848 = vmatpush1.bf16.msra.mxu0 %v1306
    %1849 = vmatprep.subr.bf16.mxu0 0
    %1850 = vmatpush1.bf16.msra.mxu0 %v1305
    %1851 = vmatprep.subr.bf16.mxu0 0
    %1852 = vmatpush1.bf16.msra.mxu0 %v1304
    %1853 = vmatprep.subr.bf16.mxu0 0
    %1854 = vmatpush1.bf16.msra.mxu0 %v1303
    %1855 = vmatprep.subr.bf16.mxu0 0
    %1856 = vmatpush1.bf16.msra.mxu0 %v1302
    %1857 = vmatprep.subr.bf16.mxu0 0
    %1858 = vmatpush2.bf16.msra.mxu0 %v1317
    %1859 = vmatprep.subr.bf16.mxu0 0
    %1860 = vmatpush2.bf16.msra.mxu0 %v1316
    %1861 = vmatprep.subr.bf16.mxu0 0
    %1862 = vmatpush2.bf16.msra.mxu0 %v1315
    %1863 = vmatprep.subr.bf16.mxu0 0
    %1864 = vmatpush2.bf16.msra.mxu0 %v1314
    %1865 = vmatprep.subr.bf16.mxu0 0
    %1866 = vmatpush2.bf16.msra.mxu0 %v1313
    %1867 = vmatprep.subr.bf16.mxu0 0
    %1868 = vmatpush2.bf16.msra.mxu0 %v1312
    %1869 = vmatprep.subr.bf16.mxu0 0
    %1870 = vmatpush2.bf16.msra.mxu0 %v1311
    %1871 = vmatprep.subr.bf16.mxu0 0
    %1872 = vmatpush2.bf16.msra.mxu0 %v1310
    %1873 = vmatprep.mubr.bf16.mxu0 %v522
    %1874 = vmatmul.mubr.bf16.gmra.mxu0 %v446
    %v1875 = vpop.f32.mrf.mxu0
    %v1876 = vadd.f32 %v1140, %v1875
    %v1877 = vpop.f32.mrf.mxu0
    %v1878 = vpop.f32.mrf.mxu0
    %v1879 = vadd.f32 %v1140, %v1878
    %v1880 = vpop.f32.mrf.mxu0
    %1881 = vmatprep.mubr.bf16.mxu0 %v523
    %1882 = vmatmul.mubr.bf16.gmra.mxu0 %v447
    %v1883 = vpop.f32.mrf.mxu0
    %v1884 = vadd.f32 %v1140, %v1883
    %v1885 = vpop.f32.mrf.mxu0
    %v1886 = vpop.f32.mrf.mxu0
    %v1887 = vadd.f32 %v1140, %v1886
    %v1888 = vpop.f32.mrf.mxu0
    %1889 = vdwg.mxu0
    %1890 = vmatprep.subr.bf16.mxu0 0
    %1891 = vmatpush1.bf16.msra.mxu0 %v1325
    %1892 = vmatprep.subr.bf16.mxu0 0
    %1893 = vmatpush1.bf16.msra.mxu0 %v1324
    %1894 = vmatprep.subr.bf16.mxu0 0
    %1895 = vmatpush1.bf16.msra.mxu0 %v1323
    %1896 = vmatprep.subr.bf16.mxu0 0
    %1897 = vmatpush1.bf16.msra.mxu0 %v1322
    %1898 = vmatprep.subr.bf16.mxu0 0
    %1899 = vmatpush1.bf16.msra.mxu0 %v1321
    %1900 = vmatprep.subr.bf16.mxu0 0
    %1901 = vmatpush1.bf16.msra.mxu0 %v1320
    %1902 = vmatprep.subr.bf16.mxu0 0
    %1903 = vmatpush1.bf16.msra.mxu0 %v1319
    %1904 = vmatprep.subr.bf16.mxu0 0
    %1905 = vmatpush1.bf16.msra.mxu0 %v1318
    %1906 = vmatprep.subr.bf16.mxu0 0
    %1907 = vmatpush2.bf16.msra.mxu0 %v1333
    %1908 = vmatprep.subr.bf16.mxu0 0
    %1909 = vmatpush2.bf16.msra.mxu0 %v1332
    %1910 = vmatprep.subr.bf16.mxu0 0
    %1911 = vmatpush2.bf16.msra.mxu0 %v1331
    %1912 = vmatprep.subr.bf16.mxu0 0
    %1913 = vmatpush2.bf16.msra.mxu0 %v1330
    %1914 = vmatprep.subr.bf16.mxu0 0
    %1915 = vmatpush2.bf16.msra.mxu0 %v1329
    %1916 = vmatprep.subr.bf16.mxu0 0
    %1917 = vmatpush2.bf16.msra.mxu0 %v1328
    %1918 = vmatprep.subr.bf16.mxu0 0
    %1919 = vmatpush2.bf16.msra.mxu0 %v1327
    %1920 = vmatprep.subr.bf16.mxu0 0
    %1921 = vmatpush2.bf16.msra.mxu0 %v1326
    %1922 = vmatprep.mubr.bf16.mxu0 %v674
    %1923 = vmatmul.mubr.bf16.gmra.mxu0 %v598
    %v1924 = vpop.f32.mrf.mxu0
    %v1925 = vadd.f32 %v1876, %v1924
    %v1926 = vpop.f32.mrf.mxu0
    %v1927 = vpop.f32.mrf.mxu0
    %v1928 = vadd.f32 %v1879, %v1927
    %v1929 = vpop.f32.mrf.mxu0
    %1930 = vmatprep.mubr.bf16.mxu0 %v675
    %1931 = vmatmul.mubr.bf16.gmra.mxu0 %v599
    %v1932 = vpop.f32.mrf.mxu0
    %v1933 = vadd.f32 %v1884, %v1932
    %v1934 = vpop.f32.mrf.mxu0
    %v1935 = vpop.f32.mrf.mxu0
    %v1936 = vadd.f32 %v1887, %v1935
    %v1937 = vpop.f32.mrf.mxu0
    %1938 = vdwg.mxu0
    %1939 = vmatprep.subr.bf16.mxu0 0
    %1940 = vmatpush1.bf16.msra.mxu0 %v1341
    %1941 = vmatprep.subr.bf16.mxu0 0
    %1942 = vmatpush1.bf16.msra.mxu0 %v1340
    %1943 = vmatprep.subr.bf16.mxu0 0
    %1944 = vmatpush1.bf16.msra.mxu0 %v1339
    %1945 = vmatprep.subr.bf16.mxu0 0
    %1946 = vmatpush1.bf16.msra.mxu0 %v1338
    %1947 = vmatprep.subr.bf16.mxu0 0
    %1948 = vmatpush1.bf16.msra.mxu0 %v1337
    %1949 = vmatprep.subr.bf16.mxu0 0
    %1950 = vmatpush1.bf16.msra.mxu0 %v1336
    %1951 = vmatprep.subr.bf16.mxu0 0
    %1952 = vmatpush1.bf16.msra.mxu0 %v1335
    %1953 = vmatprep.subr.bf16.mxu0 0
    %1954 = vmatpush1.bf16.msra.mxu0 %v1334
    %1955 = vmatprep.subr.bf16.mxu0 0
    %1956 = vmatpush2.bf16.msra.mxu0 0
    %1957 = vmatprep.subr.bf16.mxu0 0
    %1958 = vmatpush2.bf16.msra.mxu0 0
    %1959 = vmatprep.subr.bf16.mxu0 0
    %1960 = vmatpush2.bf16.msra.mxu0 0
    %1961 = vmatprep.subr.bf16.mxu0 0
    %1962 = vmatpush2.bf16.msra.mxu0 0
    %1963 = vmatprep.subr.bf16.mxu0 0
    %1964 = vmatpush2.bf16.msra.mxu0 0
    %1965 = vmatprep.subr.bf16.mxu0 0
    %1966 = vmatpush2.bf16.msra.mxu0 0
    %1967 = vmatprep.subr.bf16.mxu0 0
    %1968 = vmatpush2.bf16.msra.mxu0 0
    %1969 = vmatprep.subr.bf16.mxu0 0
    %1970 = vmatpush2.bf16.msra.mxu0 0
    %1971 = vmatprep.mubr.bf16.mxu0 0
    %1972 = vmatmul.mubr.bf16.gmra.mxu0 %v750
    %v1973 = vpop.f32.mrf.mxu0
    %v1974 = vadd.f32 %v1925, %v1973
    %v1975 = vpop.f32.mrf.mxu0
    %v1976 = vpop.f32.mrf.mxu0
    %v1977 = vadd.f32 %v1928, %v1976
    %v1978 = vpop.f32.mrf.mxu0
    %1979 = vmatprep.mubr.bf16.mxu0 0
    %1980 = vmatmul.mubr.bf16.gmra.mxu0 %v751
    %v1981 = vpop.f32.mrf.mxu0
    %v1982 = vadd.f32 %v1933, %v1981
    %v1983 = vpop.f32.mrf.mxu0
    %v1984 = vpop.f32.mrf.mxu0
    %v1985 = vadd.f32 %v1936, %v1984
    %v1986 = vpop.f32.mrf.mxu0
    %1987 = vdwg.mxu0
    %v1988 = vmax.f32 %v1974, 0.0
    %v1989 = vmax.f32 %v1977, 0.0
    %v1990 = vmax.f32 %v1982, 0.0
    %v1991 = vmax.f32 %v1985, 0.0
    %v1992 = vpack.c.bf16 %v1989, %v1988
    %v1993 = vpack.c.bf16 %v1991, %v1990
    %1994 = vmatprep.subr.bf16.mxu0 0
    %1995 = vmatpush1.bf16.msra.mxu0 %v1309
    %1996 = vmatprep.subr.bf16.mxu0 0
    %1997 = vmatpush1.bf16.msra.mxu0 %v1308
    %1998 = vmatprep.subr.bf16.mxu0 0
    %1999 = vmatpush1.bf16.msra.mxu0 %v1307
    %2000 = vmatprep.subr.bf16.mxu0 0
    %2001 = vmatpush1.bf16.msra.mxu0 %v1306
    %2002 = vmatprep.subr.bf16.mxu0 0
    %2003 = vmatpush1.bf16.msra.mxu0 %v1305
    %2004 = vmatprep.subr.bf16.mxu0 0
    %2005 = vmatpush1.bf16.msra.mxu0 %v1304
    %2006 = vmatprep.subr.bf16.mxu0 0
    %2007 = vmatpush1.bf16.msra.mxu0 %v1303
    %2008 = vmatprep.subr.bf16.mxu0 0
    %2009 = vmatpush1.bf16.msra.mxu0 %v1302
    %2010 = vmatprep.subr.bf16.mxu0 0
    %2011 = vmatpush2.bf16.msra.mxu0 %v1317
    %2012 = vmatprep.subr.bf16.mxu0 0
    %2013 = vmatpush2.bf16.msra.mxu0 %v1316
    %2014 = vmatprep.subr.bf16.mxu0 0
    %2015 = vmatpush2.bf16.msra.mxu0 %v1315
    %2016 = vmatprep.subr.bf16.mxu0 0
    %2017 = vmatpush2.bf16.msra.mxu0 %v1314
    %2018 = vmatprep.subr.bf16.mxu0 0
    %2019 = vmatpush2.bf16.msra.mxu0 %v1313
    %2020 = vmatprep.subr.bf16.mxu0 0
    %2021 = vmatpush2.bf16.msra.mxu0 %v1312
    %2022 = vmatprep.subr.bf16.mxu0 0
    %2023 = vmatpush2.bf16.msra.mxu0 %v1311
    %2024 = vmatprep.subr.bf16.mxu0 0
    %2025 = vmatpush2.bf16.msra.mxu0 %v1310
    %2026 = vmatprep.mubr.bf16.mxu0 %v598
    %2027 = vmatmul.mubr.bf16.gmra.mxu0 %v522
    %v2028 = vpop.f32.mrf.mxu0
    %v2029 = vadd.f32 %v1140, %v2028
    %v2030 = vpop.f32.mrf.mxu0
    %v2031 = vpop.f32.mrf.mxu0
    %v2032 = vadd.f32 %v1140, %v2031
    %v2033 = vpop.f32.mrf.mxu0
    %2034 = vmatprep.mubr.bf16.mxu0 %v599
    %2035 = vmatmul.mubr.bf16.gmra.mxu0 %v523
    %v2036 = vpop.f32.mrf.mxu0
    %v2037 = vadd.f32 %v1140, %v2036
    %v2038 = vpop.f32.mrf.mxu0
    %v2039 = vpop.f32.mrf.mxu0
    %v2040 = vadd.f32 %v1140, %v2039
    %v2041 = vpop.f32.mrf.mxu0
    %2042 = vdwg.mxu0
    %2043 = vmatprep.subr.bf16.mxu0 0
    %2044 = vmatpush1.bf16.msra.mxu0 %v1325
    %2045 = vmatprep.subr.bf16.mxu0 0
    %2046 = vmatpush1.bf16.msra.mxu0 %v1324
    %2047 = vmatprep.subr.bf16.mxu0 0
    %2048 = vmatpush1.bf16.msra.mxu0 %v1323
    %2049 = vmatprep.subr.bf16.mxu0 0
    %2050 = vmatpush1.bf16.msra.mxu0 %v1322
    %2051 = vmatprep.subr.bf16.mxu0 0
    %2052 = vmatpush1.bf16.msra.mxu0 %v1321
    %2053 = vmatprep.subr.bf16.mxu0 0
    %2054 = vmatpush1.bf16.msra.mxu0 %v1320
    %2055 = vmatprep.subr.bf16.mxu0 0
    %2056 = vmatpush1.bf16.msra.mxu0 %v1319
    %2057 = vmatprep.subr.bf16.mxu0 0
    %2058 = vmatpush1.bf16.msra.mxu0 %v1318
    %2059 = vmatprep.subr.bf16.mxu0 0
    %2060 = vmatpush2.bf16.msra.mxu0 %v1333
    %2061 = vmatprep.subr.bf16.mxu0 0
    %2062 = vmatpush2.bf16.msra.mxu0 %v1332
    %2063 = vmatprep.subr.bf16.mxu0 0
    %2064 = vmatpush2.bf16.msra.mxu0 %v1331
    %2065 = vmatprep.subr.bf16.mxu0 0
    %2066 = vmatpush2.bf16.msra.mxu0 %v1330
    %2067 = vmatprep.subr.bf16.mxu0 0
    %2068 = vmatpush2.bf16.msra.mxu0 %v1329
    %2069 = vmatprep.subr.bf16.mxu0 0
    %2070 = vmatpush2.bf16.msra.mxu0 %v1328
    %2071 = vmatprep.subr.bf16.mxu0 0
    %2072 = vmatpush2.bf16.msra.mxu0 %v1327
    %2073 = vmatprep.subr.bf16.mxu0 0
    %2074 = vmatpush2.bf16.msra.mxu0 %v1326
    %2075 = vmatprep.mubr.bf16.mxu0 %v750
    %2076 = vmatmul.mubr.bf16.gmra.mxu0 %v674
    %v2077 = vpop.f32.mrf.mxu0
    %v2078 = vadd.f32 %v2029, %v2077
    %v2079 = vpop.f32.mrf.mxu0
    %v2080 = vpop.f32.mrf.mxu0
    %v2081 = vadd.f32 %v2032, %v2080
    %v2082 = vpop.f32.mrf.mxu0
    %2083 = vmatprep.mubr.bf16.mxu0 %v751
    %2084 = vmatmul.mubr.bf16.gmra.mxu0 %v675
    %v2085 = vpop.f32.mrf.mxu0
    %v2086 = vadd.f32 %v2037, %v2085
    %v2087 = vpop.f32.mrf.mxu0
    %v2088 = vpop.f32.mrf.mxu0
    %v2089 = vadd.f32 %v2040, %v2088
    %v2090 = vpop.f32.mrf.mxu0
    %2091 = vdwg.mxu0
    %2092 = vmatprep.subr.bf16.mxu0 0
    %2093 = vmatpush1.bf16.msra.mxu0 %v1341
    %2094 = vmatprep.subr.bf16.mxu0 0
    %2095 = vmatpush1.bf16.msra.mxu0 %v1340
    %2096 = vmatprep.subr.bf16.mxu0 0
    %2097 = vmatpush1.bf16.msra.mxu0 %v1339
    %2098 = vmatprep.subr.bf16.mxu0 0
    %2099 = vmatpush1.bf16.msra.mxu0 %v1338
    %2100 = vmatprep.subr.bf16.mxu0 0
    %2101 = vmatpush1.bf16.msra.mxu0 %v1337
    %2102 = vmatprep.subr.bf16.mxu0 0
    %2103 = vmatpush1.bf16.msra.mxu0 %v1336
    %2104 = vmatprep.subr.bf16.mxu0 0
    %2105 = vmatpush1.bf16.msra.mxu0 %v1335
    %2106 = vmatprep.subr.bf16.mxu0 0
    %2107 = vmatpush1.bf16.msra.mxu0 %v1334
    %2108 = vmatprep.subr.bf16.mxu0 0
    %2109 = vmatpush2.bf16.msra.mxu0 0
    %2110 = vmatprep.subr.bf16.mxu0 0
    %2111 = vmatpush2.bf16.msra.mxu0 0
    %2112 = vmatprep.subr.bf16.mxu0 0
    %2113 = vmatpush2.bf16.msra.mxu0 0
    %2114 = vmatprep.subr.bf16.mxu0 0
    %2115 = vmatpush2.bf16.msra.mxu0 0
    %2116 = vmatprep.subr.bf16.mxu0 0
    %2117 = vmatpush2.bf16.msra.mxu0 0
    %2118 = vmatprep.subr.bf16.mxu0 0
    %2119 = vmatpush2.bf16.msra.mxu0 0
    %2120 = vmatprep.subr.bf16.mxu0 0
    %2121 = vmatpush2.bf16.msra.mxu0 0
    %2122 = vmatprep.subr.bf16.mxu0 0
    %2123 = vmatpush2.bf16.msra.mxu0 0
    %2124 = vmatprep.mubr.bf16.mxu0 0
    %2125 = vmatmul.mubr.bf16.gmra.mxu0 %v826
    %v2126 = vpop.f32.mrf.mxu0
    %v2127 = vadd.f32 %v2078, %v2126
    %v2128 = vpop.f32.mrf.mxu0
    %v2129 = vpop.f32.mrf.mxu0
    %v2130 = vadd.f32 %v2081, %v2129
    %v2131 = vpop.f32.mrf.mxu0
    %2132 = vmatprep.mubr.bf16.mxu0 0
    %2133 = vmatmul.mubr.bf16.gmra.mxu0 %v827
    %v2134 = vpop.f32.mrf.mxu0
    %v2135 = vadd.f32 %v2086, %v2134
    %v2136 = vpop.f32.mrf.mxu0
    %v2137 = vpop.f32.mrf.mxu0
    %v2138 = vadd.f32 %v2089, %v2137
    %v2139 = vpop.f32.mrf.mxu0
    %2140 = vdwg.mxu0
    %v2141 = vmax.f32 %v2127, 0.0
    %v2142 = vmax.f32 %v2130, 0.0
    %v2143 = vmax.f32 %v2135, 0.0
    %v2144 = vmax.f32 %v2138, 0.0
    %v2145 = vpack.c.bf16 %v2142, %v2141
    %v2146 = vpack.c.bf16 %v2144, %v2143
    %2147 = vmatprep.subr.bf16.mxu0 0
    %2148 = vmatpush1.bf16.msra.mxu0 %v1309
    %2149 = vmatprep.subr.bf16.mxu0 0
    %2150 = vmatpush1.bf16.msra.mxu0 %v1308
    %2151 = vmatprep.subr.bf16.mxu0 0
    %2152 = vmatpush1.bf16.msra.mxu0 %v1307
    %2153 = vmatprep.subr.bf16.mxu0 0
    %2154 = vmatpush1.bf16.msra.mxu0 %v1306
    %2155 = vmatprep.subr.bf16.mxu0 0
    %2156 = vmatpush1.bf16.msra.mxu0 %v1305
    %2157 = vmatprep.subr.bf16.mxu0 0
    %2158 = vmatpush1.bf16.msra.mxu0 %v1304
    %2159 = vmatprep.subr.bf16.mxu0 0
    %2160 = vmatpush1.bf16.msra.mxu0 %v1303
    %2161 = vmatprep.subr.bf16.mxu0 0
    %2162 = vmatpush1.bf16.msra.mxu0 %v1302
    %2163 = vmatprep.subr.bf16.mxu0 0
    %2164 = vmatpush2.bf16.msra.mxu0 %v1317
    %2165 = vmatprep.subr.bf16.mxu0 0
    %2166 = vmatpush2.bf16.msra.mxu0 %v1316
    %2167 = vmatprep.subr.bf16.mxu0 0
    %2168 = vmatpush2.bf16.msra.mxu0 %v1315
    %2169 = vmatprep.subr.bf16.mxu0 0
    %2170 = vmatpush2.bf16.msra.mxu0 %v1314
    %2171 = vmatprep.subr.bf16.mxu0 0
    %2172 = vmatpush2.bf16.msra.mxu0 %v1313
    %2173 = vmatprep.subr.bf16.mxu0 0
    %2174 = vmatpush2.bf16.msra.mxu0 %v1312
    %2175 = vmatprep.subr.bf16.mxu0 0
    %2176 = vmatpush2.bf16.msra.mxu0 %v1311
    %2177 = vmatprep.subr.bf16.mxu0 0
    %2178 = vmatpush2.bf16.msra.mxu0 %v1310
    %2179 = vmatprep.mubr.bf16.mxu0 %v674
    %2180 = vmatmul.mubr.bf16.gmra.mxu0 %v598
    %v2181 = vpop.f32.mrf.mxu0
    %v2182 = vadd.f32 %v1140, %v2181
    %v2183 = vpop.f32.mrf.mxu0
    %v2184 = vpop.f32.mrf.mxu0
    %v2185 = vadd.f32 %v1140, %v2184
    %v2186 = vpop.f32.mrf.mxu0
    %2187 = vmatprep.mubr.bf16.mxu0 %v675
    %2188 = vmatmul.mubr.bf16.gmra.mxu0 %v599
    %v2189 = vpop.f32.mrf.mxu0
    %v2190 = vadd.f32 %v1140, %v2189
    %v2191 = vpop.f32.mrf.mxu0
    %v2192 = vpop.f32.mrf.mxu0
    %v2193 = vadd.f32 %v1140, %v2192
    %v2194 = vpop.f32.mrf.mxu0
    %2195 = vdwg.mxu0
    %2196 = vmatprep.subr.bf16.mxu0 0
    %2197 = vmatpush1.bf16.msra.mxu0 %v1325
    %2198 = vmatprep.subr.bf16.mxu0 0
    %2199 = vmatpush1.bf16.msra.mxu0 %v1324
    %2200 = vmatprep.subr.bf16.mxu0 0
    %2201 = vmatpush1.bf16.msra.mxu0 %v1323
    %2202 = vmatprep.subr.bf16.mxu0 0
    %2203 = vmatpush1.bf16.msra.mxu0 %v1322
    %2204 = vmatprep.subr.bf16.mxu0 0
    %2205 = vmatpush1.bf16.msra.mxu0 %v1321
    %2206 = vmatprep.subr.bf16.mxu0 0
    %2207 = vmatpush1.bf16.msra.mxu0 %v1320
    %2208 = vmatprep.subr.bf16.mxu0 0
    %2209 = vmatpush1.bf16.msra.mxu0 %v1319
    %2210 = vmatprep.subr.bf16.mxu0 0
    %2211 = vmatpush1.bf16.msra.mxu0 %v1318
    %2212 = vmatprep.subr.bf16.mxu0 0
    %2213 = vmatpush2.bf16.msra.mxu0 %v1333
    %2214 = vmatprep.subr.bf16.mxu0 0
    %2215 = vmatpush2.bf16.msra.mxu0 %v1332
    %2216 = vmatprep.subr.bf16.mxu0 0
    %2217 = vmatpush2.bf16.msra.mxu0 %v1331
    %2218 = vmatprep.subr.bf16.mxu0 0
    %2219 = vmatpush2.bf16.msra.mxu0 %v1330
    %2220 = vmatprep.subr.bf16.mxu0 0
    %2221 = vmatpush2.bf16.msra.mxu0 %v1329
    %2222 = vmatprep.subr.bf16.mxu0 0
    %2223 = vmatpush2.bf16.msra.mxu0 %v1328
    %2224 = vmatprep.subr.bf16.mxu0 0
    %2225 = vmatpush2.bf16.msra.mxu0 %v1327
    %2226 = vmatprep.subr.bf16.mxu0 0
    %2227 = vmatpush2.bf16.msra.mxu0 %v1326
    %2228 = vmatprep.mubr.bf16.mxu0 %v826
    %2229 = vmatmul.mubr.bf16.gmra.mxu0 %v750
    %v2230 = vpop.f32.mrf.mxu0
    %v2231 = vadd.f32 %v2182, %v2230
    %v2232 = vpop.f32.mrf.mxu0
    %v2233 = vpop.f32.mrf.mxu0
    %v2234 = vadd.f32 %v2185, %v2233
    %v2235 = vpop.f32.mrf.mxu0
    %2236 = vmatprep.mubr.bf16.mxu0 %v827
    %2237 = vmatmul.mubr.bf16.gmra.mxu0 %v751
    %v2238 = vpop.f32.mrf.mxu0
    %v2239 = vadd.f32 %v2190, %v2238
    %v2240 = vpop.f32.mrf.mxu0
    %v2241 = vpop.f32.mrf.mxu0
    %v2242 = vadd.f32 %v2193, %v2241
    %v2243 = vpop.f32.mrf.mxu0
    %2244 = vdwg.mxu0
    %2245 = vmatprep.subr.bf16.mxu0 0
    %2246 = vmatpush1.bf16.msra.mxu0 %v1341
    %2247 = vmatprep.subr.bf16.mxu0 0
    %2248 = vmatpush1.bf16.msra.mxu0 %v1340
    %2249 = vmatprep.subr.bf16.mxu0 0
    %2250 = vmatpush1.bf16.msra.mxu0 %v1339
    %2251 = vmatprep.subr.bf16.mxu0 0
    %2252 = vmatpush1.bf16.msra.mxu0 %v1338
    %2253 = vmatprep.subr.bf16.mxu0 0
    %2254 = vmatpush1.bf16.msra.mxu0 %v1337
    %2255 = vmatprep.subr.bf16.mxu0 0
    %2256 = vmatpush1.bf16.msra.mxu0 %v1336
    %2257 = vmatprep.subr.bf16.mxu0 0
    %2258 = vmatpush1.bf16.msra.mxu0 %v1335
    %2259 = vmatprep.subr.bf16.mxu0 0
    %2260 = vmatpush1.bf16.msra.mxu0 %v1334
    %2261 = vmatprep.subr.bf16.mxu0 0
    %2262 = vmatpush2.bf16.msra.mxu0 0
    %2263 = vmatprep.subr.bf16.mxu0 0
    %2264 = vmatpush2.bf16.msra.mxu0 0
    %2265 = vmatprep.subr.bf16.mxu0 0
    %2266 = vmatpush2.bf16.msra.mxu0 0
    %2267 = vmatprep.subr.bf16.mxu0 0
    %2268 = vmatpush2.bf16.msra.mxu0 0
    %2269 = vmatprep.subr.bf16.mxu0 0
    %2270 = vmatpush2.bf16.msra.mxu0 0
    %2271 = vmatprep.subr.bf16.mxu0 0
    %2272 = vmatpush2.bf16.msra.mxu0 0
    %2273 = vmatprep.subr.bf16.mxu0 0
    %2274 = vmatpush2.bf16.msra.mxu0 0
    %2275 = vmatprep.subr.bf16.mxu0 0
    %2276 = vmatpush2.bf16.msra.mxu0 0
    %2277 = vmatprep.mubr.bf16.mxu0 0
    %2278 = vmatmul.mubr.bf16.gmra.mxu0 %v902
    %v2279 = vpop.f32.mrf.mxu0
    %v2280 = vadd.f32 %v2231, %v2279
    %v2281 = vpop.f32.mrf.mxu0
    %v2282 = vpop.f32.mrf.mxu0
    %v2283 = vadd.f32 %v2234, %v2282
    %v2284 = vpop.f32.mrf.mxu0
    %2285 = vmatprep.mubr.bf16.mxu0 0
    %2286 = vmatmul.mubr.bf16.gmra.mxu0 %v903
    %v2287 = vpop.f32.mrf.mxu0
    %v2288 = vadd.f32 %v2239, %v2287
    %v2289 = vpop.f32.mrf.mxu0
    %v2290 = vpop.f32.mrf.mxu0
    %v2291 = vadd.f32 %v2242, %v2290
    %v2292 = vpop.f32.mrf.mxu0
    %2293 = vdwg.mxu0
    %v2294 = vmax.f32 %v2280, 0.0
    %v2295 = vmax.f32 %v2283, 0.0
    %v2296 = vmax.f32 %v2288, 0.0
    %v2297 = vmax.f32 %v2291, 0.0
    %v2298 = vpack.c.bf16 %v2295, %v2294
    %v2299 = vpack.c.bf16 %v2297, %v2296
    %2300 = vmatprep.subr.bf16.mxu0 0
    %2301 = vmatpush1.bf16.msra.mxu0 %v1309
    %2302 = vmatprep.subr.bf16.mxu0 0
    %2303 = vmatpush1.bf16.msra.mxu0 %v1308
    %2304 = vmatprep.subr.bf16.mxu0 0
    %2305 = vmatpush1.bf16.msra.mxu0 %v1307
    %2306 = vmatprep.subr.bf16.mxu0 0
    %2307 = vmatpush1.bf16.msra.mxu0 %v1306
    %2308 = vmatprep.subr.bf16.mxu0 0
    %2309 = vmatpush1.bf16.msra.mxu0 %v1305
    %2310 = vmatprep.subr.bf16.mxu0 0
    %2311 = vmatpush1.bf16.msra.mxu0 %v1304
    %2312 = vmatprep.subr.bf16.mxu0 0
    %2313 = vmatpush1.bf16.msra.mxu0 %v1303
    %2314 = vmatprep.subr.bf16.mxu0 0
    %2315 = vmatpush1.bf16.msra.mxu0 %v1302
    %2316 = vmatprep.subr.bf16.mxu0 0
    %2317 = vmatpush2.bf16.msra.mxu0 %v1317
    %2318 = vmatprep.subr.bf16.mxu0 0
    %2319 = vmatpush2.bf16.msra.mxu0 %v1316
    %2320 = vmatprep.subr.bf16.mxu0 0
    %2321 = vmatpush2.bf16.msra.mxu0 %v1315
    %2322 = vmatprep.subr.bf16.mxu0 0
    %2323 = vmatpush2.bf16.msra.mxu0 %v1314
    %2324 = vmatprep.subr.bf16.mxu0 0
    %2325 = vmatpush2.bf16.msra.mxu0 %v1313
    %2326 = vmatprep.subr.bf16.mxu0 0
    %2327 = vmatpush2.bf16.msra.mxu0 %v1312
    %2328 = vmatprep.subr.bf16.mxu0 0
    %2329 = vmatpush2.bf16.msra.mxu0 %v1311
    %2330 = vmatprep.subr.bf16.mxu0 0
    %2331 = vmatpush2.bf16.msra.mxu0 %v1310
    %2332 = vmatprep.mubr.bf16.mxu0 %v750
    %2333 = vmatmul.mubr.bf16.gmra.mxu0 %v674
    %v2334 = vpop.f32.mrf.mxu0
    %v2335 = vadd.f32 %v1140, %v2334
    %v2336 = vpop.f32.mrf.mxu0
    %v2337 = vpop.f32.mrf.mxu0
    %v2338 = vadd.f32 %v1140, %v2337
    %v2339 = vpop.f32.mrf.mxu0
    %2340 = vmatprep.mubr.bf16.mxu0 %v751
    %2341 = vmatmul.mubr.bf16.gmra.mxu0 %v675
    %v2342 = vpop.f32.mrf.mxu0
    %v2343 = vadd.f32 %v1140, %v2342
    %v2344 = vpop.f32.mrf.mxu0
    %v2345 = vpop.f32.mrf.mxu0
    %v2346 = vadd.f32 %v1140, %v2345
    %v2347 = vpop.f32.mrf.mxu0
    %2348 = vdwg.mxu0
    %2349 = vmatprep.subr.bf16.mxu0 0
    %2350 = vmatpush1.bf16.msra.mxu0 %v1325
    %2351 = vmatprep.subr.bf16.mxu0 0
    %2352 = vmatpush1.bf16.msra.mxu0 %v1324
    %2353 = vmatprep.subr.bf16.mxu0 0
    %2354 = vmatpush1.bf16.msra.mxu0 %v1323
    %2355 = vmatprep.subr.bf16.mxu0 0
    %2356 = vmatpush1.bf16.msra.mxu0 %v1322
    %2357 = vmatprep.subr.bf16.mxu0 0
    %2358 = vmatpush1.bf16.msra.mxu0 %v1321
    %2359 = vmatprep.subr.bf16.mxu0 0
    %2360 = vmatpush1.bf16.msra.mxu0 %v1320
    %2361 = vmatprep.subr.bf16.mxu0 0
    %2362 = vmatpush1.bf16.msra.mxu0 %v1319
    %2363 = vmatprep.subr.bf16.mxu0 0
    %2364 = vmatpush1.bf16.msra.mxu0 %v1318
    %2365 = vmatprep.subr.bf16.mxu0 0
    %2366 = vmatpush2.bf16.msra.mxu0 %v1333
    %2367 = vmatprep.subr.bf16.mxu0 0
    %2368 = vmatpush2.bf16.msra.mxu0 %v1332
    %2369 = vmatprep.subr.bf16.mxu0 0
    %2370 = vmatpush2.bf16.msra.mxu0 %v1331
    %2371 = vmatprep.subr.bf16.mxu0 0
    %2372 = vmatpush2.bf16.msra.mxu0 %v1330
    %2373 = vmatprep.subr.bf16.mxu0 0
    %2374 = vmatpush2.bf16.msra.mxu0 %v1329
    %2375 = vmatprep.subr.bf16.mxu0 0
    %2376 = vmatpush2.bf16.msra.mxu0 %v1328
    %2377 = vmatprep.subr.bf16.mxu0 0
    %2378 = vmatpush2.bf16.msra.mxu0 %v1327
    %2379 = vmatprep.subr.bf16.mxu0 0
    %2380 = vmatpush2.bf16.msra.mxu0 %v1326
    %2381 = vmatprep.mubr.bf16.mxu0 %v902
    %2382 = vmatmul.mubr.bf16.gmra.mxu0 %v826
    %v2383 = vpop.f32.mrf.mxu0
    %v2384 = vadd.f32 %v2335, %v2383
    %v2385 = vpop.f32.mrf.mxu0
    %v2386 = vpop.f32.mrf.mxu0
    %v2387 = vadd.f32 %v2338, %v2386
    %v2388 = vpop.f32.mrf.mxu0
    %2389 = vmatprep.mubr.bf16.mxu0 %v903
    %2390 = vmatmul.mubr.bf16.gmra.mxu0 %v827
    %v2391 = vpop.f32.mrf.mxu0
    %v2392 = vadd.f32 %v2343, %v2391
    %v2393 = vpop.f32.mrf.mxu0
    %v2394 = vpop.f32.mrf.mxu0
    %v2395 = vadd.f32 %v2346, %v2394
    %v2396 = vpop.f32.mrf.mxu0
    %2397 = vdwg.mxu0
    %2398 = vmatprep.subr.bf16.mxu0 0
    %2399 = vmatpush1.bf16.msra.mxu0 %v1341
    %2400 = vmatprep.subr.bf16.mxu0 0
    %2401 = vmatpush1.bf16.msra.mxu0 %v1340
    %2402 = vmatprep.subr.bf16.mxu0 0
    %2403 = vmatpush1.bf16.msra.mxu0 %v1339
    %2404 = vmatprep.subr.bf16.mxu0 0
    %2405 = vmatpush1.bf16.msra.mxu0 %v1338
    %2406 = vmatprep.subr.bf16.mxu0 0
    %2407 = vmatpush1.bf16.msra.mxu0 %v1337
    %2408 = vmatprep.subr.bf16.mxu0 0
    %2409 = vmatpush1.bf16.msra.mxu0 %v1336
    %2410 = vmatprep.subr.bf16.mxu0 0
    %2411 = vmatpush1.bf16.msra.mxu0 %v1335
    %2412 = vmatprep.subr.bf16.mxu0 0
    %2413 = vmatpush1.bf16.msra.mxu0 %v1334
    %2414 = vmatprep.subr.bf16.mxu0 0
    %2415 = vmatpush2.bf16.msra.mxu0 0
    %2416 = vmatprep.subr.bf16.mxu0 0
    %2417 = vmatpush2.bf16.msra.mxu0 0
    %2418 = vmatprep.subr.bf16.mxu0 0
    %2419 = vmatpush2.bf16.msra.mxu0 0
    %2420 = vmatprep.subr.bf16.mxu0 0
    %2421 = vmatpush2.bf16.msra.mxu0 0
    %2422 = vmatprep.subr.bf16.mxu0 0
    %2423 = vmatpush2.bf16.msra.mxu0 0
    %2424 = vmatprep.subr.bf16.mxu0 0
    %2425 = vmatpush2.bf16.msra.mxu0 0
    %2426 = vmatprep.subr.bf16.mxu0 0
    %2427 = vmatpush2.bf16.msra.mxu0 0
    %2428 = vmatprep.subr.bf16.mxu0 0
    %2429 = vmatpush2.bf16.msra.mxu0 0
    %2430 = vmatprep.mubr.bf16.mxu0 0
    %2431 = vmatmul.mubr.bf16.gmra.mxu0 %v978
    %v2432 = vpop.f32.mrf.mxu0
    %v2433 = vadd.f32 %v2384, %v2432
    %v2434 = vpop.f32.mrf.mxu0
    %v2435 = vpop.f32.mrf.mxu0
    %v2436 = vadd.f32 %v2387, %v2435
    %v2437 = vpop.f32.mrf.mxu0
    %2438 = vmatprep.mubr.bf16.mxu0 0
    %2439 = vmatmul.mubr.bf16.gmra.mxu0 %v979
    %v2440 = vpop.f32.mrf.mxu0
    %v2441 = vadd.f32 %v2392, %v2440
    %v2442 = vpop.f32.mrf.mxu0
    %v2443 = vpop.f32.mrf.mxu0
    %v2444 = vadd.f32 %v2395, %v2443
    %v2445 = vpop.f32.mrf.mxu0
    %2446 = vdwg.mxu0
    %v2447 = vmax.f32 %v2433, 0.0
    %v2448 = vmax.f32 %v2436, 0.0
    %v2449 = vmax.f32 %v2441, 0.0
    %v2450 = vmax.f32 %v2444, 0.0
    %v2451 = vpack.c.bf16 %v2448, %v2447
    %v2452 = vpack.c.bf16 %v2450, %v2449
    %2453 = vmatprep.subr.bf16.mxu0 0
    %2454 = vmatpush1.bf16.msra.mxu0 %v1309
    %2455 = vmatprep.subr.bf16.mxu0 0
    %2456 = vmatpush1.bf16.msra.mxu0 %v1308
    %2457 = vmatprep.subr.bf16.mxu0 0
    %2458 = vmatpush1.bf16.msra.mxu0 %v1307
    %2459 = vmatprep.subr.bf16.mxu0 0
    %2460 = vmatpush1.bf16.msra.mxu0 %v1306
    %2461 = vmatprep.subr.bf16.mxu0 0
    %2462 = vmatpush1.bf16.msra.mxu0 %v1305
    %2463 = vmatprep.subr.bf16.mxu0 0
    %2464 = vmatpush1.bf16.msra.mxu0 %v1304
    %2465 = vmatprep.subr.bf16.mxu0 0
    %2466 = vmatpush1.bf16.msra.mxu0 %v1303
    %2467 = vmatprep.subr.bf16.mxu0 0
    %2468 = vmatpush1.bf16.msra.mxu0 %v1302
    %2469 = vmatprep.subr.bf16.mxu0 0
    %2470 = vmatpush2.bf16.msra.mxu0 %v1317
    %2471 = vmatprep.subr.bf16.mxu0 0
    %2472 = vmatpush2.bf16.msra.mxu0 %v1316
    %2473 = vmatprep.subr.bf16.mxu0 0
    %2474 = vmatpush2.bf16.msra.mxu0 %v1315
    %2475 = vmatprep.subr.bf16.mxu0 0
    %2476 = vmatpush2.bf16.msra.mxu0 %v1314
    %2477 = vmatprep.subr.bf16.mxu0 0
    %2478 = vmatpush2.bf16.msra.mxu0 %v1313
    %2479 = vmatprep.subr.bf16.mxu0 0
    %2480 = vmatpush2.bf16.msra.mxu0 %v1312
    %2481 = vmatprep.subr.bf16.mxu0 0
    %2482 = vmatpush2.bf16.msra.mxu0 %v1311
    %2483 = vmatprep.subr.bf16.mxu0 0
    %2484 = vmatpush2.bf16.msra.mxu0 %v1310
    %2485 = vmatprep.mubr.bf16.mxu0 %v826
    %2486 = vmatmul.mubr.bf16.gmra.mxu0 %v750
    %v2487 = vpop.f32.mrf.mxu0
    %v2488 = vadd.f32 %v1140, %v2487
    %v2489 = vpop.f32.mrf.mxu0
    %v2490 = vpop.f32.mrf.mxu0
    %v2491 = vadd.f32 %v1140, %v2490
    %v2492 = vpop.f32.mrf.mxu0
    %2493 = vmatprep.mubr.bf16.mxu0 %v827
    %2494 = vmatmul.mubr.bf16.gmra.mxu0 %v751
    %v2495 = vpop.f32.mrf.mxu0
    %v2496 = vadd.f32 %v1140, %v2495
    %v2497 = vpop.f32.mrf.mxu0
    %v2498 = vpop.f32.mrf.mxu0
    %v2499 = vadd.f32 %v1140, %v2498
    %v2500 = vpop.f32.mrf.mxu0
    %2501 = vdwg.mxu0
    %2502 = vmatprep.subr.bf16.mxu0 0
    %2503 = vmatpush1.bf16.msra.mxu0 %v1325
    %2504 = vmatprep.subr.bf16.mxu0 0
    %2505 = vmatpush1.bf16.msra.mxu0 %v1324
    %2506 = vmatprep.subr.bf16.mxu0 0
    %2507 = vmatpush1.bf16.msra.mxu0 %v1323
    %2508 = vmatprep.subr.bf16.mxu0 0
    %2509 = vmatpush1.bf16.msra.mxu0 %v1322
    %2510 = vmatprep.subr.bf16.mxu0 0
    %2511 = vmatpush1.bf16.msra.mxu0 %v1321
    %2512 = vmatprep.subr.bf16.mxu0 0
    %2513 = vmatpush1.bf16.msra.mxu0 %v1320
    %2514 = vmatprep.subr.bf16.mxu0 0
    %2515 = vmatpush1.bf16.msra.mxu0 %v1319
    %2516 = vmatprep.subr.bf16.mxu0 0
    %2517 = vmatpush1.bf16.msra.mxu0 %v1318
    %2518 = vmatprep.subr.bf16.mxu0 0
    %2519 = vmatpush2.bf16.msra.mxu0 %v1333
    %2520 = vmatprep.subr.bf16.mxu0 0
    %2521 = vmatpush2.bf16.msra.mxu0 %v1332
    %2522 = vmatprep.subr.bf16.mxu0 0
    %2523 = vmatpush2.bf16.msra.mxu0 %v1331
    %2524 = vmatprep.subr.bf16.mxu0 0
    %2525 = vmatpush2.bf16.msra.mxu0 %v1330
    %2526 = vmatprep.subr.bf16.mxu0 0
    %2527 = vmatpush2.bf16.msra.mxu0 %v1329
    %2528 = vmatprep.subr.bf16.mxu0 0
    %2529 = vmatpush2.bf16.msra.mxu0 %v1328
    %2530 = vmatprep.subr.bf16.mxu0 0
    %2531 = vmatpush2.bf16.msra.mxu0 %v1327
    %2532 = vmatprep.subr.bf16.mxu0 0
    %2533 = vmatpush2.bf16.msra.mxu0 %v1326
    %2534 = vmatprep.mubr.bf16.mxu0 %v978
    %2535 = vmatmul.mubr.bf16.gmra.mxu0 %v902
    %v2536 = vpop.f32.mrf.mxu0
    %v2537 = vadd.f32 %v2488, %v2536
    %v2538 = vpop.f32.mrf.mxu0
    %v2539 = vpop.f32.mrf.mxu0
    %v2540 = vadd.f32 %v2491, %v2539
    %v2541 = vpop.f32.mrf.mxu0
    %2542 = vmatprep.mubr.bf16.mxu0 %v979
    %2543 = vmatmul.mubr.bf16.gmra.mxu0 %v903
    %v2544 = vpop.f32.mrf.mxu0
    %v2545 = vadd.f32 %v2496, %v2544
    %v2546 = vpop.f32.mrf.mxu0
    %v2547 = vpop.f32.mrf.mxu0
    %v2548 = vadd.f32 %v2499, %v2547
    %v2549 = vpop.f32.mrf.mxu0
    %2550 = vdwg.mxu0
    %2551 = vmatprep.subr.bf16.mxu0 0
    %2552 = vmatpush1.bf16.msra.mxu0 %v1341
    %2553 = vmatprep.subr.bf16.mxu0 0
    %2554 = vmatpush1.bf16.msra.mxu0 %v1340
    %2555 = vmatprep.subr.bf16.mxu0 0
    %2556 = vmatpush1.bf16.msra.mxu0 %v1339
    %2557 = vmatprep.subr.bf16.mxu0 0
    %2558 = vmatpush1.bf16.msra.mxu0 %v1338
    %2559 = vmatprep.subr.bf16.mxu0 0
    %2560 = vmatpush1.bf16.msra.mxu0 %v1337
    %2561 = vmatprep.subr.bf16.mxu0 0
    %2562 = vmatpush1.bf16.msra.mxu0 %v1336
    %2563 = vmatprep.subr.bf16.mxu0 0
    %2564 = vmatpush1.bf16.msra.mxu0 %v1335
    %2565 = vmatprep.subr.bf16.mxu0 0
    %2566 = vmatpush1.bf16.msra.mxu0 %v1334
    %2567 = vmatprep.subr.bf16.mxu0 0
    %2568 = vmatpush2.bf16.msra.mxu0 0
    %2569 = vmatprep.subr.bf16.mxu0 0
    %2570 = vmatpush2.bf16.msra.mxu0 0
    %2571 = vmatprep.subr.bf16.mxu0 0
    %2572 = vmatpush2.bf16.msra.mxu0 0
    %2573 = vmatprep.subr.bf16.mxu0 0
    %2574 = vmatpush2.bf16.msra.mxu0 0
    %2575 = vmatprep.subr.bf16.mxu0 0
    %2576 = vmatpush2.bf16.msra.mxu0 0
    %2577 = vmatprep.subr.bf16.mxu0 0
    %2578 = vmatpush2.bf16.msra.mxu0 0
    %2579 = vmatprep.subr.bf16.mxu0 0
    %2580 = vmatpush2.bf16.msra.mxu0 0
    %2581 = vmatprep.subr.bf16.mxu0 0
    %2582 = vmatpush2.bf16.msra.mxu0 0
    %2583 = vmatprep.mubr.bf16.mxu0 0
    %2584 = vmatmul.mubr.bf16.gmra.mxu0 %v1054
    %v2585 = vpop.f32.mrf.mxu0
    %v2586 = vadd.f32 %v2537, %v2585
    %v2587 = vpop.f32.mrf.mxu0
    %v2588 = vpop.f32.mrf.mxu0
    %v2589 = vadd.f32 %v2540, %v2588
    %v2590 = vpop.f32.mrf.mxu0
    %2591 = vmatprep.mubr.bf16.mxu0 0
    %2592 = vmatmul.mubr.bf16.gmra.mxu0 %v1055
    %v2593 = vpop.f32.mrf.mxu0
    %v2594 = vadd.f32 %v2545, %v2593
    %v2595 = vpop.f32.mrf.mxu0
    %v2596 = vpop.f32.mrf.mxu0
    %v2597 = vadd.f32 %v2548, %v2596
    %v2598 = vpop.f32.mrf.mxu0
    %2599 = vdwg.mxu0
    %v2600 = vmax.f32 %v2586, 0.0
    %v2601 = vmax.f32 %v2589, 0.0
    %v2602 = vmax.f32 %v2594, 0.0
    %v2603 = vmax.f32 %v2597, 0.0
    %v2604 = vpack.c.bf16 %v2601, %v2600
    %v2605 = vpack.c.bf16 %v2603, %v2602
    %v2606 = vld [vmem:[#allocation9] sm:$0xff]
    %v2607 = vld [vmem:[#allocation9 + $0x8] sm:$0xff]
    %v2608 = vld [vmem:[#allocation9 + $0x10] sm:$0xff]
    %v2609 = vld [vmem:[#allocation9 + $0x18] sm:$0xff]
    %v2610 = vld [vmem:[#allocation9 + $0x20] sm:$0xff]
    %v2611 = vld [vmem:[#allocation9 + $0x28] sm:$0xff]
    %v2612 = vld [vmem:[#allocation9 + $0x30] sm:$0xff]
    %v2613 = vld [vmem:[#allocation9 + $0x38] sm:$0xff]
    %v2614 = vld [vmem:[#allocation9 + $0x40] sm:$0xff]
    %v2615 = vld [vmem:[#allocation9 + $0x48] sm:$0xff]
    %v2616 = vld [vmem:[#allocation9 + $0x50] sm:$0xff]
    %v2617 = vld [vmem:[#allocation9 + $0x58] sm:$0xff]
    %v2618 = vld [vmem:[#allocation9 + $0x60] sm:$0xff]
    %v2619 = vld [vmem:[#allocation9 + $0x68] sm:$0xff]
    %v2620 = vld [vmem:[#allocation9 + $0x70] sm:$0xff]
    %v2621 = vld [vmem:[#allocation9 + $0x78] sm:$0xff]
    %v2622 = vld [vmem:[#allocation9 + $0x80] sm:$0xff]
    %v2623 = vld [vmem:[#allocation9 + $0x88] sm:$0xff]
    %v2624 = vld [vmem:[#allocation9 + $0x90] sm:$0xff]
    %v2625 = vld [vmem:[#allocation9 + $0x98] sm:$0xff]
    %v2626 = vld [vmem:[#allocation9 + $0xa0] sm:$0xff]
    %v2627 = vld [vmem:[#allocation9 + $0xa8] sm:$0xff]
    %v2628 = vld [vmem:[#allocation9 + $0xb0] sm:$0xff]
    %v2629 = vld [vmem:[#allocation9 + $0xb8] sm:$0xff]
    %v2630 = vld [vmem:[#allocation9 + $0xc0] sm:$0xff]
    %v2631 = vld [vmem:[#allocation9 + $0xc8] sm:$0xff]
    %v2632 = vld [vmem:[#allocation9 + $0xd0] sm:$0xff]
    %v2633 = vld [vmem:[#allocation9 + $0xd8] sm:$0xff]
    %v2634 = vld [vmem:[#allocation9 + $0xe0] sm:$0xff]
    %v2635 = vld [vmem:[#allocation9 + $0xe8] sm:$0xff]
    %v2636 = vld [vmem:[#allocation9 + $0xf0] sm:$0xff]
    %v2637 = vld [vmem:[#allocation9 + $0xf8] sm:$0xff]
    %v2638 = vld [vmem:[#allocation9 + $0x100] sm:$0xff]
    %v2639 = vld [vmem:[#allocation9 + $0x108] sm:$0xff]
    %v2640 = vld [vmem:[#allocation9 + $0x110] sm:$0xff]
    %v2641 = vld [vmem:[#allocation9 + $0x118] sm:$0xff]
    %v2642 = vld [vmem:[#allocation9 + $0x120] sm:$0xff]
    %v2643 = vld [vmem:[#allocation9 + $0x128] sm:$0xff]
    %v2644 = vld [vmem:[#allocation9 + $0x130] sm:$0xff]
    %v2645 = vld [vmem:[#allocation9 + $0x138] sm:$0xff]
    %v2646 = vld [vmem:[#allocation9 + $0x140] sm:$0xff]
    %v2647 = vld [vmem:[#allocation9 + $0x148] sm:$0xff]
    %v2648 = vld [vmem:[#allocation9 + $0x150] sm:$0xff]
    %v2649 = vld [vmem:[#allocation9 + $0x158] sm:$0xff]
    %v2650 = vld [vmem:[#allocation9 + $0x160] sm:$0xff]
    %v2651 = vld [vmem:[#allocation9 + $0x168] sm:$0xff]
    %v2652 = vld [vmem:[#allocation9 + $0x170] sm:$0xff]
    %v2653 = vld [vmem:[#allocation9 + $0x178] sm:$0xff]
    %v2654 = vld [vmem:[#allocation9 + $0x180] sm:$0xff]
    %v2655 = vld [vmem:[#allocation9 + $0x188] sm:$0xff]
    %v2656 = vld [vmem:[#allocation9 + $0x190] sm:$0xff]
    %v2657 = vld [vmem:[#allocation9 + $0x198] sm:$0xff]
    %v2658 = vld [vmem:[#allocation9 + $0x1a0] sm:$0xff]
    %v2659 = vld [vmem:[#allocation9 + $0x1a8] sm:$0xff]
    %v2660 = vld [vmem:[#allocation9 + $0x1b0] sm:$0xff]
    %v2661 = vld [vmem:[#allocation9 + $0x1b8] sm:$0xff]
    %v2662 = vld [vmem:[#allocation9 + $0x1c0] sm:$0xff]
    %v2663 = vld [vmem:[#allocation9 + $0x1c8] sm:$0xff]
    %v2664 = vld [vmem:[#allocation9 + $0x1d0] sm:$0xff]
    %v2665 = vld [vmem:[#allocation9 + $0x1d8] sm:$0xff]
    %v2666 = vld [vmem:[#allocation9 + $0x1e0] sm:$0xff]
    %v2667 = vld [vmem:[#allocation9 + $0x1e8] sm:$0xff]
    %v2668 = vld [vmem:[#allocation9 + $0x1f0] sm:$0xff]
    %v2669 = vld [vmem:[#allocation9 + $0x1f8] sm:$0xff]
    %v2670 = vld [vmem:[#allocation9 + $0x200] sm:$0xff]
    %v2671 = vld [vmem:[#allocation9 + $0x208] sm:$0xff]
    %v2672 = vld [vmem:[#allocation9 + $0x210] sm:$0xff]
    %v2673 = vld [vmem:[#allocation9 + $0x218] sm:$0xff]
    %v2674 = vld [vmem:[#allocation9 + $0x220] sm:$0xff]
    %v2675 = vld [vmem:[#allocation9 + $0x228] sm:$0xff]
    %v2676 = vld [vmem:[#allocation9 + $0x230] sm:$0xff]
    %v2677 = vld [vmem:[#allocation9 + $0x238] sm:$0xff]
    %v2678 = vld [vmem:[#allocation9 + $0x240] sm:$0xff]
    %v2679 = vld [vmem:[#allocation9 + $0x248] sm:$0xff]
    %v2680 = vld [vmem:[#allocation9 + $0x250] sm:$0xff]
    %v2681 = vld [vmem:[#allocation9 + $0x258] sm:$0xff]
    %v2682 = vld [vmem:[#allocation9 + $0x260] sm:$0xff]
    %v2683 = vld [vmem:[#allocation9 + $0x268] sm:$0xff]
    %v2684 = vld [vmem:[#allocation9 + $0x270] sm:$0xff]
    %v2685 = vld [vmem:[#allocation9 + $0x278] sm:$0xff]
    %v2686 = vld [vmem:[#allocation9 + $0x280] sm:$0xff]
    %v2687 = vld [vmem:[#allocation9 + $0x288] sm:$0xff]
    %v2688 = vld [vmem:[#allocation9 + $0x290] sm:$0xff]
    %v2689 = vld [vmem:[#allocation9 + $0x298] sm:$0xff]
    %v2690 = vld [vmem:[#allocation9 + $0x2a0] sm:$0xff]
    %v2691 = vld [vmem:[#allocation9 + $0x2a8] sm:$0xff]
    %v2692 = vld [vmem:[#allocation9 + $0x2b0] sm:$0xff]
    %v2693 = vld [vmem:[#allocation9 + $0x2b8] sm:$0xff]
    %v2694 = vld [vmem:[#allocation9 + $0x2c0] sm:$0xff]
    %v2695 = vld [vmem:[#allocation9 + $0x2c8] sm:$0xff]
    %v2696 = vld [vmem:[#allocation9 + $0x2d0] sm:$0xff]
    %v2697 = vld [vmem:[#allocation9 + $0x2d8] sm:$0xff]
    %v2698 = vld [vmem:[#allocation9 + $0x2e0] sm:$0xff]
    %v2699 = vld [vmem:[#allocation9 + $0x2e8] sm:$0xff]
    %v2700 = vld [vmem:[#allocation9 + $0x2f0] sm:$0xff]
    %v2701 = vld [vmem:[#allocation9 + $0x2f8] sm:$0xff]
    %v2702 = vld [vmem:[#allocation9 + $0x300] sm:$0xff]
    %v2703 = vld [vmem:[#allocation9 + $0x308] sm:$0xff]
    %v2704 = vld [vmem:[#allocation9 + $0x310] sm:$0xff]
    %v2705 = vld [vmem:[#allocation9 + $0x318] sm:$0xff]
    %v2706 = vld [vmem:[#allocation9 + $0x320] sm:$0xff]
    %v2707 = vld [vmem:[#allocation9 + $0x328] sm:$0xff]
    %v2708 = vld [vmem:[#allocation9 + $0x330] sm:$0xff]
    %v2709 = vld [vmem:[#allocation9 + $0x338] sm:$0xff]
    %v2710 = vld [vmem:[#allocation9 + $0x340] sm:$0xff]
    %v2711 = vld [vmem:[#allocation9 + $0x348] sm:$0xff]
    %v2712 = vld [vmem:[#allocation9 + $0x350] sm:$0xff]
    %v2713 = vld [vmem:[#allocation9 + $0x358] sm:$0xff]
    %v2714 = vld [vmem:[#allocation9 + $0x360] sm:$0xff]
    %v2715 = vld [vmem:[#allocation9 + $0x368] sm:$0xff]
    %v2716 = vld [vmem:[#allocation9 + $0x370] sm:$0xff]
    %v2717 = vld [vmem:[#allocation9 + $0x378] sm:$0xff]
    %v2718 = vld [vmem:[#allocation9 + $0x380] sm:$0xff]
    %v2719 = vld [vmem:[#allocation9 + $0x388] sm:$0xff]
    %v2720 = vld [vmem:[#allocation9 + $0x390] sm:$0xff]
    %v2721 = vld [vmem:[#allocation9 + $0x398] sm:$0xff]
    %v2722 = vld [vmem:[#allocation9 + $0x3a0] sm:$0xff]
    %v2723 = vld [vmem:[#allocation9 + $0x3a8] sm:$0xff]
    %v2724 = vld [vmem:[#allocation9 + $0x3b0] sm:$0xff]
    %v2725 = vld [vmem:[#allocation9 + $0x3b8] sm:$0xff]
    %v2726 = vld [vmem:[#allocation9 + $0x3c0] sm:$0xff]
    %v2727 = vld [vmem:[#allocation9 + $0x3c8] sm:$0xff]
    %v2728 = vld [vmem:[#allocation9 + $0x3d0] sm:$0xff]
    %v2729 = vld [vmem:[#allocation9 + $0x3d8] sm:$0xff]
    %v2730 = vld [vmem:[#allocation9 + $0x3e0] sm:$0xff]
    %v2731 = vld [vmem:[#allocation9 + $0x3e8] sm:$0xff]
    %v2732 = vld [vmem:[#allocation9 + $0x3f0] sm:$0xff]
    %v2733 = vld [vmem:[#allocation9 + $0x3f8] sm:$0xff]
    %v2734 = vld [vmem:[#allocation9 + $0x400] sm:$0xff]
    %v2735 = vld [vmem:[#allocation9 + $0x408] sm:$0xff]
    %v2736 = vld [vmem:[#allocation9 + $0x410] sm:$0xff]
    %v2737 = vld [vmem:[#allocation9 + $0x418] sm:$0xff]
    %v2738 = vld [vmem:[#allocation9 + $0x420] sm:$0xff]
    %v2739 = vld [vmem:[#allocation9 + $0x428] sm:$0xff]
    %v2740 = vld [vmem:[#allocation9 + $0x430] sm:$0xff]
    %v2741 = vld [vmem:[#allocation9 + $0x438] sm:$0xff]
    %v2742 = vld [vmem:[#allocation9 + $0x440] sm:$0xff]
    %v2743 = vld [vmem:[#allocation9 + $0x448] sm:$0xff]
    %v2744 = vld [vmem:[#allocation9 + $0x450] sm:$0xff]
    %v2745 = vld [vmem:[#allocation9 + $0x458] sm:$0xff]
    %v2746 = vld [vmem:[#allocation9 + $0x460] sm:$0xff]
    %v2747 = vld [vmem:[#allocation9 + $0x468] sm:$0xff]
    %v2748 = vld [vmem:[#allocation9 + $0x470] sm:$0xff]
    %v2749 = vld [vmem:[#allocation9 + $0x478] sm:$0xff]
    %v2750 = vld [vmem:[#allocation9 + $0x480] sm:$0xff]
    %v2751 = vld [vmem:[#allocation9 + $0x488] sm:$0xff]
    %v2752 = vld [vmem:[#allocation9 + $0x490] sm:$0xff]
    %v2753 = vld [vmem:[#allocation9 + $0x498] sm:$0xff]
    %v2754 = vld [vmem:[#allocation9 + $0x4a0] sm:$0xff]
    %v2755 = vld [vmem:[#allocation9 + $0x4a8] sm:$0xff]
    %v2756 = vld [vmem:[#allocation9 + $0x4b0] sm:$0xff]
    %v2757 = vld [vmem:[#allocation9 + $0x4b8] sm:$0xff]
    %v2758 = vld [vmem:[#allocation9 + $0x4c0] sm:$0xff]
    %v2759 = vld [vmem:[#allocation9 + $0x4c8] sm:$0xff]
    %v2760 = vld [vmem:[#allocation9 + $0x4d0] sm:$0xff]
    %v2761 = vld [vmem:[#allocation9 + $0x4d8] sm:$0xff]
    %v2762 = vld [vmem:[#allocation9 + $0x4e0] sm:$0xff]
    %v2763 = vld [vmem:[#allocation9 + $0x4e8] sm:$0xff]
    %v2764 = vld [vmem:[#allocation9 + $0x4f0] sm:$0xff]
    %v2765 = vld [vmem:[#allocation9 + $0x4f8] sm:$0xff]
    %v2766 = vld [vmem:[#allocation9 + $0x500] sm:$0xff]
    %v2767 = vld [vmem:[#allocation9 + $0x508] sm:$0xff]
    %v2768 = vld [vmem:[#allocation9 + $0x510] sm:$0xff]
    %v2769 = vld [vmem:[#allocation9 + $0x518] sm:$0xff]
    %v2770 = vld [vmem:[#allocation9 + $0x520] sm:$0xff]
    %v2771 = vld [vmem:[#allocation9 + $0x528] sm:$0xff]
    %v2772 = vld [vmem:[#allocation9 + $0x530] sm:$0xff]
    %v2773 = vld [vmem:[#allocation9 + $0x538] sm:$0xff]
    %v2774 = vld [vmem:[#allocation9 + $0x540] sm:$0xff]
    %v2775 = vld [vmem:[#allocation9 + $0x548] sm:$0xff]
    %v2776 = vld [vmem:[#allocation9 + $0x550] sm:$0xff]
    %v2777 = vld [vmem:[#allocation9 + $0x558] sm:$0xff]
    %v2778 = vld [vmem:[#allocation9 + $0x560] sm:$0xff]
    %v2779 = vld [vmem:[#allocation9 + $0x568] sm:$0xff]
    %v2780 = vld [vmem:[#allocation9 + $0x570] sm:$0xff]
    %v2781 = vld [vmem:[#allocation9 + $0x578] sm:$0xff]
    %v2782 = vld [vmem:[#allocation9 + $0x580] sm:$0xff]
    %v2783 = vld [vmem:[#allocation9 + $0x588] sm:$0xff]
    %v2784 = vld [vmem:[#allocation9 + $0x590] sm:$0xff]
    %v2785 = vld [vmem:[#allocation9 + $0x598] sm:$0xff]
    %v2786 = vld [vmem:[#allocation9 + $0x5a0] sm:$0xff]
    %v2787 = vld [vmem:[#allocation9 + $0x5a8] sm:$0xff]
    %v2788 = vld [vmem:[#allocation9 + $0x5b0] sm:$0xff]
    %v2789 = vld [vmem:[#allocation9 + $0x5b8] sm:$0xff]
    %v2790 = vld [vmem:[#allocation9 + $0x5c0] sm:$0xff]
    %v2791 = vld [vmem:[#allocation9 + $0x5c8] sm:$0xff]
    %v2792 = vld [vmem:[#allocation9 + $0x5d0] sm:$0xff]
    %v2793 = vld [vmem:[#allocation9 + $0x5d8] sm:$0xff]
    %v2794 = vld [vmem:[#allocation9 + $0x5e0] sm:$0xff]
    %v2795 = vld [vmem:[#allocation9 + $0x5e8] sm:$0xff]
    %v2796 = vld [vmem:[#allocation9 + $0x5f0] sm:$0xff]
    %v2797 = vld [vmem:[#allocation9 + $0x5f8] sm:$0xff]
    %v2798 = vld [vmem:[#allocation9 + $0x600] sm:$0xff]
    %v2799 = vld [vmem:[#allocation9 + $0x608] sm:$0xff]
    %v2800 = vld [vmem:[#allocation9 + $0x610] sm:$0xff]
    %v2801 = vld [vmem:[#allocation9 + $0x618] sm:$0xff]
    %v2802 = vld [vmem:[#allocation9 + $0x620] sm:$0xff]
    %v2803 = vld [vmem:[#allocation9 + $0x628] sm:$0xff]
    %v2804 = vld [vmem:[#allocation9 + $0x630] sm:$0xff]
    %v2805 = vld [vmem:[#allocation9 + $0x638] sm:$0xff]
    %v2806 = vld [vmem:[#allocation9 + $0x640] sm:$0xff]
    %v2807 = vld [vmem:[#allocation9 + $0x648] sm:$0xff]
    %v2808 = vld [vmem:[#allocation9 + $0x650] sm:$0xff]
    %v2809 = vld [vmem:[#allocation9 + $0x658] sm:$0xff]
    %v2810 = vld [vmem:[#allocation9 + $0x660] sm:$0xff]
    %v2811 = vld [vmem:[#allocation9 + $0x668] sm:$0xff]
    %v2812 = vld [vmem:[#allocation9 + $0x670] sm:$0xff]
    %v2813 = vld [vmem:[#allocation9 + $0x678] sm:$0xff]
    %v2814 = vld [vmem:[#allocation9 + $0x680] sm:$0xff]
    %v2815 = vld [vmem:[#allocation9 + $0x688] sm:$0xff]
    %v2816 = vld [vmem:[#allocation9 + $0x690] sm:$0xff]
    %v2817 = vld [vmem:[#allocation9 + $0x698] sm:$0xff]
    %v2818 = vld [vmem:[#allocation9 + $0x6a0] sm:$0xff]
    %v2819 = vld [vmem:[#allocation9 + $0x6a8] sm:$0xff]
    %v2820 = vld [vmem:[#allocation9 + $0x6b0] sm:$0xff]
    %v2821 = vld [vmem:[#allocation9 + $0x6b8] sm:$0xff]
    %v2822 = vld [vmem:[#allocation9 + $0x6c0] sm:$0xff]
    %v2823 = vld [vmem:[#allocation9 + $0x6c8] sm:$0xff]
    %v2824 = vld [vmem:[#allocation9 + $0x6d0] sm:$0xff]
    %v2825 = vld [vmem:[#allocation9 + $0x6d8] sm:$0xff]
    %v2826 = vld [vmem:[#allocation9 + $0x6e0] sm:$0xff]
    %v2827 = vld [vmem:[#allocation9 + $0x6e8] sm:$0xff]
    %v2828 = vld [vmem:[#allocation9 + $0x6f0] sm:$0xff]
    %v2829 = vld [vmem:[#allocation9 + $0x6f8] sm:$0xff]
    %v2830 = vld [vmem:[#allocation9 + $0x700] sm:$0xff]
    %v2831 = vld [vmem:[#allocation9 + $0x708] sm:$0xff]
    %v2832 = vld [vmem:[#allocation9 + $0x710] sm:$0xff]
    %v2833 = vld [vmem:[#allocation9 + $0x718] sm:$0xff]
    %v2834 = vld [vmem:[#allocation9 + $0x720] sm:$0xff]
    %v2835 = vld [vmem:[#allocation9 + $0x728] sm:$0xff]
    %v2836 = vld [vmem:[#allocation9 + $0x730] sm:$0xff]
    %v2837 = vld [vmem:[#allocation9 + $0x738] sm:$0xff]
    %v2838 = vld [vmem:[#allocation9 + $0x740] sm:$0xff]
    %v2839 = vld [vmem:[#allocation9 + $0x748] sm:$0xff]
    %v2840 = vld [vmem:[#allocation9 + $0x750] sm:$0xff]
    %v2841 = vld [vmem:[#allocation9 + $0x758] sm:$0xff]
    %v2842 = vld [vmem:[#allocation9 + $0x760] sm:$0xff]
    %v2843 = vld [vmem:[#allocation9 + $0x768] sm:$0xff]
    %v2844 = vld [vmem:[#allocation9 + $0x770] sm:$0xff]
    %v2845 = vld [vmem:[#allocation9 + $0x778] sm:$0xff]
    %v2846 = vld [vmem:[#allocation9 + $0x780] sm:$0xff]
    %v2847 = vld [vmem:[#allocation9 + $0x788] sm:$0xff]
    %v2848 = vld [vmem:[#allocation9 + $0x790] sm:$0xff]
    %v2849 = vld [vmem:[#allocation9 + $0x798] sm:$0xff]
    %v2850 = vld [vmem:[#allocation9 + $0x7a0] sm:$0xff]
    %v2851 = vld [vmem:[#allocation9 + $0x7a8] sm:$0xff]
    %v2852 = vld [vmem:[#allocation9 + $0x7b0] sm:$0xff]
    %v2853 = vld [vmem:[#allocation9 + $0x7b8] sm:$0xff]
    %v2854 = vld [vmem:[#allocation9 + $0x7c0] sm:$0xff]
    %v2855 = vld [vmem:[#allocation9 + $0x7c8] sm:$0xff]
    %v2856 = vld [vmem:[#allocation9 + $0x7d0] sm:$0xff]
    %v2857 = vld [vmem:[#allocation9 + $0x7d8] sm:$0xff]
    %v2858 = vld [vmem:[#allocation9 + $0x7e0] sm:$0xff]
    %v2859 = vld [vmem:[#allocation9 + $0x7e8] sm:$0xff]
    %v2860 = vld [vmem:[#allocation9 + $0x7f0] sm:$0xff]
    %v2861 = vld [vmem:[#allocation9 + $0x7f8] sm:$0xff]
    %v2862 = vld [vmem:[#allocation9 + $0x800] sm:$0xff]
    %v2863 = vld [vmem:[#allocation9 + $0x808] sm:$0xff]
    %v2864 = vld [vmem:[#allocation9 + $0x810] sm:$0xff]
    %v2865 = vld [vmem:[#allocation9 + $0x818] sm:$0xff]
    %v2866 = vld [vmem:[#allocation9 + $0x820] sm:$0xff]
    %v2867 = vld [vmem:[#allocation9 + $0x828] sm:$0xff]
    %v2868 = vld [vmem:[#allocation9 + $0x830] sm:$0xff]
    %v2869 = vld [vmem:[#allocation9 + $0x838] sm:$0xff]
    %v2870 = vld [vmem:[#allocation9 + $0x840] sm:$0xff]
    %v2871 = vld [vmem:[#allocation9 + $0x848] sm:$0xff]
    %v2872 = vld [vmem:[#allocation9 + $0x850] sm:$0xff]
    %v2873 = vld [vmem:[#allocation9 + $0x858] sm:$0xff]
    %v2874 = vld [vmem:[#allocation9 + $0x860] sm:$0xff]
    %v2875 = vld [vmem:[#allocation9 + $0x868] sm:$0xff]
    %v2876 = vld [vmem:[#allocation9 + $0x870] sm:$0xff]
    %v2877 = vld [vmem:[#allocation9 + $0x878] sm:$0xff]
    %v2878 = vld [vmem:[#allocation9 + $0x880] sm:$0xff]
    %v2879 = vld [vmem:[#allocation9 + $0x888] sm:$0xff]
    %v2880 = vld [vmem:[#allocation9 + $0x890] sm:$0xff]
    %v2881 = vld [vmem:[#allocation9 + $0x898] sm:$0xff]
    %v2882 = vld [vmem:[#allocation9 + $0x8a0] sm:$0xff]
    %v2883 = vld [vmem:[#allocation9 + $0x8a8] sm:$0xff]
    %v2884 = vld [vmem:[#allocation9 + $0x8b0] sm:$0xff]
    %v2885 = vld [vmem:[#allocation9 + $0x8b8] sm:$0xff]
    %v2886 = vld [vmem:[#allocation9 + $0x8c0] sm:$0xff]
    %v2887 = vld [vmem:[#allocation9 + $0x8c8] sm:$0xff]
    %v2888 = vld [vmem:[#allocation9 + $0x8d0] sm:$0xff]
    %v2889 = vld [vmem:[#allocation9 + $0x8d8] sm:$0xff]
    %v2890 = vld [vmem:[#allocation9 + $0x8e0] sm:$0xff]
    %v2891 = vld [vmem:[#allocation9 + $0x8e8] sm:$0xff]
    %v2892 = vld [vmem:[#allocation9 + $0x8f0] sm:$0xff]
    %v2893 = vld [vmem:[#allocation9 + $0x8f8] sm:$0xff]
    %v2894 = vld [vmem:[#allocation9 + $0x900] sm:$0xff]
    %v2895 = vld [vmem:[#allocation9 + $0x908] sm:$0xff]
    %v2896 = vld [vmem:[#allocation9 + $0x910] sm:$0xff]
    %v2897 = vld [vmem:[#allocation9 + $0x918] sm:$0xff]
    %v2898 = vld [vmem:[#allocation9 + $0x920] sm:$0xff]
    %v2899 = vld [vmem:[#allocation9 + $0x928] sm:$0xff]
    %v2900 = vld [vmem:[#allocation9 + $0x930] sm:$0xff]
    %v2901 = vld [vmem:[#allocation9 + $0x938] sm:$0xff]
    %v2902 = vld [vmem:[#allocation9 + $0x940] sm:$0xff]
    %v2903 = vld [vmem:[#allocation9 + $0x948] sm:$0xff]
    %v2904 = vld [vmem:[#allocation9 + $0x950] sm:$0xff]
    %v2905 = vld [vmem:[#allocation9 + $0x958] sm:$0xff]
    %v2906 = vld [vmem:[#allocation9 + $0x960] sm:$0xff]
    %v2907 = vld [vmem:[#allocation9 + $0x968] sm:$0xff]
    %v2908 = vld [vmem:[#allocation9 + $0x970] sm:$0xff]
    %v2909 = vld [vmem:[#allocation9 + $0x978] sm:$0xff]
    %v2910 = vld [vmem:[#allocation9 + $0x980] sm:$0xff]
    %v2911 = vld [vmem:[#allocation9 + $0x988] sm:$0xff]
    %v2912 = vld [vmem:[#allocation9 + $0x990] sm:$0xff]
    %v2913 = vld [vmem:[#allocation9 + $0x998] sm:$0xff]
    %v2914 = vld [vmem:[#allocation9 + $0x9a0] sm:$0xff]
    %v2915 = vld [vmem:[#allocation9 + $0x9a8] sm:$0xff]
    %v2916 = vld [vmem:[#allocation9 + $0x9b0] sm:$0xff]
    %v2917 = vld [vmem:[#allocation9 + $0x9b8] sm:$0xff]
    %v2918 = vld [vmem:[#allocation9 + $0x9c0] sm:$0xff]
    %v2919 = vld [vmem:[#allocation9 + $0x9c8] sm:$0xff]
    %v2920 = vld [vmem:[#allocation9 + $0x9d0] sm:$0xff]
    %v2921 = vld [vmem:[#allocation9 + $0x9d8] sm:$0xff]
    %v2922 = vld [vmem:[#allocation9 + $0x9e0] sm:$0xff]
    %v2923 = vld [vmem:[#allocation9 + $0x9e8] sm:$0xff]
    %v2924 = vld [vmem:[#allocation9 + $0x9f0] sm:$0xff]
    %v2925 = vld [vmem:[#allocation9 + $0x9f8] sm:$0xff]
    %v2926 = vld [vmem:[#allocation9 + $0xa00] sm:$0xff]
    %v2927 = vld [vmem:[#allocation9 + $0xa08] sm:$0xff]
    %v2928 = vld [vmem:[#allocation9 + $0xa10] sm:$0xff]
    %v2929 = vld [vmem:[#allocation9 + $0xa18] sm:$0xff]
    %v2930 = vld [vmem:[#allocation9 + $0xa20] sm:$0xff]
    %v2931 = vld [vmem:[#allocation9 + $0xa28] sm:$0xff]
    %v2932 = vld [vmem:[#allocation9 + $0xa30] sm:$0xff]
    %v2933 = vld [vmem:[#allocation9 + $0xa38] sm:$0xff]
    %v2934 = vld [vmem:[#allocation9 + $0xa40] sm:$0xff]
    %v2935 = vld [vmem:[#allocation9 + $0xa48] sm:$0xff]
    %v2936 = vld [vmem:[#allocation9 + $0xa50] sm:$0xff]
    %v2937 = vld [vmem:[#allocation9 + $0xa58] sm:$0xff]
    %v2938 = vld [vmem:[#allocation9 + $0xa60] sm:$0xff]
    %v2939 = vld [vmem:[#allocation9 + $0xa68] sm:$0xff]
    %v2940 = vld [vmem:[#allocation9 + $0xa70] sm:$0xff]
    %v2941 = vld [vmem:[#allocation9 + $0xa78] sm:$0xff]
    %v2942 = vld [vmem:[#allocation9 + $0xa80] sm:$0xff]
    %v2943 = vld [vmem:[#allocation9 + $0xa88] sm:$0xff]
    %v2944 = vld [vmem:[#allocation9 + $0xa90] sm:$0xff]
    %v2945 = vld [vmem:[#allocation9 + $0xa98] sm:$0xff]
    %v2946 = vld [vmem:[#allocation9 + $0xaa0] sm:$0xff]
    %v2947 = vld [vmem:[#allocation9 + $0xaa8] sm:$0xff]
    %v2948 = vld [vmem:[#allocation9 + $0xab0] sm:$0xff]
    %v2949 = vld [vmem:[#allocation9 + $0xab8] sm:$0xff]
    %v2950 = vld [vmem:[#allocation9 + $0xac0] sm:$0xff]
    %v2951 = vld [vmem:[#allocation9 + $0xac8] sm:$0xff]
    %v2952 = vld [vmem:[#allocation9 + $0xad0] sm:$0xff]
    %v2953 = vld [vmem:[#allocation9 + $0xad8] sm:$0xff]
    %v2954 = vld [vmem:[#allocation9 + $0xae0] sm:$0xff]
    %v2955 = vld [vmem:[#allocation9 + $0xae8] sm:$0xff]
    %v2956 = vld [vmem:[#allocation9 + $0xaf0] sm:$0xff]
    %v2957 = vld [vmem:[#allocation9 + $0xaf8] sm:$0xff]
    %v2958 = vld [vmem:[#allocation9 + $0xb00] sm:$0xff]
    %v2959 = vld [vmem:[#allocation9 + $0xb08] sm:$0xff]
    %v2960 = vld [vmem:[#allocation9 + $0xb10] sm:$0xff]
    %v2961 = vld [vmem:[#allocation9 + $0xb18] sm:$0xff]
    %v2962 = vld [vmem:[#allocation9 + $0xb20] sm:$0xff]
    %v2963 = vld [vmem:[#allocation9 + $0xb28] sm:$0xff]
    %v2964 = vld [vmem:[#allocation9 + $0xb30] sm:$0xff]
    %v2965 = vld [vmem:[#allocation9 + $0xb38] sm:$0xff]
    %v2966 = vld [vmem:[#allocation9 + $0xb40] sm:$0xff]
    %v2967 = vld [vmem:[#allocation9 + $0xb48] sm:$0xff]
    %v2968 = vld [vmem:[#allocation9 + $0xb50] sm:$0xff]
    %v2969 = vld [vmem:[#allocation9 + $0xb58] sm:$0xff]
    %v2970 = vld [vmem:[#allocation9 + $0xb60] sm:$0xff]
    %v2971 = vld [vmem:[#allocation9 + $0xb68] sm:$0xff]
    %v2972 = vld [vmem:[#allocation9 + $0xb70] sm:$0xff]
    %v2973 = vld [vmem:[#allocation9 + $0xb78] sm:$0xff]
    %v2974 = vld [vmem:[#allocation9 + $0xb80] sm:$0xff]
    %v2975 = vld [vmem:[#allocation9 + $0xb88] sm:$0xff]
    %v2976 = vld [vmem:[#allocation9 + $0xb90] sm:$0xff]
    %v2977 = vld [vmem:[#allocation9 + $0xb98] sm:$0xff]
    %v2978 = vld [vmem:[#allocation9 + $0xba0] sm:$0xff]
    %v2979 = vld [vmem:[#allocation9 + $0xba8] sm:$0xff]
    %v2980 = vld [vmem:[#allocation9 + $0xbb0] sm:$0xff]
    %v2981 = vld [vmem:[#allocation9 + $0xbb8] sm:$0xff]
    %v2982 = vld [vmem:[#allocation9 + $0xbc0] sm:$0xff]
    %v2983 = vld [vmem:[#allocation9 + $0xbc8] sm:$0xff]
    %v2984 = vld [vmem:[#allocation9 + $0xbd0] sm:$0xff]
    %v2985 = vld [vmem:[#allocation9 + $0xbd8] sm:$0xff]
    %v2986 = vld [vmem:[#allocation9 + $0xbe0] sm:$0xff]
    %v2987 = vld [vmem:[#allocation9 + $0xbe8] sm:$0xff]
    %v2988 = vld [vmem:[#allocation9 + $0xbf0] sm:$0xff]
    %v2989 = vld [vmem:[#allocation9 + $0xbf8] sm:$0xff]
    %v2990 = vld [vmem:[#allocation9 + $0xc00] sm:$0xff]
    %v2991 = vld [vmem:[#allocation9 + $0xc08] sm:$0xff]
    %v2992 = vld [vmem:[#allocation9 + $0xc10] sm:$0xff]
    %v2993 = vld [vmem:[#allocation9 + $0xc18] sm:$0xff]
    %v2994 = vld [vmem:[#allocation9 + $0xc20] sm:$0xff]
    %v2995 = vld [vmem:[#allocation9 + $0xc28] sm:$0xff]
    %v2996 = vld [vmem:[#allocation9 + $0xc30] sm:$0xff]
    %v2997 = vld [vmem:[#allocation9 + $0xc38] sm:$0xff]
    %v2998 = vld [vmem:[#allocation9 + $0xc40] sm:$0xff]
    %v2999 = vld [vmem:[#allocation9 + $0xc48] sm:$0xff]
    %v3000 = vld [vmem:[#allocation9 + $0xc50] sm:$0xff]
    %v3001 = vld [vmem:[#allocation9 + $0xc58] sm:$0xff]
    %v3002 = vld [vmem:[#allocation9 + $0xc60] sm:$0xff]
    %v3003 = vld [vmem:[#allocation9 + $0xc68] sm:$0xff]
    %v3004 = vld [vmem:[#allocation9 + $0xc70] sm:$0xff]
    %v3005 = vld [vmem:[#allocation9 + $0xc78] sm:$0xff]
    %v3006 = vld [vmem:[#allocation9 + $0xc80] sm:$0xff]
    %v3007 = vld [vmem:[#allocation9 + $0xc88] sm:$0xff]
    %v3008 = vld [vmem:[#allocation9 + $0xc90] sm:$0xff]
    %v3009 = vld [vmem:[#allocation9 + $0xc98] sm:$0xff]
    %v3010 = vld [vmem:[#allocation9 + $0xca0] sm:$0xff]
    %v3011 = vld [vmem:[#allocation9 + $0xca8] sm:$0xff]
    %v3012 = vld [vmem:[#allocation9 + $0xcb0] sm:$0xff]
    %v3013 = vld [vmem:[#allocation9 + $0xcb8] sm:$0xff]
    %v3014 = vld [vmem:[#allocation9 + $0xcc0] sm:$0xff]
    %v3015 = vld [vmem:[#allocation9 + $0xcc8] sm:$0xff]
    %v3016 = vld [vmem:[#allocation9 + $0xcd0] sm:$0xff]
    %v3017 = vld [vmem:[#allocation9 + $0xcd8] sm:$0xff]
    %v3018 = vld [vmem:[#allocation9 + $0xce0] sm:$0xff]
    %v3019 = vld [vmem:[#allocation9 + $0xce8] sm:$0xff]
    %v3020 = vld [vmem:[#allocation9 + $0xcf0] sm:$0xff]
    %v3021 = vld [vmem:[#allocation9 + $0xcf8] sm:$0xff]
    %v3022 = vld [vmem:[#allocation9 + $0xd00] sm:$0xff]
    %v3023 = vld [vmem:[#allocation9 + $0xd08] sm:$0xff]
    %v3024 = vld [vmem:[#allocation9 + $0xd10] sm:$0xff]
    %v3025 = vld [vmem:[#allocation9 + $0xd18] sm:$0xff]
    %v3026 = vld [vmem:[#allocation9 + $0xd20] sm:$0xff]
    %v3027 = vld [vmem:[#allocation9 + $0xd28] sm:$0xff]
    %v3028 = vld [vmem:[#allocation9 + $0xd30] sm:$0xff]
    %v3029 = vld [vmem:[#allocation9 + $0xd38] sm:$0xff]
    %v3030 = vld [vmem:[#allocation9 + $0xd40] sm:$0xff]
    %v3031 = vld [vmem:[#allocation9 + $0xd48] sm:$0xff]
    %v3032 = vld [vmem:[#allocation9 + $0xd50] sm:$0xff]
    %v3033 = vld [vmem:[#allocation9 + $0xd58] sm:$0xff]
    %v3034 = vld [vmem:[#allocation9 + $0xd60] sm:$0xff]
    %v3035 = vld [vmem:[#allocation9 + $0xd68] sm:$0xff]
    %v3036 = vld [vmem:[#allocation9 + $0xd70] sm:$0xff]
    %v3037 = vld [vmem:[#allocation9 + $0xd78] sm:$0xff]
    %v3038 = vld [vmem:[#allocation9 + $0xd80] sm:$0xff]
    %v3039 = vld [vmem:[#allocation9 + $0xd88] sm:$0xff]
    %v3040 = vld [vmem:[#allocation9 + $0xd90] sm:$0xff]
    %v3041 = vld [vmem:[#allocation9 + $0xd98] sm:$0xff]
    %v3042 = vld [vmem:[#allocation9 + $0xda0] sm:$0xff]
    %v3043 = vld [vmem:[#allocation9 + $0xda8] sm:$0xff]
    %v3044 = vld [vmem:[#allocation9 + $0xdb0] sm:$0xff]
    %v3045 = vld [vmem:[#allocation9 + $0xdb8] sm:$0xff]
    %v3046 = vld [vmem:[#allocation9 + $0xdc0] sm:$0xff]
    %v3047 = vld [vmem:[#allocation9 + $0xdc8] sm:$0xff]
    %v3048 = vld [vmem:[#allocation9 + $0xdd0] sm:$0xff]
    %v3049 = vld [vmem:[#allocation9 + $0xdd8] sm:$0xff]
    %v3050 = vld [vmem:[#allocation9 + $0xde0] sm:$0xff]
    %v3051 = vld [vmem:[#allocation9 + $0xde8] sm:$0xff]
    %v3052 = vld [vmem:[#allocation9 + $0xdf0] sm:$0xff]
    %v3053 = vld [vmem:[#allocation9 + $0xdf8] sm:$0xff]
    %v3054 = vld [vmem:[#allocation9 + $0xe00] sm:$0xff]
    %v3055 = vld [vmem:[#allocation9 + $0xe08] sm:$0xff]
    %v3056 = vld [vmem:[#allocation9 + $0xe10] sm:$0xff]
    %v3057 = vld [vmem:[#allocation9 + $0xe18] sm:$0xff]
    %v3058 = vld [vmem:[#allocation9 + $0xe20] sm:$0xff]
    %v3059 = vld [vmem:[#allocation9 + $0xe28] sm:$0xff]
    %v3060 = vld [vmem:[#allocation9 + $0xe30] sm:$0xff]
    %v3061 = vld [vmem:[#allocation9 + $0xe38] sm:$0xff]
    %v3062 = vld [vmem:[#allocation9 + $0xe40] sm:$0xff]
    %v3063 = vld [vmem:[#allocation9 + $0xe48] sm:$0xff]
    %v3064 = vld [vmem:[#allocation9 + $0xe50] sm:$0xff]
    %v3065 = vld [vmem:[#allocation9 + $0xe58] sm:$0xff]
    %v3066 = vld [vmem:[#allocation9 + $0xe60] sm:$0xff]
    %v3067 = vld [vmem:[#allocation9 + $0xe68] sm:$0xff]
    %v3068 = vld [vmem:[#allocation9 + $0xe70] sm:$0xff]
    %v3069 = vld [vmem:[#allocation9 + $0xe78] sm:$0xff]
    %v3070 = vld [vmem:[#allocation9 + $0xe80] sm:$0xff]
    %v3071 = vld [vmem:[#allocation9 + $0xe88] sm:$0xff]
    %v3072 = vld [vmem:[#allocation9 + $0xe90] sm:$0xff]
    %v3073 = vld [vmem:[#allocation9 + $0xe98] sm:$0xff]
    %v3074 = vld [vmem:[#allocation9 + $0xea0] sm:$0xff]
    %v3075 = vld [vmem:[#allocation9 + $0xea8] sm:$0xff]
    %v3076 = vld [vmem:[#allocation9 + $0xeb0] sm:$0xff]
    %v3077 = vld [vmem:[#allocation9 + $0xeb8] sm:$0xff]
    %v3078 = vld [vmem:[#allocation9 + $0xec0] sm:$0xff]
    %v3079 = vld [vmem:[#allocation9 + $0xec8] sm:$0xff]
    %v3080 = vld [vmem:[#allocation9 + $0xed0] sm:$0xff]
    %v3081 = vld [vmem:[#allocation9 + $0xed8] sm:$0xff]
    %v3082 = vld [vmem:[#allocation9 + $0xee0] sm:$0xff]
    %v3083 = vld [vmem:[#allocation9 + $0xee8] sm:$0xff]
    %v3084 = vld [vmem:[#allocation9 + $0xef0] sm:$0xff]
    %v3085 = vld [vmem:[#allocation9 + $0xef8] sm:$0xff]
    %v3086 = vld [vmem:[#allocation9 + $0xf00] sm:$0xff]
    %v3087 = vld [vmem:[#allocation9 + $0xf08] sm:$0xff]
    %v3088 = vld [vmem:[#allocation9 + $0xf10] sm:$0xff]
    %v3089 = vld [vmem:[#allocation9 + $0xf18] sm:$0xff]
    %v3090 = vld [vmem:[#allocation9 + $0xf20] sm:$0xff]
    %v3091 = vld [vmem:[#allocation9 + $0xf28] sm:$0xff]
    %v3092 = vld [vmem:[#allocation9 + $0xf30] sm:$0xff]
    %v3093 = vld [vmem:[#allocation9 + $0xf38] sm:$0xff]
    %v3094 = vld [vmem:[#allocation9 + $0xf40] sm:$0xff]
    %v3095 = vld [vmem:[#allocation9 + $0xf48] sm:$0xff]
    %v3096 = vld [vmem:[#allocation9 + $0xf50] sm:$0xff]
    %v3097 = vld [vmem:[#allocation9 + $0xf58] sm:$0xff]
    %v3098 = vld [vmem:[#allocation9 + $0xf60] sm:$0xff]
    %v3099 = vld [vmem:[#allocation9 + $0xf68] sm:$0xff]
    %v3100 = vld [vmem:[#allocation9 + $0xf70] sm:$0xff]
    %v3101 = vld [vmem:[#allocation9 + $0xf78] sm:$0xff]
    %v3102 = vld [vmem:[#allocation9 + $0xf80] sm:$0xff]
    %v3103 = vld [vmem:[#allocation9 + $0xf88] sm:$0xff]
    %v3104 = vld [vmem:[#allocation9 + $0xf90] sm:$0xff]
    %v3105 = vld [vmem:[#allocation9 + $0xf98] sm:$0xff]
    %v3106 = vld [vmem:[#allocation9 + $0xfa0] sm:$0xff]
    %v3107 = vld [vmem:[#allocation9 + $0xfa8] sm:$0xff]
    %v3108 = vld [vmem:[#allocation9 + $0xfb0] sm:$0xff]
    %v3109 = vld [vmem:[#allocation9 + $0xfb8] sm:$0xff]
    %v3110 = vld [vmem:[#allocation9 + $0xfc0] sm:$0xff]
    %v3111 = vld [vmem:[#allocation9 + $0xfc8] sm:$0xff]
    %v3112 = vld [vmem:[#allocation9 + $0xfd0] sm:$0xff]
    %v3113 = vld [vmem:[#allocation9 + $0xfd8] sm:$0xff]
    %v3114 = vld [vmem:[#allocation9 + $0xfe0] sm:$0xff]
    %v3115 = vld [vmem:[#allocation9 + $0xfe8] sm:$0xff]
    %v3116 = vld [vmem:[#allocation9 + $0xff0] sm:$0xff]
    %v3117 = vld [vmem:[#allocation9 + $0xff8] sm:$0xff]
    %v3118 = vld [vmem:[#allocation10] sm:$0xff]
    %v3120 = vlaneseq
    %v3121 = vshrl.u32 %v3120, 7
    %v3122 = vsub.s32 0, %v3121
    %v3123 = vrot.slane %v3118, %v3122
    %v3124 = vlaneseq
    %v3125 = vshrl.u32 %v3124, 7
    %v3126 = vsub.s32 1, %v3125
    %v3127 = vrot.slane %v3118, %v3126
    %v3128 = vlaneseq
    %v3129 = vshrl.u32 %v3128, 7
    %v3130 = vsub.s32 2, %v3129
    %v3131 = vrot.slane %v3118, %v3130
    %v3132 = vlaneseq
    %v3133 = vshrl.u32 %v3132, 7
    %v3134 = vsub.s32 3, %v3133
    %v3135 = vrot.slane %v3118, %v3134
    %v3136 = vlaneseq
    %v3137 = vshrl.u32 %v3136, 7
    %v3138 = vsub.s32 4, %v3137
    %v3139 = vrot.slane %v3118, %v3138
    %v3140 = vlaneseq
    %v3141 = vshrl.u32 %v3140, 7
    %v3142 = vsub.s32 5, %v3141
    %v3143 = vrot.slane %v3118, %v3142
    %v3144 = vlaneseq
    %v3145 = vshrl.u32 %v3144, 7
    %v3146 = vsub.s32 6, %v3145
    %v3147 = vrot.slane %v3118, %v3146
    %v3148 = vlaneseq
    %v3149 = vshrl.u32 %v3148, 7
    %v3150 = vsub.s32 7, %v3149
    %v3151 = vrot.slane %v3118, %v3150
    %v3672 = vunpack.c.l.b16 %v2606
    %v3673 = vunpack.c.h.b16 %v2606
    %v3674 = vunpack.c.l.b16 %v2607
    %v3675 = vunpack.c.h.b16 %v2607
    %v3676 = vunpack.c.l.b16 %v2608
    %v3677 = vunpack.c.h.b16 %v2608
    %v3678 = vunpack.c.l.b16 %v2609
    %v3679 = vunpack.c.h.b16 %v2609
    %v3680 = vunpack.c.l.b16 %v2610
    %v3681 = vunpack.c.h.b16 %v2610
    %v3682 = vunpack.c.l.b16 %v2611
    %v3683 = vunpack.c.h.b16 %v2611
    %v3684 = vunpack.c.l.b16 %v2612
    %v3685 = vunpack.c.h.b16 %v2612
    %v3686 = vunpack.c.l.b16 %v2613
    %v3687 = vunpack.c.h.b16 %v2613
    %v3688 = vunpack.c.l.b16 %v2614
    %v3689 = vunpack.c.h.b16 %v2614
    %v3690 = vunpack.c.l.b16 %v2615
    %v3691 = vunpack.c.h.b16 %v2615
    %v3692 = vunpack.c.l.b16 %v2616
    %v3693 = vunpack.c.h.b16 %v2616
    %v3694 = vunpack.c.l.b16 %v2617
    %v3695 = vunpack.c.h.b16 %v2617
    %v3696 = vunpack.c.l.b16 %v2618
    %v3697 = vunpack.c.h.b16 %v2618
    %v3698 = vunpack.c.l.b16 %v2619
    %v3699 = vunpack.c.h.b16 %v2619
    %v3700 = vunpack.c.l.b16 %v2620
    %v3701 = vunpack.c.h.b16 %v2620
    %v3702 = vunpack.c.l.b16 %v2621
    %v3703 = vunpack.c.h.b16 %v2621
    %v3704 = vunpack.c.l.b16 %v2622
    %v3705 = vunpack.c.h.b16 %v2622
    %v3706 = vunpack.c.l.b16 %v2623
    %v3707 = vunpack.c.h.b16 %v2623
    %v3708 = vunpack.c.l.b16 %v2624
    %v3709 = vunpack.c.h.b16 %v2624
    %v3710 = vunpack.c.l.b16 %v2625
    %v3711 = vunpack.c.h.b16 %v2625
    %v3712 = vunpack.c.l.b16 %v2626
    %v3713 = vunpack.c.h.b16 %v2626
    %v3714 = vunpack.c.l.b16 %v2627
    %v3715 = vunpack.c.h.b16 %v2627
    %v3716 = vunpack.c.l.b16 %v2628
    %v3717 = vunpack.c.h.b16 %v2628
    %v3718 = vunpack.c.l.b16 %v2629
    %v3719 = vunpack.c.h.b16 %v2629
    %v3720 = vunpack.c.l.b16 %v2630
    %v3721 = vunpack.c.h.b16 %v2630
    %v3722 = vunpack.c.l.b16 %v2631
    %v3723 = vunpack.c.h.b16 %v2631
    %v3724 = vunpack.c.l.b16 %v2632
    %v3725 = vunpack.c.h.b16 %v2632
    %v3726 = vunpack.c.l.b16 %v2633
    %v3727 = vunpack.c.h.b16 %v2633
    %v3728 = vunpack.c.l.b16 %v2634
    %v3729 = vunpack.c.h.b16 %v2634
    %v3730 = vunpack.c.l.b16 %v2635
    %v3731 = vunpack.c.h.b16 %v2635
    %v3732 = vunpack.c.l.b16 %v2636
    %v3733 = vunpack.c.h.b16 %v2636
    %v3734 = vunpack.c.l.b16 %v2637
    %v3735 = vunpack.c.h.b16 %v2637
    %v3736 = vunpack.c.l.b16 %v2638
    %v3737 = vunpack.c.h.b16 %v2638
    %v3738 = vunpack.c.l.b16 %v2639
    %v3739 = vunpack.c.h.b16 %v2639
    %v3740 = vunpack.c.l.b16 %v2640
    %v3741 = vunpack.c.h.b16 %v2640
    %v3742 = vunpack.c.l.b16 %v2641
    %v3743 = vunpack.c.h.b16 %v2641
    %v3744 = vunpack.c.l.b16 %v2642
    %v3745 = vunpack.c.h.b16 %v2642
    %v3746 = vunpack.c.l.b16 %v2643
    %v3747 = vunpack.c.h.b16 %v2643
    %v3748 = vunpack.c.l.b16 %v2644
    %v3749 = vunpack.c.h.b16 %v2644
    %v3750 = vunpack.c.l.b16 %v2645
    %v3751 = vunpack.c.h.b16 %v2645
    %v3752 = vunpack.c.l.b16 %v2646
    %v3753 = vunpack.c.h.b16 %v2646
    %v3754 = vunpack.c.l.b16 %v2647
    %v3755 = vunpack.c.h.b16 %v2647
    %v3756 = vunpack.c.l.b16 %v2648
    %v3757 = vunpack.c.h.b16 %v2648
    %v3758 = vunpack.c.l.b16 %v2649
    %v3759 = vunpack.c.h.b16 %v2649
    %v3760 = vunpack.c.l.b16 %v2650
    %v3761 = vunpack.c.h.b16 %v2650
    %v3762 = vunpack.c.l.b16 %v2651
    %v3763 = vunpack.c.h.b16 %v2651
    %v3764 = vunpack.c.l.b16 %v2652
    %v3765 = vunpack.c.h.b16 %v2652
    %v3766 = vunpack.c.l.b16 %v2653
    %v3767 = vunpack.c.h.b16 %v2653
    %v3768 = vunpack.c.l.b16 %v2654
    %v3769 = vunpack.c.h.b16 %v2654
    %v3770 = vunpack.c.l.b16 %v2655
    %v3771 = vunpack.c.h.b16 %v2655
    %v3772 = vunpack.c.l.b16 %v2656
    %v3773 = vunpack.c.h.b16 %v2656
    %v3774 = vunpack.c.l.b16 %v2657
    %v3775 = vunpack.c.h.b16 %v2657
    %v3776 = vunpack.c.l.b16 %v2658
    %v3777 = vunpack.c.h.b16 %v2658
    %v3778 = vunpack.c.l.b16 %v2659
    %v3779 = vunpack.c.h.b16 %v2659
    %v3780 = vunpack.c.l.b16 %v2660
    %v3781 = vunpack.c.h.b16 %v2660
    %v3782 = vunpack.c.l.b16 %v2661
    %v3783 = vunpack.c.h.b16 %v2661
    %v3784 = vunpack.c.l.b16 %v2662
    %v3785 = vunpack.c.h.b16 %v2662
    %v3786 = vunpack.c.l.b16 %v2663
    %v3787 = vunpack.c.h.b16 %v2663
    %v3788 = vunpack.c.l.b16 %v2664
    %v3789 = vunpack.c.h.b16 %v2664
    %v3790 = vunpack.c.l.b16 %v2665
    %v3791 = vunpack.c.h.b16 %v2665
    %v3792 = vunpack.c.l.b16 %v2666
    %v3793 = vunpack.c.h.b16 %v2666
    %v3794 = vunpack.c.l.b16 %v2667
    %v3795 = vunpack.c.h.b16 %v2667
    %v3796 = vunpack.c.l.b16 %v2668
    %v3797 = vunpack.c.h.b16 %v2668
    %v3798 = vunpack.c.l.b16 %v2669
    %v3799 = vunpack.c.h.b16 %v2669
    %v3800 = vunpack.c.l.b16 %v2670
    %v3801 = vunpack.c.h.b16 %v2670
    %v3802 = vunpack.c.l.b16 %v2671
    %v3803 = vunpack.c.h.b16 %v2671
    %v3804 = vunpack.c.l.b16 %v2672
    %v3805 = vunpack.c.h.b16 %v2672
    %v3806 = vunpack.c.l.b16 %v2673
    %v3807 = vunpack.c.h.b16 %v2673
    %v3808 = vunpack.c.l.b16 %v2674
    %v3809 = vunpack.c.h.b16 %v2674
    %v3810 = vunpack.c.l.b16 %v2675
    %v3811 = vunpack.c.h.b16 %v2675
    %v3812 = vunpack.c.l.b16 %v2676
    %v3813 = vunpack.c.h.b16 %v2676
    %v3814 = vunpack.c.l.b16 %v2677
    %v3815 = vunpack.c.h.b16 %v2677
    %v3816 = vunpack.c.l.b16 %v2678
    %v3817 = vunpack.c.h.b16 %v2678
    %v3818 = vunpack.c.l.b16 %v2679
    %v3819 = vunpack.c.h.b16 %v2679
    %v3820 = vunpack.c.l.b16 %v2680
    %v3821 = vunpack.c.h.b16 %v2680
    %v3822 = vunpack.c.l.b16 %v2681
    %v3823 = vunpack.c.h.b16 %v2681
    %v3824 = vunpack.c.l.b16 %v2682
    %v3825 = vunpack.c.h.b16 %v2682
    %v3826 = vunpack.c.l.b16 %v2683
    %v3827 = vunpack.c.h.b16 %v2683
    %v3828 = vunpack.c.l.b16 %v2684
    %v3829 = vunpack.c.h.b16 %v2684
    %v3830 = vunpack.c.l.b16 %v2685
    %v3831 = vunpack.c.h.b16 %v2685
    %v3832 = vunpack.c.l.b16 %v2686
    %v3833 = vunpack.c.h.b16 %v2686
    %v3834 = vunpack.c.l.b16 %v2687
    %v3835 = vunpack.c.h.b16 %v2687
    %v3836 = vunpack.c.l.b16 %v2688
    %v3837 = vunpack.c.h.b16 %v2688
    %v3838 = vunpack.c.l.b16 %v2689
    %v3839 = vunpack.c.h.b16 %v2689
    %v3840 = vunpack.c.l.b16 %v2690
    %v3841 = vunpack.c.h.b16 %v2690
    %v3842 = vunpack.c.l.b16 %v2691
    %v3843 = vunpack.c.h.b16 %v2691
    %v3844 = vunpack.c.l.b16 %v2692
    %v3845 = vunpack.c.h.b16 %v2692
    %v3846 = vunpack.c.l.b16 %v2693
    %v3847 = vunpack.c.h.b16 %v2693
    %v3848 = vunpack.c.l.b16 %v2694
    %v3849 = vunpack.c.h.b16 %v2694
    %v3850 = vunpack.c.l.b16 %v2695
    %v3851 = vunpack.c.h.b16 %v2695
    %v3852 = vunpack.c.l.b16 %v2696
    %v3853 = vunpack.c.h.b16 %v2696
    %v3854 = vunpack.c.l.b16 %v2697
    %v3855 = vunpack.c.h.b16 %v2697
    %v3856 = vunpack.c.l.b16 %v2698
    %v3857 = vunpack.c.h.b16 %v2698
    %v3858 = vunpack.c.l.b16 %v2699
    %v3859 = vunpack.c.h.b16 %v2699
    %v3860 = vunpack.c.l.b16 %v2700
    %v3861 = vunpack.c.h.b16 %v2700
    %v3862 = vunpack.c.l.b16 %v2701
    %v3863 = vunpack.c.h.b16 %v2701
    %v3864 = vunpack.c.l.b16 %v2702
    %v3865 = vunpack.c.h.b16 %v2702
    %v3866 = vunpack.c.l.b16 %v2703
    %v3867 = vunpack.c.h.b16 %v2703
    %v3868 = vunpack.c.l.b16 %v2704
    %v3869 = vunpack.c.h.b16 %v2704
    %v3870 = vunpack.c.l.b16 %v2705
    %v3871 = vunpack.c.h.b16 %v2705
    %v3872 = vunpack.c.l.b16 %v2706
    %v3873 = vunpack.c.h.b16 %v2706
    %v3874 = vunpack.c.l.b16 %v2707
    %v3875 = vunpack.c.h.b16 %v2707
    %v3876 = vunpack.c.l.b16 %v2708
    %v3877 = vunpack.c.h.b16 %v2708
    %v3878 = vunpack.c.l.b16 %v2709
    %v3879 = vunpack.c.h.b16 %v2709
    %v3880 = vunpack.c.l.b16 %v2710
    %v3881 = vunpack.c.h.b16 %v2710
    %v3882 = vunpack.c.l.b16 %v2711
    %v3883 = vunpack.c.h.b16 %v2711
    %v3884 = vunpack.c.l.b16 %v2712
    %v3885 = vunpack.c.h.b16 %v2712
    %v3886 = vunpack.c.l.b16 %v2713
    %v3887 = vunpack.c.h.b16 %v2713
    %v3888 = vunpack.c.l.b16 %v2714
    %v3889 = vunpack.c.h.b16 %v2714
    %v3890 = vunpack.c.l.b16 %v2715
    %v3891 = vunpack.c.h.b16 %v2715
    %v3892 = vunpack.c.l.b16 %v2716
    %v3893 = vunpack.c.h.b16 %v2716
    %v3894 = vunpack.c.l.b16 %v2717
    %v3895 = vunpack.c.h.b16 %v2717
    %v3896 = vunpack.c.l.b16 %v2718
    %v3897 = vunpack.c.h.b16 %v2718
    %v3898 = vunpack.c.l.b16 %v2719
    %v3899 = vunpack.c.h.b16 %v2719
    %v3900 = vunpack.c.l.b16 %v2720
    %v3901 = vunpack.c.h.b16 %v2720
    %v3902 = vunpack.c.l.b16 %v2721
    %v3903 = vunpack.c.h.b16 %v2721
    %v3904 = vunpack.c.l.b16 %v2722
    %v3905 = vunpack.c.h.b16 %v2722
    %v3906 = vunpack.c.l.b16 %v2723
    %v3907 = vunpack.c.h.b16 %v2723
    %v3908 = vunpack.c.l.b16 %v2724
    %v3909 = vunpack.c.h.b16 %v2724
    %v3910 = vunpack.c.l.b16 %v2725
    %v3911 = vunpack.c.h.b16 %v2725
    %v3912 = vunpack.c.l.b16 %v2726
    %v3913 = vunpack.c.h.b16 %v2726
    %v3914 = vunpack.c.l.b16 %v2727
    %v3915 = vunpack.c.h.b16 %v2727
    %v3916 = vunpack.c.l.b16 %v2728
    %v3917 = vunpack.c.h.b16 %v2728
    %v3918 = vunpack.c.l.b16 %v2729
    %v3919 = vunpack.c.h.b16 %v2729
    %v3920 = vunpack.c.l.b16 %v2730
    %v3921 = vunpack.c.h.b16 %v2730
    %v3922 = vunpack.c.l.b16 %v2731
    %v3923 = vunpack.c.h.b16 %v2731
    %v3924 = vunpack.c.l.b16 %v2732
    %v3925 = vunpack.c.h.b16 %v2732
    %v3926 = vunpack.c.l.b16 %v2733
    %v3927 = vunpack.c.h.b16 %v2733
    %v3928 = vunpack.c.l.b16 %v2734
    %v3929 = vunpack.c.h.b16 %v2734
    %v3930 = vunpack.c.l.b16 %v2735
    %v3931 = vunpack.c.h.b16 %v2735
    %v3932 = vunpack.c.l.b16 %v2736
    %v3933 = vunpack.c.h.b16 %v2736
    %v3934 = vunpack.c.l.b16 %v2737
    %v3935 = vunpack.c.h.b16 %v2737
    %v3936 = vunpack.c.l.b16 %v2738
    %v3937 = vunpack.c.h.b16 %v2738
    %v3938 = vunpack.c.l.b16 %v2739
    %v3939 = vunpack.c.h.b16 %v2739
    %v3940 = vunpack.c.l.b16 %v2740
    %v3941 = vunpack.c.h.b16 %v2740
    %v3942 = vunpack.c.l.b16 %v2741
    %v3943 = vunpack.c.h.b16 %v2741
    %v3944 = vunpack.c.l.b16 %v2742
    %v3945 = vunpack.c.h.b16 %v2742
    %v3946 = vunpack.c.l.b16 %v2743
    %v3947 = vunpack.c.h.b16 %v2743
    %v3948 = vunpack.c.l.b16 %v2744
    %v3949 = vunpack.c.h.b16 %v2744
    %v3950 = vunpack.c.l.b16 %v2745
    %v3951 = vunpack.c.h.b16 %v2745
    %v3952 = vunpack.c.l.b16 %v2746
    %v3953 = vunpack.c.h.b16 %v2746
    %v3954 = vunpack.c.l.b16 %v2747
    %v3955 = vunpack.c.h.b16 %v2747
    %v3956 = vunpack.c.l.b16 %v2748
    %v3957 = vunpack.c.h.b16 %v2748
    %v3958 = vunpack.c.l.b16 %v2749
    %v3959 = vunpack.c.h.b16 %v2749
    %v3960 = vunpack.c.l.b16 %v2750
    %v3961 = vunpack.c.h.b16 %v2750
    %v3962 = vunpack.c.l.b16 %v2751
    %v3963 = vunpack.c.h.b16 %v2751
    %v3964 = vunpack.c.l.b16 %v2752
    %v3965 = vunpack.c.h.b16 %v2752
    %v3966 = vunpack.c.l.b16 %v2753
    %v3967 = vunpack.c.h.b16 %v2753
    %v3968 = vunpack.c.l.b16 %v2754
    %v3969 = vunpack.c.h.b16 %v2754
    %v3970 = vunpack.c.l.b16 %v2755
    %v3971 = vunpack.c.h.b16 %v2755
    %v3972 = vunpack.c.l.b16 %v2756
    %v3973 = vunpack.c.h.b16 %v2756
    %v3974 = vunpack.c.l.b16 %v2757
    %v3975 = vunpack.c.h.b16 %v2757
    %v3976 = vunpack.c.l.b16 %v2758
    %v3977 = vunpack.c.h.b16 %v2758
    %v3978 = vunpack.c.l.b16 %v2759
    %v3979 = vunpack.c.h.b16 %v2759
    %v3980 = vunpack.c.l.b16 %v2760
    %v3981 = vunpack.c.h.b16 %v2760
    %v3982 = vunpack.c.l.b16 %v2761
    %v3983 = vunpack.c.h.b16 %v2761
    %v3984 = vunpack.c.l.b16 %v2762
    %v3985 = vunpack.c.h.b16 %v2762
    %v3986 = vunpack.c.l.b16 %v2763
    %v3987 = vunpack.c.h.b16 %v2763
    %v3988 = vunpack.c.l.b16 %v2764
    %v3989 = vunpack.c.h.b16 %v2764
    %v3990 = vunpack.c.l.b16 %v2765
    %v3991 = vunpack.c.h.b16 %v2765
    %v3992 = vunpack.c.l.b16 %v2766
    %v3993 = vunpack.c.h.b16 %v2766
    %v3994 = vunpack.c.l.b16 %v2767
    %v3995 = vunpack.c.h.b16 %v2767
    %v3996 = vunpack.c.l.b16 %v2768
    %v3997 = vunpack.c.h.b16 %v2768
    %v3998 = vunpack.c.l.b16 %v2769
    %v3999 = vunpack.c.h.b16 %v2769
    %v4000 = vunpack.c.l.b16 %v2770
    %v4001 = vunpack.c.h.b16 %v2770
    %v4002 = vunpack.c.l.b16 %v2771
    %v4003 = vunpack.c.h.b16 %v2771
    %v4004 = vunpack.c.l.b16 %v2772
    %v4005 = vunpack.c.h.b16 %v2772
    %v4006 = vunpack.c.l.b16 %v2773
    %v4007 = vunpack.c.h.b16 %v2773
    %v4008 = vunpack.c.l.b16 %v2774
    %v4009 = vunpack.c.h.b16 %v2774
    %v4010 = vunpack.c.l.b16 %v2775
    %v4011 = vunpack.c.h.b16 %v2775
    %v4012 = vunpack.c.l.b16 %v2776
    %v4013 = vunpack.c.h.b16 %v2776
    %v4014 = vunpack.c.l.b16 %v2777
    %v4015 = vunpack.c.h.b16 %v2777
    %v4016 = vunpack.c.l.b16 %v2778
    %v4017 = vunpack.c.h.b16 %v2778
    %v4018 = vunpack.c.l.b16 %v2779
    %v4019 = vunpack.c.h.b16 %v2779
    %v4020 = vunpack.c.l.b16 %v2780
    %v4021 = vunpack.c.h.b16 %v2780
    %v4022 = vunpack.c.l.b16 %v2781
    %v4023 = vunpack.c.h.b16 %v2781
    %v4024 = vunpack.c.l.b16 %v2782
    %v4025 = vunpack.c.h.b16 %v2782
    %v4026 = vunpack.c.l.b16 %v2783
    %v4027 = vunpack.c.h.b16 %v2783
    %v4028 = vunpack.c.l.b16 %v2784
    %v4029 = vunpack.c.h.b16 %v2784
    %v4030 = vunpack.c.l.b16 %v2785
    %v4031 = vunpack.c.h.b16 %v2785
    %v4032 = vunpack.c.l.b16 %v2786
    %v4033 = vunpack.c.h.b16 %v2786
    %v4034 = vunpack.c.l.b16 %v2787
    %v4035 = vunpack.c.h.b16 %v2787
    %v4036 = vunpack.c.l.b16 %v2788
    %v4037 = vunpack.c.h.b16 %v2788
    %v4038 = vunpack.c.l.b16 %v2789
    %v4039 = vunpack.c.h.b16 %v2789
    %v4040 = vunpack.c.l.b16 %v2790
    %v4041 = vunpack.c.h.b16 %v2790
    %v4042 = vunpack.c.l.b16 %v2791
    %v4043 = vunpack.c.h.b16 %v2791
    %v4044 = vunpack.c.l.b16 %v2792
    %v4045 = vunpack.c.h.b16 %v2792
    %v4046 = vunpack.c.l.b16 %v2793
    %v4047 = vunpack.c.h.b16 %v2793
    %v4048 = vunpack.c.l.b16 %v2794
    %v4049 = vunpack.c.h.b16 %v2794
    %v4050 = vunpack.c.l.b16 %v2795
    %v4051 = vunpack.c.h.b16 %v2795
    %v4052 = vunpack.c.l.b16 %v2796
    %v4053 = vunpack.c.h.b16 %v2796
    %v4054 = vunpack.c.l.b16 %v2797
    %v4055 = vunpack.c.h.b16 %v2797
    %v4056 = vunpack.c.l.b16 %v2798
    %v4057 = vunpack.c.h.b16 %v2798
    %v4058 = vunpack.c.l.b16 %v2799
    %v4059 = vunpack.c.h.b16 %v2799
    %v4060 = vunpack.c.l.b16 %v2800
    %v4061 = vunpack.c.h.b16 %v2800
    %v4062 = vunpack.c.l.b16 %v2801
    %v4063 = vunpack.c.h.b16 %v2801
    %v4064 = vunpack.c.l.b16 %v2802
    %v4065 = vunpack.c.h.b16 %v2802
    %v4066 = vunpack.c.l.b16 %v2803
    %v4067 = vunpack.c.h.b16 %v2803
    %v4068 = vunpack.c.l.b16 %v2804
    %v4069 = vunpack.c.h.b16 %v2804
    %v4070 = vunpack.c.l.b16 %v2805
    %v4071 = vunpack.c.h.b16 %v2805
    %v4072 = vunpack.c.l.b16 %v2806
    %v4073 = vunpack.c.h.b16 %v2806
    %v4074 = vunpack.c.l.b16 %v2807
    %v4075 = vunpack.c.h.b16 %v2807
    %v4076 = vunpack.c.l.b16 %v2808
    %v4077 = vunpack.c.h.b16 %v2808
    %v4078 = vunpack.c.l.b16 %v2809
    %v4079 = vunpack.c.h.b16 %v2809
    %v4080 = vunpack.c.l.b16 %v2810
    %v4081 = vunpack.c.h.b16 %v2810
    %v4082 = vunpack.c.l.b16 %v2811
    %v4083 = vunpack.c.h.b16 %v2811
    %v4084 = vunpack.c.l.b16 %v2812
    %v4085 = vunpack.c.h.b16 %v2812
    %v4086 = vunpack.c.l.b16 %v2813
    %v4087 = vunpack.c.h.b16 %v2813
    %v4088 = vunpack.c.l.b16 %v2814
    %v4089 = vunpack.c.h.b16 %v2814
    %v4090 = vunpack.c.l.b16 %v2815
    %v4091 = vunpack.c.h.b16 %v2815
    %v4092 = vunpack.c.l.b16 %v2816
    %v4093 = vunpack.c.h.b16 %v2816
    %v4094 = vunpack.c.l.b16 %v2817
    %v4095 = vunpack.c.h.b16 %v2817
    %v4096 = vunpack.c.l.b16 %v2818
    %v4097 = vunpack.c.h.b16 %v2818
    %v4098 = vunpack.c.l.b16 %v2819
    %v4099 = vunpack.c.h.b16 %v2819
    %v4100 = vunpack.c.l.b16 %v2820
    %v4101 = vunpack.c.h.b16 %v2820
    %v4102 = vunpack.c.l.b16 %v2821
    %v4103 = vunpack.c.h.b16 %v2821
    %v4104 = vunpack.c.l.b16 %v2822
    %v4105 = vunpack.c.h.b16 %v2822
    %v4106 = vunpack.c.l.b16 %v2823
    %v4107 = vunpack.c.h.b16 %v2823
    %v4108 = vunpack.c.l.b16 %v2824
    %v4109 = vunpack.c.h.b16 %v2824
    %v4110 = vunpack.c.l.b16 %v2825
    %v4111 = vunpack.c.h.b16 %v2825
    %v4112 = vunpack.c.l.b16 %v2826
    %v4113 = vunpack.c.h.b16 %v2826
    %v4114 = vunpack.c.l.b16 %v2827
    %v4115 = vunpack.c.h.b16 %v2827
    %v4116 = vunpack.c.l.b16 %v2828
    %v4117 = vunpack.c.h.b16 %v2828
    %v4118 = vunpack.c.l.b16 %v2829
    %v4119 = vunpack.c.h.b16 %v2829
    %v4120 = vunpack.c.l.b16 %v2830
    %v4121 = vunpack.c.h.b16 %v2830
    %v4122 = vunpack.c.l.b16 %v2831
    %v4123 = vunpack.c.h.b16 %v2831
    %v4124 = vunpack.c.l.b16 %v2832
    %v4125 = vunpack.c.h.b16 %v2832
    %v4126 = vunpack.c.l.b16 %v2833
    %v4127 = vunpack.c.h.b16 %v2833
    %v4128 = vunpack.c.l.b16 %v2834
    %v4129 = vunpack.c.h.b16 %v2834
    %v4130 = vunpack.c.l.b16 %v2835
    %v4131 = vunpack.c.h.b16 %v2835
    %v4132 = vunpack.c.l.b16 %v2836
    %v4133 = vunpack.c.h.b16 %v2836
    %v4134 = vunpack.c.l.b16 %v2837
    %v4135 = vunpack.c.h.b16 %v2837
    %v4136 = vunpack.c.l.b16 %v2838
    %v4137 = vunpack.c.h.b16 %v2838
    %v4138 = vunpack.c.l.b16 %v2839
    %v4139 = vunpack.c.h.b16 %v2839
    %v4140 = vunpack.c.l.b16 %v2840
    %v4141 = vunpack.c.h.b16 %v2840
    %v4142 = vunpack.c.l.b16 %v2841
    %v4143 = vunpack.c.h.b16 %v2841
    %v4144 = vunpack.c.l.b16 %v2842
    %v4145 = vunpack.c.h.b16 %v2842
    %v4146 = vunpack.c.l.b16 %v2843
    %v4147 = vunpack.c.h.b16 %v2843
    %v4148 = vunpack.c.l.b16 %v2844
    %v4149 = vunpack.c.h.b16 %v2844
    %v4150 = vunpack.c.l.b16 %v2845
    %v4151 = vunpack.c.h.b16 %v2845
    %v4152 = vunpack.c.l.b16 %v2846
    %v4153 = vunpack.c.h.b16 %v2846
    %v4154 = vunpack.c.l.b16 %v2847
    %v4155 = vunpack.c.h.b16 %v2847
    %v4156 = vunpack.c.l.b16 %v2848
    %v4157 = vunpack.c.h.b16 %v2848
    %v4158 = vunpack.c.l.b16 %v2849
    %v4159 = vunpack.c.h.b16 %v2849
    %v4160 = vunpack.c.l.b16 %v2850
    %v4161 = vunpack.c.h.b16 %v2850
    %v4162 = vunpack.c.l.b16 %v2851
    %v4163 = vunpack.c.h.b16 %v2851
    %v4164 = vunpack.c.l.b16 %v2852
    %v4165 = vunpack.c.h.b16 %v2852
    %v4166 = vunpack.c.l.b16 %v2853
    %v4167 = vunpack.c.h.b16 %v2853
    %v4168 = vunpack.c.l.b16 %v2854
    %v4169 = vunpack.c.h.b16 %v2854
    %v4170 = vunpack.c.l.b16 %v2855
    %v4171 = vunpack.c.h.b16 %v2855
    %v4172 = vunpack.c.l.b16 %v2856
    %v4173 = vunpack.c.h.b16 %v2856
    %v4174 = vunpack.c.l.b16 %v2857
    %v4175 = vunpack.c.h.b16 %v2857
    %v4176 = vunpack.c.l.b16 %v2858
    %v4177 = vunpack.c.h.b16 %v2858
    %v4178 = vunpack.c.l.b16 %v2859
    %v4179 = vunpack.c.h.b16 %v2859
    %v4180 = vunpack.c.l.b16 %v2860
    %v4181 = vunpack.c.h.b16 %v2860
    %v4182 = vunpack.c.l.b16 %v2861
    %v4183 = vunpack.c.h.b16 %v2861
    %v4184 = vunpack.c.l.b16 %v2862
    %v4185 = vunpack.c.h.b16 %v2862
    %v4186 = vunpack.c.l.b16 %v2863
    %v4187 = vunpack.c.h.b16 %v2863
    %v4188 = vunpack.c.l.b16 %v2864
    %v4189 = vunpack.c.h.b16 %v2864
    %v4190 = vunpack.c.l.b16 %v2865
    %v4191 = vunpack.c.h.b16 %v2865
    %v4192 = vunpack.c.l.b16 %v2866
    %v4193 = vunpack.c.h.b16 %v2866
    %v4194 = vunpack.c.l.b16 %v2867
    %v4195 = vunpack.c.h.b16 %v2867
    %v4196 = vunpack.c.l.b16 %v2868
    %v4197 = vunpack.c.h.b16 %v2868
    %v4198 = vunpack.c.l.b16 %v2869
    %v4199 = vunpack.c.h.b16 %v2869
    %v4200 = vunpack.c.l.b16 %v2870
    %v4201 = vunpack.c.h.b16 %v2870
    %v4202 = vunpack.c.l.b16 %v2871
    %v4203 = vunpack.c.h.b16 %v2871
    %v4204 = vunpack.c.l.b16 %v2872
    %v4205 = vunpack.c.h.b16 %v2872
    %v4206 = vunpack.c.l.b16 %v2873
    %v4207 = vunpack.c.h.b16 %v2873
    %v4208 = vunpack.c.l.b16 %v2874
    %v4209 = vunpack.c.h.b16 %v2874
    %v4210 = vunpack.c.l.b16 %v2875
    %v4211 = vunpack.c.h.b16 %v2875
    %v4212 = vunpack.c.l.b16 %v2876
    %v4213 = vunpack.c.h.b16 %v2876
    %v4214 = vunpack.c.l.b16 %v2877
    %v4215 = vunpack.c.h.b16 %v2877
    %v4216 = vunpack.c.l.b16 %v2878
    %v4217 = vunpack.c.h.b16 %v2878
    %v4218 = vunpack.c.l.b16 %v2879
    %v4219 = vunpack.c.h.b16 %v2879
    %v4220 = vunpack.c.l.b16 %v2880
    %v4221 = vunpack.c.h.b16 %v2880
    %v4222 = vunpack.c.l.b16 %v2881
    %v4223 = vunpack.c.h.b16 %v2881
    %v4224 = vunpack.c.l.b16 %v2882
    %v4225 = vunpack.c.h.b16 %v2882
    %v4226 = vunpack.c.l.b16 %v2883
    %v4227 = vunpack.c.h.b16 %v2883
    %v4228 = vunpack.c.l.b16 %v2884
    %v4229 = vunpack.c.h.b16 %v2884
    %v4230 = vunpack.c.l.b16 %v2885
    %v4231 = vunpack.c.h.b16 %v2885
    %v4232 = vunpack.c.l.b16 %v2886
    %v4233 = vunpack.c.h.b16 %v2886
    %v4234 = vunpack.c.l.b16 %v2887
    %v4235 = vunpack.c.h.b16 %v2887
    %v4236 = vunpack.c.l.b16 %v2888
    %v4237 = vunpack.c.h.b16 %v2888
    %v4238 = vunpack.c.l.b16 %v2889
    %v4239 = vunpack.c.h.b16 %v2889
    %v4240 = vunpack.c.l.b16 %v2890
    %v4241 = vunpack.c.h.b16 %v2890
    %v4242 = vunpack.c.l.b16 %v2891
    %v4243 = vunpack.c.h.b16 %v2891
    %v4244 = vunpack.c.l.b16 %v2892
    %v4245 = vunpack.c.h.b16 %v2892
    %v4246 = vunpack.c.l.b16 %v2893
    %v4247 = vunpack.c.h.b16 %v2893
    %v4248 = vunpack.c.l.b16 %v2894
    %v4249 = vunpack.c.h.b16 %v2894
    %v4250 = vunpack.c.l.b16 %v2895
    %v4251 = vunpack.c.h.b16 %v2895
    %v4252 = vunpack.c.l.b16 %v2896
    %v4253 = vunpack.c.h.b16 %v2896
    %v4254 = vunpack.c.l.b16 %v2897
    %v4255 = vunpack.c.h.b16 %v2897
    %v4256 = vunpack.c.l.b16 %v2898
    %v4257 = vunpack.c.h.b16 %v2898
    %v4258 = vunpack.c.l.b16 %v2899
    %v4259 = vunpack.c.h.b16 %v2899
    %v4260 = vunpack.c.l.b16 %v2900
    %v4261 = vunpack.c.h.b16 %v2900
    %v4262 = vunpack.c.l.b16 %v2901
    %v4263 = vunpack.c.h.b16 %v2901
    %v4264 = vunpack.c.l.b16 %v2902
    %v4265 = vunpack.c.h.b16 %v2902
    %v4266 = vunpack.c.l.b16 %v2903
    %v4267 = vunpack.c.h.b16 %v2903
    %v4268 = vunpack.c.l.b16 %v2904
    %v4269 = vunpack.c.h.b16 %v2904
    %v4270 = vunpack.c.l.b16 %v2905
    %v4271 = vunpack.c.h.b16 %v2905
    %v4272 = vunpack.c.l.b16 %v2906
    %v4273 = vunpack.c.h.b16 %v2906
    %v4274 = vunpack.c.l.b16 %v2907
    %v4275 = vunpack.c.h.b16 %v2907
    %v4276 = vunpack.c.l.b16 %v2908
    %v4277 = vunpack.c.h.b16 %v2908
    %v4278 = vunpack.c.l.b16 %v2909
    %v4279 = vunpack.c.h.b16 %v2909
    %v4280 = vunpack.c.l.b16 %v2910
    %v4281 = vunpack.c.h.b16 %v2910
    %v4282 = vunpack.c.l.b16 %v2911
    %v4283 = vunpack.c.h.b16 %v2911
    %v4284 = vunpack.c.l.b16 %v2912
    %v4285 = vunpack.c.h.b16 %v2912
    %v4286 = vunpack.c.l.b16 %v2913
    %v4287 = vunpack.c.h.b16 %v2913
    %v4288 = vunpack.c.l.b16 %v2914
    %v4289 = vunpack.c.h.b16 %v2914
    %v4290 = vunpack.c.l.b16 %v2915
    %v4291 = vunpack.c.h.b16 %v2915
    %v4292 = vunpack.c.l.b16 %v2916
    %v4293 = vunpack.c.h.b16 %v2916
    %v4294 = vunpack.c.l.b16 %v2917
    %v4295 = vunpack.c.h.b16 %v2917
    %v4296 = vunpack.c.l.b16 %v2918
    %v4297 = vunpack.c.h.b16 %v2918
    %v4298 = vunpack.c.l.b16 %v2919
    %v4299 = vunpack.c.h.b16 %v2919
    %v4300 = vunpack.c.l.b16 %v2920
    %v4301 = vunpack.c.h.b16 %v2920
    %v4302 = vunpack.c.l.b16 %v2921
    %v4303 = vunpack.c.h.b16 %v2921
    %v4304 = vunpack.c.l.b16 %v2922
    %v4305 = vunpack.c.h.b16 %v2922
    %v4306 = vunpack.c.l.b16 %v2923
    %v4307 = vunpack.c.h.b16 %v2923
    %v4308 = vunpack.c.l.b16 %v2924
    %v4309 = vunpack.c.h.b16 %v2924
    %v4310 = vunpack.c.l.b16 %v2925
    %v4311 = vunpack.c.h.b16 %v2925
    %v4312 = vunpack.c.l.b16 %v2926
    %v4313 = vunpack.c.h.b16 %v2926
    %v4314 = vunpack.c.l.b16 %v2927
    %v4315 = vunpack.c.h.b16 %v2927
    %v4316 = vunpack.c.l.b16 %v2928
    %v4317 = vunpack.c.h.b16 %v2928
    %v4318 = vunpack.c.l.b16 %v2929
    %v4319 = vunpack.c.h.b16 %v2929
    %v4320 = vunpack.c.l.b16 %v2930
    %v4321 = vunpack.c.h.b16 %v2930
    %v4322 = vunpack.c.l.b16 %v2931
    %v4323 = vunpack.c.h.b16 %v2931
    %v4324 = vunpack.c.l.b16 %v2932
    %v4325 = vunpack.c.h.b16 %v2932
    %v4326 = vunpack.c.l.b16 %v2933
    %v4327 = vunpack.c.h.b16 %v2933
    %v4328 = vunpack.c.l.b16 %v2934
    %v4329 = vunpack.c.h.b16 %v2934
    %v4330 = vunpack.c.l.b16 %v2935
    %v4331 = vunpack.c.h.b16 %v2935
    %v4332 = vunpack.c.l.b16 %v2936
    %v4333 = vunpack.c.h.b16 %v2936
    %v4334 = vunpack.c.l.b16 %v2937
    %v4335 = vunpack.c.h.b16 %v2937
    %v4336 = vunpack.c.l.b16 %v2938
    %v4337 = vunpack.c.h.b16 %v2938
    %v4338 = vunpack.c.l.b16 %v2939
    %v4339 = vunpack.c.h.b16 %v2939
    %v4340 = vunpack.c.l.b16 %v2940
    %v4341 = vunpack.c.h.b16 %v2940
    %v4342 = vunpack.c.l.b16 %v2941
    %v4343 = vunpack.c.h.b16 %v2941
    %v4344 = vunpack.c.l.b16 %v2942
    %v4345 = vunpack.c.h.b16 %v2942
    %v4346 = vunpack.c.l.b16 %v2943
    %v4347 = vunpack.c.h.b16 %v2943
    %v4348 = vunpack.c.l.b16 %v2944
    %v4349 = vunpack.c.h.b16 %v2944
    %v4350 = vunpack.c.l.b16 %v2945
    %v4351 = vunpack.c.h.b16 %v2945
    %v4352 = vunpack.c.l.b16 %v2946
    %v4353 = vunpack.c.h.b16 %v2946
    %v4354 = vunpack.c.l.b16 %v2947
    %v4355 = vunpack.c.h.b16 %v2947
    %v4356 = vunpack.c.l.b16 %v2948
    %v4357 = vunpack.c.h.b16 %v2948
    %v4358 = vunpack.c.l.b16 %v2949
    %v4359 = vunpack.c.h.b16 %v2949
    %v4360 = vunpack.c.l.b16 %v2950
    %v4361 = vunpack.c.h.b16 %v2950
    %v4362 = vunpack.c.l.b16 %v2951
    %v4363 = vunpack.c.h.b16 %v2951
    %v4364 = vunpack.c.l.b16 %v2952
    %v4365 = vunpack.c.h.b16 %v2952
    %v4366 = vunpack.c.l.b16 %v2953
    %v4367 = vunpack.c.h.b16 %v2953
    %v4368 = vunpack.c.l.b16 %v2954
    %v4369 = vunpack.c.h.b16 %v2954
    %v4370 = vunpack.c.l.b16 %v2955
    %v4371 = vunpack.c.h.b16 %v2955
    %v4372 = vunpack.c.l.b16 %v2956
    %v4373 = vunpack.c.h.b16 %v2956
    %v4374 = vunpack.c.l.b16 %v2957
    %v4375 = vunpack.c.h.b16 %v2957
    %v4376 = vunpack.c.l.b16 %v2958
    %v4377 = vunpack.c.h.b16 %v2958
    %v4378 = vunpack.c.l.b16 %v2959
    %v4379 = vunpack.c.h.b16 %v2959
    %v4380 = vunpack.c.l.b16 %v2960
    %v4381 = vunpack.c.h.b16 %v2960
    %v4382 = vunpack.c.l.b16 %v2961
    %v4383 = vunpack.c.h.b16 %v2961
    %v4384 = vunpack.c.l.b16 %v2962
    %v4385 = vunpack.c.h.b16 %v2962
    %v4386 = vunpack.c.l.b16 %v2963
    %v4387 = vunpack.c.h.b16 %v2963
    %v4388 = vunpack.c.l.b16 %v2964
    %v4389 = vunpack.c.h.b16 %v2964
    %v4390 = vunpack.c.l.b16 %v2965
    %v4391 = vunpack.c.h.b16 %v2965
    %v4392 = vunpack.c.l.b16 %v2966
    %v4393 = vunpack.c.h.b16 %v2966
    %v4394 = vunpack.c.l.b16 %v2967
    %v4395 = vunpack.c.h.b16 %v2967
    %v4396 = vunpack.c.l.b16 %v2968
    %v4397 = vunpack.c.h.b16 %v2968
    %v4398 = vunpack.c.l.b16 %v2969
    %v4399 = vunpack.c.h.b16 %v2969
    %v4400 = vunpack.c.l.b16 %v2970
    %v4401 = vunpack.c.h.b16 %v2970
    %v4402 = vunpack.c.l.b16 %v2971
    %v4403 = vunpack.c.h.b16 %v2971
    %v4404 = vunpack.c.l.b16 %v2972
    %v4405 = vunpack.c.h.b16 %v2972
    %v4406 = vunpack.c.l.b16 %v2973
    %v4407 = vunpack.c.h.b16 %v2973
    %v4408 = vunpack.c.l.b16 %v2974
    %v4409 = vunpack.c.h.b16 %v2974
    %v4410 = vunpack.c.l.b16 %v2975
    %v4411 = vunpack.c.h.b16 %v2975
    %v4412 = vunpack.c.l.b16 %v2976
    %v4413 = vunpack.c.h.b16 %v2976
    %v4414 = vunpack.c.l.b16 %v2977
    %v4415 = vunpack.c.h.b16 %v2977
    %v4416 = vunpack.c.l.b16 %v2978
    %v4417 = vunpack.c.h.b16 %v2978
    %v4418 = vunpack.c.l.b16 %v2979
    %v4419 = vunpack.c.h.b16 %v2979
    %v4420 = vunpack.c.l.b16 %v2980
    %v4421 = vunpack.c.h.b16 %v2980
    %v4422 = vunpack.c.l.b16 %v2981
    %v4423 = vunpack.c.h.b16 %v2981
    %v4424 = vunpack.c.l.b16 %v2982
    %v4425 = vunpack.c.h.b16 %v2982
    %v4426 = vunpack.c.l.b16 %v2983
    %v4427 = vunpack.c.h.b16 %v2983
    %v4428 = vunpack.c.l.b16 %v2984
    %v4429 = vunpack.c.h.b16 %v2984
    %v4430 = vunpack.c.l.b16 %v2985
    %v4431 = vunpack.c.h.b16 %v2985
    %v4432 = vunpack.c.l.b16 %v2986
    %v4433 = vunpack.c.h.b16 %v2986
    %v4434 = vunpack.c.l.b16 %v2987
    %v4435 = vunpack.c.h.b16 %v2987
    %v4436 = vunpack.c.l.b16 %v2988
    %v4437 = vunpack.c.h.b16 %v2988
    %v4438 = vunpack.c.l.b16 %v2989
    %v4439 = vunpack.c.h.b16 %v2989
    %v4440 = vunpack.c.l.b16 %v2990
    %v4441 = vunpack.c.h.b16 %v2990
    %v4442 = vunpack.c.l.b16 %v2991
    %v4443 = vunpack.c.h.b16 %v2991
    %v4444 = vunpack.c.l.b16 %v2992
    %v4445 = vunpack.c.h.b16 %v2992
    %v4446 = vunpack.c.l.b16 %v2993
    %v4447 = vunpack.c.h.b16 %v2993
    %v4448 = vunpack.c.l.b16 %v2994
    %v4449 = vunpack.c.h.b16 %v2994
    %v4450 = vunpack.c.l.b16 %v2995
    %v4451 = vunpack.c.h.b16 %v2995
    %v4452 = vunpack.c.l.b16 %v2996
    %v4453 = vunpack.c.h.b16 %v2996
    %v4454 = vunpack.c.l.b16 %v2997
    %v4455 = vunpack.c.h.b16 %v2997
    %v4456 = vunpack.c.l.b16 %v2998
    %v4457 = vunpack.c.h.b16 %v2998
    %v4458 = vunpack.c.l.b16 %v2999
    %v4459 = vunpack.c.h.b16 %v2999
    %v4460 = vunpack.c.l.b16 %v3000
    %v4461 = vunpack.c.h.b16 %v3000
    %v4462 = vunpack.c.l.b16 %v3001
    %v4463 = vunpack.c.h.b16 %v3001
    %v4464 = vunpack.c.l.b16 %v3002
    %v4465 = vunpack.c.h.b16 %v3002
    %v4466 = vunpack.c.l.b16 %v3003
    %v4467 = vunpack.c.h.b16 %v3003
    %v4468 = vunpack.c.l.b16 %v3004
    %v4469 = vunpack.c.h.b16 %v3004
    %v4470 = vunpack.c.l.b16 %v3005
    %v4471 = vunpack.c.h.b16 %v3005
    %v4472 = vunpack.c.l.b16 %v3006
    %v4473 = vunpack.c.h.b16 %v3006
    %v4474 = vunpack.c.l.b16 %v3007
    %v4475 = vunpack.c.h.b16 %v3007
    %v4476 = vunpack.c.l.b16 %v3008
    %v4477 = vunpack.c.h.b16 %v3008
    %v4478 = vunpack.c.l.b16 %v3009
    %v4479 = vunpack.c.h.b16 %v3009
    %v4480 = vunpack.c.l.b16 %v3010
    %v4481 = vunpack.c.h.b16 %v3010
    %v4482 = vunpack.c.l.b16 %v3011
    %v4483 = vunpack.c.h.b16 %v3011
    %v4484 = vunpack.c.l.b16 %v3012
    %v4485 = vunpack.c.h.b16 %v3012
    %v4486 = vunpack.c.l.b16 %v3013
    %v4487 = vunpack.c.h.b16 %v3013
    %v4488 = vunpack.c.l.b16 %v3014
    %v4489 = vunpack.c.h.b16 %v3014
    %v4490 = vunpack.c.l.b16 %v3015
    %v4491 = vunpack.c.h.b16 %v3015
    %v4492 = vunpack.c.l.b16 %v3016
    %v4493 = vunpack.c.h.b16 %v3016
    %v4494 = vunpack.c.l.b16 %v3017
    %v4495 = vunpack.c.h.b16 %v3017
    %v4496 = vunpack.c.l.b16 %v3018
    %v4497 = vunpack.c.h.b16 %v3018
    %v4498 = vunpack.c.l.b16 %v3019
    %v4499 = vunpack.c.h.b16 %v3019
    %v4500 = vunpack.c.l.b16 %v3020
    %v4501 = vunpack.c.h.b16 %v3020
    %v4502 = vunpack.c.l.b16 %v3021
    %v4503 = vunpack.c.h.b16 %v3021
    %v4504 = vunpack.c.l.b16 %v3022
    %v4505 = vunpack.c.h.b16 %v3022
    %v4506 = vunpack.c.l.b16 %v3023
    %v4507 = vunpack.c.h.b16 %v3023
    %v4508 = vunpack.c.l.b16 %v3024
    %v4509 = vunpack.c.h.b16 %v3024
    %v4510 = vunpack.c.l.b16 %v3025
    %v4511 = vunpack.c.h.b16 %v3025
    %v4512 = vunpack.c.l.b16 %v3026
    %v4513 = vunpack.c.h.b16 %v3026
    %v4514 = vunpack.c.l.b16 %v3027
    %v4515 = vunpack.c.h.b16 %v3027
    %v4516 = vunpack.c.l.b16 %v3028
    %v4517 = vunpack.c.h.b16 %v3028
    %v4518 = vunpack.c.l.b16 %v3029
    %v4519 = vunpack.c.h.b16 %v3029
    %v4520 = vunpack.c.l.b16 %v3030
    %v4521 = vunpack.c.h.b16 %v3030
    %v4522 = vunpack.c.l.b16 %v3031
    %v4523 = vunpack.c.h.b16 %v3031
    %v4524 = vunpack.c.l.b16 %v3032
    %v4525 = vunpack.c.h.b16 %v3032
    %v4526 = vunpack.c.l.b16 %v3033
    %v4527 = vunpack.c.h.b16 %v3033
    %v4528 = vunpack.c.l.b16 %v3034
    %v4529 = vunpack.c.h.b16 %v3034
    %v4530 = vunpack.c.l.b16 %v3035
    %v4531 = vunpack.c.h.b16 %v3035
    %v4532 = vunpack.c.l.b16 %v3036
    %v4533 = vunpack.c.h.b16 %v3036
    %v4534 = vunpack.c.l.b16 %v3037
    %v4535 = vunpack.c.h.b16 %v3037
    %v4536 = vunpack.c.l.b16 %v3038
    %v4537 = vunpack.c.h.b16 %v3038
    %v4538 = vunpack.c.l.b16 %v3039
    %v4539 = vunpack.c.h.b16 %v3039
    %v4540 = vunpack.c.l.b16 %v3040
    %v4541 = vunpack.c.h.b16 %v3040
    %v4542 = vunpack.c.l.b16 %v3041
    %v4543 = vunpack.c.h.b16 %v3041
    %v4544 = vunpack.c.l.b16 %v3042
    %v4545 = vunpack.c.h.b16 %v3042
    %v4546 = vunpack.c.l.b16 %v3043
    %v4547 = vunpack.c.h.b16 %v3043
    %v4548 = vunpack.c.l.b16 %v3044
    %v4549 = vunpack.c.h.b16 %v3044
    %v4550 = vunpack.c.l.b16 %v3045
    %v4551 = vunpack.c.h.b16 %v3045
    %v4552 = vunpack.c.l.b16 %v3046
    %v4553 = vunpack.c.h.b16 %v3046
    %v4554 = vunpack.c.l.b16 %v3047
    %v4555 = vunpack.c.h.b16 %v3047
    %v4556 = vunpack.c.l.b16 %v3048
    %v4557 = vunpack.c.h.b16 %v3048
    %v4558 = vunpack.c.l.b16 %v3049
    %v4559 = vunpack.c.h.b16 %v3049
    %v4560 = vunpack.c.l.b16 %v3050
    %v4561 = vunpack.c.h.b16 %v3050
    %v4562 = vunpack.c.l.b16 %v3051
    %v4563 = vunpack.c.h.b16 %v3051
    %v4564 = vunpack.c.l.b16 %v3052
    %v4565 = vunpack.c.h.b16 %v3052
    %v4566 = vunpack.c.l.b16 %v3053
    %v4567 = vunpack.c.h.b16 %v3053
    %v4568 = vunpack.c.l.b16 %v3054
    %v4569 = vunpack.c.h.b16 %v3054
    %v4570 = vunpack.c.l.b16 %v3055
    %v4571 = vunpack.c.h.b16 %v3055
    %v4572 = vunpack.c.l.b16 %v3056
    %v4573 = vunpack.c.h.b16 %v3056
    %v4574 = vunpack.c.l.b16 %v3057
    %v4575 = vunpack.c.h.b16 %v3057
    %v4576 = vunpack.c.l.b16 %v3058
    %v4577 = vunpack.c.h.b16 %v3058
    %v4578 = vunpack.c.l.b16 %v3059
    %v4579 = vunpack.c.h.b16 %v3059
    %v4580 = vunpack.c.l.b16 %v3060
    %v4581 = vunpack.c.h.b16 %v3060
    %v4582 = vunpack.c.l.b16 %v3061
    %v4583 = vunpack.c.h.b16 %v3061
    %v4584 = vunpack.c.l.b16 %v3062
    %v4585 = vunpack.c.h.b16 %v3062
    %v4586 = vunpack.c.l.b16 %v3063
    %v4587 = vunpack.c.h.b16 %v3063
    %v4588 = vunpack.c.l.b16 %v3064
    %v4589 = vunpack.c.h.b16 %v3064
    %v4590 = vunpack.c.l.b16 %v3065
    %v4591 = vunpack.c.h.b16 %v3065
    %v4592 = vunpack.c.l.b16 %v3066
    %v4593 = vunpack.c.h.b16 %v3066
    %v4594 = vunpack.c.l.b16 %v3067
    %v4595 = vunpack.c.h.b16 %v3067
    %v4596 = vunpack.c.l.b16 %v3068
    %v4597 = vunpack.c.h.b16 %v3068
    %v4598 = vunpack.c.l.b16 %v3069
    %v4599 = vunpack.c.h.b16 %v3069
    %v4600 = vunpack.c.l.b16 %v3070
    %v4601 = vunpack.c.h.b16 %v3070
    %v4602 = vunpack.c.l.b16 %v3071
    %v4603 = vunpack.c.h.b16 %v3071
    %v4604 = vunpack.c.l.b16 %v3072
    %v4605 = vunpack.c.h.b16 %v3072
    %v4606 = vunpack.c.l.b16 %v3073
    %v4607 = vunpack.c.h.b16 %v3073
    %v4608 = vunpack.c.l.b16 %v3074
    %v4609 = vunpack.c.h.b16 %v3074
    %v4610 = vunpack.c.l.b16 %v3075
    %v4611 = vunpack.c.h.b16 %v3075
    %v4612 = vunpack.c.l.b16 %v3076
    %v4613 = vunpack.c.h.b16 %v3076
    %v4614 = vunpack.c.l.b16 %v3077
    %v4615 = vunpack.c.h.b16 %v3077
    %v4616 = vunpack.c.l.b16 %v3078
    %v4617 = vunpack.c.h.b16 %v3078
    %v4618 = vunpack.c.l.b16 %v3079
    %v4619 = vunpack.c.h.b16 %v3079
    %v4620 = vunpack.c.l.b16 %v3080
    %v4621 = vunpack.c.h.b16 %v3080
    %v4622 = vunpack.c.l.b16 %v3081
    %v4623 = vunpack.c.h.b16 %v3081
    %v4624 = vunpack.c.l.b16 %v3082
    %v4625 = vunpack.c.h.b16 %v3082
    %v4626 = vunpack.c.l.b16 %v3083
    %v4627 = vunpack.c.h.b16 %v3083
    %v4628 = vunpack.c.l.b16 %v3084
    %v4629 = vunpack.c.h.b16 %v3084
    %v4630 = vunpack.c.l.b16 %v3085
    %v4631 = vunpack.c.h.b16 %v3085
    %v4632 = vunpack.c.l.b16 %v3086
    %v4633 = vunpack.c.h.b16 %v3086
    %v4634 = vunpack.c.l.b16 %v3087
    %v4635 = vunpack.c.h.b16 %v3087
    %v4636 = vunpack.c.l.b16 %v3088
    %v4637 = vunpack.c.h.b16 %v3088
    %v4638 = vunpack.c.l.b16 %v3089
    %v4639 = vunpack.c.h.b16 %v3089
    %v4640 = vunpack.c.l.b16 %v3090
    %v4641 = vunpack.c.h.b16 %v3090
    %v4642 = vunpack.c.l.b16 %v3091
    %v4643 = vunpack.c.h.b16 %v3091
    %v4644 = vunpack.c.l.b16 %v3092
    %v4645 = vunpack.c.h.b16 %v3092
    %v4646 = vunpack.c.l.b16 %v3093
    %v4647 = vunpack.c.h.b16 %v3093
    %v4648 = vunpack.c.l.b16 %v3094
    %v4649 = vunpack.c.h.b16 %v3094
    %v4650 = vunpack.c.l.b16 %v3095
    %v4651 = vunpack.c.h.b16 %v3095
    %v4652 = vunpack.c.l.b16 %v3096
    %v4653 = vunpack.c.h.b16 %v3096
    %v4654 = vunpack.c.l.b16 %v3097
    %v4655 = vunpack.c.h.b16 %v3097
    %v4656 = vunpack.c.l.b16 %v3098
    %v4657 = vunpack.c.h.b16 %v3098
    %v4658 = vunpack.c.l.b16 %v3099
    %v4659 = vunpack.c.h.b16 %v3099
    %v4660 = vunpack.c.l.b16 %v3100
    %v4661 = vunpack.c.h.b16 %v3100
    %v4662 = vunpack.c.l.b16 %v3101
    %v4663 = vunpack.c.h.b16 %v3101
    %v4664 = vunpack.c.l.b16 %v3102
    %v4665 = vunpack.c.h.b16 %v3102
    %v4666 = vunpack.c.l.b16 %v3103
    %v4667 = vunpack.c.h.b16 %v3103
    %v4668 = vunpack.c.l.b16 %v3104
    %v4669 = vunpack.c.h.b16 %v3104
    %v4670 = vunpack.c.l.b16 %v3105
    %v4671 = vunpack.c.h.b16 %v3105
    %v4672 = vunpack.c.l.b16 %v3106
    %v4673 = vunpack.c.h.b16 %v3106
    %v4674 = vunpack.c.l.b16 %v3107
    %v4675 = vunpack.c.h.b16 %v3107
    %v4676 = vunpack.c.l.b16 %v3108
    %v4677 = vunpack.c.h.b16 %v3108
    %v4678 = vunpack.c.l.b16 %v3109
    %v4679 = vunpack.c.h.b16 %v3109
    %v4680 = vunpack.c.l.b16 %v3110
    %v4681 = vunpack.c.h.b16 %v3110
    %v4682 = vunpack.c.l.b16 %v3111
    %v4683 = vunpack.c.h.b16 %v3111
    %v4684 = vunpack.c.l.b16 %v3112
    %v4685 = vunpack.c.h.b16 %v3112
    %v4686 = vunpack.c.l.b16 %v3113
    %v4687 = vunpack.c.h.b16 %v3113
    %v4688 = vunpack.c.l.b16 %v3114
    %v4689 = vunpack.c.h.b16 %v3114
    %v4690 = vunpack.c.l.b16 %v3115
    %v4691 = vunpack.c.h.b16 %v3115
    %v4692 = vunpack.c.l.b16 %v3116
    %v4693 = vunpack.c.h.b16 %v3116
    %v4694 = vunpack.c.l.b16 %v3117
    %v4695 = vunpack.c.h.b16 %v3117
    %v4696 = vpack.c.b16 %v3680, %v3672
    %v4697 = vpack.c.b16 %v3681, %v3673
    %v4698 = vpack.c.b16 %v3682, %v3674
    %v4699 = vpack.c.b16 %v3683, %v3675
    %v4700 = vpack.c.b16 %v3684, %v3676
    %v4701 = vpack.c.b16 %v3685, %v3677
    %v4702 = vpack.c.b16 %v3686, %v3678
    %v4703 = vpack.c.b16 %v3687, %v3679
    %v4704 = vpack.c.b16 %v3696, %v3688
    %v4705 = vpack.c.b16 %v3697, %v3689
    %v4706 = vpack.c.b16 %v3698, %v3690
    %v4707 = vpack.c.b16 %v3699, %v3691
    %v4708 = vpack.c.b16 %v3700, %v3692
    %v4709 = vpack.c.b16 %v3701, %v3693
    %v4710 = vpack.c.b16 %v3702, %v3694
    %v4711 = vpack.c.b16 %v3703, %v3695
    %v4712 = vpack.c.b16 %v3712, %v3704
    %v4713 = vpack.c.b16 %v3713, %v3705
    %v4714 = vpack.c.b16 %v3714, %v3706
    %v4715 = vpack.c.b16 %v3715, %v3707
    %v4716 = vpack.c.b16 %v3716, %v3708
    %v4717 = vpack.c.b16 %v3717, %v3709
    %v4718 = vpack.c.b16 %v3718, %v3710
    %v4719 = vpack.c.b16 %v3719, %v3711
    %v4720 = vpack.c.b16 %v3728, %v3720
    %v4721 = vpack.c.b16 %v3729, %v3721
    %v4722 = vpack.c.b16 %v3730, %v3722
    %v4723 = vpack.c.b16 %v3731, %v3723
    %v4724 = vpack.c.b16 %v3732, %v3724
    %v4725 = vpack.c.b16 %v3733, %v3725
    %v4726 = vpack.c.b16 %v3734, %v3726
    %v4727 = vpack.c.b16 %v3735, %v3727
    %v4728 = vpack.c.b16 %v3744, %v3736
    %v4729 = vpack.c.b16 %v3745, %v3737
    %v4730 = vpack.c.b16 %v3746, %v3738
    %v4731 = vpack.c.b16 %v3747, %v3739
    %v4732 = vpack.c.b16 %v3748, %v3740
    %v4733 = vpack.c.b16 %v3749, %v3741
    %v4734 = vpack.c.b16 %v3750, %v3742
    %v4735 = vpack.c.b16 %v3751, %v3743
    %v4736 = vpack.c.b16 %v3760, %v3752
    %v4737 = vpack.c.b16 %v3761, %v3753
    %v4738 = vpack.c.b16 %v3762, %v3754
    %v4739 = vpack.c.b16 %v3763, %v3755
    %v4740 = vpack.c.b16 %v3764, %v3756
    %v4741 = vpack.c.b16 %v3765, %v3757
    %v4742 = vpack.c.b16 %v3766, %v3758
    %v4743 = vpack.c.b16 %v3767, %v3759
    %v4744 = vpack.c.b16 %v3776, %v3768
    %v4745 = vpack.c.b16 %v3777, %v3769
    %v4746 = vpack.c.b16 %v3778, %v3770
    %v4747 = vpack.c.b16 %v3779, %v3771
    %v4748 = vpack.c.b16 %v3780, %v3772
    %v4749 = vpack.c.b16 %v3781, %v3773
    %v4750 = vpack.c.b16 %v3782, %v3774
    %v4751 = vpack.c.b16 %v3783, %v3775
    %v4752 = vpack.c.b16 %v3792, %v3784
    %v4753 = vpack.c.b16 %v3793, %v3785
    %v4754 = vpack.c.b16 %v3794, %v3786
    %v4755 = vpack.c.b16 %v3795, %v3787
    %v4756 = vpack.c.b16 %v3796, %v3788
    %v4757 = vpack.c.b16 %v3797, %v3789
    %v4758 = vpack.c.b16 %v3798, %v3790
    %v4759 = vpack.c.b16 %v3799, %v3791
    %v4760 = vpack.c.b16 %v3808, %v3800
    %v4761 = vpack.c.b16 %v3809, %v3801
    %v4762 = vpack.c.b16 %v3810, %v3802
    %v4763 = vpack.c.b16 %v3811, %v3803
    %v4764 = vpack.c.b16 %v3812, %v3804
    %v4765 = vpack.c.b16 %v3813, %v3805
    %v4766 = vpack.c.b16 %v3814, %v3806
    %v4767 = vpack.c.b16 %v3815, %v3807
    %v4768 = vpack.c.b16 %v3824, %v3816
    %v4769 = vpack.c.b16 %v3825, %v3817
    %v4770 = vpack.c.b16 %v3826, %v3818
    %v4771 = vpack.c.b16 %v3827, %v3819
    %v4772 = vpack.c.b16 %v3828, %v3820
    %v4773 = vpack.c.b16 %v3829, %v3821
    %v4774 = vpack.c.b16 %v3830, %v3822
    %v4775 = vpack.c.b16 %v3831, %v3823
    %v4776 = vpack.c.b16 %v3840, %v3832
    %v4777 = vpack.c.b16 %v3841, %v3833
    %v4778 = vpack.c.b16 %v3842, %v3834
    %v4779 = vpack.c.b16 %v3843, %v3835
    %v4780 = vpack.c.b16 %v3844, %v3836
    %v4781 = vpack.c.b16 %v3845, %v3837
    %v4782 = vpack.c.b16 %v3846, %v3838
    %v4783 = vpack.c.b16 %v3847, %v3839
    %v4784 = vpack.c.b16 %v3856, %v3848
    %v4785 = vpack.c.b16 %v3857, %v3849
    %v4786 = vpack.c.b16 %v3858, %v3850
    %v4787 = vpack.c.b16 %v3859, %v3851
    %v4788 = vpack.c.b16 %v3860, %v3852
    %v4789 = vpack.c.b16 %v3861, %v3853
    %v4790 = vpack.c.b16 %v3862, %v3854
    %v4791 = vpack.c.b16 %v3863, %v3855
    %v4792 = vpack.c.b16 %v3872, %v3864
    %v4793 = vpack.c.b16 %v3873, %v3865
    %v4794 = vpack.c.b16 %v3874, %v3866
    %v4795 = vpack.c.b16 %v3875, %v3867
    %v4796 = vpack.c.b16 %v3876, %v3868
    %v4797 = vpack.c.b16 %v3877, %v3869
    %v4798 = vpack.c.b16 %v3878, %v3870
    %v4799 = vpack.c.b16 %v3879, %v3871
    %v4800 = vpack.c.b16 %v3888, %v3880
    %v4801 = vpack.c.b16 %v3889, %v3881
    %v4802 = vpack.c.b16 %v3890, %v3882
    %v4803 = vpack.c.b16 %v3891, %v3883
    %v4804 = vpack.c.b16 %v3892, %v3884
    %v4805 = vpack.c.b16 %v3893, %v3885
    %v4806 = vpack.c.b16 %v3894, %v3886
    %v4807 = vpack.c.b16 %v3895, %v3887
    %v4808 = vpack.c.b16 %v3904, %v3896
    %v4809 = vpack.c.b16 %v3905, %v3897
    %v4810 = vpack.c.b16 %v3906, %v3898
    %v4811 = vpack.c.b16 %v3907, %v3899
    %v4812 = vpack.c.b16 %v3908, %v3900
    %v4813 = vpack.c.b16 %v3909, %v3901
    %v4814 = vpack.c.b16 %v3910, %v3902
    %v4815 = vpack.c.b16 %v3911, %v3903
    %v4816 = vpack.c.b16 %v3920, %v3912
    %v4817 = vpack.c.b16 %v3921, %v3913
    %v4818 = vpack.c.b16 %v3922, %v3914
    %v4819 = vpack.c.b16 %v3923, %v3915
    %v4820 = vpack.c.b16 %v3924, %v3916
    %v4821 = vpack.c.b16 %v3925, %v3917
    %v4822 = vpack.c.b16 %v3926, %v3918
    %v4823 = vpack.c.b16 %v3927, %v3919
    %v4824 = vpack.c.b16 %v3936, %v3928
    %v4825 = vpack.c.b16 %v3937, %v3929
    %v4826 = vpack.c.b16 %v3938, %v3930
    %v4827 = vpack.c.b16 %v3939, %v3931
    %v4828 = vpack.c.b16 %v3940, %v3932
    %v4829 = vpack.c.b16 %v3941, %v3933
    %v4830 = vpack.c.b16 %v3942, %v3934
    %v4831 = vpack.c.b16 %v3943, %v3935
    %v4832 = vpack.c.b16 %v3952, %v3944
    %v4833 = vpack.c.b16 %v3953, %v3945
    %v4834 = vpack.c.b16 %v3954, %v3946
    %v4835 = vpack.c.b16 %v3955, %v3947
    %v4836 = vpack.c.b16 %v3956, %v3948
    %v4837 = vpack.c.b16 %v3957, %v3949
    %v4838 = vpack.c.b16 %v3958, %v3950
    %v4839 = vpack.c.b16 %v3959, %v3951
    %v4840 = vpack.c.b16 %v3968, %v3960
    %v4841 = vpack.c.b16 %v3969, %v3961
    %v4842 = vpack.c.b16 %v3970, %v3962
    %v4843 = vpack.c.b16 %v3971, %v3963
    %v4844 = vpack.c.b16 %v3972, %v3964
    %v4845 = vpack.c.b16 %v3973, %v3965
    %v4846 = vpack.c.b16 %v3974, %v3966
    %v4847 = vpack.c.b16 %v3975, %v3967
    %v4848 = vpack.c.b16 %v3984, %v3976
    %v4849 = vpack.c.b16 %v3985, %v3977
    %v4850 = vpack.c.b16 %v3986, %v3978
    %v4851 = vpack.c.b16 %v3987, %v3979
    %v4852 = vpack.c.b16 %v3988, %v3980
    %v4853 = vpack.c.b16 %v3989, %v3981
    %v4854 = vpack.c.b16 %v3990, %v3982
    %v4855 = vpack.c.b16 %v3991, %v3983
    %v4856 = vpack.c.b16 %v4000, %v3992
    %v4857 = vpack.c.b16 %v4001, %v3993
    %v4858 = vpack.c.b16 %v4002, %v3994
    %v4859 = vpack.c.b16 %v4003, %v3995
    %v4860 = vpack.c.b16 %v4004, %v3996
    %v4861 = vpack.c.b16 %v4005, %v3997
    %v4862 = vpack.c.b16 %v4006, %v3998
    %v4863 = vpack.c.b16 %v4007, %v3999
    %v4864 = vpack.c.b16 %v4016, %v4008
    %v4865 = vpack.c.b16 %v4017, %v4009
    %v4866 = vpack.c.b16 %v4018, %v4010
    %v4867 = vpack.c.b16 %v4019, %v4011
    %v4868 = vpack.c.b16 %v4020, %v4012
    %v4869 = vpack.c.b16 %v4021, %v4013
    %v4870 = vpack.c.b16 %v4022, %v4014
    %v4871 = vpack.c.b16 %v4023, %v4015
    %v4872 = vpack.c.b16 %v4032, %v4024
    %v4873 = vpack.c.b16 %v4033, %v4025
    %v4874 = vpack.c.b16 %v4034, %v4026
    %v4875 = vpack.c.b16 %v4035, %v4027
    %v4876 = vpack.c.b16 %v4036, %v4028
    %v4877 = vpack.c.b16 %v4037, %v4029
    %v4878 = vpack.c.b16 %v4038, %v4030
    %v4879 = vpack.c.b16 %v4039, %v4031
    %v4880 = vpack.c.b16 %v4048, %v4040
    %v4881 = vpack.c.b16 %v4049, %v4041
    %v4882 = vpack.c.b16 %v4050, %v4042
    %v4883 = vpack.c.b16 %v4051, %v4043
    %v4884 = vpack.c.b16 %v4052, %v4044
    %v4885 = vpack.c.b16 %v4053, %v4045
    %v4886 = vpack.c.b16 %v4054, %v4046
    %v4887 = vpack.c.b16 %v4055, %v4047
    %v4888 = vpack.c.b16 %v4064, %v4056
    %v4889 = vpack.c.b16 %v4065, %v4057
    %v4890 = vpack.c.b16 %v4066, %v4058
    %v4891 = vpack.c.b16 %v4067, %v4059
    %v4892 = vpack.c.b16 %v4068, %v4060
    %v4893 = vpack.c.b16 %v4069, %v4061
    %v4894 = vpack.c.b16 %v4070, %v4062
    %v4895 = vpack.c.b16 %v4071, %v4063
    %v4896 = vpack.c.b16 %v4080, %v4072
    %v4897 = vpack.c.b16 %v4081, %v4073
    %v4898 = vpack.c.b16 %v4082, %v4074
    %v4899 = vpack.c.b16 %v4083, %v4075
    %v4900 = vpack.c.b16 %v4084, %v4076
    %v4901 = vpack.c.b16 %v4085, %v4077
    %v4902 = vpack.c.b16 %v4086, %v4078
    %v4903 = vpack.c.b16 %v4087, %v4079
    %v4904 = vpack.c.b16 %v4096, %v4088
    %v4905 = vpack.c.b16 %v4097, %v4089
    %v4906 = vpack.c.b16 %v4098, %v4090
    %v4907 = vpack.c.b16 %v4099, %v4091
    %v4908 = vpack.c.b16 %v4100, %v4092
    %v4909 = vpack.c.b16 %v4101, %v4093
    %v4910 = vpack.c.b16 %v4102, %v4094
    %v4911 = vpack.c.b16 %v4103, %v4095
    %v4912 = vpack.c.b16 %v4112, %v4104
    %v4913 = vpack.c.b16 %v4113, %v4105
    %v4914 = vpack.c.b16 %v4114, %v4106
    %v4915 = vpack.c.b16 %v4115, %v4107
    %v4916 = vpack.c.b16 %v4116, %v4108
    %v4917 = vpack.c.b16 %v4117, %v4109
    %v4918 = vpack.c.b16 %v4118, %v4110
    %v4919 = vpack.c.b16 %v4119, %v4111
    %v4920 = vpack.c.b16 %v4128, %v4120
    %v4921 = vpack.c.b16 %v4129, %v4121
    %v4922 = vpack.c.b16 %v4130, %v4122
    %v4923 = vpack.c.b16 %v4131, %v4123
    %v4924 = vpack.c.b16 %v4132, %v4124
    %v4925 = vpack.c.b16 %v4133, %v4125
    %v4926 = vpack.c.b16 %v4134, %v4126
    %v4927 = vpack.c.b16 %v4135, %v4127
    %v4928 = vpack.c.b16 %v4144, %v4136
    %v4929 = vpack.c.b16 %v4145, %v4137
    %v4930 = vpack.c.b16 %v4146, %v4138
    %v4931 = vpack.c.b16 %v4147, %v4139
    %v4932 = vpack.c.b16 %v4148, %v4140
    %v4933 = vpack.c.b16 %v4149, %v4141
    %v4934 = vpack.c.b16 %v4150, %v4142
    %v4935 = vpack.c.b16 %v4151, %v4143
    %v4936 = vpack.c.b16 %v4160, %v4152
    %v4937 = vpack.c.b16 %v4161, %v4153
    %v4938 = vpack.c.b16 %v4162, %v4154
    %v4939 = vpack.c.b16 %v4163, %v4155
    %v4940 = vpack.c.b16 %v4164, %v4156
    %v4941 = vpack.c.b16 %v4165, %v4157
    %v4942 = vpack.c.b16 %v4166, %v4158
    %v4943 = vpack.c.b16 %v4167, %v4159
    %v4944 = vpack.c.b16 %v4176, %v4168
    %v4945 = vpack.c.b16 %v4177, %v4169
    %v4946 = vpack.c.b16 %v4178, %v4170
    %v4947 = vpack.c.b16 %v4179, %v4171
    %v4948 = vpack.c.b16 %v4180, %v4172
    %v4949 = vpack.c.b16 %v4181, %v4173
    %v4950 = vpack.c.b16 %v4182, %v4174
    %v4951 = vpack.c.b16 %v4183, %v4175
    %v4952 = vpack.c.b16 %v4192, %v4184
    %v4953 = vpack.c.b16 %v4193, %v4185
    %v4954 = vpack.c.b16 %v4194, %v4186
    %v4955 = vpack.c.b16 %v4195, %v4187
    %v4956 = vpack.c.b16 %v4196, %v4188
    %v4957 = vpack.c.b16 %v4197, %v4189
    %v4958 = vpack.c.b16 %v4198, %v4190
    %v4959 = vpack.c.b16 %v4199, %v4191
    %v4960 = vpack.c.b16 %v4208, %v4200
    %v4961 = vpack.c.b16 %v4209, %v4201
    %v4962 = vpack.c.b16 %v4210, %v4202
    %v4963 = vpack.c.b16 %v4211, %v4203
    %v4964 = vpack.c.b16 %v4212, %v4204
    %v4965 = vpack.c.b16 %v4213, %v4205
    %v4966 = vpack.c.b16 %v4214, %v4206
    %v4967 = vpack.c.b16 %v4215, %v4207
    %v4968 = vpack.c.b16 %v4224, %v4216
    %v4969 = vpack.c.b16 %v4225, %v4217
    %v4970 = vpack.c.b16 %v4226, %v4218
    %v4971 = vpack.c.b16 %v4227, %v4219
    %v4972 = vpack.c.b16 %v4228, %v4220
    %v4973 = vpack.c.b16 %v4229, %v4221
    %v4974 = vpack.c.b16 %v4230, %v4222
    %v4975 = vpack.c.b16 %v4231, %v4223
    %v4976 = vpack.c.b16 %v4240, %v4232
    %v4977 = vpack.c.b16 %v4241, %v4233
    %v4978 = vpack.c.b16 %v4242, %v4234
    %v4979 = vpack.c.b16 %v4243, %v4235
    %v4980 = vpack.c.b16 %v4244, %v4236
    %v4981 = vpack.c.b16 %v4245, %v4237
    %v4982 = vpack.c.b16 %v4246, %v4238
    %v4983 = vpack.c.b16 %v4247, %v4239
    %v4984 = vpack.c.b16 %v4256, %v4248
    %v4985 = vpack.c.b16 %v4257, %v4249
    %v4986 = vpack.c.b16 %v4258, %v4250
    %v4987 = vpack.c.b16 %v4259, %v4251
    %v4988 = vpack.c.b16 %v4260, %v4252
    %v4989 = vpack.c.b16 %v4261, %v4253
    %v4990 = vpack.c.b16 %v4262, %v4254
    %v4991 = vpack.c.b16 %v4263, %v4255
    %v4992 = vpack.c.b16 %v4272, %v4264
    %v4993 = vpack.c.b16 %v4273, %v4265
    %v4994 = vpack.c.b16 %v4274, %v4266
    %v4995 = vpack.c.b16 %v4275, %v4267
    %v4996 = vpack.c.b16 %v4276, %v4268
    %v4997 = vpack.c.b16 %v4277, %v4269
    %v4998 = vpack.c.b16 %v4278, %v4270
    %v4999 = vpack.c.b16 %v4279, %v4271
    %v5000 = vpack.c.b16 %v4288, %v4280
    %v5001 = vpack.c.b16 %v4289, %v4281
    %v5002 = vpack.c.b16 %v4290, %v4282
    %v5003 = vpack.c.b16 %v4291, %v4283
    %v5004 = vpack.c.b16 %v4292, %v4284
    %v5005 = vpack.c.b16 %v4293, %v4285
    %v5006 = vpack.c.b16 %v4294, %v4286
    %v5007 = vpack.c.b16 %v4295, %v4287
    %v5008 = vpack.c.b16 %v4304, %v4296
    %v5009 = vpack.c.b16 %v4305, %v4297
    %v5010 = vpack.c.b16 %v4306, %v4298
    %v5011 = vpack.c.b16 %v4307, %v4299
    %v5012 = vpack.c.b16 %v4308, %v4300
    %v5013 = vpack.c.b16 %v4309, %v4301
    %v5014 = vpack.c.b16 %v4310, %v4302
    %v5015 = vpack.c.b16 %v4311, %v4303
    %v5016 = vpack.c.b16 %v4320, %v4312
    %v5017 = vpack.c.b16 %v4321, %v4313
    %v5018 = vpack.c.b16 %v4322, %v4314
    %v5019 = vpack.c.b16 %v4323, %v4315
    %v5020 = vpack.c.b16 %v4324, %v4316
    %v5021 = vpack.c.b16 %v4325, %v4317
    %v5022 = vpack.c.b16 %v4326, %v4318
    %v5023 = vpack.c.b16 %v4327, %v4319
    %v5024 = vpack.c.b16 %v4336, %v4328
    %v5025 = vpack.c.b16 %v4337, %v4329
    %v5026 = vpack.c.b16 %v4338, %v4330
    %v5027 = vpack.c.b16 %v4339, %v4331
    %v5028 = vpack.c.b16 %v4340, %v4332
    %v5029 = vpack.c.b16 %v4341, %v4333
    %v5030 = vpack.c.b16 %v4342, %v4334
    %v5031 = vpack.c.b16 %v4343, %v4335
    %v5032 = vpack.c.b16 %v4352, %v4344
    %v5033 = vpack.c.b16 %v4353, %v4345
    %v5034 = vpack.c.b16 %v4354, %v4346
    %v5035 = vpack.c.b16 %v4355, %v4347
    %v5036 = vpack.c.b16 %v4356, %v4348
    %v5037 = vpack.c.b16 %v4357, %v4349
    %v5038 = vpack.c.b16 %v4358, %v4350
    %v5039 = vpack.c.b16 %v4359, %v4351
    %v5040 = vpack.c.b16 %v4368, %v4360
    %v5041 = vpack.c.b16 %v4369, %v4361
    %v5042 = vpack.c.b16 %v4370, %v4362
    %v5043 = vpack.c.b16 %v4371, %v4363
    %v5044 = vpack.c.b16 %v4372, %v4364
    %v5045 = vpack.c.b16 %v4373, %v4365
    %v5046 = vpack.c.b16 %v4374, %v4366
    %v5047 = vpack.c.b16 %v4375, %v4367
    %v5048 = vpack.c.b16 %v4384, %v4376
    %v5049 = vpack.c.b16 %v4385, %v4377
    %v5050 = vpack.c.b16 %v4386, %v4378
    %v5051 = vpack.c.b16 %v4387, %v4379
    %v5052 = vpack.c.b16 %v4388, %v4380
    %v5053 = vpack.c.b16 %v4389, %v4381
    %v5054 = vpack.c.b16 %v4390, %v4382
    %v5055 = vpack.c.b16 %v4391, %v4383
    %v5056 = vpack.c.b16 %v4400, %v4392
    %v5057 = vpack.c.b16 %v4401, %v4393
    %v5058 = vpack.c.b16 %v4402, %v4394
    %v5059 = vpack.c.b16 %v4403, %v4395
    %v5060 = vpack.c.b16 %v4404, %v4396
    %v5061 = vpack.c.b16 %v4405, %v4397
    %v5062 = vpack.c.b16 %v4406, %v4398
    %v5063 = vpack.c.b16 %v4407, %v4399
    %v5064 = vpack.c.b16 %v4416, %v4408
    %v5065 = vpack.c.b16 %v4417, %v4409
    %v5066 = vpack.c.b16 %v4418, %v4410
    %v5067 = vpack.c.b16 %v4419, %v4411
    %v5068 = vpack.c.b16 %v4420, %v4412
    %v5069 = vpack.c.b16 %v4421, %v4413
    %v5070 = vpack.c.b16 %v4422, %v4414
    %v5071 = vpack.c.b16 %v4423, %v4415
    %v5072 = vpack.c.b16 %v4432, %v4424
    %v5073 = vpack.c.b16 %v4433, %v4425
    %v5074 = vpack.c.b16 %v4434, %v4426
    %v5075 = vpack.c.b16 %v4435, %v4427
    %v5076 = vpack.c.b16 %v4436, %v4428
    %v5077 = vpack.c.b16 %v4437, %v4429
    %v5078 = vpack.c.b16 %v4438, %v4430
    %v5079 = vpack.c.b16 %v4439, %v4431
    %v5080 = vpack.c.b16 %v4448, %v4440
    %v5081 = vpack.c.b16 %v4449, %v4441
    %v5082 = vpack.c.b16 %v4450, %v4442
    %v5083 = vpack.c.b16 %v4451, %v4443
    %v5084 = vpack.c.b16 %v4452, %v4444
    %v5085 = vpack.c.b16 %v4453, %v4445
    %v5086 = vpack.c.b16 %v4454, %v4446
    %v5087 = vpack.c.b16 %v4455, %v4447
    %v5088 = vpack.c.b16 %v4464, %v4456
    %v5089 = vpack.c.b16 %v4465, %v4457
    %v5090 = vpack.c.b16 %v4466, %v4458
    %v5091 = vpack.c.b16 %v4467, %v4459
    %v5092 = vpack.c.b16 %v4468, %v4460
    %v5093 = vpack.c.b16 %v4469, %v4461
    %v5094 = vpack.c.b16 %v4470, %v4462
    %v5095 = vpack.c.b16 %v4471, %v4463
    %v5096 = vpack.c.b16 %v4480, %v4472
    %v5097 = vpack.c.b16 %v4481, %v4473
    %v5098 = vpack.c.b16 %v4482, %v4474
    %v5099 = vpack.c.b16 %v4483, %v4475
    %v5100 = vpack.c.b16 %v4484, %v4476
    %v5101 = vpack.c.b16 %v4485, %v4477
    %v5102 = vpack.c.b16 %v4486, %v4478
    %v5103 = vpack.c.b16 %v4487, %v4479
    %v5104 = vpack.c.b16 %v4496, %v4488
    %v5105 = vpack.c.b16 %v4497, %v4489
    %v5106 = vpack.c.b16 %v4498, %v4490
    %v5107 = vpack.c.b16 %v4499, %v4491
    %v5108 = vpack.c.b16 %v4500, %v4492
    %v5109 = vpack.c.b16 %v4501, %v4493
    %v5110 = vpack.c.b16 %v4502, %v4494
    %v5111 = vpack.c.b16 %v4503, %v4495
    %v5112 = vpack.c.b16 %v4512, %v4504
    %v5113 = vpack.c.b16 %v4513, %v4505
    %v5114 = vpack.c.b16 %v4514, %v4506
    %v5115 = vpack.c.b16 %v4515, %v4507
    %v5116 = vpack.c.b16 %v4516, %v4508
    %v5117 = vpack.c.b16 %v4517, %v4509
    %v5118 = vpack.c.b16 %v4518, %v4510
    %v5119 = vpack.c.b16 %v4519, %v4511
    %v5120 = vpack.c.b16 %v4528, %v4520
    %v5121 = vpack.c.b16 %v4529, %v4521
    %v5122 = vpack.c.b16 %v4530, %v4522
    %v5123 = vpack.c.b16 %v4531, %v4523
    %v5124 = vpack.c.b16 %v4532, %v4524
    %v5125 = vpack.c.b16 %v4533, %v4525
    %v5126 = vpack.c.b16 %v4534, %v4526
    %v5127 = vpack.c.b16 %v4535, %v4527
    %v5128 = vpack.c.b16 %v4544, %v4536
    %v5129 = vpack.c.b16 %v4545, %v4537
    %v5130 = vpack.c.b16 %v4546, %v4538
    %v5131 = vpack.c.b16 %v4547, %v4539
    %v5132 = vpack.c.b16 %v4548, %v4540
    %v5133 = vpack.c.b16 %v4549, %v4541
    %v5134 = vpack.c.b16 %v4550, %v4542
    %v5135 = vpack.c.b16 %v4551, %v4543
    %v5136 = vpack.c.b16 %v4560, %v4552
    %v5137 = vpack.c.b16 %v4561, %v4553
    %v5138 = vpack.c.b16 %v4562, %v4554
    %v5139 = vpack.c.b16 %v4563, %v4555
    %v5140 = vpack.c.b16 %v4564, %v4556
    %v5141 = vpack.c.b16 %v4565, %v4557
    %v5142 = vpack.c.b16 %v4566, %v4558
    %v5143 = vpack.c.b16 %v4567, %v4559
    %v5144 = vpack.c.b16 %v4576, %v4568
    %v5145 = vpack.c.b16 %v4577, %v4569
    %v5146 = vpack.c.b16 %v4578, %v4570
    %v5147 = vpack.c.b16 %v4579, %v4571
    %v5148 = vpack.c.b16 %v4580, %v4572
    %v5149 = vpack.c.b16 %v4581, %v4573
    %v5150 = vpack.c.b16 %v4582, %v4574
    %v5151 = vpack.c.b16 %v4583, %v4575
    %v5152 = vpack.c.b16 %v4592, %v4584
    %v5153 = vpack.c.b16 %v4593, %v4585
    %v5154 = vpack.c.b16 %v4594, %v4586
    %v5155 = vpack.c.b16 %v4595, %v4587
    %v5156 = vpack.c.b16 %v4596, %v4588
    %v5157 = vpack.c.b16 %v4597, %v4589
    %v5158 = vpack.c.b16 %v4598, %v4590
    %v5159 = vpack.c.b16 %v4599, %v4591
    %v5160 = vpack.c.b16 %v4608, %v4600
    %v5161 = vpack.c.b16 %v4609, %v4601
    %v5162 = vpack.c.b16 %v4610, %v4602
    %v5163 = vpack.c.b16 %v4611, %v4603
    %v5164 = vpack.c.b16 %v4612, %v4604
    %v5165 = vpack.c.b16 %v4613, %v4605
    %v5166 = vpack.c.b16 %v4614, %v4606
    %v5167 = vpack.c.b16 %v4615, %v4607
    %v5168 = vpack.c.b16 %v4624, %v4616
    %v5169 = vpack.c.b16 %v4625, %v4617
    %v5170 = vpack.c.b16 %v4626, %v4618
    %v5171 = vpack.c.b16 %v4627, %v4619
    %v5172 = vpack.c.b16 %v4628, %v4620
    %v5173 = vpack.c.b16 %v4629, %v4621
    %v5174 = vpack.c.b16 %v4630, %v4622
    %v5175 = vpack.c.b16 %v4631, %v4623
    %v5176 = vpack.c.b16 %v4640, %v4632
    %v5177 = vpack.c.b16 %v4641, %v4633
    %v5178 = vpack.c.b16 %v4642, %v4634
    %v5179 = vpack.c.b16 %v4643, %v4635
    %v5180 = vpack.c.b16 %v4644, %v4636
    %v5181 = vpack.c.b16 %v4645, %v4637
    %v5182 = vpack.c.b16 %v4646, %v4638
    %v5183 = vpack.c.b16 %v4647, %v4639
    %v5184 = vpack.c.b16 %v4656, %v4648
    %v5185 = vpack.c.b16 %v4657, %v4649
    %v5186 = vpack.c.b16 %v4658, %v4650
    %v5187 = vpack.c.b16 %v4659, %v4651
    %v5188 = vpack.c.b16 %v4660, %v4652
    %v5189 = vpack.c.b16 %v4661, %v4653
    %v5190 = vpack.c.b16 %v4662, %v4654
    %v5191 = vpack.c.b16 %v4663, %v4655
    %v5192 = vpack.c.b16 %v4672, %v4664
    %v5193 = vpack.c.b16 %v4673, %v4665
    %v5194 = vpack.c.b16 %v4674, %v4666
    %v5195 = vpack.c.b16 %v4675, %v4667
    %v5196 = vpack.c.b16 %v4676, %v4668
    %v5197 = vpack.c.b16 %v4677, %v4669
    %v5198 = vpack.c.b16 %v4678, %v4670
    %v5199 = vpack.c.b16 %v4679, %v4671
    %v5200 = vpack.c.b16 %v4688, %v4680
    %v5201 = vpack.c.b16 %v4689, %v4681
    %v5202 = vpack.c.b16 %v4690, %v4682
    %v5203 = vpack.c.b16 %v4691, %v4683
    %v5204 = vpack.c.b16 %v4692, %v4684
    %v5205 = vpack.c.b16 %v4693, %v4685
    %v5206 = vpack.c.b16 %v4694, %v4686
    %v5207 = vpack.c.b16 %v4695, %v4687
    %5720 = vmatprep.subr.bf16.mxu0 %v4753
    %5721 = vmatpush1.bf16.msra.mxu0 %v4752
    %5722 = vmatprep.subr.bf16.mxu0 %v4745
    %5723 = vmatpush1.bf16.msra.mxu0 %v4744
    %5724 = vmatprep.subr.bf16.mxu0 %v4737
    %5725 = vmatpush1.bf16.msra.mxu0 %v4736
    %5726 = vmatprep.subr.bf16.mxu0 %v4729
    %5727 = vmatpush1.bf16.msra.mxu0 %v4728
    %5728 = vmatprep.subr.bf16.mxu0 %v4721
    %5729 = vmatpush1.bf16.msra.mxu0 %v4720
    %5730 = vmatprep.subr.bf16.mxu0 %v4713
    %5731 = vmatpush1.bf16.msra.mxu0 %v4712
    %5732 = vmatprep.subr.bf16.mxu0 %v4705
    %5733 = vmatpush1.bf16.msra.mxu0 %v4704
    %5734 = vmatprep.subr.bf16.mxu0 %v4697
    %5735 = vmatpush1.bf16.msra.mxu0 %v4696
    %5736 = vmatprep.subr.bf16.mxu0 %v4817
    %5737 = vmatpush2.bf16.msra.mxu0 %v4816
    %5738 = vmatprep.subr.bf16.mxu0 %v4809
    %5739 = vmatpush2.bf16.msra.mxu0 %v4808
    %5740 = vmatprep.subr.bf16.mxu0 %v4801
    %5741 = vmatpush2.bf16.msra.mxu0 %v4800
    %5742 = vmatprep.subr.bf16.mxu0 %v4793
    %5743 = vmatpush2.bf16.msra.mxu0 %v4792
    %5744 = vmatprep.subr.bf16.mxu0 %v4785
    %5745 = vmatpush2.bf16.msra.mxu0 %v4784
    %5746 = vmatprep.subr.bf16.mxu0 %v4777
    %5747 = vmatpush2.bf16.msra.mxu0 %v4776
    %5748 = vmatprep.subr.bf16.mxu0 %v4769
    %5749 = vmatpush2.bf16.msra.mxu0 %v4768
    %5750 = vmatprep.subr.bf16.mxu0 %v4761
    %5751 = vmatpush2.bf16.msra.mxu0 %v4760
    %5752 = vmatprep.mubr.bf16.mxu0 %v1686
    %5753 = vmatmul.mubr.bf16.gmra.mxu0 %v1533
    %v5754 = vpop.f32.mrf.mxu0
    %v5755 = vadd.f32 %v3123, %v5754
    %v5756 = vpop.f32.mrf.mxu0
    %v5757 = vadd.f32 %v3127, %v5756
    %v5758 = vpop.f32.mrf.mxu0
    %v5759 = vadd.f32 %v3123, %v5758
    %v5760 = vpop.f32.mrf.mxu0
    %v5761 = vadd.f32 %v3127, %v5760
    %5762 = vmatprep.mubr.bf16.mxu0 %v1687
    %5763 = vmatmul.mubr.bf16.gmra.mxu0 %v1534
    %v5764 = vpop.f32.mrf.mxu0
    %v5765 = vadd.f32 %v3123, %v5764
    %v5766 = vpop.f32.mrf.mxu0
    %v5767 = vadd.f32 %v3127, %v5766
    %v5768 = vpop.f32.mrf.mxu0
    %v5769 = vadd.f32 %v3123, %v5768
    %v5770 = vpop.f32.mrf.mxu0
    %v5771 = vadd.f32 %v3127, %v5770
    %5772 = vdwg.mxu0
    %5773 = vmatprep.subr.bf16.mxu0 %v4881
    %5774 = vmatpush1.bf16.msra.mxu0 %v4880
    %5775 = vmatprep.subr.bf16.mxu0 %v4873
    %5776 = vmatpush1.bf16.msra.mxu0 %v4872
    %5777 = vmatprep.subr.bf16.mxu0 %v4865
    %5778 = vmatpush1.bf16.msra.mxu0 %v4864
    %5779 = vmatprep.subr.bf16.mxu0 %v4857
    %5780 = vmatpush1.bf16.msra.mxu0 %v4856
    %5781 = vmatprep.subr.bf16.mxu0 %v4849
    %5782 = vmatpush1.bf16.msra.mxu0 %v4848
    %5783 = vmatprep.subr.bf16.mxu0 %v4841
    %5784 = vmatpush1.bf16.msra.mxu0 %v4840
    %5785 = vmatprep.subr.bf16.mxu0 %v4833
    %5786 = vmatpush1.bf16.msra.mxu0 %v4832
    %5787 = vmatprep.subr.bf16.mxu0 %v4825
    %5788 = vmatpush1.bf16.msra.mxu0 %v4824
    %5789 = vmatprep.subr.bf16.mxu0 %v4945
    %5790 = vmatpush2.bf16.msra.mxu0 %v4944
    %5791 = vmatprep.subr.bf16.mxu0 %v4937
    %5792 = vmatpush2.bf16.msra.mxu0 %v4936
    %5793 = vmatprep.subr.bf16.mxu0 %v4929
    %5794 = vmatpush2.bf16.msra.mxu0 %v4928
    %5795 = vmatprep.subr.bf16.mxu0 %v4921
    %5796 = vmatpush2.bf16.msra.mxu0 %v4920
    %5797 = vmatprep.subr.bf16.mxu0 %v4913
    %5798 = vmatpush2.bf16.msra.mxu0 %v4912
    %5799 = vmatprep.subr.bf16.mxu0 %v4905
    %5800 = vmatpush2.bf16.msra.mxu0 %v4904
    %5801 = vmatprep.subr.bf16.mxu0 %v4897
    %5802 = vmatpush2.bf16.msra.mxu0 %v4896
    %5803 = vmatprep.subr.bf16.mxu0 %v4889
    %5804 = vmatpush2.bf16.msra.mxu0 %v4888
    %5805 = vmatprep.mubr.bf16.mxu0 %v1992
    %5806 = vmatmul.mubr.bf16.gmra.mxu0 %v1839
    %v5807 = vpop.f32.mrf.mxu0
    %v5808 = vadd.f32 %v5755, %v5807
    %v5809 = vpop.f32.mrf.mxu0
    %v5810 = vadd.f32 %v5757, %v5809
    %v5811 = vpop.f32.mrf.mxu0
    %v5812 = vadd.f32 %v5759, %v5811
    %v5813 = vpop.f32.mrf.mxu0
    %v5814 = vadd.f32 %v5761, %v5813
    %5815 = vmatprep.mubr.bf16.mxu0 %v1993
    %5816 = vmatmul.mubr.bf16.gmra.mxu0 %v1840
    %v5817 = vpop.f32.mrf.mxu0
    %v5818 = vadd.f32 %v5765, %v5817
    %v5819 = vpop.f32.mrf.mxu0
    %v5820 = vadd.f32 %v5767, %v5819
    %v5821 = vpop.f32.mrf.mxu0
    %v5822 = vadd.f32 %v5769, %v5821
    %v5823 = vpop.f32.mrf.mxu0
    %v5824 = vadd.f32 %v5771, %v5823
    %5825 = vdwg.mxu0
    %5826 = vmatprep.subr.bf16.mxu0 %v5009
    %5827 = vmatpush1.bf16.msra.mxu0 %v5008
    %5828 = vmatprep.subr.bf16.mxu0 %v5001
    %5829 = vmatpush1.bf16.msra.mxu0 %v5000
    %5830 = vmatprep.subr.bf16.mxu0 %v4993
    %5831 = vmatpush1.bf16.msra.mxu0 %v4992
    %5832 = vmatprep.subr.bf16.mxu0 %v4985
    %5833 = vmatpush1.bf16.msra.mxu0 %v4984
    %5834 = vmatprep.subr.bf16.mxu0 %v4977
    %5835 = vmatpush1.bf16.msra.mxu0 %v4976
    %5836 = vmatprep.subr.bf16.mxu0 %v4969
    %5837 = vmatpush1.bf16.msra.mxu0 %v4968
    %5838 = vmatprep.subr.bf16.mxu0 %v4961
    %5839 = vmatpush1.bf16.msra.mxu0 %v4960
    %5840 = vmatprep.subr.bf16.mxu0 %v4953
    %5841 = vmatpush1.bf16.msra.mxu0 %v4952
    %5842 = vmatprep.subr.bf16.mxu0 %v5073
    %5843 = vmatpush2.bf16.msra.mxu0 %v5072
    %5844 = vmatprep.subr.bf16.mxu0 %v5065
    %5845 = vmatpush2.bf16.msra.mxu0 %v5064
    %5846 = vmatprep.subr.bf16.mxu0 %v5057
    %5847 = vmatpush2.bf16.msra.mxu0 %v5056
    %5848 = vmatprep.subr.bf16.mxu0 %v5049
    %5849 = vmatpush2.bf16.msra.mxu0 %v5048
    %5850 = vmatprep.subr.bf16.mxu0 %v5041
    %5851 = vmatpush2.bf16.msra.mxu0 %v5040
    %5852 = vmatprep.subr.bf16.mxu0 %v5033
    %5853 = vmatpush2.bf16.msra.mxu0 %v5032
    %5854 = vmatprep.subr.bf16.mxu0 %v5025
    %5855 = vmatpush2.bf16.msra.mxu0 %v5024
    %5856 = vmatprep.subr.bf16.mxu0 %v5017
    %5857 = vmatpush2.bf16.msra.mxu0 %v5016
    %5858 = vmatprep.mubr.bf16.mxu0 %v2298
    %5859 = vmatmul.mubr.bf16.gmra.mxu0 %v2145
    %v5860 = vpop.f32.mrf.mxu0
    %v5861 = vadd.f32 %v5808, %v5860
    %v5862 = vpop.f32.mrf.mxu0
    %v5863 = vadd.f32 %v5810, %v5862
    %v5864 = vpop.f32.mrf.mxu0
    %v5865 = vadd.f32 %v5812, %v5864
    %v5866 = vpop.f32.mrf.mxu0
    %v5867 = vadd.f32 %v5814, %v5866
    %5868 = vmatprep.mubr.bf16.mxu0 %v2299
    %5869 = vmatmul.mubr.bf16.gmra.mxu0 %v2146
    %v5870 = vpop.f32.mrf.mxu0
    %v5871 = vadd.f32 %v5818, %v5870
    %v5872 = vpop.f32.mrf.mxu0
    %v5873 = vadd.f32 %v5820, %v5872
    %v5874 = vpop.f32.mrf.mxu0
    %v5875 = vadd.f32 %v5822, %v5874
    %v5876 = vpop.f32.mrf.mxu0
    %v5877 = vadd.f32 %v5824, %v5876
    %5878 = vdwg.mxu0
    %5879 = vmatprep.subr.bf16.mxu0 %v5137
    %5880 = vmatpush1.bf16.msra.mxu0 %v5136
    %5881 = vmatprep.subr.bf16.mxu0 %v5129
    %5882 = vmatpush1.bf16.msra.mxu0 %v5128
    %5883 = vmatprep.subr.bf16.mxu0 %v5121
    %5884 = vmatpush1.bf16.msra.mxu0 %v5120
    %5885 = vmatprep.subr.bf16.mxu0 %v5113
    %5886 = vmatpush1.bf16.msra.mxu0 %v5112
    %5887 = vmatprep.subr.bf16.mxu0 %v5105
    %5888 = vmatpush1.bf16.msra.mxu0 %v5104
    %5889 = vmatprep.subr.bf16.mxu0 %v5097
    %5890 = vmatpush1.bf16.msra.mxu0 %v5096
    %5891 = vmatprep.subr.bf16.mxu0 %v5089
    %5892 = vmatpush1.bf16.msra.mxu0 %v5088
    %5893 = vmatprep.subr.bf16.mxu0 %v5081
    %5894 = vmatpush1.bf16.msra.mxu0 %v5080
    %5895 = vmatprep.subr.bf16.mxu0 %v5201
    %5896 = vmatpush2.bf16.msra.mxu0 %v5200
    %5897 = vmatprep.subr.bf16.mxu0 %v5193
    %5898 = vmatpush2.bf16.msra.mxu0 %v5192
    %5899 = vmatprep.subr.bf16.mxu0 %v5185
    %5900 = vmatpush2.bf16.msra.mxu0 %v5184
    %5901 = vmatprep.subr.bf16.mxu0 %v5177
    %5902 = vmatpush2.bf16.msra.mxu0 %v5176
    %5903 = vmatprep.subr.bf16.mxu0 %v5169
    %5904 = vmatpush2.bf16.msra.mxu0 %v5168
    %5905 = vmatprep.subr.bf16.mxu0 %v5161
    %5906 = vmatpush2.bf16.msra.mxu0 %v5160
    %5907 = vmatprep.subr.bf16.mxu0 %v5153
    %5908 = vmatpush2.bf16.msra.mxu0 %v5152
    %5909 = vmatprep.subr.bf16.mxu0 %v5145
    %5910 = vmatpush2.bf16.msra.mxu0 %v5144
    %5911 = vmatprep.mubr.bf16.mxu0 %v2604
    %5912 = vmatmul.mubr.bf16.gmra.mxu0 %v2451
    %v5913 = vpop.f32.mrf.mxu0
    %v5914 = vadd.f32 %v5861, %v5913
    %v5915 = vpop.f32.mrf.mxu0
    %v5916 = vadd.f32 %v5863, %v5915
    %v5917 = vpop.f32.mrf.mxu0
    %v5918 = vadd.f32 %v5865, %v5917
    %v5919 = vpop.f32.mrf.mxu0
    %v5920 = vadd.f32 %v5867, %v5919
    %5921 = vmatprep.mubr.bf16.mxu0 %v2605
    %5922 = vmatmul.mubr.bf16.gmra.mxu0 %v2452
    %v5923 = vpop.f32.mrf.mxu0
    %v5924 = vadd.f32 %v5871, %v5923
    %v5925 = vpop.f32.mrf.mxu0
    %v5926 = vadd.f32 %v5873, %v5925
    %v5927 = vpop.f32.mrf.mxu0
    %v5928 = vadd.f32 %v5875, %v5927
    %v5929 = vpop.f32.mrf.mxu0
    %v5930 = vadd.f32 %v5877, %v5929
    %5931 = vdwg.mxu0
    %5932 = vmatprep.subr.bf16.mxu0 %v4755
    %5933 = vmatpush1.bf16.msra.mxu0 %v4754
    %5934 = vmatprep.subr.bf16.mxu0 %v4747
    %5935 = vmatpush1.bf16.msra.mxu0 %v4746
    %5936 = vmatprep.subr.bf16.mxu0 %v4739
    %5937 = vmatpush1.bf16.msra.mxu0 %v4738
    %5938 = vmatprep.subr.bf16.mxu0 %v4731
    %5939 = vmatpush1.bf16.msra.mxu0 %v4730
    %5940 = vmatprep.subr.bf16.mxu0 %v4723
    %5941 = vmatpush1.bf16.msra.mxu0 %v4722
    %5942 = vmatprep.subr.bf16.mxu0 %v4715
    %5943 = vmatpush1.bf16.msra.mxu0 %v4714
    %5944 = vmatprep.subr.bf16.mxu0 %v4707
    %5945 = vmatpush1.bf16.msra.mxu0 %v4706
    %5946 = vmatprep.subr.bf16.mxu0 %v4699
    %5947 = vmatpush1.bf16.msra.mxu0 %v4698
    %5948 = vmatprep.subr.bf16.mxu0 %v4819
    %5949 = vmatpush2.bf16.msra.mxu0 %v4818
    %5950 = vmatprep.subr.bf16.mxu0 %v4811
    %5951 = vmatpush2.bf16.msra.mxu0 %v4810
    %5952 = vmatprep.subr.bf16.mxu0 %v4803
    %5953 = vmatpush2.bf16.msra.mxu0 %v4802
    %5954 = vmatprep.subr.bf16.mxu0 %v4795
    %5955 = vmatpush2.bf16.msra.mxu0 %v4794
    %5956 = vmatprep.subr.bf16.mxu0 %v4787
    %5957 = vmatpush2.bf16.msra.mxu0 %v4786
    %5958 = vmatprep.subr.bf16.mxu0 %v4779
    %5959 = vmatpush2.bf16.msra.mxu0 %v4778
    %5960 = vmatprep.subr.bf16.mxu0 %v4771
    %5961 = vmatpush2.bf16.msra.mxu0 %v4770
    %5962 = vmatprep.subr.bf16.mxu0 %v4763
    %5963 = vmatpush2.bf16.msra.mxu0 %v4762
    %5964 = vmatprep.mubr.bf16.mxu0 %v1686
    %5965 = vmatmul.mubr.bf16.gmra.mxu0 %v1533
    %v5966 = vpop.f32.mrf.mxu0
    %v5967 = vadd.f32 %v3131, %v5966
    %v5968 = vpop.f32.mrf.mxu0
    %v5969 = vadd.f32 %v3135, %v5968
    %v5970 = vpop.f32.mrf.mxu0
    %v5971 = vadd.f32 %v3131, %v5970
    %v5972 = vpop.f32.mrf.mxu0
    %v5973 = vadd.f32 %v3135, %v5972
    %5974 = vmatprep.mubr.bf16.mxu0 %v1687
    %5975 = vmatmul.mubr.bf16.gmra.mxu0 %v1534
    %v5976 = vpop.f32.mrf.mxu0
    %v5977 = vadd.f32 %v3131, %v5976
    %v5978 = vpop.f32.mrf.mxu0
    %v5979 = vadd.f32 %v3135, %v5978
    %v5980 = vpop.f32.mrf.mxu0
    %v5981 = vadd.f32 %v3131, %v5980
    %v5982 = vpop.f32.mrf.mxu0
    %v5983 = vadd.f32 %v3135, %v5982
    %5984 = vdwg.mxu0
    %5985 = vmatprep.subr.bf16.mxu0 %v4883
    %5986 = vmatpush1.bf16.msra.mxu0 %v4882
    %5987 = vmatprep.subr.bf16.mxu0 %v4875
    %5988 = vmatpush1.bf16.msra.mxu0 %v4874
    %5989 = vmatprep.subr.bf16.mxu0 %v4867
    %5990 = vmatpush1.bf16.msra.mxu0 %v4866
    %5991 = vmatprep.subr.bf16.mxu0 %v4859
    %5992 = vmatpush1.bf16.msra.mxu0 %v4858
    %5993 = vmatprep.subr.bf16.mxu0 %v4851
    %5994 = vmatpush1.bf16.msra.mxu0 %v4850
    %5995 = vmatprep.subr.bf16.mxu0 %v4843
    %5996 = vmatpush1.bf16.msra.mxu0 %v4842
    %5997 = vmatprep.subr.bf16.mxu0 %v4835
    %5998 = vmatpush1.bf16.msra.mxu0 %v4834
    %5999 = vmatprep.subr.bf16.mxu0 %v4827
    %6000 = vmatpush1.bf16.msra.mxu0 %v4826
    %6001 = vmatprep.subr.bf16.mxu0 %v4947
    %6002 = vmatpush2.bf16.msra.mxu0 %v4946
    %6003 = vmatprep.subr.bf16.mxu0 %v4939
    %6004 = vmatpush2.bf16.msra.mxu0 %v4938
    %6005 = vmatprep.subr.bf16.mxu0 %v4931
    %6006 = vmatpush2.bf16.msra.mxu0 %v4930
    %6007 = vmatprep.subr.bf16.mxu0 %v4923
    %6008 = vmatpush2.bf16.msra.mxu0 %v4922
    %6009 = vmatprep.subr.bf16.mxu0 %v4915
    %6010 = vmatpush2.bf16.msra.mxu0 %v4914
    %6011 = vmatprep.subr.bf16.mxu0 %v4907
    %6012 = vmatpush2.bf16.msra.mxu0 %v4906
    %6013 = vmatprep.subr.bf16.mxu0 %v4899
    %6014 = vmatpush2.bf16.msra.mxu0 %v4898
    %6015 = vmatprep.subr.bf16.mxu0 %v4891
    %6016 = vmatpush2.bf16.msra.mxu0 %v4890
    %6017 = vmatprep.mubr.bf16.mxu0 %v1992
    %6018 = vmatmul.mubr.bf16.gmra.mxu0 %v1839
    %v6019 = vpop.f32.mrf.mxu0
    %v6020 = vadd.f32 %v5967, %v6019
    %v6021 = vpop.f32.mrf.mxu0
    %v6022 = vadd.f32 %v5969, %v6021
    %v6023 = vpop.f32.mrf.mxu0
    %v6024 = vadd.f32 %v5971, %v6023
    %v6025 = vpop.f32.mrf.mxu0
    %v6026 = vadd.f32 %v5973, %v6025
    %6027 = vmatprep.mubr.bf16.mxu0 %v1993
    %6028 = vmatmul.mubr.bf16.gmra.mxu0 %v1840
    %v6029 = vpop.f32.mrf.mxu0
    %v6030 = vadd.f32 %v5977, %v6029
    %v6031 = vpop.f32.mrf.mxu0
    %v6032 = vadd.f32 %v5979, %v6031
    %v6033 = vpop.f32.mrf.mxu0
    %v6034 = vadd.f32 %v5981, %v6033
    %v6035 = vpop.f32.mrf.mxu0
    %v6036 = vadd.f32 %v5983, %v6035
    %6037 = vdwg.mxu0
    %6038 = vmatprep.subr.bf16.mxu0 %v5011
    %6039 = vmatpush1.bf16.msra.mxu0 %v5010
    %6040 = vmatprep.subr.bf16.mxu0 %v5003
    %6041 = vmatpush1.bf16.msra.mxu0 %v5002
    %6042 = vmatprep.subr.bf16.mxu0 %v4995
    %6043 = vmatpush1.bf16.msra.mxu0 %v4994
    %6044 = vmatprep.subr.bf16.mxu0 %v4987
    %6045 = vmatpush1.bf16.msra.mxu0 %v4986
    %6046 = vmatprep.subr.bf16.mxu0 %v4979
    %6047 = vmatpush1.bf16.msra.mxu0 %v4978
    %6048 = vmatprep.subr.bf16.mxu0 %v4971
    %6049 = vmatpush1.bf16.msra.mxu0 %v4970
    %6050 = vmatprep.subr.bf16.mxu0 %v4963
    %6051 = vmatpush1.bf16.msra.mxu0 %v4962
    %6052 = vmatprep.subr.bf16.mxu0 %v4955
    %6053 = vmatpush1.bf16.msra.mxu0 %v4954
    %6054 = vmatprep.subr.bf16.mxu0 %v5075
    %6055 = vmatpush2.bf16.msra.mxu0 %v5074
    %6056 = vmatprep.subr.bf16.mxu0 %v5067
    %6057 = vmatpush2.bf16.msra.mxu0 %v5066
    %6058 = vmatprep.subr.bf16.mxu0 %v5059
    %6059 = vmatpush2.bf16.msra.mxu0 %v5058
    %6060 = vmatprep.subr.bf16.mxu0 %v5051
    %6061 = vmatpush2.bf16.msra.mxu0 %v5050
    %6062 = vmatprep.subr.bf16.mxu0 %v5043
    %6063 = vmatpush2.bf16.msra.mxu0 %v5042
    %6064 = vmatprep.subr.bf16.mxu0 %v5035
    %6065 = vmatpush2.bf16.msra.mxu0 %v5034
    %6066 = vmatprep.subr.bf16.mxu0 %v5027
    %6067 = vmatpush2.bf16.msra.mxu0 %v5026
    %6068 = vmatprep.subr.bf16.mxu0 %v5019
    %6069 = vmatpush2.bf16.msra.mxu0 %v5018
    %6070 = vmatprep.mubr.bf16.mxu0 %v2298
    %6071 = vmatmul.mubr.bf16.gmra.mxu0 %v2145
    %v6072 = vpop.f32.mrf.mxu0
    %v6073 = vadd.f32 %v6020, %v6072
    %v6074 = vpop.f32.mrf.mxu0
    %v6075 = vadd.f32 %v6022, %v6074
    %v6076 = vpop.f32.mrf.mxu0
    %v6077 = vadd.f32 %v6024, %v6076
    %v6078 = vpop.f32.mrf.mxu0
    %v6079 = vadd.f32 %v6026, %v6078
    %6080 = vmatprep.mubr.bf16.mxu0 %v2299
    %6081 = vmatmul.mubr.bf16.gmra.mxu0 %v2146
    %v6082 = vpop.f32.mrf.mxu0
    %v6083 = vadd.f32 %v6030, %v6082
    %v6084 = vpop.f32.mrf.mxu0
    %v6085 = vadd.f32 %v6032, %v6084
    %v6086 = vpop.f32.mrf.mxu0
    %v6087 = vadd.f32 %v6034, %v6086
    %v6088 = vpop.f32.mrf.mxu0
    %v6089 = vadd.f32 %v6036, %v6088
    %6090 = vdwg.mxu0
    %6091 = vmatprep.subr.bf16.mxu0 %v5139
    %6092 = vmatpush1.bf16.msra.mxu0 %v5138
    %6093 = vmatprep.subr.bf16.mxu0 %v5131
    %6094 = vmatpush1.bf16.msra.mxu0 %v5130
    %6095 = vmatprep.subr.bf16.mxu0 %v5123
    %6096 = vmatpush1.bf16.msra.mxu0 %v5122
    %6097 = vmatprep.subr.bf16.mxu0 %v5115
    %6098 = vmatpush1.bf16.msra.mxu0 %v5114
    %6099 = vmatprep.subr.bf16.mxu0 %v5107
    %6100 = vmatpush1.bf16.msra.mxu0 %v5106
    %6101 = vmatprep.subr.bf16.mxu0 %v5099
    %6102 = vmatpush1.bf16.msra.mxu0 %v5098
    %6103 = vmatprep.subr.bf16.mxu0 %v5091
    %6104 = vmatpush1.bf16.msra.mxu0 %v5090
    %6105 = vmatprep.subr.bf16.mxu0 %v5083
    %6106 = vmatpush1.bf16.msra.mxu0 %v5082
    %6107 = vmatprep.subr.bf16.mxu0 %v5203
    %6108 = vmatpush2.bf16.msra.mxu0 %v5202
    %6109 = vmatprep.subr.bf16.mxu0 %v5195
    %6110 = vmatpush2.bf16.msra.mxu0 %v5194
    %6111 = vmatprep.subr.bf16.mxu0 %v5187
    %6112 = vmatpush2.bf16.msra.mxu0 %v5186
    %6113 = vmatprep.subr.bf16.mxu0 %v5179
    %6114 = vmatpush2.bf16.msra.mxu0 %v5178
    %6115 = vmatprep.subr.bf16.mxu0 %v5171
    %6116 = vmatpush2.bf16.msra.mxu0 %v5170
    %6117 = vmatprep.subr.bf16.mxu0 %v5163
    %6118 = vmatpush2.bf16.msra.mxu0 %v5162
    %6119 = vmatprep.subr.bf16.mxu0 %v5155
    %6120 = vmatpush2.bf16.msra.mxu0 %v5154
    %6121 = vmatprep.subr.bf16.mxu0 %v5147
    %6122 = vmatpush2.bf16.msra.mxu0 %v5146
    %6123 = vmatprep.mubr.bf16.mxu0 %v2604
    %6124 = vmatmul.mubr.bf16.gmra.mxu0 %v2451
    %v6125 = vpop.f32.mrf.mxu0
    %v6126 = vadd.f32 %v6073, %v6125
    %v6127 = vpop.f32.mrf.mxu0
    %v6128 = vadd.f32 %v6075, %v6127
    %v6129 = vpop.f32.mrf.mxu0
    %v6130 = vadd.f32 %v6077, %v6129
    %v6131 = vpop.f32.mrf.mxu0
    %v6132 = vadd.f32 %v6079, %v6131
    %6133 = vmatprep.mubr.bf16.mxu0 %v2605
    %6134 = vmatmul.mubr.bf16.gmra.mxu0 %v2452
    %v6135 = vpop.f32.mrf.mxu0
    %v6136 = vadd.f32 %v6083, %v6135
    %v6137 = vpop.f32.mrf.mxu0
    %v6138 = vadd.f32 %v6085, %v6137
    %v6139 = vpop.f32.mrf.mxu0
    %v6140 = vadd.f32 %v6087, %v6139
    %v6141 = vpop.f32.mrf.mxu0
    %v6142 = vadd.f32 %v6089, %v6141
    %6143 = vdwg.mxu0
    %6144 = vmatprep.subr.bf16.mxu0 %v4757
    %6145 = vmatpush1.bf16.msra.mxu0 %v4756
    %6146 = vmatprep.subr.bf16.mxu0 %v4749
    %6147 = vmatpush1.bf16.msra.mxu0 %v4748
    %6148 = vmatprep.subr.bf16.mxu0 %v4741
    %6149 = vmatpush1.bf16.msra.mxu0 %v4740
    %6150 = vmatprep.subr.bf16.mxu0 %v4733
    %6151 = vmatpush1.bf16.msra.mxu0 %v4732
    %6152 = vmatprep.subr.bf16.mxu0 %v4725
    %6153 = vmatpush1.bf16.msra.mxu0 %v4724
    %6154 = vmatprep.subr.bf16.mxu0 %v4717
    %6155 = vmatpush1.bf16.msra.mxu0 %v4716
    %6156 = vmatprep.subr.bf16.mxu0 %v4709
    %6157 = vmatpush1.bf16.msra.mxu0 %v4708
    %6158 = vmatprep.subr.bf16.mxu0 %v4701
    %6159 = vmatpush1.bf16.msra.mxu0 %v4700
    %6160 = vmatprep.subr.bf16.mxu0 %v4821
    %6161 = vmatpush2.bf16.msra.mxu0 %v4820
    %6162 = vmatprep.subr.bf16.mxu0 %v4813
    %6163 = vmatpush2.bf16.msra.mxu0 %v4812
    %6164 = vmatprep.subr.bf16.mxu0 %v4805
    %6165 = vmatpush2.bf16.msra.mxu0 %v4804
    %6166 = vmatprep.subr.bf16.mxu0 %v4797
    %6167 = vmatpush2.bf16.msra.mxu0 %v4796
    %6168 = vmatprep.subr.bf16.mxu0 %v4789
    %6169 = vmatpush2.bf16.msra.mxu0 %v4788
    %6170 = vmatprep.subr.bf16.mxu0 %v4781
    %6171 = vmatpush2.bf16.msra.mxu0 %v4780
    %6172 = vmatprep.subr.bf16.mxu0 %v4773
    %6173 = vmatpush2.bf16.msra.mxu0 %v4772
    %6174 = vmatprep.subr.bf16.mxu0 %v4765
    %6175 = vmatpush2.bf16.msra.mxu0 %v4764
    %6176 = vmatprep.mubr.bf16.mxu0 %v1686
    %6177 = vmatmul.mubr.bf16.gmra.mxu0 %v1533
    %v6178 = vpop.f32.mrf.mxu0
    %v6179 = vadd.f32 %v3139, %v6178
    %v6180 = vpop.f32.mrf.mxu0
    %v6181 = vadd.f32 %v3143, %v6180
    %v6182 = vpop.f32.mrf.mxu0
    %v6183 = vadd.f32 %v3139, %v6182
    %v6184 = vpop.f32.mrf.mxu0
    %v6185 = vadd.f32 %v3143, %v6184
    %6186 = vmatprep.mubr.bf16.mxu0 %v1687
    %6187 = vmatmul.mubr.bf16.gmra.mxu0 %v1534
    %v6188 = vpop.f32.mrf.mxu0
    %v6189 = vadd.f32 %v3139, %v6188
    %v6190 = vpop.f32.mrf.mxu0
    %v6191 = vadd.f32 %v3143, %v6190
    %v6192 = vpop.f32.mrf.mxu0
    %v6193 = vadd.f32 %v3139, %v6192
    %v6194 = vpop.f32.mrf.mxu0
    %v6195 = vadd.f32 %v3143, %v6194
    %6196 = vdwg.mxu0
    %6197 = vmatprep.subr.bf16.mxu0 %v4885
    %6198 = vmatpush1.bf16.msra.mxu0 %v4884
    %6199 = vmatprep.subr.bf16.mxu0 %v4877
    %6200 = vmatpush1.bf16.msra.mxu0 %v4876
    %6201 = vmatprep.subr.bf16.mxu0 %v4869
    %6202 = vmatpush1.bf16.msra.mxu0 %v4868
    %6203 = vmatprep.subr.bf16.mxu0 %v4861
    %6204 = vmatpush1.bf16.msra.mxu0 %v4860
    %6205 = vmatprep.subr.bf16.mxu0 %v4853
    %6206 = vmatpush1.bf16.msra.mxu0 %v4852
    %6207 = vmatprep.subr.bf16.mxu0 %v4845
    %6208 = vmatpush1.bf16.msra.mxu0 %v4844
    %6209 = vmatprep.subr.bf16.mxu0 %v4837
    %6210 = vmatpush1.bf16.msra.mxu0 %v4836
    %6211 = vmatprep.subr.bf16.mxu0 %v4829
    %6212 = vmatpush1.bf16.msra.mxu0 %v4828
    %6213 = vmatprep.subr.bf16.mxu0 %v4949
    %6214 = vmatpush2.bf16.msra.mxu0 %v4948
    %6215 = vmatprep.subr.bf16.mxu0 %v4941
    %6216 = vmatpush2.bf16.msra.mxu0 %v4940
    %6217 = vmatprep.subr.bf16.mxu0 %v4933
    %6218 = vmatpush2.bf16.msra.mxu0 %v4932
    %6219 = vmatprep.subr.bf16.mxu0 %v4925
    %6220 = vmatpush2.bf16.msra.mxu0 %v4924
    %6221 = vmatprep.subr.bf16.mxu0 %v4917
    %6222 = vmatpush2.bf16.msra.mxu0 %v4916
    %6223 = vmatprep.subr.bf16.mxu0 %v4909
    %6224 = vmatpush2.bf16.msra.mxu0 %v4908
    %6225 = vmatprep.subr.bf16.mxu0 %v4901
    %6226 = vmatpush2.bf16.msra.mxu0 %v4900
    %6227 = vmatprep.subr.bf16.mxu0 %v4893
    %6228 = vmatpush2.bf16.msra.mxu0 %v4892
    %6229 = vmatprep.mubr.bf16.mxu0 %v1992
    %6230 = vmatmul.mubr.bf16.gmra.mxu0 %v1839
    %v6231 = vpop.f32.mrf.mxu0
    %v6232 = vadd.f32 %v6179, %v6231
    %v6233 = vpop.f32.mrf.mxu0
    %v6234 = vadd.f32 %v6181, %v6233
    %v6235 = vpop.f32.mrf.mxu0
    %v6236 = vadd.f32 %v6183, %v6235
    %v6237 = vpop.f32.mrf.mxu0
    %v6238 = vadd.f32 %v6185, %v6237
    %6239 = vmatprep.mubr.bf16.mxu0 %v1993
    %6240 = vmatmul.mubr.bf16.gmra.mxu0 %v1840
    %v6241 = vpop.f32.mrf.mxu0
    %v6242 = vadd.f32 %v6189, %v6241
    %v6243 = vpop.f32.mrf.mxu0
    %v6244 = vadd.f32 %v6191, %v6243
    %v6245 = vpop.f32.mrf.mxu0
    %v6246 = vadd.f32 %v6193, %v6245
    %v6247 = vpop.f32.mrf.mxu0
    %v6248 = vadd.f32 %v6195, %v6247
    %6249 = vdwg.mxu0
    %6250 = vmatprep.subr.bf16.mxu0 %v5013
    %6251 = vmatpush1.bf16.msra.mxu0 %v5012
    %6252 = vmatprep.subr.bf16.mxu0 %v5005
    %6253 = vmatpush1.bf16.msra.mxu0 %v5004
    %6254 = vmatprep.subr.bf16.mxu0 %v4997
    %6255 = vmatpush1.bf16.msra.mxu0 %v4996
    %6256 = vmatprep.subr.bf16.mxu0 %v4989
    %6257 = vmatpush1.bf16.msra.mxu0 %v4988
    %6258 = vmatprep.subr.bf16.mxu0 %v4981
    %6259 = vmatpush1.bf16.msra.mxu0 %v4980
    %6260 = vmatprep.subr.bf16.mxu0 %v4973
    %6261 = vmatpush1.bf16.msra.mxu0 %v4972
    %6262 = vmatprep.subr.bf16.mxu0 %v4965
    %6263 = vmatpush1.bf16.msra.mxu0 %v4964
    %6264 = vmatprep.subr.bf16.mxu0 %v4957
    %6265 = vmatpush1.bf16.msra.mxu0 %v4956
    %6266 = vmatprep.subr.bf16.mxu0 %v5077
    %6267 = vmatpush2.bf16.msra.mxu0 %v5076
    %6268 = vmatprep.subr.bf16.mxu0 %v5069
    %6269 = vmatpush2.bf16.msra.mxu0 %v5068
    %6270 = vmatprep.subr.bf16.mxu0 %v5061
    %6271 = vmatpush2.bf16.msra.mxu0 %v5060
    %6272 = vmatprep.subr.bf16.mxu0 %v5053
    %6273 = vmatpush2.bf16.msra.mxu0 %v5052
    %6274 = vmatprep.subr.bf16.mxu0 %v5045
    %6275 = vmatpush2.bf16.msra.mxu0 %v5044
    %6276 = vmatprep.subr.bf16.mxu0 %v5037
    %6277 = vmatpush2.bf16.msra.mxu0 %v5036
    %6278 = vmatprep.subr.bf16.mxu0 %v5029
    %6279 = vmatpush2.bf16.msra.mxu0 %v5028
    %6280 = vmatprep.subr.bf16.mxu0 %v5021
    %6281 = vmatpush2.bf16.msra.mxu0 %v5020
    %6282 = vmatprep.mubr.bf16.mxu0 %v2298
    %6283 = vmatmul.mubr.bf16.gmra.mxu0 %v2145
    %v6284 = vpop.f32.mrf.mxu0
    %v6285 = vadd.f32 %v6232, %v6284
    %v6286 = vpop.f32.mrf.mxu0
    %v6287 = vadd.f32 %v6234, %v6286
    %v6288 = vpop.f32.mrf.mxu0
    %v6289 = vadd.f32 %v6236, %v6288
    %v6290 = vpop.f32.mrf.mxu0
    %v6291 = vadd.f32 %v6238, %v6290
    %6292 = vmatprep.mubr.bf16.mxu0 %v2299
    %6293 = vmatmul.mubr.bf16.gmra.mxu0 %v2146
    %v6294 = vpop.f32.mrf.mxu0
    %v6295 = vadd.f32 %v6242, %v6294
    %v6296 = vpop.f32.mrf.mxu0
    %v6297 = vadd.f32 %v6244, %v6296
    %v6298 = vpop.f32.mrf.mxu0
    %v6299 = vadd.f32 %v6246, %v6298
    %v6300 = vpop.f32.mrf.mxu0
    %v6301 = vadd.f32 %v6248, %v6300
    %6302 = vdwg.mxu0
    %6303 = vmatprep.subr.bf16.mxu0 %v5141
    %6304 = vmatpush1.bf16.msra.mxu0 %v5140
    %6305 = vmatprep.subr.bf16.mxu0 %v5133
    %6306 = vmatpush1.bf16.msra.mxu0 %v5132
    %6307 = vmatprep.subr.bf16.mxu0 %v5125
    %6308 = vmatpush1.bf16.msra.mxu0 %v5124
    %6309 = vmatprep.subr.bf16.mxu0 %v5117
    %6310 = vmatpush1.bf16.msra.mxu0 %v5116
    %6311 = vmatprep.subr.bf16.mxu0 %v5109
    %6312 = vmatpush1.bf16.msra.mxu0 %v5108
    %6313 = vmatprep.subr.bf16.mxu0 %v5101
    %6314 = vmatpush1.bf16.msra.mxu0 %v5100
    %6315 = vmatprep.subr.bf16.mxu0 %v5093
    %6316 = vmatpush1.bf16.msra.mxu0 %v5092
    %6317 = vmatprep.subr.bf16.mxu0 %v5085
    %6318 = vmatpush1.bf16.msra.mxu0 %v5084
    %6319 = vmatprep.subr.bf16.mxu0 %v5205
    %6320 = vmatpush2.bf16.msra.mxu0 %v5204
    %6321 = vmatprep.subr.bf16.mxu0 %v5197
    %6322 = vmatpush2.bf16.msra.mxu0 %v5196
    %6323 = vmatprep.subr.bf16.mxu0 %v5189
    %6324 = vmatpush2.bf16.msra.mxu0 %v5188
    %6325 = vmatprep.subr.bf16.mxu0 %v5181
    %6326 = vmatpush2.bf16.msra.mxu0 %v5180
    %6327 = vmatprep.subr.bf16.mxu0 %v5173
    %6328 = vmatpush2.bf16.msra.mxu0 %v5172
    %6329 = vmatprep.subr.bf16.mxu0 %v5165
    %6330 = vmatpush2.bf16.msra.mxu0 %v5164
    %6331 = vmatprep.subr.bf16.mxu0 %v5157
    %6332 = vmatpush2.bf16.msra.mxu0 %v5156
    %6333 = vmatprep.subr.bf16.mxu0 %v5149
    %6334 = vmatpush2.bf16.msra.mxu0 %v5148
    %6335 = vmatprep.mubr.bf16.mxu0 %v2604
    %6336 = vmatmul.mubr.bf16.gmra.mxu0 %v2451
    %v6337 = vpop.f32.mrf.mxu0
    %v6338 = vadd.f32 %v6285, %v6337
    %v6339 = vpop.f32.mrf.mxu0
    %v6340 = vadd.f32 %v6287, %v6339
    %v6341 = vpop.f32.mrf.mxu0
    %v6342 = vadd.f32 %v6289, %v6341
    %v6343 = vpop.f32.mrf.mxu0
    %v6344 = vadd.f32 %v6291, %v6343
    %6345 = vmatprep.mubr.bf16.mxu0 %v2605
    %6346 = vmatmul.mubr.bf16.gmra.mxu0 %v2452
    %v6347 = vpop.f32.mrf.mxu0
    %v6348 = vadd.f32 %v6295, %v6347
    %v6349 = vpop.f32.mrf.mxu0
    %v6350 = vadd.f32 %v6297, %v6349
    %v6351 = vpop.f32.mrf.mxu0
    %v6352 = vadd.f32 %v6299, %v6351
    %v6353 = vpop.f32.mrf.mxu0
    %v6354 = vadd.f32 %v6301, %v6353
    %6355 = vdwg.mxu0
    %6356 = vmatprep.subr.bf16.mxu0 %v4759
    %6357 = vmatpush1.bf16.msra.mxu0 %v4758
    %6358 = vmatprep.subr.bf16.mxu0 %v4751
    %6359 = vmatpush1.bf16.msra.mxu0 %v4750
    %6360 = vmatprep.subr.bf16.mxu0 %v4743
    %6361 = vmatpush1.bf16.msra.mxu0 %v4742
    %6362 = vmatprep.subr.bf16.mxu0 %v4735
    %6363 = vmatpush1.bf16.msra.mxu0 %v4734
    %6364 = vmatprep.subr.bf16.mxu0 %v4727
    %6365 = vmatpush1.bf16.msra.mxu0 %v4726
    %6366 = vmatprep.subr.bf16.mxu0 %v4719
    %6367 = vmatpush1.bf16.msra.mxu0 %v4718
    %6368 = vmatprep.subr.bf16.mxu0 %v4711
    %6369 = vmatpush1.bf16.msra.mxu0 %v4710
    %6370 = vmatprep.subr.bf16.mxu0 %v4703
    %6371 = vmatpush1.bf16.msra.mxu0 %v4702
    %6372 = vmatprep.subr.bf16.mxu0 %v4823
    %6373 = vmatpush2.bf16.msra.mxu0 %v4822
    %6374 = vmatprep.subr.bf16.mxu0 %v4815
    %6375 = vmatpush2.bf16.msra.mxu0 %v4814
    %6376 = vmatprep.subr.bf16.mxu0 %v4807
    %6377 = vmatpush2.bf16.msra.mxu0 %v4806
    %6378 = vmatprep.subr.bf16.mxu0 %v4799
    %6379 = vmatpush2.bf16.msra.mxu0 %v4798
    %6380 = vmatprep.subr.bf16.mxu0 %v4791
    %6381 = vmatpush2.bf16.msra.mxu0 %v4790
    %6382 = vmatprep.subr.bf16.mxu0 %v4783
    %6383 = vmatpush2.bf16.msra.mxu0 %v4782
    %6384 = vmatprep.subr.bf16.mxu0 %v4775
    %6385 = vmatpush2.bf16.msra.mxu0 %v4774
    %6386 = vmatprep.subr.bf16.mxu0 %v4767
    %6387 = vmatpush2.bf16.msra.mxu0 %v4766
    %6388 = vmatprep.mubr.bf16.mxu0 %v1686
    %6389 = vmatmul.mubr.bf16.gmra.mxu0 %v1533
    %v6390 = vpop.f32.mrf.mxu0
    %v6391 = vadd.f32 %v3147, %v6390
    %v6392 = vpop.f32.mrf.mxu0
    %v6393 = vadd.f32 %v3151, %v6392
    %v6394 = vpop.f32.mrf.mxu0
    %v6395 = vadd.f32 %v3147, %v6394
    %v6396 = vpop.f32.mrf.mxu0
    %v6397 = vadd.f32 %v3151, %v6396
    %6398 = vmatprep.mubr.bf16.mxu0 %v1687
    %6399 = vmatmul.mubr.bf16.gmra.mxu0 %v1534
    %v6400 = vpop.f32.mrf.mxu0
    %v6401 = vadd.f32 %v3147, %v6400
    %v6402 = vpop.f32.mrf.mxu0
    %v6403 = vadd.f32 %v3151, %v6402
    %v6404 = vpop.f32.mrf.mxu0
    %v6405 = vadd.f32 %v3147, %v6404
    %v6406 = vpop.f32.mrf.mxu0
    %v6407 = vadd.f32 %v3151, %v6406
    %6408 = vdwg.mxu0
    %6409 = vmatprep.subr.bf16.mxu0 %v4887
    %6410 = vmatpush1.bf16.msra.mxu0 %v4886
    %6411 = vmatprep.subr.bf16.mxu0 %v4879
    %6412 = vmatpush1.bf16.msra.mxu0 %v4878
    %6413 = vmatprep.subr.bf16.mxu0 %v4871
    %6414 = vmatpush1.bf16.msra.mxu0 %v4870
    %6415 = vmatprep.subr.bf16.mxu0 %v4863
    %6416 = vmatpush1.bf16.msra.mxu0 %v4862
    %6417 = vmatprep.subr.bf16.mxu0 %v4855
    %6418 = vmatpush1.bf16.msra.mxu0 %v4854
    %6419 = vmatprep.subr.bf16.mxu0 %v4847
    %6420 = vmatpush1.bf16.msra.mxu0 %v4846
    %6421 = vmatprep.subr.bf16.mxu0 %v4839
    %6422 = vmatpush1.bf16.msra.mxu0 %v4838
    %6423 = vmatprep.subr.bf16.mxu0 %v4831
    %6424 = vmatpush1.bf16.msra.mxu0 %v4830
    %6425 = vmatprep.subr.bf16.mxu0 %v4951
    %6426 = vmatpush2.bf16.msra.mxu0 %v4950
    %6427 = vmatprep.subr.bf16.mxu0 %v4943
    %6428 = vmatpush2.bf16.msra.mxu0 %v4942
    %6429 = vmatprep.subr.bf16.mxu0 %v4935
    %6430 = vmatpush2.bf16.msra.mxu0 %v4934
    %6431 = vmatprep.subr.bf16.mxu0 %v4927
    %6432 = vmatpush2.bf16.msra.mxu0 %v4926
    %6433 = vmatprep.subr.bf16.mxu0 %v4919
    %6434 = vmatpush2.bf16.msra.mxu0 %v4918
    %6435 = vmatprep.subr.bf16.mxu0 %v4911
    %6436 = vmatpush2.bf16.msra.mxu0 %v4910
    %6437 = vmatprep.subr.bf16.mxu0 %v4903
    %6438 = vmatpush2.bf16.msra.mxu0 %v4902
    %6439 = vmatprep.subr.bf16.mxu0 %v4895
    %6440 = vmatpush2.bf16.msra.mxu0 %v4894
    %6441 = vmatprep.mubr.bf16.mxu0 %v1992
    %6442 = vmatmul.mubr.bf16.gmra.mxu0 %v1839
    %v6443 = vpop.f32.mrf.mxu0
    %v6444 = vadd.f32 %v6391, %v6443
    %v6445 = vpop.f32.mrf.mxu0
    %v6446 = vadd.f32 %v6393, %v6445
    %v6447 = vpop.f32.mrf.mxu0
    %v6448 = vadd.f32 %v6395, %v6447
    %v6449 = vpop.f32.mrf.mxu0
    %v6450 = vadd.f32 %v6397, %v6449
    %6451 = vmatprep.mubr.bf16.mxu0 %v1993
    %6452 = vmatmul.mubr.bf16.gmra.mxu0 %v1840
    %v6453 = vpop.f32.mrf.mxu0
    %v6454 = vadd.f32 %v6401, %v6453
    %v6455 = vpop.f32.mrf.mxu0
    %v6456 = vadd.f32 %v6403, %v6455
    %v6457 = vpop.f32.mrf.mxu0
    %v6458 = vadd.f32 %v6405, %v6457
    %v6459 = vpop.f32.mrf.mxu0
    %v6460 = vadd.f32 %v6407, %v6459
    %6461 = vdwg.mxu0
    %6462 = vmatprep.subr.bf16.mxu0 %v5015
    %6463 = vmatpush1.bf16.msra.mxu0 %v5014
    %6464 = vmatprep.subr.bf16.mxu0 %v5007
    %6465 = vmatpush1.bf16.msra.mxu0 %v5006
    %6466 = vmatprep.subr.bf16.mxu0 %v4999
    %6467 = vmatpush1.bf16.msra.mxu0 %v4998
    %6468 = vmatprep.subr.bf16.mxu0 %v4991
    %6469 = vmatpush1.bf16.msra.mxu0 %v4990
    %6470 = vmatprep.subr.bf16.mxu0 %v4983
    %6471 = vmatpush1.bf16.msra.mxu0 %v4982
    %6472 = vmatprep.subr.bf16.mxu0 %v4975
    %6473 = vmatpush1.bf16.msra.mxu0 %v4974
    %6474 = vmatprep.subr.bf16.mxu0 %v4967
    %6475 = vmatpush1.bf16.msra.mxu0 %v4966
    %6476 = vmatprep.subr.bf16.mxu0 %v4959
    %6477 = vmatpush1.bf16.msra.mxu0 %v4958
    %6478 = vmatprep.subr.bf16.mxu0 %v5079
    %6479 = vmatpush2.bf16.msra.mxu0 %v5078
    %6480 = vmatprep.subr.bf16.mxu0 %v5071
    %6481 = vmatpush2.bf16.msra.mxu0 %v5070
    %6482 = vmatprep.subr.bf16.mxu0 %v5063
    %6483 = vmatpush2.bf16.msra.mxu0 %v5062
    %6484 = vmatprep.subr.bf16.mxu0 %v5055
    %6485 = vmatpush2.bf16.msra.mxu0 %v5054
    %6486 = vmatprep.subr.bf16.mxu0 %v5047
    %6487 = vmatpush2.bf16.msra.mxu0 %v5046
    %6488 = vmatprep.subr.bf16.mxu0 %v5039
    %6489 = vmatpush2.bf16.msra.mxu0 %v5038
    %6490 = vmatprep.subr.bf16.mxu0 %v5031
    %6491 = vmatpush2.bf16.msra.mxu0 %v5030
    %6492 = vmatprep.subr.bf16.mxu0 %v5023
    %6493 = vmatpush2.bf16.msra.mxu0 %v5022
    %6494 = vmatprep.mubr.bf16.mxu0 %v2298
    %6495 = vmatmul.mubr.bf16.gmra.mxu0 %v2145
    %v6496 = vpop.f32.mrf.mxu0
    %v6497 = vadd.f32 %v6444, %v6496
    %v6498 = vpop.f32.mrf.mxu0
    %v6499 = vadd.f32 %v6446, %v6498
    %v6500 = vpop.f32.mrf.mxu0
    %v6501 = vadd.f32 %v6448, %v6500
    %v6502 = vpop.f32.mrf.mxu0
    %v6503 = vadd.f32 %v6450, %v6502
    %6504 = vmatprep.mubr.bf16.mxu0 %v2299
    %6505 = vmatmul.mubr.bf16.gmra.mxu0 %v2146
    %v6506 = vpop.f32.mrf.mxu0
    %v6507 = vadd.f32 %v6454, %v6506
    %v6508 = vpop.f32.mrf.mxu0
    %v6509 = vadd.f32 %v6456, %v6508
    %v6510 = vpop.f32.mrf.mxu0
    %v6511 = vadd.f32 %v6458, %v6510
    %v6512 = vpop.f32.mrf.mxu0
    %v6513 = vadd.f32 %v6460, %v6512
    %6514 = vdwg.mxu0
    %6515 = vmatprep.subr.bf16.mxu0 %v5143
    %6516 = vmatpush1.bf16.msra.mxu0 %v5142
    %6517 = vmatprep.subr.bf16.mxu0 %v5135
    %6518 = vmatpush1.bf16.msra.mxu0 %v5134
    %6519 = vmatprep.subr.bf16.mxu0 %v5127
    %6520 = vmatpush1.bf16.msra.mxu0 %v5126
    %6521 = vmatprep.subr.bf16.mxu0 %v5119
    %6522 = vmatpush1.bf16.msra.mxu0 %v5118
    %6523 = vmatprep.subr.bf16.mxu0 %v5111
    %6524 = vmatpush1.bf16.msra.mxu0 %v5110
    %6525 = vmatprep.subr.bf16.mxu0 %v5103
    %6526 = vmatpush1.bf16.msra.mxu0 %v5102
    %6527 = vmatprep.subr.bf16.mxu0 %v5095
    %6528 = vmatpush1.bf16.msra.mxu0 %v5094
    %6529 = vmatprep.subr.bf16.mxu0 %v5087
    %6530 = vmatpush1.bf16.msra.mxu0 %v5086
    %6531 = vmatprep.subr.bf16.mxu0 %v5207
    %6532 = vmatpush2.bf16.msra.mxu0 %v5206
    %6533 = vmatprep.subr.bf16.mxu0 %v5199
    %6534 = vmatpush2.bf16.msra.mxu0 %v5198
    %6535 = vmatprep.subr.bf16.mxu0 %v5191
    %6536 = vmatpush2.bf16.msra.mxu0 %v5190
    %6537 = vmatprep.subr.bf16.mxu0 %v5183
    %6538 = vmatpush2.bf16.msra.mxu0 %v5182
    %6539 = vmatprep.subr.bf16.mxu0 %v5175
    %6540 = vmatpush2.bf16.msra.mxu0 %v5174
    %6541 = vmatprep.subr.bf16.mxu0 %v5167
    %6542 = vmatpush2.bf16.msra.mxu0 %v5166
    %6543 = vmatprep.subr.bf16.mxu0 %v5159
    %6544 = vmatpush2.bf16.msra.mxu0 %v5158
    %6545 = vmatprep.subr.bf16.mxu0 %v5151
    %6546 = vmatpush2.bf16.msra.mxu0 %v5150
    %6547 = vmatprep.mubr.bf16.mxu0 %v2604
    %6548 = vmatmul.mubr.bf16.gmra.mxu0 %v2451
    %v6549 = vpop.f32.mrf.mxu0
    %v6550 = vadd.f32 %v6497, %v6549
    %v6551 = vpop.f32.mrf.mxu0
    %v6552 = vadd.f32 %v6499, %v6551
    %v6553 = vpop.f32.mrf.mxu0
    %v6554 = vadd.f32 %v6501, %v6553
    %v6555 = vpop.f32.mrf.mxu0
    %v6556 = vadd.f32 %v6503, %v6555
    %6557 = vmatprep.mubr.bf16.mxu0 %v2605
    %6558 = vmatmul.mubr.bf16.gmra.mxu0 %v2452
    %v6559 = vpop.f32.mrf.mxu0
    %v6560 = vadd.f32 %v6507, %v6559
    %v6561 = vpop.f32.mrf.mxu0
    %v6562 = vadd.f32 %v6509, %v6561
    %v6563 = vpop.f32.mrf.mxu0
    %v6564 = vadd.f32 %v6511, %v6563
    %v6565 = vpop.f32.mrf.mxu0
    %v6566 = vadd.f32 %v6513, %v6565
    %6567 = vdwg.mxu0
    %v6568 = vmax.f32 %v5914, 0.0
    %v6569 = vmax.f32 %v5916, 0.0
    %v6570 = vmax.f32 %v6126, 0.0
    %v6571 = vmax.f32 %v6128, 0.0
    %v6572 = vmax.f32 %v6338, 0.0
    %v6573 = vmax.f32 %v6340, 0.0
    %v6574 = vmax.f32 %v6550, 0.0
    %v6575 = vmax.f32 %v6552, 0.0
    %v6576 = vmax.f32 %v5918, 0.0
    %v6577 = vmax.f32 %v5920, 0.0
    %v6578 = vmax.f32 %v6130, 0.0
    %v6579 = vmax.f32 %v6132, 0.0
    %v6580 = vmax.f32 %v6342, 0.0
    %v6581 = vmax.f32 %v6344, 0.0
    %v6582 = vmax.f32 %v6554, 0.0
    %v6583 = vmax.f32 %v6556, 0.0
    %v6584 = vmax.f32 %v5924, 0.0
    %v6585 = vmax.f32 %v5926, 0.0
    %v6586 = vmax.f32 %v6136, 0.0
    %v6587 = vmax.f32 %v6138, 0.0
    %v6588 = vmax.f32 %v6348, 0.0
    %v6589 = vmax.f32 %v6350, 0.0
    %v6590 = vmax.f32 %v6560, 0.0
    %v6591 = vmax.f32 %v6562, 0.0
    %v6592 = vmax.f32 %v5928, 0.0
    %v6593 = vmax.f32 %v5930, 0.0
    %v6594 = vmax.f32 %v6140, 0.0
    %v6595 = vmax.f32 %v6142, 0.0
    %v6596 = vmax.f32 %v6352, 0.0
    %v6597 = vmax.f32 %v6354, 0.0
    %v6598 = vmax.f32 %v6564, 0.0
    %v6599 = vmax.f32 %v6566, 0.0
    %v6600 = vpack.c.bf16 %v6576, %v6568
    %v6601 = vpack.c.bf16 %v6577, %v6569
    %v6602 = vpack.c.bf16 %v6578, %v6570
    %v6603 = vpack.c.bf16 %v6579, %v6571
    %v6604 = vpack.c.bf16 %v6580, %v6572
    %v6605 = vpack.c.bf16 %v6581, %v6573
    %v6606 = vpack.c.bf16 %v6582, %v6574
    %v6607 = vpack.c.bf16 %v6583, %v6575
    %v6608 = vpack.c.bf16 %v6592, %v6584
    %v6609 = vpack.c.bf16 %v6593, %v6585
    %v6610 = vpack.c.bf16 %v6594, %v6586
    %v6611 = vpack.c.bf16 %v6595, %v6587
    %v6612 = vpack.c.bf16 %v6596, %v6588
    %v6613 = vpack.c.bf16 %v6597, %v6589
    %v6614 = vpack.c.bf16 %v6598, %v6590
    %v6615 = vpack.c.bf16 %v6599, %v6591
    %v6616 = vld [vmem:[%s7] sm:$0xf]
    %v6617 = vld [vmem:[%s7 + $0x4] sm:$0xf]
    %v6618 = vld [vmem:[%s7 + $0x8] sm:$0xf]
    %v6619 = vld [vmem:[%s7 + $0xc] sm:$0xf]
    %v6620 = vld [vmem:[%s7 + $0x10] sm:$0xf]
    %v6621 = vld [vmem:[%s7 + $0x14] sm:$0xf]
    %v6622 = vld [vmem:[%s7 + $0x18] sm:$0xf]
    %v6623 = vld [vmem:[%s7 + $0x1c] sm:$0xf]
    %v6624 = vld [vmem:[%s7 + $0x20] sm:$0xf]
    %v6625 = vld [vmem:[%s7 + $0x24] sm:$0xf]
    %v6626 = vld [vmem:[%s7 + $0x28] sm:$0xf]
    %v6627 = vld [vmem:[%s7 + $0x2c] sm:$0xf]
    %v6628 = vld [vmem:[%s7 + $0x30] sm:$0xf]
    %v6629 = vld [vmem:[%s7 + $0x34] sm:$0xf]
    %v6630 = vld [vmem:[%s7 + $0x38] sm:$0xf]
    %v6631 = vld [vmem:[%s7 + $0x3c] sm:$0xf]
    %v6632 = vld [vmem:[%s7 + $0x40] sm:$0xf]
    %v6633 = vld [vmem:[%s7 + $0x44] sm:$0xf]
    %v6634 = vld [vmem:[%s7 + $0x48] sm:$0xf]
    %v6635 = vld [vmem:[%s7 + $0x4c] sm:$0xf]
    %v6636 = vld [vmem:[%s7 + $0x50] sm:$0xf]
    %v6637 = vld [vmem:[%s7 + $0x54] sm:$0xf]
    %v6638 = vld [vmem:[%s7 + $0x58] sm:$0xf]
    %v6639 = vld [vmem:[%s7 + $0x5c] sm:$0xf]
    %v6640 = vld [vmem:[%s7 + $0x60] sm:$0xf]
    %v6641 = vld [vmem:[%s7 + $0x64] sm:$0xf]
    %v6642 = vld [vmem:[%s7 + $0x68] sm:$0xf]
    %v6643 = vld [vmem:[%s7 + $0x6c] sm:$0xf]
    %v6644 = vld [vmem:[%s7 + $0x70] sm:$0xf]
    %v6645 = vld [vmem:[%s7 + $0x74] sm:$0xf]
    %v6646 = vld [vmem:[%s7 + $0x78] sm:$0xf]
    %v6647 = vld [vmem:[%s7 + $0x7c] sm:$0xf]
    %v6648 = vld [vmem:[%s7 + $0x80] sm:$0xf]
    %v6649 = vld [vmem:[%s7 + $0x84] sm:$0xf]
    %v6650 = vld [vmem:[%s7 + $0x88] sm:$0xf]
    %v6651 = vld [vmem:[%s7 + $0x8c] sm:$0xf]
    %v6652 = vld [vmem:[%s7 + $0x90] sm:$0xf]
    %v6653 = vld [vmem:[%s7 + $0x94] sm:$0xf]
    %v6654 = vld [vmem:[%s7 + $0x98] sm:$0xf]
    %v6655 = vld [vmem:[%s7 + $0x9c] sm:$0xf]
    %v6656 = vld [vmem:[%s7 + $0xa0] sm:$0xf]
    %v6657 = vld [vmem:[%s7 + $0xa4] sm:$0xf]
    %v6658 = vld [vmem:[%s7 + $0xa8] sm:$0xf]
    %v6659 = vld [vmem:[%s7 + $0xac] sm:$0xf]
    %v6660 = vld [vmem:[%s7 + $0xb0] sm:$0xf]
    %v6661 = vld [vmem:[%s7 + $0xb4] sm:$0xf]
    %v6662 = vld [vmem:[%s7 + $0xb8] sm:$0xf]
    %v6663 = vld [vmem:[%s7 + $0xbc] sm:$0xf]
    %v6664 = vld [vmem:[%s7 + $0xc0] sm:$0xf]
    %v6665 = vld [vmem:[%s7 + $0xc4] sm:$0xf]
    %v6666 = vld [vmem:[%s7 + $0xc8] sm:$0xf]
    %v6667 = vld [vmem:[%s7 + $0xcc] sm:$0xf]
    %v6668 = vld [vmem:[%s7 + $0xd0] sm:$0xf]
    %v6669 = vld [vmem:[%s7 + $0xd4] sm:$0xf]
    %v6670 = vld [vmem:[%s7 + $0xd8] sm:$0xf]
    %v6671 = vld [vmem:[%s7 + $0xdc] sm:$0xf]
    %v6672 = vld [vmem:[%s7 + $0xe0] sm:$0xf]
    %v6673 = vld [vmem:[%s7 + $0xe4] sm:$0xf]
    %v6674 = vld [vmem:[%s7 + $0xe8] sm:$0xf]
    %v6675 = vld [vmem:[%s7 + $0xec] sm:$0xf]
    %v6676 = vld [vmem:[%s7 + $0xf0] sm:$0xf]
    %v6677 = vld [vmem:[%s7 + $0xf4] sm:$0xf]
    %v6678 = vld [vmem:[%s7 + $0xf8] sm:$0xf]
    %v6679 = vld [vmem:[%s7 + $0xfc] sm:$0xf]
    %v6680 = vld [vmem:[%s7 + $0x100] sm:$0xf]
    %v6681 = vld [vmem:[%s7 + $0x104] sm:$0xf]
    %v6682 = vld [vmem:[%s7 + $0x108] sm:$0xf]
    %v6683 = vld [vmem:[%s7 + $0x10c] sm:$0xf]
    %v6684 = vld [vmem:[%s7 + $0x110] sm:$0xf]
    %v6685 = vld [vmem:[%s7 + $0x114] sm:$0xf]
    %v6686 = vld [vmem:[%s7 + $0x118] sm:$0xf]
    %v6687 = vld [vmem:[%s7 + $0x11c] sm:$0xf]
    %v6688 = vld [vmem:[%s7 + $0x120] sm:$0xf]
    %v6689 = vld [vmem:[%s7 + $0x124] sm:$0xf]
    %v6690 = vld [vmem:[%s7 + $0x128] sm:$0xf]
    %v6691 = vld [vmem:[%s7 + $0x12c] sm:$0xf]
    %v6692 = vld [vmem:[%s7 + $0x130] sm:$0xf]
    %v6693 = vld [vmem:[%s7 + $0x134] sm:$0xf]
    %v6694 = vld [vmem:[%s7 + $0x138] sm:$0xf]
    %v6695 = vld [vmem:[%s7 + $0x13c] sm:$0xf]
    %v6696 = vld [vmem:[%s7 + $0x140] sm:$0xf]
    %v6697 = vld [vmem:[%s7 + $0x144] sm:$0xf]
    %v6698 = vld [vmem:[%s7 + $0x148] sm:$0xf]
    %v6699 = vld [vmem:[%s7 + $0x14c] sm:$0xf]
    %v6700 = vld [vmem:[%s7 + $0x150] sm:$0xf]
    %v6701 = vld [vmem:[%s7 + $0x154] sm:$0xf]
    %v6702 = vld [vmem:[%s7 + $0x158] sm:$0xf]
    %v6703 = vld [vmem:[%s7 + $0x15c] sm:$0xf]
    %v6704 = vld [vmem:[%s7 + $0x160] sm:$0xf]
    %v6705 = vld [vmem:[%s7 + $0x164] sm:$0xf]
    %v6706 = vld [vmem:[%s7 + $0x168] sm:$0xf]
    %v6707 = vld [vmem:[%s7 + $0x16c] sm:$0xf]
    %v6708 = vld [vmem:[%s7 + $0x170] sm:$0xf]
    %v6709 = vld [vmem:[%s7 + $0x174] sm:$0xf]
    %v6710 = vld [vmem:[%s7 + $0x178] sm:$0xf]
    %v6711 = vld [vmem:[%s7 + $0x17c] sm:$0xf]
    %v6712 = vld [vmem:[%s7 + $0x180] sm:$0xf]
    %v6713 = vld [vmem:[%s7 + $0x184] sm:$0xf]
    %v6714 = vld [vmem:[%s7 + $0x188] sm:$0xf]
    %v6715 = vld [vmem:[%s7 + $0x18c] sm:$0xf]
    %v6716 = vld [vmem:[%s7 + $0x190] sm:$0xf]
    %v6717 = vld [vmem:[%s7 + $0x194] sm:$0xf]
    %v6718 = vld [vmem:[%s7 + $0x198] sm:$0xf]
    %v6719 = vld [vmem:[%s7 + $0x19c] sm:$0xf]
    %v6720 = vld [vmem:[%s7 + $0x1a0] sm:$0xf]
    %v6721 = vld [vmem:[%s7 + $0x1a4] sm:$0xf]
    %v6722 = vld [vmem:[%s7 + $0x1a8] sm:$0xf]
    %v6723 = vld [vmem:[%s7 + $0x1ac] sm:$0xf]
    %v6724 = vld [vmem:[%s7 + $0x1b0] sm:$0xf]
    %v6725 = vld [vmem:[%s7 + $0x1b4] sm:$0xf]
    %v6726 = vld [vmem:[%s7 + $0x1b8] sm:$0xf]
    %v6727 = vld [vmem:[%s7 + $0x1bc] sm:$0xf]
    %v6728 = vld [vmem:[%s7 + $0x1c0] sm:$0xf]
    %v6729 = vld [vmem:[%s7 + $0x1c4] sm:$0xf]
    %v6730 = vld [vmem:[%s7 + $0x1c8] sm:$0xf]
    %v6731 = vld [vmem:[%s7 + $0x1cc] sm:$0xf]
    %v6732 = vld [vmem:[%s7 + $0x1d0] sm:$0xf]
    %v6733 = vld [vmem:[%s7 + $0x1d4] sm:$0xf]
    %v6734 = vld [vmem:[%s7 + $0x1d8] sm:$0xf]
    %v6735 = vld [vmem:[%s7 + $0x1dc] sm:$0xf]
    %v6736 = vld [vmem:[%s7 + $0x1e0] sm:$0xf]
    %v6737 = vld [vmem:[%s7 + $0x1e4] sm:$0xf]
    %v6738 = vld [vmem:[%s7 + $0x1e8] sm:$0xf]
    %v6739 = vld [vmem:[%s7 + $0x1ec] sm:$0xf]
    %v6740 = vld [vmem:[%s7 + $0x1f0] sm:$0xf]
    %v6741 = vld [vmem:[%s7 + $0x1f4] sm:$0xf]
    %v6742 = vld [vmem:[%s7 + $0x1f8] sm:$0xf]
    %v6743 = vld [vmem:[%s7 + $0x1fc] sm:$0xf]
    %v6744 = vld [vmem:[#allocation12] sm:$0x1]
    %v6746 = vlaneseq
    %v6747 = vshrl.u32 %v6746, 7
    %v6748 = vsub.s32 0, %v6747
    %v6749 = vrot.slane %v6744, %v6748
    %v6879 = vunpack.c.l.b16 %v6616
    %v6880 = vunpack.c.l.b16 %v6617
    %v6881 = vunpack.c.l.b16 %v6618
    %v6882 = vunpack.c.l.b16 %v6619
    %v6883 = vunpack.c.l.b16 %v6620
    %v6884 = vunpack.c.l.b16 %v6621
    %v6885 = vunpack.c.l.b16 %v6622
    %v6886 = vunpack.c.l.b16 %v6623
    %v6887 = vunpack.c.l.b16 %v6624
    %v6888 = vunpack.c.l.b16 %v6625
    %v6889 = vunpack.c.l.b16 %v6626
    %v6890 = vunpack.c.l.b16 %v6627
    %v6891 = vunpack.c.l.b16 %v6628
    %v6892 = vunpack.c.l.b16 %v6629
    %v6893 = vunpack.c.l.b16 %v6630
    %v6894 = vunpack.c.l.b16 %v6631
    %v6895 = vunpack.c.l.b16 %v6632
    %v6896 = vunpack.c.l.b16 %v6633
    %v6897 = vunpack.c.l.b16 %v6634
    %v6898 = vunpack.c.l.b16 %v6635
    %v6899 = vunpack.c.l.b16 %v6636
    %v6900 = vunpack.c.l.b16 %v6637
    %v6901 = vunpack.c.l.b16 %v6638
    %v6902 = vunpack.c.l.b16 %v6639
    %v6903 = vunpack.c.l.b16 %v6640
    %v6904 = vunpack.c.l.b16 %v6641
    %v6905 = vunpack.c.l.b16 %v6642
    %v6906 = vunpack.c.l.b16 %v6643
    %v6907 = vunpack.c.l.b16 %v6644
    %v6908 = vunpack.c.l.b16 %v6645
    %v6909 = vunpack.c.l.b16 %v6646
    %v6910 = vunpack.c.l.b16 %v6647
    %v6911 = vunpack.c.l.b16 %v6648
    %v6912 = vunpack.c.l.b16 %v6649
    %v6913 = vunpack.c.l.b16 %v6650
    %v6914 = vunpack.c.l.b16 %v6651
    %v6915 = vunpack.c.l.b16 %v6652
    %v6916 = vunpack.c.l.b16 %v6653
    %v6917 = vunpack.c.l.b16 %v6654
    %v6918 = vunpack.c.l.b16 %v6655
    %v6919 = vunpack.c.l.b16 %v6656
    %v6920 = vunpack.c.l.b16 %v6657
    %v6921 = vunpack.c.l.b16 %v6658
    %v6922 = vunpack.c.l.b16 %v6659
    %v6923 = vunpack.c.l.b16 %v6660
    %v6924 = vunpack.c.l.b16 %v6661
    %v6925 = vunpack.c.l.b16 %v6662
    %v6926 = vunpack.c.l.b16 %v6663
    %v6927 = vunpack.c.l.b16 %v6664
    %v6928 = vunpack.c.l.b16 %v6665
    %v6929 = vunpack.c.l.b16 %v6666
    %v6930 = vunpack.c.l.b16 %v6667
    %v6931 = vunpack.c.l.b16 %v6668
    %v6932 = vunpack.c.l.b16 %v6669
    %v6933 = vunpack.c.l.b16 %v6670
    %v6934 = vunpack.c.l.b16 %v6671
    %v6935 = vunpack.c.l.b16 %v6672
    %v6936 = vunpack.c.l.b16 %v6673
    %v6937 = vunpack.c.l.b16 %v6674
    %v6938 = vunpack.c.l.b16 %v6675
    %v6939 = vunpack.c.l.b16 %v6676
    %v6940 = vunpack.c.l.b16 %v6677
    %v6941 = vunpack.c.l.b16 %v6678
    %v6942 = vunpack.c.l.b16 %v6679
    %v6943 = vunpack.c.l.b16 %v6680
    %v6944 = vunpack.c.l.b16 %v6681
    %v6945 = vunpack.c.l.b16 %v6682
    %v6946 = vunpack.c.l.b16 %v6683
    %v6947 = vunpack.c.l.b16 %v6684
    %v6948 = vunpack.c.l.b16 %v6685
    %v6949 = vunpack.c.l.b16 %v6686
    %v6950 = vunpack.c.l.b16 %v6687
    %v6951 = vunpack.c.l.b16 %v6688
    %v6952 = vunpack.c.l.b16 %v6689
    %v6953 = vunpack.c.l.b16 %v6690
    %v6954 = vunpack.c.l.b16 %v6691
    %v6955 = vunpack.c.l.b16 %v6692
    %v6956 = vunpack.c.l.b16 %v6693
    %v6957 = vunpack.c.l.b16 %v6694
    %v6958 = vunpack.c.l.b16 %v6695
    %v6959 = vunpack.c.l.b16 %v6696
    %v6960 = vunpack.c.l.b16 %v6697
    %v6961 = vunpack.c.l.b16 %v6698
    %v6962 = vunpack.c.l.b16 %v6699
    %v6963 = vunpack.c.l.b16 %v6700
    %v6964 = vunpack.c.l.b16 %v6701
    %v6965 = vunpack.c.l.b16 %v6702
    %v6966 = vunpack.c.l.b16 %v6703
    %v6967 = vunpack.c.l.b16 %v6704
    %v6968 = vunpack.c.l.b16 %v6705
    %v6969 = vunpack.c.l.b16 %v6706
    %v6970 = vunpack.c.l.b16 %v6707
    %v6971 = vunpack.c.l.b16 %v6708
    %v6972 = vunpack.c.l.b16 %v6709
    %v6973 = vunpack.c.l.b16 %v6710
    %v6974 = vunpack.c.l.b16 %v6711
    %v6975 = vunpack.c.l.b16 %v6712
    %v6976 = vunpack.c.l.b16 %v6713
    %v6977 = vunpack.c.l.b16 %v6714
    %v6978 = vunpack.c.l.b16 %v6715
    %v6979 = vunpack.c.l.b16 %v6716
    %v6980 = vunpack.c.l.b16 %v6717
    %v6981 = vunpack.c.l.b16 %v6718
    %v6982 = vunpack.c.l.b16 %v6719
    %v6983 = vunpack.c.l.b16 %v6720
    %v6984 = vunpack.c.l.b16 %v6721
    %v6985 = vunpack.c.l.b16 %v6722
    %v6986 = vunpack.c.l.b16 %v6723
    %v6987 = vunpack.c.l.b16 %v6724
    %v6988 = vunpack.c.l.b16 %v6725
    %v6989 = vunpack.c.l.b16 %v6726
    %v6990 = vunpack.c.l.b16 %v6727
    %v6991 = vunpack.c.l.b16 %v6728
    %v6992 = vunpack.c.l.b16 %v6729
    %v6993 = vunpack.c.l.b16 %v6730
    %v6994 = vunpack.c.l.b16 %v6731
    %v6995 = vunpack.c.l.b16 %v6732
    %v6996 = vunpack.c.l.b16 %v6733
    %v6997 = vunpack.c.l.b16 %v6734
    %v6998 = vunpack.c.l.b16 %v6735
    %v6999 = vunpack.c.l.b16 %v6736
    %v7000 = vunpack.c.l.b16 %v6737
    %v7001 = vunpack.c.l.b16 %v6738
    %v7002 = vunpack.c.l.b16 %v6739
    %v7003 = vunpack.c.l.b16 %v6740
    %v7004 = vunpack.c.l.b16 %v6741
    %v7005 = vunpack.c.l.b16 %v6742
    %v7006 = vunpack.c.l.b16 %v6743
    %v7007 = vpack.c.b16 %v6880, %v6879
    %v7008 = vpack.c.b16 %v6882, %v6881
    %v7009 = vpack.c.b16 %v6884, %v6883
    %v7010 = vpack.c.b16 %v6886, %v6885
    %v7011 = vpack.c.b16 %v6888, %v6887
    %v7012 = vpack.c.b16 %v6890, %v6889
    %v7013 = vpack.c.b16 %v6892, %v6891
    %v7014 = vpack.c.b16 %v6894, %v6893
    %v7015 = vpack.c.b16 %v6896, %v6895
    %v7016 = vpack.c.b16 %v6898, %v6897
    %v7017 = vpack.c.b16 %v6900, %v6899
    %v7018 = vpack.c.b16 %v6902, %v6901
    %v7019 = vpack.c.b16 %v6904, %v6903
    %v7020 = vpack.c.b16 %v6906, %v6905
    %v7021 = vpack.c.b16 %v6908, %v6907
    %v7022 = vpack.c.b16 %v6910, %v6909
    %v7023 = vpack.c.b16 %v6912, %v6911
    %v7024 = vpack.c.b16 %v6914, %v6913
    %v7025 = vpack.c.b16 %v6916, %v6915
    %v7026 = vpack.c.b16 %v6918, %v6917
    %v7027 = vpack.c.b16 %v6920, %v6919
    %v7028 = vpack.c.b16 %v6922, %v6921
    %v7029 = vpack.c.b16 %v6924, %v6923
    %v7030 = vpack.c.b16 %v6926, %v6925
    %v7031 = vpack.c.b16 %v6928, %v6927
    %v7032 = vpack.c.b16 %v6930, %v6929
    %v7033 = vpack.c.b16 %v6932, %v6931
    %v7034 = vpack.c.b16 %v6934, %v6933
    %v7035 = vpack.c.b16 %v6936, %v6935
    %v7036 = vpack.c.b16 %v6938, %v6937
    %v7037 = vpack.c.b16 %v6940, %v6939
    %v7038 = vpack.c.b16 %v6942, %v6941
    %v7039 = vpack.c.b16 %v6944, %v6943
    %v7040 = vpack.c.b16 %v6946, %v6945
    %v7041 = vpack.c.b16 %v6948, %v6947
    %v7042 = vpack.c.b16 %v6950, %v6949
    %v7043 = vpack.c.b16 %v6952, %v6951
    %v7044 = vpack.c.b16 %v6954, %v6953
    %v7045 = vpack.c.b16 %v6956, %v6955
    %v7046 = vpack.c.b16 %v6958, %v6957
    %v7047 = vpack.c.b16 %v6960, %v6959
    %v7048 = vpack.c.b16 %v6962, %v6961
    %v7049 = vpack.c.b16 %v6964, %v6963
    %v7050 = vpack.c.b16 %v6966, %v6965
    %v7051 = vpack.c.b16 %v6968, %v6967
    %v7052 = vpack.c.b16 %v6970, %v6969
    %v7053 = vpack.c.b16 %v6972, %v6971
    %v7054 = vpack.c.b16 %v6974, %v6973
    %v7055 = vpack.c.b16 %v6976, %v6975
    %v7056 = vpack.c.b16 %v6978, %v6977
    %v7057 = vpack.c.b16 %v6980, %v6979
    %v7058 = vpack.c.b16 %v6982, %v6981
    %v7059 = vpack.c.b16 %v6984, %v6983
    %v7060 = vpack.c.b16 %v6986, %v6985
    %v7061 = vpack.c.b16 %v6988, %v6987
    %v7062 = vpack.c.b16 %v6990, %v6989
    %v7063 = vpack.c.b16 %v6992, %v6991
    %v7064 = vpack.c.b16 %v6994, %v6993
    %v7065 = vpack.c.b16 %v6996, %v6995
    %v7066 = vpack.c.b16 %v6998, %v6997
    %v7067 = vpack.c.b16 %v7000, %v6999
    %v7068 = vpack.c.b16 %v7002, %v7001
    %v7069 = vpack.c.b16 %v7004, %v7003
    %v7070 = vpack.c.b16 %v7006, %v7005
    %7135 = vmatprep.subr.bf16.mxu0 0
    %7136 = vmatpush1.bf16.msra.mxu0 %v7014
    %7137 = vmatprep.subr.bf16.mxu0 0
    %7138 = vmatpush1.bf16.msra.mxu0 %v7013
    %7139 = vmatprep.subr.bf16.mxu0 0
    %7140 = vmatpush1.bf16.msra.mxu0 %v7012
    %7141 = vmatprep.subr.bf16.mxu0 0
    %7142 = vmatpush1.bf16.msra.mxu0 %v7011
    %7143 = vmatprep.subr.bf16.mxu0 0
    %7144 = vmatpush1.bf16.msra.mxu0 %v7010
    %7145 = vmatprep.subr.bf16.mxu0 0
    %7146 = vmatpush1.bf16.msra.mxu0 %v7009
    %7147 = vmatprep.subr.bf16.mxu0 0
    %7148 = vmatpush1.bf16.msra.mxu0 %v7008
    %7149 = vmatprep.subr.bf16.mxu0 0
    %7150 = vmatpush1.bf16.msra.mxu0 %v7007
    %7151 = vmatprep.subr.bf16.mxu0 0
    %7152 = vmatpush2.bf16.msra.mxu0 %v7022
    %7153 = vmatprep.subr.bf16.mxu0 0
    %7154 = vmatpush2.bf16.msra.mxu0 %v7021
    %7155 = vmatprep.subr.bf16.mxu0 0
    %7156 = vmatpush2.bf16.msra.mxu0 %v7020
    %7157 = vmatprep.subr.bf16.mxu0 0
    %7158 = vmatpush2.bf16.msra.mxu0 %v7019
    %7159 = vmatprep.subr.bf16.mxu0 0
    %7160 = vmatpush2.bf16.msra.mxu0 %v7018
    %7161 = vmatprep.subr.bf16.mxu0 0
    %7162 = vmatpush2.bf16.msra.mxu0 %v7017
    %7163 = vmatprep.subr.bf16.mxu0 0
    %7164 = vmatpush2.bf16.msra.mxu0 %v7016
    %7165 = vmatprep.subr.bf16.mxu0 0
    %7166 = vmatpush2.bf16.msra.mxu0 %v7015
    %7167 = vmatprep.mubr.bf16.mxu0 %v6601
    %7168 = vmatmul.mubr.bf16.gmra.mxu0 %v6600
    %v7169 = vpop.f32.mrf.mxu0
    %v7170 = vadd.f32 %v6749, %v7169
    %v7171 = vpop.f32.mrf.mxu0
    %v7172 = vpop.f32.mrf.mxu0
    %v7173 = vadd.f32 %v6749, %v7172
    %v7174 = vpop.f32.mrf.mxu0
    %7175 = vmatprep.mubr.bf16.mxu0 %v6609
    %7176 = vmatmul.mubr.bf16.gmra.mxu0 %v6608
    %v7177 = vpop.f32.mrf.mxu0
    %v7178 = vadd.f32 %v6749, %v7177
    %v7179 = vpop.f32.mrf.mxu0
    %v7180 = vpop.f32.mrf.mxu0
    %v7181 = vadd.f32 %v6749, %v7180
    %v7182 = vpop.f32.mrf.mxu0
    %7183 = vdwg.mxu0
    %7184 = vmatprep.subr.bf16.mxu0 0
    %7185 = vmatpush1.bf16.msra.mxu0 %v7030
    %7186 = vmatprep.subr.bf16.mxu0 0
    %7187 = vmatpush1.bf16.msra.mxu0 %v7029
    %7188 = vmatprep.subr.bf16.mxu0 0
    %7189 = vmatpush1.bf16.msra.mxu0 %v7028
    %7190 = vmatprep.subr.bf16.mxu0 0
    %7191 = vmatpush1.bf16.msra.mxu0 %v7027
    %7192 = vmatprep.subr.bf16.mxu0 0
    %7193 = vmatpush1.bf16.msra.mxu0 %v7026
    %7194 = vmatprep.subr.bf16.mxu0 0
    %7195 = vmatpush1.bf16.msra.mxu0 %v7025
    %7196 = vmatprep.subr.bf16.mxu0 0
    %7197 = vmatpush1.bf16.msra.mxu0 %v7024
    %7198 = vmatprep.subr.bf16.mxu0 0
    %7199 = vmatpush1.bf16.msra.mxu0 %v7023
    %7200 = vmatprep.subr.bf16.mxu0 0
    %7201 = vmatpush2.bf16.msra.mxu0 %v7038
    %7202 = vmatprep.subr.bf16.mxu0 0
    %7203 = vmatpush2.bf16.msra.mxu0 %v7037
    %7204 = vmatprep.subr.bf16.mxu0 0
    %7205 = vmatpush2.bf16.msra.mxu0 %v7036
    %7206 = vmatprep.subr.bf16.mxu0 0
    %7207 = vmatpush2.bf16.msra.mxu0 %v7035
    %7208 = vmatprep.subr.bf16.mxu0 0
    %7209 = vmatpush2.bf16.msra.mxu0 %v7034
    %7210 = vmatprep.subr.bf16.mxu0 0
    %7211 = vmatpush2.bf16.msra.mxu0 %v7033
    %7212 = vmatprep.subr.bf16.mxu0 0
    %7213 = vmatpush2.bf16.msra.mxu0 %v7032
    %7214 = vmatprep.subr.bf16.mxu0 0
    %7215 = vmatpush2.bf16.msra.mxu0 %v7031
    %7216 = vmatprep.mubr.bf16.mxu0 %v6603
    %7217 = vmatmul.mubr.bf16.gmra.mxu0 %v6602
    %v7218 = vpop.f32.mrf.mxu0
    %v7219 = vadd.f32 %v7170, %v7218
    %v7220 = vpop.f32.mrf.mxu0
    %v7221 = vpop.f32.mrf.mxu0
    %v7222 = vadd.f32 %v7173, %v7221
    %v7223 = vpop.f32.mrf.mxu0
    %7224 = vmatprep.mubr.bf16.mxu0 %v6611
    %7225 = vmatmul.mubr.bf16.gmra.mxu0 %v6610
    %v7226 = vpop.f32.mrf.mxu0
    %v7227 = vadd.f32 %v7178, %v7226
    %v7228 = vpop.f32.mrf.mxu0
    %v7229 = vpop.f32.mrf.mxu0
    %v7230 = vadd.f32 %v7181, %v7229
    %v7231 = vpop.f32.mrf.mxu0
    %7232 = vdwg.mxu0
    %7233 = vmatprep.subr.bf16.mxu0 0
    %7234 = vmatpush1.bf16.msra.mxu0 %v7046
    %7235 = vmatprep.subr.bf16.mxu0 0
    %7236 = vmatpush1.bf16.msra.mxu0 %v7045
    %7237 = vmatprep.subr.bf16.mxu0 0
    %7238 = vmatpush1.bf16.msra.mxu0 %v7044
    %7239 = vmatprep.subr.bf16.mxu0 0
    %7240 = vmatpush1.bf16.msra.mxu0 %v7043
    %7241 = vmatprep.subr.bf16.mxu0 0
    %7242 = vmatpush1.bf16.msra.mxu0 %v7042
    %7243 = vmatprep.subr.bf16.mxu0 0
    %7244 = vmatpush1.bf16.msra.mxu0 %v7041
    %7245 = vmatprep.subr.bf16.mxu0 0
    %7246 = vmatpush1.bf16.msra.mxu0 %v7040
    %7247 = vmatprep.subr.bf16.mxu0 0
    %7248 = vmatpush1.bf16.msra.mxu0 %v7039
    %7249 = vmatprep.subr.bf16.mxu0 0
    %7250 = vmatpush2.bf16.msra.mxu0 %v7054
    %7251 = vmatprep.subr.bf16.mxu0 0
    %7252 = vmatpush2.bf16.msra.mxu0 %v7053
    %7253 = vmatprep.subr.bf16.mxu0 0
    %7254 = vmatpush2.bf16.msra.mxu0 %v7052
    %7255 = vmatprep.subr.bf16.mxu0 0
    %7256 = vmatpush2.bf16.msra.mxu0 %v7051
    %7257 = vmatprep.subr.bf16.mxu0 0
    %7258 = vmatpush2.bf16.msra.mxu0 %v7050
    %7259 = vmatprep.subr.bf16.mxu0 0
    %7260 = vmatpush2.bf16.msra.mxu0 %v7049
    %7261 = vmatprep.subr.bf16.mxu0 0
    %7262 = vmatpush2.bf16.msra.mxu0 %v7048
    %7263 = vmatprep.subr.bf16.mxu0 0
    %7264 = vmatpush2.bf16.msra.mxu0 %v7047
    %7265 = vmatprep.mubr.bf16.mxu0 %v6605
    %7266 = vmatmul.mubr.bf16.gmra.mxu0 %v6604
    %v7267 = vpop.f32.mrf.mxu0
    %v7268 = vadd.f32 %v7219, %v7267
    %v7269 = vpop.f32.mrf.mxu0
    %v7270 = vpop.f32.mrf.mxu0
    %v7271 = vadd.f32 %v7222, %v7270
    %v7272 = vpop.f32.mrf.mxu0
    %7273 = vmatprep.mubr.bf16.mxu0 %v6613
    %7274 = vmatmul.mubr.bf16.gmra.mxu0 %v6612
    %v7275 = vpop.f32.mrf.mxu0
    %v7276 = vadd.f32 %v7227, %v7275
    %v7277 = vpop.f32.mrf.mxu0
    %v7278 = vpop.f32.mrf.mxu0
    %v7279 = vadd.f32 %v7230, %v7278
    %v7280 = vpop.f32.mrf.mxu0
    %7281 = vdwg.mxu0
    %7282 = vmatprep.subr.bf16.mxu0 0
    %7283 = vmatpush1.bf16.msra.mxu0 %v7062
    %7284 = vmatprep.subr.bf16.mxu0 0
    %7285 = vmatpush1.bf16.msra.mxu0 %v7061
    %7286 = vmatprep.subr.bf16.mxu0 0
    %7287 = vmatpush1.bf16.msra.mxu0 %v7060
    %7288 = vmatprep.subr.bf16.mxu0 0
    %7289 = vmatpush1.bf16.msra.mxu0 %v7059
    %7290 = vmatprep.subr.bf16.mxu0 0
    %7291 = vmatpush1.bf16.msra.mxu0 %v7058
    %7292 = vmatprep.subr.bf16.mxu0 0
    %7293 = vmatpush1.bf16.msra.mxu0 %v7057
    %7294 = vmatprep.subr.bf16.mxu0 0
    %7295 = vmatpush1.bf16.msra.mxu0 %v7056
    %7296 = vmatprep.subr.bf16.mxu0 0
    %7297 = vmatpush1.bf16.msra.mxu0 %v7055
    %7298 = vmatprep.subr.bf16.mxu0 0
    %7299 = vmatpush2.bf16.msra.mxu0 %v7070
    %7300 = vmatprep.subr.bf16.mxu0 0
    %7301 = vmatpush2.bf16.msra.mxu0 %v7069
    %7302 = vmatprep.subr.bf16.mxu0 0
    %7303 = vmatpush2.bf16.msra.mxu0 %v7068
    %7304 = vmatprep.subr.bf16.mxu0 0
    %7305 = vmatpush2.bf16.msra.mxu0 %v7067
    %7306 = vmatprep.subr.bf16.mxu0 0
    %7307 = vmatpush2.bf16.msra.mxu0 %v7066
    %7308 = vmatprep.subr.bf16.mxu0 0
    %7309 = vmatpush2.bf16.msra.mxu0 %v7065
    %7310 = vmatprep.subr.bf16.mxu0 0
    %7311 = vmatpush2.bf16.msra.mxu0 %v7064
    %7312 = vmatprep.subr.bf16.mxu0 0
    %7313 = vmatpush2.bf16.msra.mxu0 %v7063
    %7314 = vmatprep.mubr.bf16.mxu0 %v6607
    %7315 = vmatmul.mubr.bf16.gmra.mxu0 %v6606
    %v7316 = vpop.f32.mrf.mxu0
    %v7317 = vadd.f32 %v7268, %v7316
    %v7318 = vpop.f32.mrf.mxu0
    %v7319 = vpop.f32.mrf.mxu0
    %v7320 = vadd.f32 %v7271, %v7319
    %v7321 = vpop.f32.mrf.mxu0
    %7322 = vmatprep.mubr.bf16.mxu0 %v6615
    %7323 = vmatmul.mubr.bf16.gmra.mxu0 %v6614
    %v7324 = vpop.f32.mrf.mxu0
    %v7325 = vadd.f32 %v7276, %v7324
    %v7326 = vpop.f32.mrf.mxu0
    %v7327 = vpop.f32.mrf.mxu0
    %v7328 = vadd.f32 %v7279, %v7327
    %v7329 = vpop.f32.mrf.mxu0
    %7330 = vdwg.mxu0
    %7335 = vrot.lane.b32.xlu0 %v7317, 127
    %v7336 = vpop.permute.xlu0 %7335
    %7337 = vrot.lane.b32.xlu0 %v7320, 127
    %v7338 = vpop.permute.xlu0 %7337
    %7339 = vrot.lane.b32.xlu0 %v7325, 127
    %v7340 = vpop.permute.xlu0 %7339
    %7341 = vrot.lane.b32.xlu0 %v7328, 127
    %v7342 = vpop.permute.xlu0 %7341
    %vm7347 = vcmask 64512
    %v7348 = vsel %vm7347, %v7336, 0.0
    %7349 = vadd.xlane.f32.xlu0 %v7348
    %v7350 = vpop.xlane.xlu0 %7349
    %v7351 = vsel %vm7347, %v7338, 0.0
    %7352 = vadd.xlane.f32.xlu0 %v7351
    %v7353 = vpop.xlane.xlu0 %7352
    %v7354 = vsel %vm7347, %v7340, 0.0
    %7355 = vadd.xlane.f32.xlu0 %v7354
    %v7356 = vpop.xlane.xlu0 %7355
    %v7357 = vsel %vm7347, %v7342, 0.0
    %7358 = vadd.xlane.f32.xlu0 %v7357
    %v7359 = vpop.xlane.xlu0 %7358
    %v7360 = vmul.f32 %v7350, 0.125
    %v7361 = vmul.f32 %v7353, 0.125
    %v7362 = vmul.f32 %v7356, 0.125
    %v7363 = vmul.f32 %v7359, 0.125
    %v7364 = vsub.f32 %v7317, %v7360
    %v7365 = vsub.f32 %v7320, %v7361
    %v7366 = vsub.f32 %v7325, %v7362
    %v7367 = vsub.f32 %v7328, %v7363
    %7368 = vset.pattern.permute.xlu0 0
    %7369 = vperm.xlu0 %7368, %v7317
    %v7370 = vpop.permute.xlu0 %7369
    %7372 = vset.pattern.permute.xlu0 0
    %7373 = vperm.xlu0 %7372, %v7320
    %v7374 = vpop.permute.xlu0 %7373
    %7376 = vset.pattern.permute.xlu0 0
    %7377 = vperm.xlu0 %7376, %v7325
    %v7378 = vpop.permute.xlu0 %7377
    %7380 = vset.pattern.permute.xlu0 0
    %7381 = vperm.xlu0 %7380, %v7328
    %v7382 = vpop.permute.xlu0 %7381
    %v7384 = vadd.f32 %v7370, %v7364
    %v7385 = vadd.f32 %v7374, %v7365
    %v7386 = vadd.f32 %v7378, %v7366
    %v7387 = vadd.f32 %v7382, %v7367
    %7392 = vrot.lane.b32.xlu0 %v7384, 127
    %v7393 = vpop.permute.xlu0 %7392
    %7394 = vrot.lane.b32.xlu0 %v7385, 127
    %v7395 = vpop.permute.xlu0 %7394
    %7396 = vrot.lane.b32.xlu0 %v7386, 127
    %v7397 = vpop.permute.xlu0 %7396
    %7398 = vrot.lane.b32.xlu0 %v7387, 127
    %v7399 = vpop.permute.xlu0 %7398
    %7404 = vst.msk [vmem:[%s9] sm:$0xff] %vm7347, %v7393
    %7405 = vst.msk [vmem:[%s9 + $0x8] sm:$0xff] %vm7347, %v7395
    %7406 = vst.msk [vmem:[%s9 + $0x10] sm:$0xff] %vm7347, %v7397
    %7407 = vst.msk [vmem:[%s9 + $0x18] sm:$0xff] %vm7347, %v7399
    // Predicated region
    $region66: #{tpu_custom_call.1} parent=1 // pred_check
      _
    $region67: #{tpu_custom_call.1} parent=1 // pred_check_branch
      %7409 = sbr.rel (0) target = $region69
    $region68: #{tpu_custom_call.1} parent=1 // pred_region
      _
    $region69: #{tpu_custom_call.1} parent=1 // pred_fallthru
      _
    // Predicated region
    $region70: #{tpu_custom_call.1} parent=1 // pred_check
      _
    $region71: #{tpu_custom_call.1} parent=1 // pred_check_branch
      %7411 = sbr.rel (0) target = $region73
    $region72: #{tpu_custom_call.1} parent=1 // pred_region
      _
    $region73: #{tpu_custom_call.1} parent=1 // pred_fallthru
      _
    %7412 = vsyncpa [#allocation3], 1
    %7413 = vsyncpa [#allocation5], 1
    %7414 = vsyncpa [#allocation8], 1
    %7415 = vsyncpa [#allocation11], 1

</llo_original>
